<compile_context>
chip_gen: v5e
topology: v5e:2x2
jax: 0.10.0
libtpu: 0.0.40
codegen_flags: <defaults>
</compile_context>

<pallas_src>
import functools

import jax
import jax.numpy as jnp
from jax import lax
from jax.experimental import pallas as pl
from jax.experimental.pallas import tpu as pltpu

K = 7      # conv kernel size
DIL = 3    # dilation
PAD = 9    # padding -> effective span 3*(7-1)+1 = 19, out spatial == in spatial


def _sam_kernel(w_ref, b_ref, x_ref, o_ref, att_pad, *, C, INC, H, W):
    # w_ref:   SMEM (INC*2*K*K,)  conv weight, row-major [oc, cin, kh, kw]
    # b_ref:   SMEM (INC,)        conv bias
    # x_ref:   VMEM (1, C, H, W)  one batch element (native dtype)
    # o_ref:   VMEM (1, INC, H, W)
    # att_pad: VMEM scratch (2, H + 2*PAD, W + 2*PAD) float32
    Hp = H + 2 * PAD
    Wp = W + 2 * PAD

    # Channel mean / max, accumulated in f32.  mean = sum * (1/C) (constant mul,
    # no VALU divide).
    x = x_ref[0].astype(jnp.float32)                       # (C, H, W)
    mean_map = jnp.sum(x, axis=0) * jnp.float32(1.0 / C)   # (H, W)
    max_map = jnp.max(x, axis=0)                           # (H, W)

    # Zero ONLY the padding frame; the interior is fully overwritten below.
    for cin in range(2):
        att_pad[cin, 0:PAD, 0:Wp] = jnp.zeros((PAD, Wp), jnp.float32)
        att_pad[cin, PAD + H:Hp, 0:Wp] = jnp.zeros((PAD, Wp), jnp.float32)
        att_pad[cin, PAD:PAD + H, 0:PAD] = jnp.zeros((H, PAD), jnp.float32)
        att_pad[cin, PAD:PAD + H, PAD + W:Wp] = jnp.zeros((H, PAD), jnp.float32)

    att_pad[0, PAD:PAD + H, PAD:PAD + W] = mean_map
    att_pad[1, PAD:PAD + H, PAD:PAD + W] = max_map

    # Dilated 7x7 conv: tap-outer / oc-inner, so only INC accumulators plus a
    # single (H, W) window are live at any time (no vreg spills).
    accs = [jnp.full((H, W), b_ref[oc], dtype=jnp.float32) for oc in range(INC)]
    for cin in range(2):
        for kh in range(K):
            r0 = DIL * kh
            for kw in range(K):
                c0 = DIL * kw
                win = att_pad[cin, r0:r0 + H, c0:c0 + W]   # (H, W), one live window
                tap = (cin * K + kh) * K + kw
                for oc in range(INC):
                    accs[oc] = accs[oc] + w_ref[oc * (2 * K * K) + tap] * win

    for oc in range(INC):
        o_ref[0, oc] = jax.nn.sigmoid(accs[oc]).astype(o_ref.dtype)


def spatial_attention(x, weight, bias):
    """x: (N, C, H, W); weight: (INC, 2, 7, 7); bias: (INC,). Returns f32 (N, INC, H, W)."""
    N, C, H, W = x.shape
    INC = weight.shape[0]
    w_flat = weight.reshape(-1).astype(jnp.float32)
    b = bias.astype(jnp.float32)

    kernel = functools.partial(_sam_kernel, C=C, INC=INC, H=H, W=W)
    return pl.pallas_call(
        kernel,
        out_shape=jax.ShapeDtypeStruct((N, INC, H, W), jnp.float32),
        grid_spec=pltpu.PrefetchScalarGridSpec(
            num_scalar_prefetch=0,
            grid=(N,),
            in_specs=[
                pl.BlockSpec(memory_space=pltpu.MemorySpace.SMEM),   # conv weight (scalars)
                pl.BlockSpec(memory_space=pltpu.MemorySpace.SMEM),   # conv bias
                pl.BlockSpec((1, C, H, W), lambda n: (n, 0, 0, 0)),  # x, native dtype
            ],
            out_specs=pl.BlockSpec((1, INC, H, W), lambda n: (n, 0, 0, 0)),
            scratch_shapes=[
                pltpu.VMEM((2, H + 2 * PAD, W + 2 * PAD), jnp.float32),
            ],
        ),
        compiler_params=pltpu.CompilerParams(dimension_semantics=("parallel",)),
    )(w_flat, b, x)


def _reference(x, weight, bias):
    """Pure-JAX reference mirroring the PyTorch module."""
    avg = jnp.mean(x, axis=1, keepdims=True)
    mx = jnp.max(x, axis=1, keepdims=True)
    att = jnp.concatenate([avg, mx], axis=1)                 # (N, 2, H, W)
    out = lax.conv_general_dilated(
        att, weight,
        window_strides=(1, 1),
        padding=[(PAD, PAD), (PAD, PAD)],
        rhs_dilation=(DIL, DIL),
        dimension_numbers=("NCHW", "OIHW", "NCHW"),
    )
    out = out + bias[None, :, None, None]
    return jax.nn.sigmoid(out)


if __name__ == "__main__":
    N, C, H, W = 2, 4, 16, 16
    INC = 4  # module __init__ arg `inc`

    key = jax.random.PRNGKey(0)
    kx, kw, kb = jax.random.split(key, 3)
    x = jax.random.normal(kx, (N, C, H, W), dtype=jnp.float32)
    weight = jax.random.normal(kw, (INC, 2, K, K), dtype=jnp.float32) * 0.1
    bias = jax.random.normal(kb, (INC,), dtype=jnp.float32) * 0.1

    out = spatial_attention(x, weight, bias)
    out = jax.block_until_ready(out)

    ref = _reference(x, weight, bias)
    assert out.shape == (N, INC, H, W), out.shape
    assert jnp.allclose(out, ref, rtol=1e-5, atol=1e-5), float(
        jnp.max(jnp.abs(out - ref))
    )
    print("KERNEL_OK")
</pallas_src>

<mosaic_0001>
module attributes {stable_mosaic.version = 11 : i64} {
  func.func @_sam_kernel(%arg0: i32, %arg1: memref<392xf32, #tpu.memory_space<smem>>, %arg2: memref<4xf32, #tpu.memory_space<smem>>, %arg3: memref<1x4x16x16xf32, #tpu.memory_space<vmem>>, %arg4: memref<1x4x16x16xf32, #tpu.memory_space<vmem>>, %arg5: memref<2x34x34xf32, #tpu.memory_space<vmem>>) attributes {dimension_semantics = [#tpu.dimension_semantics<parallel>], iteration_bounds = array<i64: 2>, scalar_prefetch = 0 : i64, scratch_operands = 1 : i64, tpu.core_type = #tpu.core_type<tc>, window_params = [{transform_indices = @transform_0, window_bounds = array<i64: 392>}, {transform_indices = @transform_1, window_bounds = array<i64: 4>}, {transform_indices = @transform_2, window_bounds = array<i64: 1, 4, 16, 16>}, {transform_indices = @transform_3, window_bounds = array<i64: 1, 4, 16, 16>}]} {
    %c0 = arith.constant 0 : index
    %c0_0 = arith.constant 0 : index
    %c0_1 = arith.constant 0 : index
    %c0_2 = arith.constant 0 : index
    %0 = vector.load %arg3[%c0, %c0_0, %c0_1, %c0_2] : memref<1x4x16x16xf32, #tpu.memory_space<vmem>>, vector<1x4x16x16xf32>
    %1 = vector.shape_cast %0 : vector<1x4x16x16xf32> to vector<4x16x16xf32>
    %cst = arith.constant dense<0.000000e+00> : vector<16x16xf32>
    %2 = vector.multi_reduction <add>, %1, %cst [0] : vector<4x16x16xf32> to vector<16x16xf32>
    %cst_3 = arith.constant 2.500000e-01 : f32
    %3 = vector.broadcast %cst_3 : f32 to vector<16x16xf32>
    %4 = arith.mulf %2, %3 : vector<16x16xf32>
    %cst_4 = arith.constant dense<0xFF800000> : vector<16x16xf32>
    %5 = vector.multi_reduction <maximumf>, %1, %cst_4 [0] : vector<4x16x16xf32> to vector<16x16xf32>
    %cst_5 = arith.constant 0.000000e+00 : f32
    %6 = vector.broadcast %cst_5 : f32 to vector<9x34xf32>
    %c0_6 = arith.constant 0 : index
    %c0_7 = arith.constant 0 : index
    %c0_8 = arith.constant 0 : index
    %7 = vector.load %arg5[%c0_6, %c0_7, %c0_8] : memref<2x34x34xf32, #tpu.memory_space<vmem>>, vector<1x9x34xf32>
    %8 = vector.shape_cast %7 : vector<1x9x34xf32> to vector<9x34xf32>
    %9 = vector.shape_cast %6 : vector<9x34xf32> to vector<1x9x34xf32>
    tpu.vector_store %arg5[%c0_6, %c0_7, %c0_8], %9 {strides = array<i32>} : memref<2x34x34xf32, #tpu.memory_space<vmem>>, vector<1x9x34xf32>,
    %cst_9 = arith.constant 0.000000e+00 : f32
    %10 = vector.broadcast %cst_9 : f32 to vector<9x34xf32>
    %c0_10 = arith.constant 0 : index
    %c25 = arith.constant 25 : index
    %c0_11 = arith.constant 0 : index
    %11 = vector.load %arg5[%c0_10, %c25, %c0_11] : memref<2x34x34xf32, #tpu.memory_space<vmem>>, vector<1x9x34xf32>
    %12 = vector.shape_cast %11 : vector<1x9x34xf32> to vector<9x34xf32>
    %13 = vector.shape_cast %10 : vector<9x34xf32> to vector<1x9x34xf32>
    tpu.vector_store %arg5[%c0_10, %c25, %c0_11], %13 {strides = array<i32>} : memref<2x34x34xf32, #tpu.memory_space<vmem>>, vector<1x9x34xf32>,
    %cst_12 = arith.constant 0.000000e+00 : f32
    %14 = vector.broadcast %cst_12 : f32 to vector<16x9xf32>
    %c0_13 = arith.constant 0 : index
    %c9 = arith.constant 9 : index
    %c0_14 = arith.constant 0 : index
    %15 = vector.load %arg5[%c0_13, %c9, %c0_14] : memref<2x34x34xf32, #tpu.memory_space<vmem>>, vector<1x16x9xf32>
    %16 = vector.shape_cast %15 : vector<1x16x9xf32> to vector<16x9xf32>
    %17 = vector.shape_cast %14 : vector<16x9xf32> to vector<1x16x9xf32>
    tpu.vector_store %arg5[%c0_13, %c9, %c0_14], %17 {strides = array<i32>} : memref<2x34x34xf32, #tpu.memory_space<vmem>>, vector<1x16x9xf32>,
    %cst_15 = arith.constant 0.000000e+00 : f32
    %18 = vector.broadcast %cst_15 : f32 to vector<16x9xf32>
    %c0_16 = arith.constant 0 : index
    %c9_17 = arith.constant 9 : index
    %c25_18 = arith.constant 25 : index
    %19 = vector.load %arg5[%c0_16, %c9_17, %c25_18] : memref<2x34x34xf32, #tpu.memory_space<vmem>>, vector<1x16x9xf32>
    %20 = vector.shape_cast %19 : vector<1x16x9xf32> to vector<16x9xf32>
    %21 = vector.shape_cast %18 : vector<16x9xf32> to vector<1x16x9xf32>
    tpu.vector_store %arg5[%c0_16, %c9_17, %c25_18], %21 {strides = array<i32>} : memref<2x34x34xf32, #tpu.memory_space<vmem>>, vector<1x16x9xf32>,
    %cst_19 = arith.constant 0.000000e+00 : f32
    %22 = vector.broadcast %cst_19 : f32 to vector<9x34xf32>
    %c1 = arith.constant 1 : index
    %c0_20 = arith.constant 0 : index
    %c0_21 = arith.constant 0 : index
    %23 = vector.load %arg5[%c1, %c0_20, %c0_21] : memref<2x34x34xf32, #tpu.memory_space<vmem>>, vector<1x9x34xf32>
    %24 = vector.shape_cast %23 : vector<1x9x34xf32> to vector<9x34xf32>
    %25 = vector.shape_cast %22 : vector<9x34xf32> to vector<1x9x34xf32>
    tpu.vector_store %arg5[%c1, %c0_20, %c0_21], %25 {strides = array<i32>} : memref<2x34x34xf32, #tpu.memory_space<vmem>>, vector<1x9x34xf32>,
    %cst_22 = arith.constant 0.000000e+00 : f32
    %26 = vector.broadcast %cst_22 : f32 to vector<9x34xf32>
    %c1_23 = arith.constant 1 : index
    %c25_24 = arith.constant 25 : index
    %c0_25 = arith.constant 0 : index
    %27 = vector.load %arg5[%c1_23, %c25_24, %c0_25] : memref<2x34x34xf32, #tpu.memory_space<vmem>>, vector<1x9x34xf32>
    %28 = vector.shape_cast %27 : vector<1x9x34xf32> to vector<9x34xf32>
    %29 = vector.shape_cast %26 : vector<9x34xf32> to vector<1x9x34xf32>
    tpu.vector_store %arg5[%c1_23, %c25_24, %c0_25], %29 {strides = array<i32>} : memref<2x34x34xf32, #tpu.memory_space<vmem>>, vector<1x9x34xf32>,
    %cst_26 = arith.constant 0.000000e+00 : f32
    %30 = vector.broadcast %cst_26 : f32 to vector<16x9xf32>
    %c1_27 = arith.constant 1 : index
    %c9_28 = arith.constant 9 : index
    %c0_29 = arith.constant 0 : index
    %31 = vector.load %arg5[%c1_27, %c9_28, %c0_29] : memref<2x34x34xf32, #tpu.memory_space<vmem>>, vector<1x16x9xf32>
    %32 = vector.shape_cast %31 : vector<1x16x9xf32> to vector<16x9xf32>
    %33 = vector.shape_cast %30 : vector<16x9xf32> to vector<1x16x9xf32>
    tpu.vector_store %arg5[%c1_27, %c9_28, %c0_29], %33 {strides = array<i32>} : memref<2x34x34xf32, #tpu.memory_space<vmem>>, vector<1x16x9xf32>,
    %cst_30 = arith.constant 0.000000e+00 : f32
    %34 = vector.broadcast %cst_30 : f32 to vector<16x9xf32>
    %c1_31 = arith.constant 1 : index
    %c9_32 = arith.constant 9 : index
    %c25_33 = arith.constant 25 : index
    %35 = vector.load %arg5[%c1_31, %c9_32, %c25_33] : memref<2x34x34xf32, #tpu.memory_space<vmem>>, vector<1x16x9xf32>
    %36 = vector.shape_cast %35 : vector<1x16x9xf32> to vector<16x9xf32>
    %37 = vector.shape_cast %34 : vector<16x9xf32> to vector<1x16x9xf32>
    tpu.vector_store %arg5[%c1_31, %c9_32, %c25_33], %37 {strides = array<i32>} : memref<2x34x34xf32, #tpu.memory_space<vmem>>, vector<1x16x9xf32>,
    %c0_34 = arith.constant 0 : index
    %c9_35 = arith.constant 9 : index
    %c9_36 = arith.constant 9 : index
    %38 = vector.load %arg5[%c0_34, %c9_35, %c9_36] : memref<2x34x34xf32, #tpu.memory_space<vmem>>, vector<1x16x16xf32>
    %39 = vector.shape_cast %38 : vector<1x16x16xf32> to vector<16x16xf32>
    %40 = vector.shape_cast %4 : vector<16x16xf32> to vector<1x16x16xf32>
    tpu.vector_store %arg5[%c0_34, %c9_35, %c9_36], %40 {strides = array<i32>} : memref<2x34x34xf32, #tpu.memory_space<vmem>>, vector<1x16x16xf32>,
    %c1_37 = arith.constant 1 : index
    %c9_38 = arith.constant 9 : index
    %c9_39 = arith.constant 9 : index
    %41 = vector.load %arg5[%c1_37, %c9_38, %c9_39] : memref<2x34x34xf32, #tpu.memory_space<vmem>>, vector<1x16x16xf32>
    %42 = vector.shape_cast %41 : vector<1x16x16xf32> to vector<16x16xf32>
    %43 = vector.shape_cast %5 : vector<16x16xf32> to vector<1x16x16xf32>
    tpu.vector_store %arg5[%c1_37, %c9_38, %c9_39], %43 {strides = array<i32>} : memref<2x34x34xf32, #tpu.memory_space<vmem>>, vector<1x16x16xf32>,
    %c0_40 = arith.constant 0 : index
    %44 = memref.load %arg2[%c0_40] : memref<4xf32, #tpu.memory_space<smem>>
    %45 = vector.broadcast %44 : f32 to vector<16x16xf32>
    %c1_41 = arith.constant 1 : index
    %46 = memref.load %arg2[%c1_41] : memref<4xf32, #tpu.memory_space<smem>>
    %47 = vector.broadcast %46 : f32 to vector<16x16xf32>
    %c2 = arith.constant 2 : index
    %48 = memref.load %arg2[%c2] : memref<4xf32, #tpu.memory_space<smem>>
    %49 = vector.broadcast %48 : f32 to vector<16x16xf32>
    %c3 = arith.constant 3 : index
    %50 = memref.load %arg2[%c3] : memref<4xf32, #tpu.memory_space<smem>>
    %51 = vector.broadcast %50 : f32 to vector<16x16xf32>
    %c0_42 = arith.constant 0 : index
    %c0_43 = arith.constant 0 : index
    %c0_44 = arith.constant 0 : index
    %52 = vector.load %arg5[%c0_42, %c0_43, %c0_44] : memref<2x34x34xf32, #tpu.memory_space<vmem>>, vector<1x16x16xf32>
    %53 = vector.shape_cast %52 : vector<1x16x16xf32> to vector<16x16xf32>
    %c0_45 = arith.constant 0 : index
    %54 = memref.load %arg1[%c0_45] : memref<392xf32, #tpu.memory_space<smem>>
    %55 = vector.broadcast %54 : f32 to vector<16x16xf32>
    %56 = arith.mulf %55, %53 : vector<16x16xf32>
    %57 = arith.addf %45, %56 : vector<16x16xf32>
    %c98 = arith.constant 98 : index
    %58 = memref.load %arg1[%c98] : memref<392xf32, #tpu.memory_space<smem>>
    %59 = vector.broadcast %58 : f32 to vector<16x16xf32>
    %60 = arith.mulf %59, %53 : vector<16x16xf32>
    %61 = arith.addf %47, %60 : vector<16x16xf32>
    %c196 = arith.constant 196 : index
    %62 = memref.load %arg1[%c196] : memref<392xf32, #tpu.memory_space<smem>>
    %63 = vector.broadcast %62 : f32 to vector<16x16xf32>
    %64 = arith.mulf %63, %53 : vector<16x16xf32>
    %65 = arith.addf %49, %64 : vector<16x16xf32>
    %c294 = arith.constant 294 : index
    %66 = memref.load %arg1[%c294] : memref<392xf32, #tpu.memory_space<smem>>
    %67 = vector.broadcast %66 : f32 to vector<16x16xf32>
    %68 = arith.mulf %67, %53 : vector<16x16xf32>
    %69 = arith.addf %51, %68 : vector<16x16xf32>
    %c0_46 = arith.constant 0 : index
    %c0_47 = arith.constant 0 : index
    %c3_48 = arith.constant 3 : index
    %70 = vector.load %arg5[%c0_46, %c0_47, %c3_48] : memref<2x34x34xf32, #tpu.memory_space<vmem>>, vector<1x16x16xf32>
    %71 = vector.shape_cast %70 : vector<1x16x16xf32> to vector<16x16xf32>
    %c1_49 = arith.constant 1 : index
    %72 = memref.load %arg1[%c1_49] : memref<392xf32, #tpu.memory_space<smem>>
    %73 = vector.broadcast %72 : f32 to vector<16x16xf32>
    %74 = arith.mulf %73, %71 : vector<16x16xf32>
    %75 = arith.addf %57, %74 : vector<16x16xf32>
    %c99 = arith.constant 99 : index
    %76 = memref.load %arg1[%c99] : memref<392xf32, #tpu.memory_space<smem>>
    %77 = vector.broadcast %76 : f32 to vector<16x16xf32>
    %78 = arith.mulf %77, %71 : vector<16x16xf32>
    %79 = arith.addf %61, %78 : vector<16x16xf32>
    %c197 = arith.constant 197 : index
    %80 = memref.load %arg1[%c197] : memref<392xf32, #tpu.memory_space<smem>>
    %81 = vector.broadcast %80 : f32 to vector<16x16xf32>
    %82 = arith.mulf %81, %71 : vector<16x16xf32>
    %83 = arith.addf %65, %82 : vector<16x16xf32>
    %c295 = arith.constant 295 : index
    %84 = memref.load %arg1[%c295] : memref<392xf32, #tpu.memory_space<smem>>
    %85 = vector.broadcast %84 : f32 to vector<16x16xf32>
    %86 = arith.mulf %85, %71 : vector<16x16xf32>
    %87 = arith.addf %69, %86 : vector<16x16xf32>
    %c0_50 = arith.constant 0 : index
    %c0_51 = arith.constant 0 : index
    %c6 = arith.constant 6 : index
    %88 = vector.load %arg5[%c0_50, %c0_51, %c6] : memref<2x34x34xf32, #tpu.memory_space<vmem>>, vector<1x16x16xf32>
    %89 = vector.shape_cast %88 : vector<1x16x16xf32> to vector<16x16xf32>
    %c2_52 = arith.constant 2 : index
    %90 = memref.load %arg1[%c2_52] : memref<392xf32, #tpu.memory_space<smem>>
    %91 = vector.broadcast %90 : f32 to vector<16x16xf32>
    %92 = arith.mulf %91, %89 : vector<16x16xf32>
    %93 = arith.addf %75, %92 : vector<16x16xf32>
    %c100 = arith.constant 100 : index
    %94 = memref.load %arg1[%c100] : memref<392xf32, #tpu.memory_space<smem>>
    %95 = vector.broadcast %94 : f32 to vector<16x16xf32>
    %96 = arith.mulf %95, %89 : vector<16x16xf32>
    %97 = arith.addf %79, %96 : vector<16x16xf32>
    %c198 = arith.constant 198 : index
    %98 = memref.load %arg1[%c198] : memref<392xf32, #tpu.memory_space<smem>>
    %99 = vector.broadcast %98 : f32 to vector<16x16xf32>
    %100 = arith.mulf %99, %89 : vector<16x16xf32>
    %101 = arith.addf %83, %100 : vector<16x16xf32>
    %c296 = arith.constant 296 : index
    %102 = memref.load %arg1[%c296] : memref<392xf32, #tpu.memory_space<smem>>
    %103 = vector.broadcast %102 : f32 to vector<16x16xf32>
    %104 = arith.mulf %103, %89 : vector<16x16xf32>
    %105 = arith.addf %87, %104 : vector<16x16xf32>
    %c0_53 = arith.constant 0 : index
    %c0_54 = arith.constant 0 : index
    %c9_55 = arith.constant 9 : index
    %106 = vector.load %arg5[%c0_53, %c0_54, %c9_55] : memref<2x34x34xf32, #tpu.memory_space<vmem>>, vector<1x16x16xf32>
    %107 = vector.shape_cast %106 : vector<1x16x16xf32> to vector<16x16xf32>
    %c3_56 = arith.constant 3 : index
    %108 = memref.load %arg1[%c3_56] : memref<392xf32, #tpu.memory_space<smem>>
    %109 = vector.broadcast %108 : f32 to vector<16x16xf32>
    %110 = arith.mulf %109, %107 : vector<16x16xf32>
    %111 = arith.addf %93, %110 : vector<16x16xf32>
    %c101 = arith.constant 101 : index
    %112 = memref.load %arg1[%c101] : memref<392xf32, #tpu.memory_space<smem>>
    %113 = vector.broadcast %112 : f32 to vector<16x16xf32>
    %114 = arith.mulf %113, %107 : vector<16x16xf32>
    %115 = arith.addf %97, %114 : vector<16x16xf32>
    %c199 = arith.constant 199 : index
    %116 = memref.load %arg1[%c199] : memref<392xf32, #tpu.memory_space<smem>>
    %117 = vector.broadcast %116 : f32 to vector<16x16xf32>
    %118 = arith.mulf %117, %107 : vector<16x16xf32>
    %119 = arith.addf %101, %118 : vector<16x16xf32>
    %c297 = arith.constant 297 : index
    %120 = memref.load %arg1[%c297] : memref<392xf32, #tpu.memory_space<smem>>
    %121 = vector.broadcast %120 : f32 to vector<16x16xf32>
    %122 = arith.mulf %121, %107 : vector<16x16xf32>
    %123 = arith.addf %105, %122 : vector<16x16xf32>
    %c0_57 = arith.constant 0 : index
    %c0_58 = arith.constant 0 : index
    %c12 = arith.constant 12 : index
    %124 = vector.load %arg5[%c0_57, %c0_58, %c12] : memref<2x34x34xf32, #tpu.memory_space<vmem>>, vector<1x16x16xf32>
    %125 = vector.shape_cast %124 : vector<1x16x16xf32> to vector<16x16xf32>
    %c4 = arith.constant 4 : index
    %126 = memref.load %arg1[%c4] : memref<392xf32, #tpu.memory_space<smem>>
    %127 = vector.broadcast %126 : f32 to vector<16x16xf32>
    %128 = arith.mulf %127, %125 : vector<16x16xf32>
    %129 = arith.addf %111, %128 : vector<16x16xf32>
    %c102 = arith.constant 102 : index
    %130 = memref.load %arg1[%c102] : memref<392xf32, #tpu.memory_space<smem>>
    %131 = vector.broadcast %130 : f32 to vector<16x16xf32>
    %132 = arith.mulf %131, %125 : vector<16x16xf32>
    %133 = arith.addf %115, %132 : vector<16x16xf32>
    %c200 = arith.constant 200 : index
    %134 = memref.load %arg1[%c200] : memref<392xf32, #tpu.memory_space<smem>>
    %135 = vector.broadcast %134 : f32 to vector<16x16xf32>
    %136 = arith.mulf %135, %125 : vector<16x16xf32>
    %137 = arith.addf %119, %136 : vector<16x16xf32>
    %c298 = arith.constant 298 : index
    %138 = memref.load %arg1[%c298] : memref<392xf32, #tpu.memory_space<smem>>
    %139 = vector.broadcast %138 : f32 to vector<16x16xf32>
    %140 = arith.mulf %139, %125 : vector<16x16xf32>
    %141 = arith.addf %123, %140 : vector<16x16xf32>
    %c0_59 = arith.constant 0 : index
    %c0_60 = arith.constant 0 : index
    %c15 = arith.constant 15 : index
    %142 = vector.load %arg5[%c0_59, %c0_60, %c15] : memref<2x34x34xf32, #tpu.memory_space<vmem>>, vector<1x16x16xf32>
    %143 = vector.shape_cast %142 : vector<1x16x16xf32> to vector<16x16xf32>
    %c5 = arith.constant 5 : index
    %144 = memref.load %arg1[%c5] : memref<392xf32, #tpu.memory_space<smem>>
    %145 = vector.broadcast %144 : f32 to vector<16x16xf32>
    %146 = arith.mulf %145, %143 : vector<16x16xf32>
    %147 = arith.addf %129, %146 : vector<16x16xf32>
    %c103 = arith.constant 103 : index
    %148 = memref.load %arg1[%c103] : memref<392xf32, #tpu.memory_space<smem>>
    %149 = vector.broadcast %148 : f32 to vector<16x16xf32>
    %150 = arith.mulf %149, %143 : vector<16x16xf32>
    %151 = arith.addf %133, %150 : vector<16x16xf32>
    %c201 = arith.constant 201 : index
    %152 = memref.load %arg1[%c201] : memref<392xf32, #tpu.memory_space<smem>>
    %153 = vector.broadcast %152 : f32 to vector<16x16xf32>
    %154 = arith.mulf %153, %143 : vector<16x16xf32>
    %155 = arith.addf %137, %154 : vector<16x16xf32>
    %c299 = arith.constant 299 : index
    %156 = memref.load %arg1[%c299] : memref<392xf32, #tpu.memory_space<smem>>
    %157 = vector.broadcast %156 : f32 to vector<16x16xf32>
    %158 = arith.mulf %157, %143 : vector<16x16xf32>
    %159 = arith.addf %141, %158 : vector<16x16xf32>
    %c0_61 = arith.constant 0 : index
    %c0_62 = arith.constant 0 : index
    %c18 = arith.constant 18 : index
    %160 = vector.load %arg5[%c0_61, %c0_62, %c18] : memref<2x34x34xf32, #tpu.memory_space<vmem>>, vector<1x16x16xf32>
    %161 = vector.shape_cast %160 : vector<1x16x16xf32> to vector<16x16xf32>
    %c6_63 = arith.constant 6 : index
    %162 = memref.load %arg1[%c6_63] : memref<392xf32, #tpu.memory_space<smem>>
    %163 = vector.broadcast %162 : f32 to vector<16x16xf32>
    %164 = arith.mulf %163, %161 : vector<16x16xf32>
    %165 = arith.addf %147, %164 : vector<16x16xf32>
    %c104 = arith.constant 104 : index
    %166 = memref.load %arg1[%c104] : memref<392xf32, #tpu.memory_space<smem>>
    %167 = vector.broadcast %166 : f32 to vector<16x16xf32>
    %168 = arith.mulf %167, %161 : vector<16x16xf32>
    %169 = arith.addf %151, %168 : vector<16x16xf32>
    %c202 = arith.constant 202 : index
    %170 = memref.load %arg1[%c202] : memref<392xf32, #tpu.memory_space<smem>>
    %171 = vector.broadcast %170 : f32 to vector<16x16xf32>
    %172 = arith.mulf %171, %161 : vector<16x16xf32>
    %173 = arith.addf %155, %172 : vector<16x16xf32>
    %c300 = arith.constant 300 : index
    %174 = memref.load %arg1[%c300] : memref<392xf32, #tpu.memory_space<smem>>
    %175 = vector.broadcast %174 : f32 to vector<16x16xf32>
    %176 = arith.mulf %175, %161 : vector<16x16xf32>
    %177 = arith.addf %159, %176 : vector<16x16xf32>
    %c0_64 = arith.constant 0 : index
    %c3_65 = arith.constant 3 : index
    %c0_66 = arith.constant 0 : index
    %178 = vector.load %arg5[%c0_64, %c3_65, %c0_66] : memref<2x34x34xf32, #tpu.memory_space<vmem>>, vector<1x16x16xf32>
    %179 = vector.shape_cast %178 : vector<1x16x16xf32> to vector<16x16xf32>
    %c7 = arith.constant 7 : index
    %180 = memref.load %arg1[%c7] : memref<392xf32, #tpu.memory_space<smem>>
    %181 = vector.broadcast %180 : f32 to vector<16x16xf32>
    %182 = arith.mulf %181, %179 : vector<16x16xf32>
    %183 = arith.addf %165, %182 : vector<16x16xf32>
    %c105 = arith.constant 105 : index
    %184 = memref.load %arg1[%c105] : memref<392xf32, #tpu.memory_space<smem>>
    %185 = vector.broadcast %184 : f32 to vector<16x16xf32>
    %186 = arith.mulf %185, %179 : vector<16x16xf32>
    %187 = arith.addf %169, %186 : vector<16x16xf32>
    %c203 = arith.constant 203 : index
    %188 = memref.load %arg1[%c203] : memref<392xf32, #tpu.memory_space<smem>>
    %189 = vector.broadcast %188 : f32 to vector<16x16xf32>
    %190 = arith.mulf %189, %179 : vector<16x16xf32>
    %191 = arith.addf %173, %190 : vector<16x16xf32>
    %c301 = arith.constant 301 : index
    %192 = memref.load %arg1[%c301] : memref<392xf32, #tpu.memory_space<smem>>
    %193 = vector.broadcast %192 : f32 to vector<16x16xf32>
    %194 = arith.mulf %193, %179 : vector<16x16xf32>
    %195 = arith.addf %177, %194 : vector<16x16xf32>
    %c0_67 = arith.constant 0 : index
    %c3_68 = arith.constant 3 : index
    %c3_69 = arith.constant 3 : index
    %196 = vector.load %arg5[%c0_67, %c3_68, %c3_69] : memref<2x34x34xf32, #tpu.memory_space<vmem>>, vector<1x16x16xf32>
    %197 = vector.shape_cast %196 : vector<1x16x16xf32> to vector<16x16xf32>
    %c8 = arith.constant 8 : index
    %198 = memref.load %arg1[%c8] : memref<392xf32, #tpu.memory_space<smem>>
    %199 = vector.broadcast %198 : f32 to vector<16x16xf32>
    %200 = arith.mulf %199, %197 : vector<16x16xf32>
    %201 = arith.addf %183, %200 : vector<16x16xf32>
    %c106 = arith.constant 106 : index
    %202 = memref.load %arg1[%c106] : memref<392xf32, #tpu.memory_space<smem>>
    %203 = vector.broadcast %202 : f32 to vector<16x16xf32>
    %204 = arith.mulf %203, %197 : vector<16x16xf32>
    %205 = arith.addf %187, %204 : vector<16x16xf32>
    %c204 = arith.constant 204 : index
    %206 = memref.load %arg1[%c204] : memref<392xf32, #tpu.memory_space<smem>>
    %207 = vector.broadcast %206 : f32 to vector<16x16xf32>
    %208 = arith.mulf %207, %197 : vector<16x16xf32>
    %209 = arith.addf %191, %208 : vector<16x16xf32>
    %c302 = arith.constant 302 : index
    %210 = memref.load %arg1[%c302] : memref<392xf32, #tpu.memory_space<smem>>
    %211 = vector.broadcast %210 : f32 to vector<16x16xf32>
    %212 = arith.mulf %211, %197 : vector<16x16xf32>
    %213 = arith.addf %195, %212 : vector<16x16xf32>
    %c0_70 = arith.constant 0 : index
    %c3_71 = arith.constant 3 : index
    %c6_72 = arith.constant 6 : index
    %214 = vector.load %arg5[%c0_70, %c3_71, %c6_72] : memref<2x34x34xf32, #tpu.memory_space<vmem>>, vector<1x16x16xf32>
    %215 = vector.shape_cast %214 : vector<1x16x16xf32> to vector<16x16xf32>
    %c9_73 = arith.constant 9 : index
    %216 = memref.load %arg1[%c9_73] : memref<392xf32, #tpu.memory_space<smem>>
    %217 = vector.broadcast %216 : f32 to vector<16x16xf32>
    %218 = arith.mulf %217, %215 : vector<16x16xf32>
    %219 = arith.addf %201, %218 : vector<16x16xf32>
    %c107 = arith.constant 107 : index
    %220 = memref.load %arg1[%c107] : memref<392xf32, #tpu.memory_space<smem>>
    %221 = vector.broadcast %220 : f32 to vector<16x16xf32>
    %222 = arith.mulf %221, %215 : vector<16x16xf32>
    %223 = arith.addf %205, %222 : vector<16x16xf32>
    %c205 = arith.constant 205 : index
    %224 = memref.load %arg1[%c205] : memref<392xf32, #tpu.memory_space<smem>>
    %225 = vector.broadcast %224 : f32 to vector<16x16xf32>
    %226 = arith.mulf %225, %215 : vector<16x16xf32>
    %227 = arith.addf %209, %226 : vector<16x16xf32>
    %c303 = arith.constant 303 : index
    %228 = memref.load %arg1[%c303] : memref<392xf32, #tpu.memory_space<smem>>
    %229 = vector.broadcast %228 : f32 to vector<16x16xf32>
    %230 = arith.mulf %229, %215 : vector<16x16xf32>
    %231 = arith.addf %213, %230 : vector<16x16xf32>
    %c0_74 = arith.constant 0 : index
    %c3_75 = arith.constant 3 : index
    %c9_76 = arith.constant 9 : index
    %232 = vector.load %arg5[%c0_74, %c3_75, %c9_76] : memref<2x34x34xf32, #tpu.memory_space<vmem>>, vector<1x16x16xf32>
    %233 = vector.shape_cast %232 : vector<1x16x16xf32> to vector<16x16xf32>
    %c10 = arith.constant 10 : index
    %234 = memref.load %arg1[%c10] : memref<392xf32, #tpu.memory_space<smem>>
    %235 = vector.broadcast %234 : f32 to vector<16x16xf32>
    %236 = arith.mulf %235, %233 : vector<16x16xf32>
    %237 = arith.addf %219, %236 : vector<16x16xf32>
    %c108 = arith.constant 108 : index
    %238 = memref.load %arg1[%c108] : memref<392xf32, #tpu.memory_space<smem>>
    %239 = vector.broadcast %238 : f32 to vector<16x16xf32>
    %240 = arith.mulf %239, %233 : vector<16x16xf32>
    %241 = arith.addf %223, %240 : vector<16x16xf32>
    %c206 = arith.constant 206 : index
    %242 = memref.load %arg1[%c206] : memref<392xf32, #tpu.memory_space<smem>>
    %243 = vector.broadcast %242 : f32 to vector<16x16xf32>
    %244 = arith.mulf %243, %233 : vector<16x16xf32>
    %245 = arith.addf %227, %244 : vector<16x16xf32>
    %c304 = arith.constant 304 : index
    %246 = memref.load %arg1[%c304] : memref<392xf32, #tpu.memory_space<smem>>
    %247 = vector.broadcast %246 : f32 to vector<16x16xf32>
    %248 = arith.mulf %247, %233 : vector<16x16xf32>
    %249 = arith.addf %231, %248 : vector<16x16xf32>
    %c0_77 = arith.constant 0 : index
    %c3_78 = arith.constant 3 : index
    %c12_79 = arith.constant 12 : index
    %250 = vector.load %arg5[%c0_77, %c3_78, %c12_79] : memref<2x34x34xf32, #tpu.memory_space<vmem>>, vector<1x16x16xf32>
    %251 = vector.shape_cast %250 : vector<1x16x16xf32> to vector<16x16xf32>
    %c11 = arith.constant 11 : index
    %252 = memref.load %arg1[%c11] : memref<392xf32, #tpu.memory_space<smem>>
    %253 = vector.broadcast %252 : f32 to vector<16x16xf32>
    %254 = arith.mulf %253, %251 : vector<16x16xf32>
    %255 = arith.addf %237, %254 : vector<16x16xf32>
    %c109 = arith.constant 109 : index
    %256 = memref.load %arg1[%c109] : memref<392xf32, #tpu.memory_space<smem>>
    %257 = vector.broadcast %256 : f32 to vector<16x16xf32>
    %258 = arith.mulf %257, %251 : vector<16x16xf32>
    %259 = arith.addf %241, %258 : vector<16x16xf32>
    %c207 = arith.constant 207 : index
    %260 = memref.load %arg1[%c207] : memref<392xf32, #tpu.memory_space<smem>>
    %261 = vector.broadcast %260 : f32 to vector<16x16xf32>
    %262 = arith.mulf %261, %251 : vector<16x16xf32>
    %263 = arith.addf %245, %262 : vector<16x16xf32>
    %c305 = arith.constant 305 : index
    %264 = memref.load %arg1[%c305] : memref<392xf32, #tpu.memory_space<smem>>
    %265 = vector.broadcast %264 : f32 to vector<16x16xf32>
    %266 = arith.mulf %265, %251 : vector<16x16xf32>
    %267 = arith.addf %249, %266 : vector<16x16xf32>
    %c0_80 = arith.constant 0 : index
    %c3_81 = arith.constant 3 : index
    %c15_82 = arith.constant 15 : index
    %268 = vector.load %arg5[%c0_80, %c3_81, %c15_82] : memref<2x34x34xf32, #tpu.memory_space<vmem>>, vector<1x16x16xf32>
    %269 = vector.shape_cast %268 : vector<1x16x16xf32> to vector<16x16xf32>
    %c12_83 = arith.constant 12 : index
    %270 = memref.load %arg1[%c12_83] : memref<392xf32, #tpu.memory_space<smem>>
    %271 = vector.broadcast %270 : f32 to vector<16x16xf32>
    %272 = arith.mulf %271, %269 : vector<16x16xf32>
    %273 = arith.addf %255, %272 : vector<16x16xf32>
    %c110 = arith.constant 110 : index
    %274 = memref.load %arg1[%c110] : memref<392xf32, #tpu.memory_space<smem>>
    %275 = vector.broadcast %274 : f32 to vector<16x16xf32>
    %276 = arith.mulf %275, %269 : vector<16x16xf32>
    %277 = arith.addf %259, %276 : vector<16x16xf32>
    %c208 = arith.constant 208 : index
    %278 = memref.load %arg1[%c208] : memref<392xf32, #tpu.memory_space<smem>>
    %279 = vector.broadcast %278 : f32 to vector<16x16xf32>
    %280 = arith.mulf %279, %269 : vector<16x16xf32>
    %281 = arith.addf %263, %280 : vector<16x16xf32>
    %c306 = arith.constant 306 : index
    %282 = memref.load %arg1[%c306] : memref<392xf32, #tpu.memory_space<smem>>
    %283 = vector.broadcast %282 : f32 to vector<16x16xf32>
    %284 = arith.mulf %283, %269 : vector<16x16xf32>
    %285 = arith.addf %267, %284 : vector<16x16xf32>
    %c0_84 = arith.constant 0 : index
    %c3_85 = arith.constant 3 : index
    %c18_86 = arith.constant 18 : index
    %286 = vector.load %arg5[%c0_84, %c3_85, %c18_86] : memref<2x34x34xf32, #tpu.memory_space<vmem>>, vector<1x16x16xf32>
    %287 = vector.shape_cast %286 : vector<1x16x16xf32> to vector<16x16xf32>
    %c13 = arith.constant 13 : index
    %288 = memref.load %arg1[%c13] : memref<392xf32, #tpu.memory_space<smem>>
    %289 = vector.broadcast %288 : f32 to vector<16x16xf32>
    %290 = arith.mulf %289, %287 : vector<16x16xf32>
    %291 = arith.addf %273, %290 : vector<16x16xf32>
    %c111 = arith.constant 111 : index
    %292 = memref.load %arg1[%c111] : memref<392xf32, #tpu.memory_space<smem>>
    %293 = vector.broadcast %292 : f32 to vector<16x16xf32>
    %294 = arith.mulf %293, %287 : vector<16x16xf32>
    %295 = arith.addf %277, %294 : vector<16x16xf32>
    %c209 = arith.constant 209 : index
    %296 = memref.load %arg1[%c209] : memref<392xf32, #tpu.memory_space<smem>>
    %297 = vector.broadcast %296 : f32 to vector<16x16xf32>
    %298 = arith.mulf %297, %287 : vector<16x16xf32>
    %299 = arith.addf %281, %298 : vector<16x16xf32>
    %c307 = arith.constant 307 : index
    %300 = memref.load %arg1[%c307] : memref<392xf32, #tpu.memory_space<smem>>
    %301 = vector.broadcast %300 : f32 to vector<16x16xf32>
    %302 = arith.mulf %301, %287 : vector<16x16xf32>
    %303 = arith.addf %285, %302 : vector<16x16xf32>
    %c0_87 = arith.constant 0 : index
    %c6_88 = arith.constant 6 : index
    %c0_89 = arith.constant 0 : index
    %304 = vector.load %arg5[%c0_87, %c6_88, %c0_89] : memref<2x34x34xf32, #tpu.memory_space<vmem>>, vector<1x16x16xf32>
    %305 = vector.shape_cast %304 : vector<1x16x16xf32> to vector<16x16xf32>
    %c14 = arith.constant 14 : index
    %306 = memref.load %arg1[%c14] : memref<392xf32, #tpu.memory_space<smem>>
    %307 = vector.broadcast %306 : f32 to vector<16x16xf32>
    %308 = arith.mulf %307, %305 : vector<16x16xf32>
    %309 = arith.addf %291, %308 : vector<16x16xf32>
    %c112 = arith.constant 112 : index
    %310 = memref.load %arg1[%c112] : memref<392xf32, #tpu.memory_space<smem>>
    %311 = vector.broadcast %310 : f32 to vector<16x16xf32>
    %312 = arith.mulf %311, %305 : vector<16x16xf32>
    %313 = arith.addf %295, %312 : vector<16x16xf32>
    %c210 = arith.constant 210 : index
    %314 = memref.load %arg1[%c210] : memref<392xf32, #tpu.memory_space<smem>>
    %315 = vector.broadcast %314 : f32 to vector<16x16xf32>
    %316 = arith.mulf %315, %305 : vector<16x16xf32>
    %317 = arith.addf %299, %316 : vector<16x16xf32>
    %c308 = arith.constant 308 : index
    %318 = memref.load %arg1[%c308] : memref<392xf32, #tpu.memory_space<smem>>
    %319 = vector.broadcast %318 : f32 to vector<16x16xf32>
    %320 = arith.mulf %319, %305 : vector<16x16xf32>
    %321 = arith.addf %303, %320 : vector<16x16xf32>
    %c0_90 = arith.constant 0 : index
    %c6_91 = arith.constant 6 : index
    %c3_92 = arith.constant 3 : index
    %322 = vector.load %arg5[%c0_90, %c6_91, %c3_92] : memref<2x34x34xf32, #tpu.memory_space<vmem>>, vector<1x16x16xf32>
    %323 = vector.shape_cast %322 : vector<1x16x16xf32> to vector<16x16xf32>
    %c15_93 = arith.constant 15 : index
    %324 = memref.load %arg1[%c15_93] : memref<392xf32, #tpu.memory_space<smem>>
    %325 = vector.broadcast %324 : f32 to vector<16x16xf32>
    %326 = arith.mulf %325, %323 : vector<16x16xf32>
    %327 = arith.addf %309, %326 : vector<16x16xf32>
    %c113 = arith.constant 113 : index
    %328 = memref.load %arg1[%c113] : memref<392xf32, #tpu.memory_space<smem>>
    %329 = vector.broadcast %328 : f32 to vector<16x16xf32>
    %330 = arith.mulf %329, %323 : vector<16x16xf32>
    %331 = arith.addf %313, %330 : vector<16x16xf32>
    %c211 = arith.constant 211 : index
    %332 = memref.load %arg1[%c211] : memref<392xf32, #tpu.memory_space<smem>>
    %333 = vector.broadcast %332 : f32 to vector<16x16xf32>
    %334 = arith.mulf %333, %323 : vector<16x16xf32>
    %335 = arith.addf %317, %334 : vector<16x16xf32>
    %c309 = arith.constant 309 : index
    %336 = memref.load %arg1[%c309] : memref<392xf32, #tpu.memory_space<smem>>
    %337 = vector.broadcast %336 : f32 to vector<16x16xf32>
    %338 = arith.mulf %337, %323 : vector<16x16xf32>
    %339 = arith.addf %321, %338 : vector<16x16xf32>
    %c0_94 = arith.constant 0 : index
    %c6_95 = arith.constant 6 : index
    %c6_96 = arith.constant 6 : index
    %340 = vector.load %arg5[%c0_94, %c6_95, %c6_96] : memref<2x34x34xf32, #tpu.memory_space<vmem>>, vector<1x16x16xf32>
    %341 = vector.shape_cast %340 : vector<1x16x16xf32> to vector<16x16xf32>
    %c16 = arith.constant 16 : index
    %342 = memref.load %arg1[%c16] : memref<392xf32, #tpu.memory_space<smem>>
    %343 = vector.broadcast %342 : f32 to vector<16x16xf32>
    %344 = arith.mulf %343, %341 : vector<16x16xf32>
    %345 = arith.addf %327, %344 : vector<16x16xf32>
    %c114 = arith.constant 114 : index
    %346 = memref.load %arg1[%c114] : memref<392xf32, #tpu.memory_space<smem>>
    %347 = vector.broadcast %346 : f32 to vector<16x16xf32>
    %348 = arith.mulf %347, %341 : vector<16x16xf32>
    %349 = arith.addf %331, %348 : vector<16x16xf32>
    %c212 = arith.constant 212 : index
    %350 = memref.load %arg1[%c212] : memref<392xf32, #tpu.memory_space<smem>>
    %351 = vector.broadcast %350 : f32 to vector<16x16xf32>
    %352 = arith.mulf %351, %341 : vector<16x16xf32>
    %353 = arith.addf %335, %352 : vector<16x16xf32>
    %c310 = arith.constant 310 : index
    %354 = memref.load %arg1[%c310] : memref<392xf32, #tpu.memory_space<smem>>
    %355 = vector.broadcast %354 : f32 to vector<16x16xf32>
    %356 = arith.mulf %355, %341 : vector<16x16xf32>
    %357 = arith.addf %339, %356 : vector<16x16xf32>
    %c0_97 = arith.constant 0 : index
    %c6_98 = arith.constant 6 : index
    %c9_99 = arith.constant 9 : index
    %358 = vector.load %arg5[%c0_97, %c6_98, %c9_99] : memref<2x34x34xf32, #tpu.memory_space<vmem>>, vector<1x16x16xf32>
    %359 = vector.shape_cast %358 : vector<1x16x16xf32> to vector<16x16xf32>
    %c17 = arith.constant 17 : index
    %360 = memref.load %arg1[%c17] : memref<392xf32, #tpu.memory_space<smem>>
    %361 = vector.broadcast %360 : f32 to vector<16x16xf32>
    %362 = arith.mulf %361, %359 : vector<16x16xf32>
    %363 = arith.addf %345, %362 : vector<16x16xf32>
    %c115 = arith.constant 115 : index
    %364 = memref.load %arg1[%c115] : memref<392xf32, #tpu.memory_space<smem>>
    %365 = vector.broadcast %364 : f32 to vector<16x16xf32>
    %366 = arith.mulf %365, %359 : vector<16x16xf32>
    %367 = arith.addf %349, %366 : vector<16x16xf32>
    %c213 = arith.constant 213 : index
    %368 = memref.load %arg1[%c213] : memref<392xf32, #tpu.memory_space<smem>>
    %369 = vector.broadcast %368 : f32 to vector<16x16xf32>
    %370 = arith.mulf %369, %359 : vector<16x16xf32>
    %371 = arith.addf %353, %370 : vector<16x16xf32>
    %c311 = arith.constant 311 : index
    %372 = memref.load %arg1[%c311] : memref<392xf32, #tpu.memory_space<smem>>
    %373 = vector.broadcast %372 : f32 to vector<16x16xf32>
    %374 = arith.mulf %373, %359 : vector<16x16xf32>
    %375 = arith.addf %357, %374 : vector<16x16xf32>
    %c0_100 = arith.constant 0 : index
    %c6_101 = arith.constant 6 : index
    %c12_102 = arith.constant 12 : index
    %376 = vector.load %arg5[%c0_100, %c6_101, %c12_102] : memref<2x34x34xf32, #tpu.memory_space<vmem>>, vector<1x16x16xf32>
    %377 = vector.shape_cast %376 : vector<1x16x16xf32> to vector<16x16xf32>
    %c18_103 = arith.constant 18 : index
    %378 = memref.load %arg1[%c18_103] : memref<392xf32, #tpu.memory_space<smem>>
    %379 = vector.broadcast %378 : f32 to vector<16x16xf32>
    %380 = arith.mulf %379, %377 : vector<16x16xf32>
    %381 = arith.addf %363, %380 : vector<16x16xf32>
    %c116 = arith.constant 116 : index
    %382 = memref.load %arg1[%c116] : memref<392xf32, #tpu.memory_space<smem>>
    %383 = vector.broadcast %382 : f32 to vector<16x16xf32>
    %384 = arith.mulf %383, %377 : vector<16x16xf32>
    %385 = arith.addf %367, %384 : vector<16x16xf32>
    %c214 = arith.constant 214 : index
    %386 = memref.load %arg1[%c214] : memref<392xf32, #tpu.memory_space<smem>>
    %387 = vector.broadcast %386 : f32 to vector<16x16xf32>
    %388 = arith.mulf %387, %377 : vector<16x16xf32>
    %389 = arith.addf %371, %388 : vector<16x16xf32>
    %c312 = arith.constant 312 : index
    %390 = memref.load %arg1[%c312] : memref<392xf32, #tpu.memory_space<smem>>
    %391 = vector.broadcast %390 : f32 to vector<16x16xf32>
    %392 = arith.mulf %391, %377 : vector<16x16xf32>
    %393 = arith.addf %375, %392 : vector<16x16xf32>
    %c0_104 = arith.constant 0 : index
    %c6_105 = arith.constant 6 : index
    %c15_106 = arith.constant 15 : index
    %394 = vector.load %arg5[%c0_104, %c6_105, %c15_106] : memref<2x34x34xf32, #tpu.memory_space<vmem>>, vector<1x16x16xf32>
    %395 = vector.shape_cast %394 : vector<1x16x16xf32> to vector<16x16xf32>
    %c19 = arith.constant 19 : index
    %396 = memref.load %arg1[%c19] : memref<392xf32, #tpu.memory_space<smem>>
    %397 = vector.broadcast %396 : f32 to vector<16x16xf32>
    %398 = arith.mulf %397, %395 : vector<16x16xf32>
    %399 = arith.addf %381, %398 : vector<16x16xf32>
    %c117 = arith.constant 117 : index
    %400 = memref.load %arg1[%c117] : memref<392xf32, #tpu.memory_space<smem>>
    %401 = vector.broadcast %400 : f32 to vector<16x16xf32>
    %402 = arith.mulf %401, %395 : vector<16x16xf32>
    %403 = arith.addf %385, %402 : vector<16x16xf32>
    %c215 = arith.constant 215 : index
    %404 = memref.load %arg1[%c215] : memref<392xf32, #tpu.memory_space<smem>>
    %405 = vector.broadcast %404 : f32 to vector<16x16xf32>
    %406 = arith.mulf %405, %395 : vector<16x16xf32>
    %407 = arith.addf %389, %406 : vector<16x16xf32>
    %c313 = arith.constant 313 : index
    %408 = memref.load %arg1[%c313] : memref<392xf32, #tpu.memory_space<smem>>
    %409 = vector.broadcast %408 : f32 to vector<16x16xf32>
    %410 = arith.mulf %409, %395 : vector<16x16xf32>
    %411 = arith.addf %393, %410 : vector<16x16xf32>
    %c0_107 = arith.constant 0 : index
    %c6_108 = arith.constant 6 : index
    %c18_109 = arith.constant 18 : index
    %412 = vector.load %arg5[%c0_107, %c6_108, %c18_109] : memref<2x34x34xf32, #tpu.memory_space<vmem>>, vector<1x16x16xf32>
    %413 = vector.shape_cast %412 : vector<1x16x16xf32> to vector<16x16xf32>
    %c20 = arith.constant 20 : index
    %414 = memref.load %arg1[%c20] : memref<392xf32, #tpu.memory_space<smem>>
    %415 = vector.broadcast %414 : f32 to vector<16x16xf32>
    %416 = arith.mulf %415, %413 : vector<16x16xf32>
    %417 = arith.addf %399, %416 : vector<16x16xf32>
    %c118 = arith.constant 118 : index
    %418 = memref.load %arg1[%c118] : memref<392xf32, #tpu.memory_space<smem>>
    %419 = vector.broadcast %418 : f32 to vector<16x16xf32>
    %420 = arith.mulf %419, %413 : vector<16x16xf32>
    %421 = arith.addf %403, %420 : vector<16x16xf32>
    %c216 = arith.constant 216 : index
    %422 = memref.load %arg1[%c216] : memref<392xf32, #tpu.memory_space<smem>>
    %423 = vector.broadcast %422 : f32 to vector<16x16xf32>
    %424 = arith.mulf %423, %413 : vector<16x16xf32>
    %425 = arith.addf %407, %424 : vector<16x16xf32>
    %c314 = arith.constant 314 : index
    %426 = memref.load %arg1[%c314] : memref<392xf32, #tpu.memory_space<smem>>
    %427 = vector.broadcast %426 : f32 to vector<16x16xf32>
    %428 = arith.mulf %427, %413 : vector<16x16xf32>
    %429 = arith.addf %411, %428 : vector<16x16xf32>
    %c0_110 = arith.constant 0 : index
    %c9_111 = arith.constant 9 : index
    %c0_112 = arith.constant 0 : index
    %430 = vector.load %arg5[%c0_110, %c9_111, %c0_112] : memref<2x34x34xf32, #tpu.memory_space<vmem>>, vector<1x16x16xf32>
    %431 = vector.shape_cast %430 : vector<1x16x16xf32> to vector<16x16xf32>
    %c21 = arith.constant 21 : index
    %432 = memref.load %arg1[%c21] : memref<392xf32, #tpu.memory_space<smem>>
    %433 = vector.broadcast %432 : f32 to vector<16x16xf32>
    %434 = arith.mulf %433, %431 : vector<16x16xf32>
    %435 = arith.addf %417, %434 : vector<16x16xf32>
    %c119 = arith.constant 119 : index
    %436 = memref.load %arg1[%c119] : memref<392xf32, #tpu.memory_space<smem>>
    %437 = vector.broadcast %436 : f32 to vector<16x16xf32>
    %438 = arith.mulf %437, %431 : vector<16x16xf32>
    %439 = arith.addf %421, %438 : vector<16x16xf32>
    %c217 = arith.constant 217 : index
    %440 = memref.load %arg1[%c217] : memref<392xf32, #tpu.memory_space<smem>>
    %441 = vector.broadcast %440 : f32 to vector<16x16xf32>
    %442 = arith.mulf %441, %431 : vector<16x16xf32>
    %443 = arith.addf %425, %442 : vector<16x16xf32>
    %c315 = arith.constant 315 : index
    %444 = memref.load %arg1[%c315] : memref<392xf32, #tpu.memory_space<smem>>
    %445 = vector.broadcast %444 : f32 to vector<16x16xf32>
    %446 = arith.mulf %445, %431 : vector<16x16xf32>
    %447 = arith.addf %429, %446 : vector<16x16xf32>
    %c0_113 = arith.constant 0 : index
    %c9_114 = arith.constant 9 : index
    %c3_115 = arith.constant 3 : index
    %448 = vector.load %arg5[%c0_113, %c9_114, %c3_115] : memref<2x34x34xf32, #tpu.memory_space<vmem>>, vector<1x16x16xf32>
    %449 = vector.shape_cast %448 : vector<1x16x16xf32> to vector<16x16xf32>
    %c22 = arith.constant 22 : index
    %450 = memref.load %arg1[%c22] : memref<392xf32, #tpu.memory_space<smem>>
    %451 = vector.broadcast %450 : f32 to vector<16x16xf32>
    %452 = arith.mulf %451, %449 : vector<16x16xf32>
    %453 = arith.addf %435, %452 : vector<16x16xf32>
    %c120 = arith.constant 120 : index
    %454 = memref.load %arg1[%c120] : memref<392xf32, #tpu.memory_space<smem>>
    %455 = vector.broadcast %454 : f32 to vector<16x16xf32>
    %456 = arith.mulf %455, %449 : vector<16x16xf32>
    %457 = arith.addf %439, %456 : vector<16x16xf32>
    %c218 = arith.constant 218 : index
    %458 = memref.load %arg1[%c218] : memref<392xf32, #tpu.memory_space<smem>>
    %459 = vector.broadcast %458 : f32 to vector<16x16xf32>
    %460 = arith.mulf %459, %449 : vector<16x16xf32>
    %461 = arith.addf %443, %460 : vector<16x16xf32>
    %c316 = arith.constant 316 : index
    %462 = memref.load %arg1[%c316] : memref<392xf32, #tpu.memory_space<smem>>
    %463 = vector.broadcast %462 : f32 to vector<16x16xf32>
    %464 = arith.mulf %463, %449 : vector<16x16xf32>
    %465 = arith.addf %447, %464 : vector<16x16xf32>
    %c0_116 = arith.constant 0 : index
    %c9_117 = arith.constant 9 : index
    %c6_118 = arith.constant 6 : index
    %466 = vector.load %arg5[%c0_116, %c9_117, %c6_118] : memref<2x34x34xf32, #tpu.memory_space<vmem>>, vector<1x16x16xf32>
    %467 = vector.shape_cast %466 : vector<1x16x16xf32> to vector<16x16xf32>
    %c23 = arith.constant 23 : index
    %468 = memref.load %arg1[%c23] : memref<392xf32, #tpu.memory_space<smem>>
    %469 = vector.broadcast %468 : f32 to vector<16x16xf32>
    %470 = arith.mulf %469, %467 : vector<16x16xf32>
    %471 = arith.addf %453, %470 : vector<16x16xf32>
    %c121 = arith.constant 121 : index
    %472 = memref.load %arg1[%c121] : memref<392xf32, #tpu.memory_space<smem>>
    %473 = vector.broadcast %472 : f32 to vector<16x16xf32>
    %474 = arith.mulf %473, %467 : vector<16x16xf32>
    %475 = arith.addf %457, %474 : vector<16x16xf32>
    %c219 = arith.constant 219 : index
    %476 = memref.load %arg1[%c219] : memref<392xf32, #tpu.memory_space<smem>>
    %477 = vector.broadcast %476 : f32 to vector<16x16xf32>
    %478 = arith.mulf %477, %467 : vector<16x16xf32>
    %479 = arith.addf %461, %478 : vector<16x16xf32>
    %c317 = arith.constant 317 : index
    %480 = memref.load %arg1[%c317] : memref<392xf32, #tpu.memory_space<smem>>
    %481 = vector.broadcast %480 : f32 to vector<16x16xf32>
    %482 = arith.mulf %481, %467 : vector<16x16xf32>
    %483 = arith.addf %465, %482 : vector<16x16xf32>
    %c0_119 = arith.constant 0 : index
    %c9_120 = arith.constant 9 : index
    %c9_121 = arith.constant 9 : index
    %484 = vector.load %arg5[%c0_119, %c9_120, %c9_121] : memref<2x34x34xf32, #tpu.memory_space<vmem>>, vector<1x16x16xf32>
    %485 = vector.shape_cast %484 : vector<1x16x16xf32> to vector<16x16xf32>
    %c24 = arith.constant 24 : index
    %486 = memref.load %arg1[%c24] : memref<392xf32, #tpu.memory_space<smem>>
    %487 = vector.broadcast %486 : f32 to vector<16x16xf32>
    %488 = arith.mulf %487, %485 : vector<16x16xf32>
    %489 = arith.addf %471, %488 : vector<16x16xf32>
    %c122 = arith.constant 122 : index
    %490 = memref.load %arg1[%c122] : memref<392xf32, #tpu.memory_space<smem>>
    %491 = vector.broadcast %490 : f32 to vector<16x16xf32>
    %492 = arith.mulf %491, %485 : vector<16x16xf32>
    %493 = arith.addf %475, %492 : vector<16x16xf32>
    %c220 = arith.constant 220 : index
    %494 = memref.load %arg1[%c220] : memref<392xf32, #tpu.memory_space<smem>>
    %495 = vector.broadcast %494 : f32 to vector<16x16xf32>
    %496 = arith.mulf %495, %485 : vector<16x16xf32>
    %497 = arith.addf %479, %496 : vector<16x16xf32>
    %c318 = arith.constant 318 : index
    %498 = memref.load %arg1[%c318] : memref<392xf32, #tpu.memory_space<smem>>
    %499 = vector.broadcast %498 : f32 to vector<16x16xf32>
    %500 = arith.mulf %499, %485 : vector<16x16xf32>
    %501 = arith.addf %483, %500 : vector<16x16xf32>
    %c0_122 = arith.constant 0 : index
    %c9_123 = arith.constant 9 : index
    %c12_124 = arith.constant 12 : index
    %502 = vector.load %arg5[%c0_122, %c9_123, %c12_124] : memref<2x34x34xf32, #tpu.memory_space<vmem>>, vector<1x16x16xf32>
    %503 = vector.shape_cast %502 : vector<1x16x16xf32> to vector<16x16xf32>
    %c25_125 = arith.constant 25 : index
    %504 = memref.load %arg1[%c25_125] : memref<392xf32, #tpu.memory_space<smem>>
    %505 = vector.broadcast %504 : f32 to vector<16x16xf32>
    %506 = arith.mulf %505, %503 : vector<16x16xf32>
    %507 = arith.addf %489, %506 : vector<16x16xf32>
    %c123 = arith.constant 123 : index
    %508 = memref.load %arg1[%c123] : memref<392xf32, #tpu.memory_space<smem>>
    %509 = vector.broadcast %508 : f32 to vector<16x16xf32>
    %510 = arith.mulf %509, %503 : vector<16x16xf32>
    %511 = arith.addf %493, %510 : vector<16x16xf32>
    %c221 = arith.constant 221 : index
    %512 = memref.load %arg1[%c221] : memref<392xf32, #tpu.memory_space<smem>>
    %513 = vector.broadcast %512 : f32 to vector<16x16xf32>
    %514 = arith.mulf %513, %503 : vector<16x16xf32>
    %515 = arith.addf %497, %514 : vector<16x16xf32>
    %c319 = arith.constant 319 : index
    %516 = memref.load %arg1[%c319] : memref<392xf32, #tpu.memory_space<smem>>
    %517 = vector.broadcast %516 : f32 to vector<16x16xf32>
    %518 = arith.mulf %517, %503 : vector<16x16xf32>
    %519 = arith.addf %501, %518 : vector<16x16xf32>
    %c0_126 = arith.constant 0 : index
    %c9_127 = arith.constant 9 : index
    %c15_128 = arith.constant 15 : index
    %520 = vector.load %arg5[%c0_126, %c9_127, %c15_128] : memref<2x34x34xf32, #tpu.memory_space<vmem>>, vector<1x16x16xf32>
    %521 = vector.shape_cast %520 : vector<1x16x16xf32> to vector<16x16xf32>
    %c26 = arith.constant 26 : index
    %522 = memref.load %arg1[%c26] : memref<392xf32, #tpu.memory_space<smem>>
    %523 = vector.broadcast %522 : f32 to vector<16x16xf32>
    %524 = arith.mulf %523, %521 : vector<16x16xf32>
    %525 = arith.addf %507, %524 : vector<16x16xf32>
    %c124 = arith.constant 124 : index
    %526 = memref.load %arg1[%c124] : memref<392xf32, #tpu.memory_space<smem>>
    %527 = vector.broadcast %526 : f32 to vector<16x16xf32>
    %528 = arith.mulf %527, %521 : vector<16x16xf32>
    %529 = arith.addf %511, %528 : vector<16x16xf32>
    %c222 = arith.constant 222 : index
    %530 = memref.load %arg1[%c222] : memref<392xf32, #tpu.memory_space<smem>>
    %531 = vector.broadcast %530 : f32 to vector<16x16xf32>
    %532 = arith.mulf %531, %521 : vector<16x16xf32>
    %533 = arith.addf %515, %532 : vector<16x16xf32>
    %c320 = arith.constant 320 : index
    %534 = memref.load %arg1[%c320] : memref<392xf32, #tpu.memory_space<smem>>
    %535 = vector.broadcast %534 : f32 to vector<16x16xf32>
    %536 = arith.mulf %535, %521 : vector<16x16xf32>
    %537 = arith.addf %519, %536 : vector<16x16xf32>
    %c0_129 = arith.constant 0 : index
    %c9_130 = arith.constant 9 : index
    %c18_131 = arith.constant 18 : index
    %538 = vector.load %arg5[%c0_129, %c9_130, %c18_131] : memref<2x34x34xf32, #tpu.memory_space<vmem>>, vector<1x16x16xf32>
    %539 = vector.shape_cast %538 : vector<1x16x16xf32> to vector<16x16xf32>
    %c27 = arith.constant 27 : index
    %540 = memref.load %arg1[%c27] : memref<392xf32, #tpu.memory_space<smem>>
    %541 = vector.broadcast %540 : f32 to vector<16x16xf32>
    %542 = arith.mulf %541, %539 : vector<16x16xf32>
    %543 = arith.addf %525, %542 : vector<16x16xf32>
    %c125 = arith.constant 125 : index
    %544 = memref.load %arg1[%c125] : memref<392xf32, #tpu.memory_space<smem>>
    %545 = vector.broadcast %544 : f32 to vector<16x16xf32>
    %546 = arith.mulf %545, %539 : vector<16x16xf32>
    %547 = arith.addf %529, %546 : vector<16x16xf32>
    %c223 = arith.constant 223 : index
    %548 = memref.load %arg1[%c223] : memref<392xf32, #tpu.memory_space<smem>>
    %549 = vector.broadcast %548 : f32 to vector<16x16xf32>
    %550 = arith.mulf %549, %539 : vector<16x16xf32>
    %551 = arith.addf %533, %550 : vector<16x16xf32>
    %c321 = arith.constant 321 : index
    %552 = memref.load %arg1[%c321] : memref<392xf32, #tpu.memory_space<smem>>
    %553 = vector.broadcast %552 : f32 to vector<16x16xf32>
    %554 = arith.mulf %553, %539 : vector<16x16xf32>
    %555 = arith.addf %537, %554 : vector<16x16xf32>
    %c0_132 = arith.constant 0 : index
    %c12_133 = arith.constant 12 : index
    %c0_134 = arith.constant 0 : index
    %556 = vector.load %arg5[%c0_132, %c12_133, %c0_134] : memref<2x34x34xf32, #tpu.memory_space<vmem>>, vector<1x16x16xf32>
    %557 = vector.shape_cast %556 : vector<1x16x16xf32> to vector<16x16xf32>
    %c28 = arith.constant 28 : index
    %558 = memref.load %arg1[%c28] : memref<392xf32, #tpu.memory_space<smem>>
    %559 = vector.broadcast %558 : f32 to vector<16x16xf32>
    %560 = arith.mulf %559, %557 : vector<16x16xf32>
    %561 = arith.addf %543, %560 : vector<16x16xf32>
    %c126 = arith.constant 126 : index
    %562 = memref.load %arg1[%c126] : memref<392xf32, #tpu.memory_space<smem>>
    %563 = vector.broadcast %562 : f32 to vector<16x16xf32>
    %564 = arith.mulf %563, %557 : vector<16x16xf32>
    %565 = arith.addf %547, %564 : vector<16x16xf32>
    %c224 = arith.constant 224 : index
    %566 = memref.load %arg1[%c224] : memref<392xf32, #tpu.memory_space<smem>>
    %567 = vector.broadcast %566 : f32 to vector<16x16xf32>
    %568 = arith.mulf %567, %557 : vector<16x16xf32>
    %569 = arith.addf %551, %568 : vector<16x16xf32>
    %c322 = arith.constant 322 : index
    %570 = memref.load %arg1[%c322] : memref<392xf32, #tpu.memory_space<smem>>
    %571 = vector.broadcast %570 : f32 to vector<16x16xf32>
    %572 = arith.mulf %571, %557 : vector<16x16xf32>
    %573 = arith.addf %555, %572 : vector<16x16xf32>
    %c0_135 = arith.constant 0 : index
    %c12_136 = arith.constant 12 : index
    %c3_137 = arith.constant 3 : index
    %574 = vector.load %arg5[%c0_135, %c12_136, %c3_137] : memref<2x34x34xf32, #tpu.memory_space<vmem>>, vector<1x16x16xf32>
    %575 = vector.shape_cast %574 : vector<1x16x16xf32> to vector<16x16xf32>
    %c29 = arith.constant 29 : index
    %576 = memref.load %arg1[%c29] : memref<392xf32, #tpu.memory_space<smem>>
    %577 = vector.broadcast %576 : f32 to vector<16x16xf32>
    %578 = arith.mulf %577, %575 : vector<16x16xf32>
    %579 = arith.addf %561, %578 : vector<16x16xf32>
    %c127 = arith.constant 127 : index
    %580 = memref.load %arg1[%c127] : memref<392xf32, #tpu.memory_space<smem>>
    %581 = vector.broadcast %580 : f32 to vector<16x16xf32>
    %582 = arith.mulf %581, %575 : vector<16x16xf32>
    %583 = arith.addf %565, %582 : vector<16x16xf32>
    %c225 = arith.constant 225 : index
    %584 = memref.load %arg1[%c225] : memref<392xf32, #tpu.memory_space<smem>>
    %585 = vector.broadcast %584 : f32 to vector<16x16xf32>
    %586 = arith.mulf %585, %575 : vector<16x16xf32>
    %587 = arith.addf %569, %586 : vector<16x16xf32>
    %c323 = arith.constant 323 : index
    %588 = memref.load %arg1[%c323] : memref<392xf32, #tpu.memory_space<smem>>
    %589 = vector.broadcast %588 : f32 to vector<16x16xf32>
    %590 = arith.mulf %589, %575 : vector<16x16xf32>
    %591 = arith.addf %573, %590 : vector<16x16xf32>
    %c0_138 = arith.constant 0 : index
    %c12_139 = arith.constant 12 : index
    %c6_140 = arith.constant 6 : index
    %592 = vector.load %arg5[%c0_138, %c12_139, %c6_140] : memref<2x34x34xf32, #tpu.memory_space<vmem>>, vector<1x16x16xf32>
    %593 = vector.shape_cast %592 : vector<1x16x16xf32> to vector<16x16xf32>
    %c30 = arith.constant 30 : index
    %594 = memref.load %arg1[%c30] : memref<392xf32, #tpu.memory_space<smem>>
    %595 = vector.broadcast %594 : f32 to vector<16x16xf32>
    %596 = arith.mulf %595, %593 : vector<16x16xf32>
    %597 = arith.addf %579, %596 : vector<16x16xf32>
    %c128 = arith.constant 128 : index
    %598 = memref.load %arg1[%c128] : memref<392xf32, #tpu.memory_space<smem>>
    %599 = vector.broadcast %598 : f32 to vector<16x16xf32>
    %600 = arith.mulf %599, %593 : vector<16x16xf32>
    %601 = arith.addf %583, %600 : vector<16x16xf32>
    %c226 = arith.constant 226 : index
    %602 = memref.load %arg1[%c226] : memref<392xf32, #tpu.memory_space<smem>>
    %603 = vector.broadcast %602 : f32 to vector<16x16xf32>
    %604 = arith.mulf %603, %593 : vector<16x16xf32>
    %605 = arith.addf %587, %604 : vector<16x16xf32>
    %c324 = arith.constant 324 : index
    %606 = memref.load %arg1[%c324] : memref<392xf32, #tpu.memory_space<smem>>
    %607 = vector.broadcast %606 : f32 to vector<16x16xf32>
    %608 = arith.mulf %607, %593 : vector<16x16xf32>
    %609 = arith.addf %591, %608 : vector<16x16xf32>
    %c0_141 = arith.constant 0 : index
    %c12_142 = arith.constant 12 : index
    %c9_143 = arith.constant 9 : index
    %610 = vector.load %arg5[%c0_141, %c12_142, %c9_143] : memref<2x34x34xf32, #tpu.memory_space<vmem>>, vector<1x16x16xf32>
    %611 = vector.shape_cast %610 : vector<1x16x16xf32> to vector<16x16xf32>
    %c31 = arith.constant 31 : index
    %612 = memref.load %arg1[%c31] : memref<392xf32, #tpu.memory_space<smem>>
    %613 = vector.broadcast %612 : f32 to vector<16x16xf32>
    %614 = arith.mulf %613, %611 : vector<16x16xf32>
    %615 = arith.addf %597, %614 : vector<16x16xf32>
    %c129 = arith.constant 129 : index
    %616 = memref.load %arg1[%c129] : memref<392xf32, #tpu.memory_space<smem>>
    %617 = vector.broadcast %616 : f32 to vector<16x16xf32>
    %618 = arith.mulf %617, %611 : vector<16x16xf32>
    %619 = arith.addf %601, %618 : vector<16x16xf32>
    %c227 = arith.constant 227 : index
    %620 = memref.load %arg1[%c227] : memref<392xf32, #tpu.memory_space<smem>>
    %621 = vector.broadcast %620 : f32 to vector<16x16xf32>
    %622 = arith.mulf %621, %611 : vector<16x16xf32>
    %623 = arith.addf %605, %622 : vector<16x16xf32>
    %c325 = arith.constant 325 : index
    %624 = memref.load %arg1[%c325] : memref<392xf32, #tpu.memory_space<smem>>
    %625 = vector.broadcast %624 : f32 to vector<16x16xf32>
    %626 = arith.mulf %625, %611 : vector<16x16xf32>
    %627 = arith.addf %609, %626 : vector<16x16xf32>
    %c0_144 = arith.constant 0 : index
    %c12_145 = arith.constant 12 : index
    %c12_146 = arith.constant 12 : index
    %628 = vector.load %arg5[%c0_144, %c12_145, %c12_146] : memref<2x34x34xf32, #tpu.memory_space<vmem>>, vector<1x16x16xf32>
    %629 = vector.shape_cast %628 : vector<1x16x16xf32> to vector<16x16xf32>
    %c32 = arith.constant 32 : index
    %630 = memref.load %arg1[%c32] : memref<392xf32, #tpu.memory_space<smem>>
    %631 = vector.broadcast %630 : f32 to vector<16x16xf32>
    %632 = arith.mulf %631, %629 : vector<16x16xf32>
    %633 = arith.addf %615, %632 : vector<16x16xf32>
    %c130 = arith.constant 130 : index
    %634 = memref.load %arg1[%c130] : memref<392xf32, #tpu.memory_space<smem>>
    %635 = vector.broadcast %634 : f32 to vector<16x16xf32>
    %636 = arith.mulf %635, %629 : vector<16x16xf32>
    %637 = arith.addf %619, %636 : vector<16x16xf32>
    %c228 = arith.constant 228 : index
    %638 = memref.load %arg1[%c228] : memref<392xf32, #tpu.memory_space<smem>>
    %639 = vector.broadcast %638 : f32 to vector<16x16xf32>
    %640 = arith.mulf %639, %629 : vector<16x16xf32>
    %641 = arith.addf %623, %640 : vector<16x16xf32>
    %c326 = arith.constant 326 : index
    %642 = memref.load %arg1[%c326] : memref<392xf32, #tpu.memory_space<smem>>
    %643 = vector.broadcast %642 : f32 to vector<16x16xf32>
    %644 = arith.mulf %643, %629 : vector<16x16xf32>
    %645 = arith.addf %627, %644 : vector<16x16xf32>
    %c0_147 = arith.constant 0 : index
    %c12_148 = arith.constant 12 : index
    %c15_149 = arith.constant 15 : index
    %646 = vector.load %arg5[%c0_147, %c12_148, %c15_149] : memref<2x34x34xf32, #tpu.memory_space<vmem>>, vector<1x16x16xf32>
    %647 = vector.shape_cast %646 : vector<1x16x16xf32> to vector<16x16xf32>
    %c33 = arith.constant 33 : index
    %648 = memref.load %arg1[%c33] : memref<392xf32, #tpu.memory_space<smem>>
    %649 = vector.broadcast %648 : f32 to vector<16x16xf32>
    %650 = arith.mulf %649, %647 : vector<16x16xf32>
    %651 = arith.addf %633, %650 : vector<16x16xf32>
    %c131 = arith.constant 131 : index
    %652 = memref.load %arg1[%c131] : memref<392xf32, #tpu.memory_space<smem>>
    %653 = vector.broadcast %652 : f32 to vector<16x16xf32>
    %654 = arith.mulf %653, %647 : vector<16x16xf32>
    %655 = arith.addf %637, %654 : vector<16x16xf32>
    %c229 = arith.constant 229 : index
    %656 = memref.load %arg1[%c229] : memref<392xf32, #tpu.memory_space<smem>>
    %657 = vector.broadcast %656 : f32 to vector<16x16xf32>
    %658 = arith.mulf %657, %647 : vector<16x16xf32>
    %659 = arith.addf %641, %658 : vector<16x16xf32>
    %c327 = arith.constant 327 : index
    %660 = memref.load %arg1[%c327] : memref<392xf32, #tpu.memory_space<smem>>
    %661 = vector.broadcast %660 : f32 to vector<16x16xf32>
    %662 = arith.mulf %661, %647 : vector<16x16xf32>
    %663 = arith.addf %645, %662 : vector<16x16xf32>
    %c0_150 = arith.constant 0 : index
    %c12_151 = arith.constant 12 : index
    %c18_152 = arith.constant 18 : index
    %664 = vector.load %arg5[%c0_150, %c12_151, %c18_152] : memref<2x34x34xf32, #tpu.memory_space<vmem>>, vector<1x16x16xf32>
    %665 = vector.shape_cast %664 : vector<1x16x16xf32> to vector<16x16xf32>
    %c34 = arith.constant 34 : index
    %666 = memref.load %arg1[%c34] : memref<392xf32, #tpu.memory_space<smem>>
    %667 = vector.broadcast %666 : f32 to vector<16x16xf32>
    %668 = arith.mulf %667, %665 : vector<16x16xf32>
    %669 = arith.addf %651, %668 : vector<16x16xf32>
    %c132 = arith.constant 132 : index
    %670 = memref.load %arg1[%c132] : memref<392xf32, #tpu.memory_space<smem>>
    %671 = vector.broadcast %670 : f32 to vector<16x16xf32>
    %672 = arith.mulf %671, %665 : vector<16x16xf32>
    %673 = arith.addf %655, %672 : vector<16x16xf32>
    %c230 = arith.constant 230 : index
    %674 = memref.load %arg1[%c230] : memref<392xf32, #tpu.memory_space<smem>>
    %675 = vector.broadcast %674 : f32 to vector<16x16xf32>
    %676 = arith.mulf %675, %665 : vector<16x16xf32>
    %677 = arith.addf %659, %676 : vector<16x16xf32>
    %c328 = arith.constant 328 : index
    %678 = memref.load %arg1[%c328] : memref<392xf32, #tpu.memory_space<smem>>
    %679 = vector.broadcast %678 : f32 to vector<16x16xf32>
    %680 = arith.mulf %679, %665 : vector<16x16xf32>
    %681 = arith.addf %663, %680 : vector<16x16xf32>
    %c0_153 = arith.constant 0 : index
    %c15_154 = arith.constant 15 : index
    %c0_155 = arith.constant 0 : index
    %682 = vector.load %arg5[%c0_153, %c15_154, %c0_155] : memref<2x34x34xf32, #tpu.memory_space<vmem>>, vector<1x16x16xf32>
    %683 = vector.shape_cast %682 : vector<1x16x16xf32> to vector<16x16xf32>
    %c35 = arith.constant 35 : index
    %684 = memref.load %arg1[%c35] : memref<392xf32, #tpu.memory_space<smem>>
    %685 = vector.broadcast %684 : f32 to vector<16x16xf32>
    %686 = arith.mulf %685, %683 : vector<16x16xf32>
    %687 = arith.addf %669, %686 : vector<16x16xf32>
    %c133 = arith.constant 133 : index
    %688 = memref.load %arg1[%c133] : memref<392xf32, #tpu.memory_space<smem>>
    %689 = vector.broadcast %688 : f32 to vector<16x16xf32>
    %690 = arith.mulf %689, %683 : vector<16x16xf32>
    %691 = arith.addf %673, %690 : vector<16x16xf32>
    %c231 = arith.constant 231 : index
    %692 = memref.load %arg1[%c231] : memref<392xf32, #tpu.memory_space<smem>>
    %693 = vector.broadcast %692 : f32 to vector<16x16xf32>
    %694 = arith.mulf %693, %683 : vector<16x16xf32>
    %695 = arith.addf %677, %694 : vector<16x16xf32>
    %c329 = arith.constant 329 : index
    %696 = memref.load %arg1[%c329] : memref<392xf32, #tpu.memory_space<smem>>
    %697 = vector.broadcast %696 : f32 to vector<16x16xf32>
    %698 = arith.mulf %697, %683 : vector<16x16xf32>
    %699 = arith.addf %681, %698 : vector<16x16xf32>
    %c0_156 = arith.constant 0 : index
    %c15_157 = arith.constant 15 : index
    %c3_158 = arith.constant 3 : index
    %700 = vector.load %arg5[%c0_156, %c15_157, %c3_158] : memref<2x34x34xf32, #tpu.memory_space<vmem>>, vector<1x16x16xf32>
    %701 = vector.shape_cast %700 : vector<1x16x16xf32> to vector<16x16xf32>
    %c36 = arith.constant 36 : index
    %702 = memref.load %arg1[%c36] : memref<392xf32, #tpu.memory_space<smem>>
    %703 = vector.broadcast %702 : f32 to vector<16x16xf32>
    %704 = arith.mulf %703, %701 : vector<16x16xf32>
    %705 = arith.addf %687, %704 : vector<16x16xf32>
    %c134 = arith.constant 134 : index
    %706 = memref.load %arg1[%c134] : memref<392xf32, #tpu.memory_space<smem>>
    %707 = vector.broadcast %706 : f32 to vector<16x16xf32>
    %708 = arith.mulf %707, %701 : vector<16x16xf32>
    %709 = arith.addf %691, %708 : vector<16x16xf32>
    %c232 = arith.constant 232 : index
    %710 = memref.load %arg1[%c232] : memref<392xf32, #tpu.memory_space<smem>>
    %711 = vector.broadcast %710 : f32 to vector<16x16xf32>
    %712 = arith.mulf %711, %701 : vector<16x16xf32>
    %713 = arith.addf %695, %712 : vector<16x16xf32>
    %c330 = arith.constant 330 : index
    %714 = memref.load %arg1[%c330] : memref<392xf32, #tpu.memory_space<smem>>
    %715 = vector.broadcast %714 : f32 to vector<16x16xf32>
    %716 = arith.mulf %715, %701 : vector<16x16xf32>
    %717 = arith.addf %699, %716 : vector<16x16xf32>
    %c0_159 = arith.constant 0 : index
    %c15_160 = arith.constant 15 : index
    %c6_161 = arith.constant 6 : index
    %718 = vector.load %arg5[%c0_159, %c15_160, %c6_161] : memref<2x34x34xf32, #tpu.memory_space<vmem>>, vector<1x16x16xf32>
    %719 = vector.shape_cast %718 : vector<1x16x16xf32> to vector<16x16xf32>
    %c37 = arith.constant 37 : index
    %720 = memref.load %arg1[%c37] : memref<392xf32, #tpu.memory_space<smem>>
    %721 = vector.broadcast %720 : f32 to vector<16x16xf32>
    %722 = arith.mulf %721, %719 : vector<16x16xf32>
    %723 = arith.addf %705, %722 : vector<16x16xf32>
    %c135 = arith.constant 135 : index
    %724 = memref.load %arg1[%c135] : memref<392xf32, #tpu.memory_space<smem>>
    %725 = vector.broadcast %724 : f32 to vector<16x16xf32>
    %726 = arith.mulf %725, %719 : vector<16x16xf32>
    %727 = arith.addf %709, %726 : vector<16x16xf32>
    %c233 = arith.constant 233 : index
    %728 = memref.load %arg1[%c233] : memref<392xf32, #tpu.memory_space<smem>>
    %729 = vector.broadcast %728 : f32 to vector<16x16xf32>
    %730 = arith.mulf %729, %719 : vector<16x16xf32>
    %731 = arith.addf %713, %730 : vector<16x16xf32>
    %c331 = arith.constant 331 : index
    %732 = memref.load %arg1[%c331] : memref<392xf32, #tpu.memory_space<smem>>
    %733 = vector.broadcast %732 : f32 to vector<16x16xf32>
    %734 = arith.mulf %733, %719 : vector<16x16xf32>
    %735 = arith.addf %717, %734 : vector<16x16xf32>
    %c0_162 = arith.constant 0 : index
    %c15_163 = arith.constant 15 : index
    %c9_164 = arith.constant 9 : index
    %736 = vector.load %arg5[%c0_162, %c15_163, %c9_164] : memref<2x34x34xf32, #tpu.memory_space<vmem>>, vector<1x16x16xf32>
    %737 = vector.shape_cast %736 : vector<1x16x16xf32> to vector<16x16xf32>
    %c38 = arith.constant 38 : index
    %738 = memref.load %arg1[%c38] : memref<392xf32, #tpu.memory_space<smem>>
    %739 = vector.broadcast %738 : f32 to vector<16x16xf32>
    %740 = arith.mulf %739, %737 : vector<16x16xf32>
    %741 = arith.addf %723, %740 : vector<16x16xf32>
    %c136 = arith.constant 136 : index
    %742 = memref.load %arg1[%c136] : memref<392xf32, #tpu.memory_space<smem>>
    %743 = vector.broadcast %742 : f32 to vector<16x16xf32>
    %744 = arith.mulf %743, %737 : vector<16x16xf32>
    %745 = arith.addf %727, %744 : vector<16x16xf32>
    %c234 = arith.constant 234 : index
    %746 = memref.load %arg1[%c234] : memref<392xf32, #tpu.memory_space<smem>>
    %747 = vector.broadcast %746 : f32 to vector<16x16xf32>
    %748 = arith.mulf %747, %737 : vector<16x16xf32>
    %749 = arith.addf %731, %748 : vector<16x16xf32>
    %c332 = arith.constant 332 : index
    %750 = memref.load %arg1[%c332] : memref<392xf32, #tpu.memory_space<smem>>
    %751 = vector.broadcast %750 : f32 to vector<16x16xf32>
    %752 = arith.mulf %751, %737 : vector<16x16xf32>
    %753 = arith.addf %735, %752 : vector<16x16xf32>
    %c0_165 = arith.constant 0 : index
    %c15_166 = arith.constant 15 : index
    %c12_167 = arith.constant 12 : index
    %754 = vector.load %arg5[%c0_165, %c15_166, %c12_167] : memref<2x34x34xf32, #tpu.memory_space<vmem>>, vector<1x16x16xf32>
    %755 = vector.shape_cast %754 : vector<1x16x16xf32> to vector<16x16xf32>
    %c39 = arith.constant 39 : index
    %756 = memref.load %arg1[%c39] : memref<392xf32, #tpu.memory_space<smem>>
    %757 = vector.broadcast %756 : f32 to vector<16x16xf32>
    %758 = arith.mulf %757, %755 : vector<16x16xf32>
    %759 = arith.addf %741, %758 : vector<16x16xf32>
    %c137 = arith.constant 137 : index
    %760 = memref.load %arg1[%c137] : memref<392xf32, #tpu.memory_space<smem>>
    %761 = vector.broadcast %760 : f32 to vector<16x16xf32>
    %762 = arith.mulf %761, %755 : vector<16x16xf32>
    %763 = arith.addf %745, %762 : vector<16x16xf32>
    %c235 = arith.constant 235 : index
    %764 = memref.load %arg1[%c235] : memref<392xf32, #tpu.memory_space<smem>>
    %765 = vector.broadcast %764 : f32 to vector<16x16xf32>
    %766 = arith.mulf %765, %755 : vector<16x16xf32>
    %767 = arith.addf %749, %766 : vector<16x16xf32>
    %c333 = arith.constant 333 : index
    %768 = memref.load %arg1[%c333] : memref<392xf32, #tpu.memory_space<smem>>
    %769 = vector.broadcast %768 : f32 to vector<16x16xf32>
    %770 = arith.mulf %769, %755 : vector<16x16xf32>
    %771 = arith.addf %753, %770 : vector<16x16xf32>
    %c0_168 = arith.constant 0 : index
    %c15_169 = arith.constant 15 : index
    %c15_170 = arith.constant 15 : index
    %772 = vector.load %arg5[%c0_168, %c15_169, %c15_170] : memref<2x34x34xf32, #tpu.memory_space<vmem>>, vector<1x16x16xf32>
    %773 = vector.shape_cast %772 : vector<1x16x16xf32> to vector<16x16xf32>
    %c40 = arith.constant 40 : index
    %774 = memref.load %arg1[%c40] : memref<392xf32, #tpu.memory_space<smem>>
    %775 = vector.broadcast %774 : f32 to vector<16x16xf32>
    %776 = arith.mulf %775, %773 : vector<16x16xf32>
    %777 = arith.addf %759, %776 : vector<16x16xf32>
    %c138 = arith.constant 138 : index
    %778 = memref.load %arg1[%c138] : memref<392xf32, #tpu.memory_space<smem>>
    %779 = vector.broadcast %778 : f32 to vector<16x16xf32>
    %780 = arith.mulf %779, %773 : vector<16x16xf32>
    %781 = arith.addf %763, %780 : vector<16x16xf32>
    %c236 = arith.constant 236 : index
    %782 = memref.load %arg1[%c236] : memref<392xf32, #tpu.memory_space<smem>>
    %783 = vector.broadcast %782 : f32 to vector<16x16xf32>
    %784 = arith.mulf %783, %773 : vector<16x16xf32>
    %785 = arith.addf %767, %784 : vector<16x16xf32>
    %c334 = arith.constant 334 : index
    %786 = memref.load %arg1[%c334] : memref<392xf32, #tpu.memory_space<smem>>
    %787 = vector.broadcast %786 : f32 to vector<16x16xf32>
    %788 = arith.mulf %787, %773 : vector<16x16xf32>
    %789 = arith.addf %771, %788 : vector<16x16xf32>
    %c0_171 = arith.constant 0 : index
    %c15_172 = arith.constant 15 : index
    %c18_173 = arith.constant 18 : index
    %790 = vector.load %arg5[%c0_171, %c15_172, %c18_173] : memref<2x34x34xf32, #tpu.memory_space<vmem>>, vector<1x16x16xf32>
    %791 = vector.shape_cast %790 : vector<1x16x16xf32> to vector<16x16xf32>
    %c41 = arith.constant 41 : index
    %792 = memref.load %arg1[%c41] : memref<392xf32, #tpu.memory_space<smem>>
    %793 = vector.broadcast %792 : f32 to vector<16x16xf32>
    %794 = arith.mulf %793, %791 : vector<16x16xf32>
    %795 = arith.addf %777, %794 : vector<16x16xf32>
    %c139 = arith.constant 139 : index
    %796 = memref.load %arg1[%c139] : memref<392xf32, #tpu.memory_space<smem>>
    %797 = vector.broadcast %796 : f32 to vector<16x16xf32>
    %798 = arith.mulf %797, %791 : vector<16x16xf32>
    %799 = arith.addf %781, %798 : vector<16x16xf32>
    %c237 = arith.constant 237 : index
    %800 = memref.load %arg1[%c237] : memref<392xf32, #tpu.memory_space<smem>>
    %801 = vector.broadcast %800 : f32 to vector<16x16xf32>
    %802 = arith.mulf %801, %791 : vector<16x16xf32>
    %803 = arith.addf %785, %802 : vector<16x16xf32>
    %c335 = arith.constant 335 : index
    %804 = memref.load %arg1[%c335] : memref<392xf32, #tpu.memory_space<smem>>
    %805 = vector.broadcast %804 : f32 to vector<16x16xf32>
    %806 = arith.mulf %805, %791 : vector<16x16xf32>
    %807 = arith.addf %789, %806 : vector<16x16xf32>
    %c0_174 = arith.constant 0 : index
    %c18_175 = arith.constant 18 : index
    %c0_176 = arith.constant 0 : index
    %808 = vector.load %arg5[%c0_174, %c18_175, %c0_176] : memref<2x34x34xf32, #tpu.memory_space<vmem>>, vector<1x16x16xf32>
    %809 = vector.shape_cast %808 : vector<1x16x16xf32> to vector<16x16xf32>
    %c42 = arith.constant 42 : index
    %810 = memref.load %arg1[%c42] : memref<392xf32, #tpu.memory_space<smem>>
    %811 = vector.broadcast %810 : f32 to vector<16x16xf32>
    %812 = arith.mulf %811, %809 : vector<16x16xf32>
    %813 = arith.addf %795, %812 : vector<16x16xf32>
    %c140 = arith.constant 140 : index
    %814 = memref.load %arg1[%c140] : memref<392xf32, #tpu.memory_space<smem>>
    %815 = vector.broadcast %814 : f32 to vector<16x16xf32>
    %816 = arith.mulf %815, %809 : vector<16x16xf32>
    %817 = arith.addf %799, %816 : vector<16x16xf32>
    %c238 = arith.constant 238 : index
    %818 = memref.load %arg1[%c238] : memref<392xf32, #tpu.memory_space<smem>>
    %819 = vector.broadcast %818 : f32 to vector<16x16xf32>
    %820 = arith.mulf %819, %809 : vector<16x16xf32>
    %821 = arith.addf %803, %820 : vector<16x16xf32>
    %c336 = arith.constant 336 : index
    %822 = memref.load %arg1[%c336] : memref<392xf32, #tpu.memory_space<smem>>
    %823 = vector.broadcast %822 : f32 to vector<16x16xf32>
    %824 = arith.mulf %823, %809 : vector<16x16xf32>
    %825 = arith.addf %807, %824 : vector<16x16xf32>
    %c0_177 = arith.constant 0 : index
    %c18_178 = arith.constant 18 : index
    %c3_179 = arith.constant 3 : index
    %826 = vector.load %arg5[%c0_177, %c18_178, %c3_179] : memref<2x34x34xf32, #tpu.memory_space<vmem>>, vector<1x16x16xf32>
    %827 = vector.shape_cast %826 : vector<1x16x16xf32> to vector<16x16xf32>
    %c43 = arith.constant 43 : index
    %828 = memref.load %arg1[%c43] : memref<392xf32, #tpu.memory_space<smem>>
    %829 = vector.broadcast %828 : f32 to vector<16x16xf32>
    %830 = arith.mulf %829, %827 : vector<16x16xf32>
    %831 = arith.addf %813, %830 : vector<16x16xf32>
    %c141 = arith.constant 141 : index
    %832 = memref.load %arg1[%c141] : memref<392xf32, #tpu.memory_space<smem>>
    %833 = vector.broadcast %832 : f32 to vector<16x16xf32>
    %834 = arith.mulf %833, %827 : vector<16x16xf32>
    %835 = arith.addf %817, %834 : vector<16x16xf32>
    %c239 = arith.constant 239 : index
    %836 = memref.load %arg1[%c239] : memref<392xf32, #tpu.memory_space<smem>>
    %837 = vector.broadcast %836 : f32 to vector<16x16xf32>
    %838 = arith.mulf %837, %827 : vector<16x16xf32>
    %839 = arith.addf %821, %838 : vector<16x16xf32>
    %c337 = arith.constant 337 : index
    %840 = memref.load %arg1[%c337] : memref<392xf32, #tpu.memory_space<smem>>
    %841 = vector.broadcast %840 : f32 to vector<16x16xf32>
    %842 = arith.mulf %841, %827 : vector<16x16xf32>
    %843 = arith.addf %825, %842 : vector<16x16xf32>
    %c0_180 = arith.constant 0 : index
    %c18_181 = arith.constant 18 : index
    %c6_182 = arith.constant 6 : index
    %844 = vector.load %arg5[%c0_180, %c18_181, %c6_182] : memref<2x34x34xf32, #tpu.memory_space<vmem>>, vector<1x16x16xf32>
    %845 = vector.shape_cast %844 : vector<1x16x16xf32> to vector<16x16xf32>
    %c44 = arith.constant 44 : index
    %846 = memref.load %arg1[%c44] : memref<392xf32, #tpu.memory_space<smem>>
    %847 = vector.broadcast %846 : f32 to vector<16x16xf32>
    %848 = arith.mulf %847, %845 : vector<16x16xf32>
    %849 = arith.addf %831, %848 : vector<16x16xf32>
    %c142 = arith.constant 142 : index
    %850 = memref.load %arg1[%c142] : memref<392xf32, #tpu.memory_space<smem>>
    %851 = vector.broadcast %850 : f32 to vector<16x16xf32>
    %852 = arith.mulf %851, %845 : vector<16x16xf32>
    %853 = arith.addf %835, %852 : vector<16x16xf32>
    %c240 = arith.constant 240 : index
    %854 = memref.load %arg1[%c240] : memref<392xf32, #tpu.memory_space<smem>>
    %855 = vector.broadcast %854 : f32 to vector<16x16xf32>
    %856 = arith.mulf %855, %845 : vector<16x16xf32>
    %857 = arith.addf %839, %856 : vector<16x16xf32>
    %c338 = arith.constant 338 : index
    %858 = memref.load %arg1[%c338] : memref<392xf32, #tpu.memory_space<smem>>
    %859 = vector.broadcast %858 : f32 to vector<16x16xf32>
    %860 = arith.mulf %859, %845 : vector<16x16xf32>
    %861 = arith.addf %843, %860 : vector<16x16xf32>
    %c0_183 = arith.constant 0 : index
    %c18_184 = arith.constant 18 : index
    %c9_185 = arith.constant 9 : index
    %862 = vector.load %arg5[%c0_183, %c18_184, %c9_185] : memref<2x34x34xf32, #tpu.memory_space<vmem>>, vector<1x16x16xf32>
    %863 = vector.shape_cast %862 : vector<1x16x16xf32> to vector<16x16xf32>
    %c45 = arith.constant 45 : index
    %864 = memref.load %arg1[%c45] : memref<392xf32, #tpu.memory_space<smem>>
    %865 = vector.broadcast %864 : f32 to vector<16x16xf32>
    %866 = arith.mulf %865, %863 : vector<16x16xf32>
    %867 = arith.addf %849, %866 : vector<16x16xf32>
    %c143 = arith.constant 143 : index
    %868 = memref.load %arg1[%c143] : memref<392xf32, #tpu.memory_space<smem>>
    %869 = vector.broadcast %868 : f32 to vector<16x16xf32>
    %870 = arith.mulf %869, %863 : vector<16x16xf32>
    %871 = arith.addf %853, %870 : vector<16x16xf32>
    %c241 = arith.constant 241 : index
    %872 = memref.load %arg1[%c241] : memref<392xf32, #tpu.memory_space<smem>>
    %873 = vector.broadcast %872 : f32 to vector<16x16xf32>
    %874 = arith.mulf %873, %863 : vector<16x16xf32>
    %875 = arith.addf %857, %874 : vector<16x16xf32>
    %c339 = arith.constant 339 : index
    %876 = memref.load %arg1[%c339] : memref<392xf32, #tpu.memory_space<smem>>
    %877 = vector.broadcast %876 : f32 to vector<16x16xf32>
    %878 = arith.mulf %877, %863 : vector<16x16xf32>
    %879 = arith.addf %861, %878 : vector<16x16xf32>
    %c0_186 = arith.constant 0 : index
    %c18_187 = arith.constant 18 : index
    %c12_188 = arith.constant 12 : index
    %880 = vector.load %arg5[%c0_186, %c18_187, %c12_188] : memref<2x34x34xf32, #tpu.memory_space<vmem>>, vector<1x16x16xf32>
    %881 = vector.shape_cast %880 : vector<1x16x16xf32> to vector<16x16xf32>
    %c46 = arith.constant 46 : index
    %882 = memref.load %arg1[%c46] : memref<392xf32, #tpu.memory_space<smem>>
    %883 = vector.broadcast %882 : f32 to vector<16x16xf32>
    %884 = arith.mulf %883, %881 : vector<16x16xf32>
    %885 = arith.addf %867, %884 : vector<16x16xf32>
    %c144 = arith.constant 144 : index
    %886 = memref.load %arg1[%c144] : memref<392xf32, #tpu.memory_space<smem>>
    %887 = vector.broadcast %886 : f32 to vector<16x16xf32>
    %888 = arith.mulf %887, %881 : vector<16x16xf32>
    %889 = arith.addf %871, %888 : vector<16x16xf32>
    %c242 = arith.constant 242 : index
    %890 = memref.load %arg1[%c242] : memref<392xf32, #tpu.memory_space<smem>>
    %891 = vector.broadcast %890 : f32 to vector<16x16xf32>
    %892 = arith.mulf %891, %881 : vector<16x16xf32>
    %893 = arith.addf %875, %892 : vector<16x16xf32>
    %c340 = arith.constant 340 : index
    %894 = memref.load %arg1[%c340] : memref<392xf32, #tpu.memory_space<smem>>
    %895 = vector.broadcast %894 : f32 to vector<16x16xf32>
    %896 = arith.mulf %895, %881 : vector<16x16xf32>
    %897 = arith.addf %879, %896 : vector<16x16xf32>
    %c0_189 = arith.constant 0 : index
    %c18_190 = arith.constant 18 : index
    %c15_191 = arith.constant 15 : index
    %898 = vector.load %arg5[%c0_189, %c18_190, %c15_191] : memref<2x34x34xf32, #tpu.memory_space<vmem>>, vector<1x16x16xf32>
    %899 = vector.shape_cast %898 : vector<1x16x16xf32> to vector<16x16xf32>
    %c47 = arith.constant 47 : index
    %900 = memref.load %arg1[%c47] : memref<392xf32, #tpu.memory_space<smem>>
    %901 = vector.broadcast %900 : f32 to vector<16x16xf32>
    %902 = arith.mulf %901, %899 : vector<16x16xf32>
    %903 = arith.addf %885, %902 : vector<16x16xf32>
    %c145 = arith.constant 145 : index
    %904 = memref.load %arg1[%c145] : memref<392xf32, #tpu.memory_space<smem>>
    %905 = vector.broadcast %904 : f32 to vector<16x16xf32>
    %906 = arith.mulf %905, %899 : vector<16x16xf32>
    %907 = arith.addf %889, %906 : vector<16x16xf32>
    %c243 = arith.constant 243 : index
    %908 = memref.load %arg1[%c243] : memref<392xf32, #tpu.memory_space<smem>>
    %909 = vector.broadcast %908 : f32 to vector<16x16xf32>
    %910 = arith.mulf %909, %899 : vector<16x16xf32>
    %911 = arith.addf %893, %910 : vector<16x16xf32>
    %c341 = arith.constant 341 : index
    %912 = memref.load %arg1[%c341] : memref<392xf32, #tpu.memory_space<smem>>
    %913 = vector.broadcast %912 : f32 to vector<16x16xf32>
    %914 = arith.mulf %913, %899 : vector<16x16xf32>
    %915 = arith.addf %897, %914 : vector<16x16xf32>
    %c0_192 = arith.constant 0 : index
    %c18_193 = arith.constant 18 : index
    %c18_194 = arith.constant 18 : index
    %916 = vector.load %arg5[%c0_192, %c18_193, %c18_194] : memref<2x34x34xf32, #tpu.memory_space<vmem>>, vector<1x16x16xf32>
    %917 = vector.shape_cast %916 : vector<1x16x16xf32> to vector<16x16xf32>
    %c48 = arith.constant 48 : index
    %918 = memref.load %arg1[%c48] : memref<392xf32, #tpu.memory_space<smem>>
    %919 = vector.broadcast %918 : f32 to vector<16x16xf32>
    %920 = arith.mulf %919, %917 : vector<16x16xf32>
    %921 = arith.addf %903, %920 : vector<16x16xf32>
    %c146 = arith.constant 146 : index
    %922 = memref.load %arg1[%c146] : memref<392xf32, #tpu.memory_space<smem>>
    %923 = vector.broadcast %922 : f32 to vector<16x16xf32>
    %924 = arith.mulf %923, %917 : vector<16x16xf32>
    %925 = arith.addf %907, %924 : vector<16x16xf32>
    %c244 = arith.constant 244 : index
    %926 = memref.load %arg1[%c244] : memref<392xf32, #tpu.memory_space<smem>>
    %927 = vector.broadcast %926 : f32 to vector<16x16xf32>
    %928 = arith.mulf %927, %917 : vector<16x16xf32>
    %929 = arith.addf %911, %928 : vector<16x16xf32>
    %c342 = arith.constant 342 : index
    %930 = memref.load %arg1[%c342] : memref<392xf32, #tpu.memory_space<smem>>
    %931 = vector.broadcast %930 : f32 to vector<16x16xf32>
    %932 = arith.mulf %931, %917 : vector<16x16xf32>
    %933 = arith.addf %915, %932 : vector<16x16xf32>
    %c1_195 = arith.constant 1 : index
    %c0_196 = arith.constant 0 : index
    %c0_197 = arith.constant 0 : index
    %934 = vector.load %arg5[%c1_195, %c0_196, %c0_197] : memref<2x34x34xf32, #tpu.memory_space<vmem>>, vector<1x16x16xf32>
    %935 = vector.shape_cast %934 : vector<1x16x16xf32> to vector<16x16xf32>
    %c49 = arith.constant 49 : index
    %936 = memref.load %arg1[%c49] : memref<392xf32, #tpu.memory_space<smem>>
    %937 = vector.broadcast %936 : f32 to vector<16x16xf32>
    %938 = arith.mulf %937, %935 : vector<16x16xf32>
    %939 = arith.addf %921, %938 : vector<16x16xf32>
    %c147 = arith.constant 147 : index
    %940 = memref.load %arg1[%c147] : memref<392xf32, #tpu.memory_space<smem>>
    %941 = vector.broadcast %940 : f32 to vector<16x16xf32>
    %942 = arith.mulf %941, %935 : vector<16x16xf32>
    %943 = arith.addf %925, %942 : vector<16x16xf32>
    %c245 = arith.constant 245 : index
    %944 = memref.load %arg1[%c245] : memref<392xf32, #tpu.memory_space<smem>>
    %945 = vector.broadcast %944 : f32 to vector<16x16xf32>
    %946 = arith.mulf %945, %935 : vector<16x16xf32>
    %947 = arith.addf %929, %946 : vector<16x16xf32>
    %c343 = arith.constant 343 : index
    %948 = memref.load %arg1[%c343] : memref<392xf32, #tpu.memory_space<smem>>
    %949 = vector.broadcast %948 : f32 to vector<16x16xf32>
    %950 = arith.mulf %949, %935 : vector<16x16xf32>
    %951 = arith.addf %933, %950 : vector<16x16xf32>
    %c1_198 = arith.constant 1 : index
    %c0_199 = arith.constant 0 : index
    %c3_200 = arith.constant 3 : index
    %952 = vector.load %arg5[%c1_198, %c0_199, %c3_200] : memref<2x34x34xf32, #tpu.memory_space<vmem>>, vector<1x16x16xf32>
    %953 = vector.shape_cast %952 : vector<1x16x16xf32> to vector<16x16xf32>
    %c50 = arith.constant 50 : index
    %954 = memref.load %arg1[%c50] : memref<392xf32, #tpu.memory_space<smem>>
    %955 = vector.broadcast %954 : f32 to vector<16x16xf32>
    %956 = arith.mulf %955, %953 : vector<16x16xf32>
    %957 = arith.addf %939, %956 : vector<16x16xf32>
    %c148 = arith.constant 148 : index
    %958 = memref.load %arg1[%c148] : memref<392xf32, #tpu.memory_space<smem>>
    %959 = vector.broadcast %958 : f32 to vector<16x16xf32>
    %960 = arith.mulf %959, %953 : vector<16x16xf32>
    %961 = arith.addf %943, %960 : vector<16x16xf32>
    %c246 = arith.constant 246 : index
    %962 = memref.load %arg1[%c246] : memref<392xf32, #tpu.memory_space<smem>>
    %963 = vector.broadcast %962 : f32 to vector<16x16xf32>
    %964 = arith.mulf %963, %953 : vector<16x16xf32>
    %965 = arith.addf %947, %964 : vector<16x16xf32>
    %c344 = arith.constant 344 : index
    %966 = memref.load %arg1[%c344] : memref<392xf32, #tpu.memory_space<smem>>
    %967 = vector.broadcast %966 : f32 to vector<16x16xf32>
    %968 = arith.mulf %967, %953 : vector<16x16xf32>
    %969 = arith.addf %951, %968 : vector<16x16xf32>
    %c1_201 = arith.constant 1 : index
    %c0_202 = arith.constant 0 : index
    %c6_203 = arith.constant 6 : index
    %970 = vector.load %arg5[%c1_201, %c0_202, %c6_203] : memref<2x34x34xf32, #tpu.memory_space<vmem>>, vector<1x16x16xf32>
    %971 = vector.shape_cast %970 : vector<1x16x16xf32> to vector<16x16xf32>
    %c51 = arith.constant 51 : index
    %972 = memref.load %arg1[%c51] : memref<392xf32, #tpu.memory_space<smem>>
    %973 = vector.broadcast %972 : f32 to vector<16x16xf32>
    %974 = arith.mulf %973, %971 : vector<16x16xf32>
    %975 = arith.addf %957, %974 : vector<16x16xf32>
    %c149 = arith.constant 149 : index
    %976 = memref.load %arg1[%c149] : memref<392xf32, #tpu.memory_space<smem>>
    %977 = vector.broadcast %976 : f32 to vector<16x16xf32>
    %978 = arith.mulf %977, %971 : vector<16x16xf32>
    %979 = arith.addf %961, %978 : vector<16x16xf32>
    %c247 = arith.constant 247 : index
    %980 = memref.load %arg1[%c247] : memref<392xf32, #tpu.memory_space<smem>>
    %981 = vector.broadcast %980 : f32 to vector<16x16xf32>
    %982 = arith.mulf %981, %971 : vector<16x16xf32>
    %983 = arith.addf %965, %982 : vector<16x16xf32>
    %c345 = arith.constant 345 : index
    %984 = memref.load %arg1[%c345] : memref<392xf32, #tpu.memory_space<smem>>
    %985 = vector.broadcast %984 : f32 to vector<16x16xf32>
    %986 = arith.mulf %985, %971 : vector<16x16xf32>
    %987 = arith.addf %969, %986 : vector<16x16xf32>
    %c1_204 = arith.constant 1 : index
    %c0_205 = arith.constant 0 : index
    %c9_206 = arith.constant 9 : index
    %988 = vector.load %arg5[%c1_204, %c0_205, %c9_206] : memref<2x34x34xf32, #tpu.memory_space<vmem>>, vector<1x16x16xf32>
    %989 = vector.shape_cast %988 : vector<1x16x16xf32> to vector<16x16xf32>
    %c52 = arith.constant 52 : index
    %990 = memref.load %arg1[%c52] : memref<392xf32, #tpu.memory_space<smem>>
    %991 = vector.broadcast %990 : f32 to vector<16x16xf32>
    %992 = arith.mulf %991, %989 : vector<16x16xf32>
    %993 = arith.addf %975, %992 : vector<16x16xf32>
    %c150 = arith.constant 150 : index
    %994 = memref.load %arg1[%c150] : memref<392xf32, #tpu.memory_space<smem>>
    %995 = vector.broadcast %994 : f32 to vector<16x16xf32>
    %996 = arith.mulf %995, %989 : vector<16x16xf32>
    %997 = arith.addf %979, %996 : vector<16x16xf32>
    %c248 = arith.constant 248 : index
    %998 = memref.load %arg1[%c248] : memref<392xf32, #tpu.memory_space<smem>>
    %999 = vector.broadcast %998 : f32 to vector<16x16xf32>
    %1000 = arith.mulf %999, %989 : vector<16x16xf32>
    %1001 = arith.addf %983, %1000 : vector<16x16xf32>
    %c346 = arith.constant 346 : index
    %1002 = memref.load %arg1[%c346] : memref<392xf32, #tpu.memory_space<smem>>
    %1003 = vector.broadcast %1002 : f32 to vector<16x16xf32>
    %1004 = arith.mulf %1003, %989 : vector<16x16xf32>
    %1005 = arith.addf %987, %1004 : vector<16x16xf32>
    %c1_207 = arith.constant 1 : index
    %c0_208 = arith.constant 0 : index
    %c12_209 = arith.constant 12 : index
    %1006 = vector.load %arg5[%c1_207, %c0_208, %c12_209] : memref<2x34x34xf32, #tpu.memory_space<vmem>>, vector<1x16x16xf32>
    %1007 = vector.shape_cast %1006 : vector<1x16x16xf32> to vector<16x16xf32>
    %c53 = arith.constant 53 : index
    %1008 = memref.load %arg1[%c53] : memref<392xf32, #tpu.memory_space<smem>>
    %1009 = vector.broadcast %1008 : f32 to vector<16x16xf32>
    %1010 = arith.mulf %1009, %1007 : vector<16x16xf32>
    %1011 = arith.addf %993, %1010 : vector<16x16xf32>
    %c151 = arith.constant 151 : index
    %1012 = memref.load %arg1[%c151] : memref<392xf32, #tpu.memory_space<smem>>
    %1013 = vector.broadcast %1012 : f32 to vector<16x16xf32>
    %1014 = arith.mulf %1013, %1007 : vector<16x16xf32>
    %1015 = arith.addf %997, %1014 : vector<16x16xf32>
    %c249 = arith.constant 249 : index
    %1016 = memref.load %arg1[%c249] : memref<392xf32, #tpu.memory_space<smem>>
    %1017 = vector.broadcast %1016 : f32 to vector<16x16xf32>
    %1018 = arith.mulf %1017, %1007 : vector<16x16xf32>
    %1019 = arith.addf %1001, %1018 : vector<16x16xf32>
    %c347 = arith.constant 347 : index
    %1020 = memref.load %arg1[%c347] : memref<392xf32, #tpu.memory_space<smem>>
    %1021 = vector.broadcast %1020 : f32 to vector<16x16xf32>
    %1022 = arith.mulf %1021, %1007 : vector<16x16xf32>
    %1023 = arith.addf %1005, %1022 : vector<16x16xf32>
    %c1_210 = arith.constant 1 : index
    %c0_211 = arith.constant 0 : index
    %c15_212 = arith.constant 15 : index
    %1024 = vector.load %arg5[%c1_210, %c0_211, %c15_212] : memref<2x34x34xf32, #tpu.memory_space<vmem>>, vector<1x16x16xf32>
    %1025 = vector.shape_cast %1024 : vector<1x16x16xf32> to vector<16x16xf32>
    %c54 = arith.constant 54 : index
    %1026 = memref.load %arg1[%c54] : memref<392xf32, #tpu.memory_space<smem>>
    %1027 = vector.broadcast %1026 : f32 to vector<16x16xf32>
    %1028 = arith.mulf %1027, %1025 : vector<16x16xf32>
    %1029 = arith.addf %1011, %1028 : vector<16x16xf32>
    %c152 = arith.constant 152 : index
    %1030 = memref.load %arg1[%c152] : memref<392xf32, #tpu.memory_space<smem>>
    %1031 = vector.broadcast %1030 : f32 to vector<16x16xf32>
    %1032 = arith.mulf %1031, %1025 : vector<16x16xf32>
    %1033 = arith.addf %1015, %1032 : vector<16x16xf32>
    %c250 = arith.constant 250 : index
    %1034 = memref.load %arg1[%c250] : memref<392xf32, #tpu.memory_space<smem>>
    %1035 = vector.broadcast %1034 : f32 to vector<16x16xf32>
    %1036 = arith.mulf %1035, %1025 : vector<16x16xf32>
    %1037 = arith.addf %1019, %1036 : vector<16x16xf32>
    %c348 = arith.constant 348 : index
    %1038 = memref.load %arg1[%c348] : memref<392xf32, #tpu.memory_space<smem>>
    %1039 = vector.broadcast %1038 : f32 to vector<16x16xf32>
    %1040 = arith.mulf %1039, %1025 : vector<16x16xf32>
    %1041 = arith.addf %1023, %1040 : vector<16x16xf32>
    %c1_213 = arith.constant 1 : index
    %c0_214 = arith.constant 0 : index
    %c18_215 = arith.constant 18 : index
    %1042 = vector.load %arg5[%c1_213, %c0_214, %c18_215] : memref<2x34x34xf32, #tpu.memory_space<vmem>>, vector<1x16x16xf32>
    %1043 = vector.shape_cast %1042 : vector<1x16x16xf32> to vector<16x16xf32>
    %c55 = arith.constant 55 : index
    %1044 = memref.load %arg1[%c55] : memref<392xf32, #tpu.memory_space<smem>>
    %1045 = vector.broadcast %1044 : f32 to vector<16x16xf32>
    %1046 = arith.mulf %1045, %1043 : vector<16x16xf32>
    %1047 = arith.addf %1029, %1046 : vector<16x16xf32>
    %c153 = arith.constant 153 : index
    %1048 = memref.load %arg1[%c153] : memref<392xf32, #tpu.memory_space<smem>>
    %1049 = vector.broadcast %1048 : f32 to vector<16x16xf32>
    %1050 = arith.mulf %1049, %1043 : vector<16x16xf32>
    %1051 = arith.addf %1033, %1050 : vector<16x16xf32>
    %c251 = arith.constant 251 : index
    %1052 = memref.load %arg1[%c251] : memref<392xf32, #tpu.memory_space<smem>>
    %1053 = vector.broadcast %1052 : f32 to vector<16x16xf32>
    %1054 = arith.mulf %1053, %1043 : vector<16x16xf32>
    %1055 = arith.addf %1037, %1054 : vector<16x16xf32>
    %c349 = arith.constant 349 : index
    %1056 = memref.load %arg1[%c349] : memref<392xf32, #tpu.memory_space<smem>>
    %1057 = vector.broadcast %1056 : f32 to vector<16x16xf32>
    %1058 = arith.mulf %1057, %1043 : vector<16x16xf32>
    %1059 = arith.addf %1041, %1058 : vector<16x16xf32>
    %c1_216 = arith.constant 1 : index
    %c3_217 = arith.constant 3 : index
    %c0_218 = arith.constant 0 : index
    %1060 = vector.load %arg5[%c1_216, %c3_217, %c0_218] : memref<2x34x34xf32, #tpu.memory_space<vmem>>, vector<1x16x16xf32>
    %1061 = vector.shape_cast %1060 : vector<1x16x16xf32> to vector<16x16xf32>
    %c56 = arith.constant 56 : index
    %1062 = memref.load %arg1[%c56] : memref<392xf32, #tpu.memory_space<smem>>
    %1063 = vector.broadcast %1062 : f32 to vector<16x16xf32>
    %1064 = arith.mulf %1063, %1061 : vector<16x16xf32>
    %1065 = arith.addf %1047, %1064 : vector<16x16xf32>
    %c154 = arith.constant 154 : index
    %1066 = memref.load %arg1[%c154] : memref<392xf32, #tpu.memory_space<smem>>
    %1067 = vector.broadcast %1066 : f32 to vector<16x16xf32>
    %1068 = arith.mulf %1067, %1061 : vector<16x16xf32>
    %1069 = arith.addf %1051, %1068 : vector<16x16xf32>
    %c252 = arith.constant 252 : index
    %1070 = memref.load %arg1[%c252] : memref<392xf32, #tpu.memory_space<smem>>
    %1071 = vector.broadcast %1070 : f32 to vector<16x16xf32>
    %1072 = arith.mulf %1071, %1061 : vector<16x16xf32>
    %1073 = arith.addf %1055, %1072 : vector<16x16xf32>
    %c350 = arith.constant 350 : index
    %1074 = memref.load %arg1[%c350] : memref<392xf32, #tpu.memory_space<smem>>
    %1075 = vector.broadcast %1074 : f32 to vector<16x16xf32>
    %1076 = arith.mulf %1075, %1061 : vector<16x16xf32>
    %1077 = arith.addf %1059, %1076 : vector<16x16xf32>
    %c1_219 = arith.constant 1 : index
    %c3_220 = arith.constant 3 : index
    %c3_221 = arith.constant 3 : index
    %1078 = vector.load %arg5[%c1_219, %c3_220, %c3_221] : memref<2x34x34xf32, #tpu.memory_space<vmem>>, vector<1x16x16xf32>
    %1079 = vector.shape_cast %1078 : vector<1x16x16xf32> to vector<16x16xf32>
    %c57 = arith.constant 57 : index
    %1080 = memref.load %arg1[%c57] : memref<392xf32, #tpu.memory_space<smem>>
    %1081 = vector.broadcast %1080 : f32 to vector<16x16xf32>
    %1082 = arith.mulf %1081, %1079 : vector<16x16xf32>
    %1083 = arith.addf %1065, %1082 : vector<16x16xf32>
    %c155 = arith.constant 155 : index
    %1084 = memref.load %arg1[%c155] : memref<392xf32, #tpu.memory_space<smem>>
    %1085 = vector.broadcast %1084 : f32 to vector<16x16xf32>
    %1086 = arith.mulf %1085, %1079 : vector<16x16xf32>
    %1087 = arith.addf %1069, %1086 : vector<16x16xf32>
    %c253 = arith.constant 253 : index
    %1088 = memref.load %arg1[%c253] : memref<392xf32, #tpu.memory_space<smem>>
    %1089 = vector.broadcast %1088 : f32 to vector<16x16xf32>
    %1090 = arith.mulf %1089, %1079 : vector<16x16xf32>
    %1091 = arith.addf %1073, %1090 : vector<16x16xf32>
    %c351 = arith.constant 351 : index
    %1092 = memref.load %arg1[%c351] : memref<392xf32, #tpu.memory_space<smem>>
    %1093 = vector.broadcast %1092 : f32 to vector<16x16xf32>
    %1094 = arith.mulf %1093, %1079 : vector<16x16xf32>
    %1095 = arith.addf %1077, %1094 : vector<16x16xf32>
    %c1_222 = arith.constant 1 : index
    %c3_223 = arith.constant 3 : index
    %c6_224 = arith.constant 6 : index
    %1096 = vector.load %arg5[%c1_222, %c3_223, %c6_224] : memref<2x34x34xf32, #tpu.memory_space<vmem>>, vector<1x16x16xf32>
    %1097 = vector.shape_cast %1096 : vector<1x16x16xf32> to vector<16x16xf32>
    %c58 = arith.constant 58 : index
    %1098 = memref.load %arg1[%c58] : memref<392xf32, #tpu.memory_space<smem>>
    %1099 = vector.broadcast %1098 : f32 to vector<16x16xf32>
    %1100 = arith.mulf %1099, %1097 : vector<16x16xf32>
    %1101 = arith.addf %1083, %1100 : vector<16x16xf32>
    %c156 = arith.constant 156 : index
    %1102 = memref.load %arg1[%c156] : memref<392xf32, #tpu.memory_space<smem>>
    %1103 = vector.broadcast %1102 : f32 to vector<16x16xf32>
    %1104 = arith.mulf %1103, %1097 : vector<16x16xf32>
    %1105 = arith.addf %1087, %1104 : vector<16x16xf32>
    %c254 = arith.constant 254 : index
    %1106 = memref.load %arg1[%c254] : memref<392xf32, #tpu.memory_space<smem>>
    %1107 = vector.broadcast %1106 : f32 to vector<16x16xf32>
    %1108 = arith.mulf %1107, %1097 : vector<16x16xf32>
    %1109 = arith.addf %1091, %1108 : vector<16x16xf32>
    %c352 = arith.constant 352 : index
    %1110 = memref.load %arg1[%c352] : memref<392xf32, #tpu.memory_space<smem>>
    %1111 = vector.broadcast %1110 : f32 to vector<16x16xf32>
    %1112 = arith.mulf %1111, %1097 : vector<16x16xf32>
    %1113 = arith.addf %1095, %1112 : vector<16x16xf32>
    %c1_225 = arith.constant 1 : index
    %c3_226 = arith.constant 3 : index
    %c9_227 = arith.constant 9 : index
    %1114 = vector.load %arg5[%c1_225, %c3_226, %c9_227] : memref<2x34x34xf32, #tpu.memory_space<vmem>>, vector<1x16x16xf32>
    %1115 = vector.shape_cast %1114 : vector<1x16x16xf32> to vector<16x16xf32>
    %c59 = arith.constant 59 : index
    %1116 = memref.load %arg1[%c59] : memref<392xf32, #tpu.memory_space<smem>>
    %1117 = vector.broadcast %1116 : f32 to vector<16x16xf32>
    %1118 = arith.mulf %1117, %1115 : vector<16x16xf32>
    %1119 = arith.addf %1101, %1118 : vector<16x16xf32>
    %c157 = arith.constant 157 : index
    %1120 = memref.load %arg1[%c157] : memref<392xf32, #tpu.memory_space<smem>>
    %1121 = vector.broadcast %1120 : f32 to vector<16x16xf32>
    %1122 = arith.mulf %1121, %1115 : vector<16x16xf32>
    %1123 = arith.addf %1105, %1122 : vector<16x16xf32>
    %c255 = arith.constant 255 : index
    %1124 = memref.load %arg1[%c255] : memref<392xf32, #tpu.memory_space<smem>>
    %1125 = vector.broadcast %1124 : f32 to vector<16x16xf32>
    %1126 = arith.mulf %1125, %1115 : vector<16x16xf32>
    %1127 = arith.addf %1109, %1126 : vector<16x16xf32>
    %c353 = arith.constant 353 : index
    %1128 = memref.load %arg1[%c353] : memref<392xf32, #tpu.memory_space<smem>>
    %1129 = vector.broadcast %1128 : f32 to vector<16x16xf32>
    %1130 = arith.mulf %1129, %1115 : vector<16x16xf32>
    %1131 = arith.addf %1113, %1130 : vector<16x16xf32>
    %c1_228 = arith.constant 1 : index
    %c3_229 = arith.constant 3 : index
    %c12_230 = arith.constant 12 : index
    %1132 = vector.load %arg5[%c1_228, %c3_229, %c12_230] : memref<2x34x34xf32, #tpu.memory_space<vmem>>, vector<1x16x16xf32>
    %1133 = vector.shape_cast %1132 : vector<1x16x16xf32> to vector<16x16xf32>
    %c60 = arith.constant 60 : index
    %1134 = memref.load %arg1[%c60] : memref<392xf32, #tpu.memory_space<smem>>
    %1135 = vector.broadcast %1134 : f32 to vector<16x16xf32>
    %1136 = arith.mulf %1135, %1133 : vector<16x16xf32>
    %1137 = arith.addf %1119, %1136 : vector<16x16xf32>
    %c158 = arith.constant 158 : index
    %1138 = memref.load %arg1[%c158] : memref<392xf32, #tpu.memory_space<smem>>
    %1139 = vector.broadcast %1138 : f32 to vector<16x16xf32>
    %1140 = arith.mulf %1139, %1133 : vector<16x16xf32>
    %1141 = arith.addf %1123, %1140 : vector<16x16xf32>
    %c256 = arith.constant 256 : index
    %1142 = memref.load %arg1[%c256] : memref<392xf32, #tpu.memory_space<smem>>
    %1143 = vector.broadcast %1142 : f32 to vector<16x16xf32>
    %1144 = arith.mulf %1143, %1133 : vector<16x16xf32>
    %1145 = arith.addf %1127, %1144 : vector<16x16xf32>
    %c354 = arith.constant 354 : index
    %1146 = memref.load %arg1[%c354] : memref<392xf32, #tpu.memory_space<smem>>
    %1147 = vector.broadcast %1146 : f32 to vector<16x16xf32>
    %1148 = arith.mulf %1147, %1133 : vector<16x16xf32>
    %1149 = arith.addf %1131, %1148 : vector<16x16xf32>
    %c1_231 = arith.constant 1 : index
    %c3_232 = arith.constant 3 : index
    %c15_233 = arith.constant 15 : index
    %1150 = vector.load %arg5[%c1_231, %c3_232, %c15_233] : memref<2x34x34xf32, #tpu.memory_space<vmem>>, vector<1x16x16xf32>
    %1151 = vector.shape_cast %1150 : vector<1x16x16xf32> to vector<16x16xf32>
    %c61 = arith.constant 61 : index
    %1152 = memref.load %arg1[%c61] : memref<392xf32, #tpu.memory_space<smem>>
    %1153 = vector.broadcast %1152 : f32 to vector<16x16xf32>
    %1154 = arith.mulf %1153, %1151 : vector<16x16xf32>
    %1155 = arith.addf %1137, %1154 : vector<16x16xf32>
    %c159 = arith.constant 159 : index
    %1156 = memref.load %arg1[%c159] : memref<392xf32, #tpu.memory_space<smem>>
    %1157 = vector.broadcast %1156 : f32 to vector<16x16xf32>
    %1158 = arith.mulf %1157, %1151 : vector<16x16xf32>
    %1159 = arith.addf %1141, %1158 : vector<16x16xf32>
    %c257 = arith.constant 257 : index
    %1160 = memref.load %arg1[%c257] : memref<392xf32, #tpu.memory_space<smem>>
    %1161 = vector.broadcast %1160 : f32 to vector<16x16xf32>
    %1162 = arith.mulf %1161, %1151 : vector<16x16xf32>
    %1163 = arith.addf %1145, %1162 : vector<16x16xf32>
    %c355 = arith.constant 355 : index
    %1164 = memref.load %arg1[%c355] : memref<392xf32, #tpu.memory_space<smem>>
    %1165 = vector.broadcast %1164 : f32 to vector<16x16xf32>
    %1166 = arith.mulf %1165, %1151 : vector<16x16xf32>
    %1167 = arith.addf %1149, %1166 : vector<16x16xf32>
    %c1_234 = arith.constant 1 : index
    %c3_235 = arith.constant 3 : index
    %c18_236 = arith.constant 18 : index
    %1168 = vector.load %arg5[%c1_234, %c3_235, %c18_236] : memref<2x34x34xf32, #tpu.memory_space<vmem>>, vector<1x16x16xf32>
    %1169 = vector.shape_cast %1168 : vector<1x16x16xf32> to vector<16x16xf32>
    %c62 = arith.constant 62 : index
    %1170 = memref.load %arg1[%c62] : memref<392xf32, #tpu.memory_space<smem>>
    %1171 = vector.broadcast %1170 : f32 to vector<16x16xf32>
    %1172 = arith.mulf %1171, %1169 : vector<16x16xf32>
    %1173 = arith.addf %1155, %1172 : vector<16x16xf32>
    %c160 = arith.constant 160 : index
    %1174 = memref.load %arg1[%c160] : memref<392xf32, #tpu.memory_space<smem>>
    %1175 = vector.broadcast %1174 : f32 to vector<16x16xf32>
    %1176 = arith.mulf %1175, %1169 : vector<16x16xf32>
    %1177 = arith.addf %1159, %1176 : vector<16x16xf32>
    %c258 = arith.constant 258 : index
    %1178 = memref.load %arg1[%c258] : memref<392xf32, #tpu.memory_space<smem>>
    %1179 = vector.broadcast %1178 : f32 to vector<16x16xf32>
    %1180 = arith.mulf %1179, %1169 : vector<16x16xf32>
    %1181 = arith.addf %1163, %1180 : vector<16x16xf32>
    %c356 = arith.constant 356 : index
    %1182 = memref.load %arg1[%c356] : memref<392xf32, #tpu.memory_space<smem>>
    %1183 = vector.broadcast %1182 : f32 to vector<16x16xf32>
    %1184 = arith.mulf %1183, %1169 : vector<16x16xf32>
    %1185 = arith.addf %1167, %1184 : vector<16x16xf32>
    %c1_237 = arith.constant 1 : index
    %c6_238 = arith.constant 6 : index
    %c0_239 = arith.constant 0 : index
    %1186 = vector.load %arg5[%c1_237, %c6_238, %c0_239] : memref<2x34x34xf32, #tpu.memory_space<vmem>>, vector<1x16x16xf32>
    %1187 = vector.shape_cast %1186 : vector<1x16x16xf32> to vector<16x16xf32>
    %c63 = arith.constant 63 : index
    %1188 = memref.load %arg1[%c63] : memref<392xf32, #tpu.memory_space<smem>>
    %1189 = vector.broadcast %1188 : f32 to vector<16x16xf32>
    %1190 = arith.mulf %1189, %1187 : vector<16x16xf32>
    %1191 = arith.addf %1173, %1190 : vector<16x16xf32>
    %c161 = arith.constant 161 : index
    %1192 = memref.load %arg1[%c161] : memref<392xf32, #tpu.memory_space<smem>>
    %1193 = vector.broadcast %1192 : f32 to vector<16x16xf32>
    %1194 = arith.mulf %1193, %1187 : vector<16x16xf32>
    %1195 = arith.addf %1177, %1194 : vector<16x16xf32>
    %c259 = arith.constant 259 : index
    %1196 = memref.load %arg1[%c259] : memref<392xf32, #tpu.memory_space<smem>>
    %1197 = vector.broadcast %1196 : f32 to vector<16x16xf32>
    %1198 = arith.mulf %1197, %1187 : vector<16x16xf32>
    %1199 = arith.addf %1181, %1198 : vector<16x16xf32>
    %c357 = arith.constant 357 : index
    %1200 = memref.load %arg1[%c357] : memref<392xf32, #tpu.memory_space<smem>>
    %1201 = vector.broadcast %1200 : f32 to vector<16x16xf32>
    %1202 = arith.mulf %1201, %1187 : vector<16x16xf32>
    %1203 = arith.addf %1185, %1202 : vector<16x16xf32>
    %c1_240 = arith.constant 1 : index
    %c6_241 = arith.constant 6 : index
    %c3_242 = arith.constant 3 : index
    %1204 = vector.load %arg5[%c1_240, %c6_241, %c3_242] : memref<2x34x34xf32, #tpu.memory_space<vmem>>, vector<1x16x16xf32>
    %1205 = vector.shape_cast %1204 : vector<1x16x16xf32> to vector<16x16xf32>
    %c64 = arith.constant 64 : index
    %1206 = memref.load %arg1[%c64] : memref<392xf32, #tpu.memory_space<smem>>
    %1207 = vector.broadcast %1206 : f32 to vector<16x16xf32>
    %1208 = arith.mulf %1207, %1205 : vector<16x16xf32>
    %1209 = arith.addf %1191, %1208 : vector<16x16xf32>
    %c162 = arith.constant 162 : index
    %1210 = memref.load %arg1[%c162] : memref<392xf32, #tpu.memory_space<smem>>
    %1211 = vector.broadcast %1210 : f32 to vector<16x16xf32>
    %1212 = arith.mulf %1211, %1205 : vector<16x16xf32>
    %1213 = arith.addf %1195, %1212 : vector<16x16xf32>
    %c260 = arith.constant 260 : index
    %1214 = memref.load %arg1[%c260] : memref<392xf32, #tpu.memory_space<smem>>
    %1215 = vector.broadcast %1214 : f32 to vector<16x16xf32>
    %1216 = arith.mulf %1215, %1205 : vector<16x16xf32>
    %1217 = arith.addf %1199, %1216 : vector<16x16xf32>
    %c358 = arith.constant 358 : index
    %1218 = memref.load %arg1[%c358] : memref<392xf32, #tpu.memory_space<smem>>
    %1219 = vector.broadcast %1218 : f32 to vector<16x16xf32>
    %1220 = arith.mulf %1219, %1205 : vector<16x16xf32>
    %1221 = arith.addf %1203, %1220 : vector<16x16xf32>
    %c1_243 = arith.constant 1 : index
    %c6_244 = arith.constant 6 : index
    %c6_245 = arith.constant 6 : index
    %1222 = vector.load %arg5[%c1_243, %c6_244, %c6_245] : memref<2x34x34xf32, #tpu.memory_space<vmem>>, vector<1x16x16xf32>
    %1223 = vector.shape_cast %1222 : vector<1x16x16xf32> to vector<16x16xf32>
    %c65 = arith.constant 65 : index
    %1224 = memref.load %arg1[%c65] : memref<392xf32, #tpu.memory_space<smem>>
    %1225 = vector.broadcast %1224 : f32 to vector<16x16xf32>
    %1226 = arith.mulf %1225, %1223 : vector<16x16xf32>
    %1227 = arith.addf %1209, %1226 : vector<16x16xf32>
    %c163 = arith.constant 163 : index
    %1228 = memref.load %arg1[%c163] : memref<392xf32, #tpu.memory_space<smem>>
    %1229 = vector.broadcast %1228 : f32 to vector<16x16xf32>
    %1230 = arith.mulf %1229, %1223 : vector<16x16xf32>
    %1231 = arith.addf %1213, %1230 : vector<16x16xf32>
    %c261 = arith.constant 261 : index
    %1232 = memref.load %arg1[%c261] : memref<392xf32, #tpu.memory_space<smem>>
    %1233 = vector.broadcast %1232 : f32 to vector<16x16xf32>
    %1234 = arith.mulf %1233, %1223 : vector<16x16xf32>
    %1235 = arith.addf %1217, %1234 : vector<16x16xf32>
    %c359 = arith.constant 359 : index
    %1236 = memref.load %arg1[%c359] : memref<392xf32, #tpu.memory_space<smem>>
    %1237 = vector.broadcast %1236 : f32 to vector<16x16xf32>
    %1238 = arith.mulf %1237, %1223 : vector<16x16xf32>
    %1239 = arith.addf %1221, %1238 : vector<16x16xf32>
    %c1_246 = arith.constant 1 : index
    %c6_247 = arith.constant 6 : index
    %c9_248 = arith.constant 9 : index
    %1240 = vector.load %arg5[%c1_246, %c6_247, %c9_248] : memref<2x34x34xf32, #tpu.memory_space<vmem>>, vector<1x16x16xf32>
    %1241 = vector.shape_cast %1240 : vector<1x16x16xf32> to vector<16x16xf32>
    %c66 = arith.constant 66 : index
    %1242 = memref.load %arg1[%c66] : memref<392xf32, #tpu.memory_space<smem>>
    %1243 = vector.broadcast %1242 : f32 to vector<16x16xf32>
    %1244 = arith.mulf %1243, %1241 : vector<16x16xf32>
    %1245 = arith.addf %1227, %1244 : vector<16x16xf32>
    %c164 = arith.constant 164 : index
    %1246 = memref.load %arg1[%c164] : memref<392xf32, #tpu.memory_space<smem>>
    %1247 = vector.broadcast %1246 : f32 to vector<16x16xf32>
    %1248 = arith.mulf %1247, %1241 : vector<16x16xf32>
    %1249 = arith.addf %1231, %1248 : vector<16x16xf32>
    %c262 = arith.constant 262 : index
    %1250 = memref.load %arg1[%c262] : memref<392xf32, #tpu.memory_space<smem>>
    %1251 = vector.broadcast %1250 : f32 to vector<16x16xf32>
    %1252 = arith.mulf %1251, %1241 : vector<16x16xf32>
    %1253 = arith.addf %1235, %1252 : vector<16x16xf32>
    %c360 = arith.constant 360 : index
    %1254 = memref.load %arg1[%c360] : memref<392xf32, #tpu.memory_space<smem>>
    %1255 = vector.broadcast %1254 : f32 to vector<16x16xf32>
    %1256 = arith.mulf %1255, %1241 : vector<16x16xf32>
    %1257 = arith.addf %1239, %1256 : vector<16x16xf32>
    %c1_249 = arith.constant 1 : index
    %c6_250 = arith.constant 6 : index
    %c12_251 = arith.constant 12 : index
    %1258 = vector.load %arg5[%c1_249, %c6_250, %c12_251] : memref<2x34x34xf32, #tpu.memory_space<vmem>>, vector<1x16x16xf32>
    %1259 = vector.shape_cast %1258 : vector<1x16x16xf32> to vector<16x16xf32>
    %c67 = arith.constant 67 : index
    %1260 = memref.load %arg1[%c67] : memref<392xf32, #tpu.memory_space<smem>>
    %1261 = vector.broadcast %1260 : f32 to vector<16x16xf32>
    %1262 = arith.mulf %1261, %1259 : vector<16x16xf32>
    %1263 = arith.addf %1245, %1262 : vector<16x16xf32>
    %c165 = arith.constant 165 : index
    %1264 = memref.load %arg1[%c165] : memref<392xf32, #tpu.memory_space<smem>>
    %1265 = vector.broadcast %1264 : f32 to vector<16x16xf32>
    %1266 = arith.mulf %1265, %1259 : vector<16x16xf32>
    %1267 = arith.addf %1249, %1266 : vector<16x16xf32>
    %c263 = arith.constant 263 : index
    %1268 = memref.load %arg1[%c263] : memref<392xf32, #tpu.memory_space<smem>>
    %1269 = vector.broadcast %1268 : f32 to vector<16x16xf32>
    %1270 = arith.mulf %1269, %1259 : vector<16x16xf32>
    %1271 = arith.addf %1253, %1270 : vector<16x16xf32>
    %c361 = arith.constant 361 : index
    %1272 = memref.load %arg1[%c361] : memref<392xf32, #tpu.memory_space<smem>>
    %1273 = vector.broadcast %1272 : f32 to vector<16x16xf32>
    %1274 = arith.mulf %1273, %1259 : vector<16x16xf32>
    %1275 = arith.addf %1257, %1274 : vector<16x16xf32>
    %c1_252 = arith.constant 1 : index
    %c6_253 = arith.constant 6 : index
    %c15_254 = arith.constant 15 : index
    %1276 = vector.load %arg5[%c1_252, %c6_253, %c15_254] : memref<2x34x34xf32, #tpu.memory_space<vmem>>, vector<1x16x16xf32>
    %1277 = vector.shape_cast %1276 : vector<1x16x16xf32> to vector<16x16xf32>
    %c68 = arith.constant 68 : index
    %1278 = memref.load %arg1[%c68] : memref<392xf32, #tpu.memory_space<smem>>
    %1279 = vector.broadcast %1278 : f32 to vector<16x16xf32>
    %1280 = arith.mulf %1279, %1277 : vector<16x16xf32>
    %1281 = arith.addf %1263, %1280 : vector<16x16xf32>
    %c166 = arith.constant 166 : index
    %1282 = memref.load %arg1[%c166] : memref<392xf32, #tpu.memory_space<smem>>
    %1283 = vector.broadcast %1282 : f32 to vector<16x16xf32>
    %1284 = arith.mulf %1283, %1277 : vector<16x16xf32>
    %1285 = arith.addf %1267, %1284 : vector<16x16xf32>
    %c264 = arith.constant 264 : index
    %1286 = memref.load %arg1[%c264] : memref<392xf32, #tpu.memory_space<smem>>
    %1287 = vector.broadcast %1286 : f32 to vector<16x16xf32>
    %1288 = arith.mulf %1287, %1277 : vector<16x16xf32>
    %1289 = arith.addf %1271, %1288 : vector<16x16xf32>
    %c362 = arith.constant 362 : index
    %1290 = memref.load %arg1[%c362] : memref<392xf32, #tpu.memory_space<smem>>
    %1291 = vector.broadcast %1290 : f32 to vector<16x16xf32>
    %1292 = arith.mulf %1291, %1277 : vector<16x16xf32>
    %1293 = arith.addf %1275, %1292 : vector<16x16xf32>
    %c1_255 = arith.constant 1 : index
    %c6_256 = arith.constant 6 : index
    %c18_257 = arith.constant 18 : index
    %1294 = vector.load %arg5[%c1_255, %c6_256, %c18_257] : memref<2x34x34xf32, #tpu.memory_space<vmem>>, vector<1x16x16xf32>
    %1295 = vector.shape_cast %1294 : vector<1x16x16xf32> to vector<16x16xf32>
    %c69 = arith.constant 69 : index
    %1296 = memref.load %arg1[%c69] : memref<392xf32, #tpu.memory_space<smem>>
    %1297 = vector.broadcast %1296 : f32 to vector<16x16xf32>
    %1298 = arith.mulf %1297, %1295 : vector<16x16xf32>
    %1299 = arith.addf %1281, %1298 : vector<16x16xf32>
    %c167 = arith.constant 167 : index
    %1300 = memref.load %arg1[%c167] : memref<392xf32, #tpu.memory_space<smem>>
    %1301 = vector.broadcast %1300 : f32 to vector<16x16xf32>
    %1302 = arith.mulf %1301, %1295 : vector<16x16xf32>
    %1303 = arith.addf %1285, %1302 : vector<16x16xf32>
    %c265 = arith.constant 265 : index
    %1304 = memref.load %arg1[%c265] : memref<392xf32, #tpu.memory_space<smem>>
    %1305 = vector.broadcast %1304 : f32 to vector<16x16xf32>
    %1306 = arith.mulf %1305, %1295 : vector<16x16xf32>
    %1307 = arith.addf %1289, %1306 : vector<16x16xf32>
    %c363 = arith.constant 363 : index
    %1308 = memref.load %arg1[%c363] : memref<392xf32, #tpu.memory_space<smem>>
    %1309 = vector.broadcast %1308 : f32 to vector<16x16xf32>
    %1310 = arith.mulf %1309, %1295 : vector<16x16xf32>
    %1311 = arith.addf %1293, %1310 : vector<16x16xf32>
    %c1_258 = arith.constant 1 : index
    %c9_259 = arith.constant 9 : index
    %c0_260 = arith.constant 0 : index
    %1312 = vector.load %arg5[%c1_258, %c9_259, %c0_260] : memref<2x34x34xf32, #tpu.memory_space<vmem>>, vector<1x16x16xf32>
    %1313 = vector.shape_cast %1312 : vector<1x16x16xf32> to vector<16x16xf32>
    %c70 = arith.constant 70 : index
    %1314 = memref.load %arg1[%c70] : memref<392xf32, #tpu.memory_space<smem>>
    %1315 = vector.broadcast %1314 : f32 to vector<16x16xf32>
    %1316 = arith.mulf %1315, %1313 : vector<16x16xf32>
    %1317 = arith.addf %1299, %1316 : vector<16x16xf32>
    %c168 = arith.constant 168 : index
    %1318 = memref.load %arg1[%c168] : memref<392xf32, #tpu.memory_space<smem>>
    %1319 = vector.broadcast %1318 : f32 to vector<16x16xf32>
    %1320 = arith.mulf %1319, %1313 : vector<16x16xf32>
    %1321 = arith.addf %1303, %1320 : vector<16x16xf32>
    %c266 = arith.constant 266 : index
    %1322 = memref.load %arg1[%c266] : memref<392xf32, #tpu.memory_space<smem>>
    %1323 = vector.broadcast %1322 : f32 to vector<16x16xf32>
    %1324 = arith.mulf %1323, %1313 : vector<16x16xf32>
    %1325 = arith.addf %1307, %1324 : vector<16x16xf32>
    %c364 = arith.constant 364 : index
    %1326 = memref.load %arg1[%c364] : memref<392xf32, #tpu.memory_space<smem>>
    %1327 = vector.broadcast %1326 : f32 to vector<16x16xf32>
    %1328 = arith.mulf %1327, %1313 : vector<16x16xf32>
    %1329 = arith.addf %1311, %1328 : vector<16x16xf32>
    %c1_261 = arith.constant 1 : index
    %c9_262 = arith.constant 9 : index
    %c3_263 = arith.constant 3 : index
    %1330 = vector.load %arg5[%c1_261, %c9_262, %c3_263] : memref<2x34x34xf32, #tpu.memory_space<vmem>>, vector<1x16x16xf32>
    %1331 = vector.shape_cast %1330 : vector<1x16x16xf32> to vector<16x16xf32>
    %c71 = arith.constant 71 : index
    %1332 = memref.load %arg1[%c71] : memref<392xf32, #tpu.memory_space<smem>>
    %1333 = vector.broadcast %1332 : f32 to vector<16x16xf32>
    %1334 = arith.mulf %1333, %1331 : vector<16x16xf32>
    %1335 = arith.addf %1317, %1334 : vector<16x16xf32>
    %c169 = arith.constant 169 : index
    %1336 = memref.load %arg1[%c169] : memref<392xf32, #tpu.memory_space<smem>>
    %1337 = vector.broadcast %1336 : f32 to vector<16x16xf32>
    %1338 = arith.mulf %1337, %1331 : vector<16x16xf32>
    %1339 = arith.addf %1321, %1338 : vector<16x16xf32>
    %c267 = arith.constant 267 : index
    %1340 = memref.load %arg1[%c267] : memref<392xf32, #tpu.memory_space<smem>>
    %1341 = vector.broadcast %1340 : f32 to vector<16x16xf32>
    %1342 = arith.mulf %1341, %1331 : vector<16x16xf32>
    %1343 = arith.addf %1325, %1342 : vector<16x16xf32>
    %c365 = arith.constant 365 : index
    %1344 = memref.load %arg1[%c365] : memref<392xf32, #tpu.memory_space<smem>>
    %1345 = vector.broadcast %1344 : f32 to vector<16x16xf32>
    %1346 = arith.mulf %1345, %1331 : vector<16x16xf32>
    %1347 = arith.addf %1329, %1346 : vector<16x16xf32>
    %c1_264 = arith.constant 1 : index
    %c9_265 = arith.constant 9 : index
    %c6_266 = arith.constant 6 : index
    %1348 = vector.load %arg5[%c1_264, %c9_265, %c6_266] : memref<2x34x34xf32, #tpu.memory_space<vmem>>, vector<1x16x16xf32>
    %1349 = vector.shape_cast %1348 : vector<1x16x16xf32> to vector<16x16xf32>
    %c72 = arith.constant 72 : index
    %1350 = memref.load %arg1[%c72] : memref<392xf32, #tpu.memory_space<smem>>
    %1351 = vector.broadcast %1350 : f32 to vector<16x16xf32>
    %1352 = arith.mulf %1351, %1349 : vector<16x16xf32>
    %1353 = arith.addf %1335, %1352 : vector<16x16xf32>
    %c170 = arith.constant 170 : index
    %1354 = memref.load %arg1[%c170] : memref<392xf32, #tpu.memory_space<smem>>
    %1355 = vector.broadcast %1354 : f32 to vector<16x16xf32>
    %1356 = arith.mulf %1355, %1349 : vector<16x16xf32>
    %1357 = arith.addf %1339, %1356 : vector<16x16xf32>
    %c268 = arith.constant 268 : index
    %1358 = memref.load %arg1[%c268] : memref<392xf32, #tpu.memory_space<smem>>
    %1359 = vector.broadcast %1358 : f32 to vector<16x16xf32>
    %1360 = arith.mulf %1359, %1349 : vector<16x16xf32>
    %1361 = arith.addf %1343, %1360 : vector<16x16xf32>
    %c366 = arith.constant 366 : index
    %1362 = memref.load %arg1[%c366] : memref<392xf32, #tpu.memory_space<smem>>
    %1363 = vector.broadcast %1362 : f32 to vector<16x16xf32>
    %1364 = arith.mulf %1363, %1349 : vector<16x16xf32>
    %1365 = arith.addf %1347, %1364 : vector<16x16xf32>
    %c1_267 = arith.constant 1 : index
    %c9_268 = arith.constant 9 : index
    %c9_269 = arith.constant 9 : index
    %1366 = vector.load %arg5[%c1_267, %c9_268, %c9_269] : memref<2x34x34xf32, #tpu.memory_space<vmem>>, vector<1x16x16xf32>
    %1367 = vector.shape_cast %1366 : vector<1x16x16xf32> to vector<16x16xf32>
    %c73 = arith.constant 73 : index
    %1368 = memref.load %arg1[%c73] : memref<392xf32, #tpu.memory_space<smem>>
    %1369 = vector.broadcast %1368 : f32 to vector<16x16xf32>
    %1370 = arith.mulf %1369, %1367 : vector<16x16xf32>
    %1371 = arith.addf %1353, %1370 : vector<16x16xf32>
    %c171 = arith.constant 171 : index
    %1372 = memref.load %arg1[%c171] : memref<392xf32, #tpu.memory_space<smem>>
    %1373 = vector.broadcast %1372 : f32 to vector<16x16xf32>
    %1374 = arith.mulf %1373, %1367 : vector<16x16xf32>
    %1375 = arith.addf %1357, %1374 : vector<16x16xf32>
    %c269 = arith.constant 269 : index
    %1376 = memref.load %arg1[%c269] : memref<392xf32, #tpu.memory_space<smem>>
    %1377 = vector.broadcast %1376 : f32 to vector<16x16xf32>
    %1378 = arith.mulf %1377, %1367 : vector<16x16xf32>
    %1379 = arith.addf %1361, %1378 : vector<16x16xf32>
    %c367 = arith.constant 367 : index
    %1380 = memref.load %arg1[%c367] : memref<392xf32, #tpu.memory_space<smem>>
    %1381 = vector.broadcast %1380 : f32 to vector<16x16xf32>
    %1382 = arith.mulf %1381, %1367 : vector<16x16xf32>
    %1383 = arith.addf %1365, %1382 : vector<16x16xf32>
    %c1_270 = arith.constant 1 : index
    %c9_271 = arith.constant 9 : index
    %c12_272 = arith.constant 12 : index
    %1384 = vector.load %arg5[%c1_270, %c9_271, %c12_272] : memref<2x34x34xf32, #tpu.memory_space<vmem>>, vector<1x16x16xf32>
    %1385 = vector.shape_cast %1384 : vector<1x16x16xf32> to vector<16x16xf32>
    %c74 = arith.constant 74 : index
    %1386 = memref.load %arg1[%c74] : memref<392xf32, #tpu.memory_space<smem>>
    %1387 = vector.broadcast %1386 : f32 to vector<16x16xf32>
    %1388 = arith.mulf %1387, %1385 : vector<16x16xf32>
    %1389 = arith.addf %1371, %1388 : vector<16x16xf32>
    %c172 = arith.constant 172 : index
    %1390 = memref.load %arg1[%c172] : memref<392xf32, #tpu.memory_space<smem>>
    %1391 = vector.broadcast %1390 : f32 to vector<16x16xf32>
    %1392 = arith.mulf %1391, %1385 : vector<16x16xf32>
    %1393 = arith.addf %1375, %1392 : vector<16x16xf32>
    %c270 = arith.constant 270 : index
    %1394 = memref.load %arg1[%c270] : memref<392xf32, #tpu.memory_space<smem>>
    %1395 = vector.broadcast %1394 : f32 to vector<16x16xf32>
    %1396 = arith.mulf %1395, %1385 : vector<16x16xf32>
    %1397 = arith.addf %1379, %1396 : vector<16x16xf32>
    %c368 = arith.constant 368 : index
    %1398 = memref.load %arg1[%c368] : memref<392xf32, #tpu.memory_space<smem>>
    %1399 = vector.broadcast %1398 : f32 to vector<16x16xf32>
    %1400 = arith.mulf %1399, %1385 : vector<16x16xf32>
    %1401 = arith.addf %1383, %1400 : vector<16x16xf32>
    %c1_273 = arith.constant 1 : index
    %c9_274 = arith.constant 9 : index
    %c15_275 = arith.constant 15 : index
    %1402 = vector.load %arg5[%c1_273, %c9_274, %c15_275] : memref<2x34x34xf32, #tpu.memory_space<vmem>>, vector<1x16x16xf32>
    %1403 = vector.shape_cast %1402 : vector<1x16x16xf32> to vector<16x16xf32>
    %c75 = arith.constant 75 : index
    %1404 = memref.load %arg1[%c75] : memref<392xf32, #tpu.memory_space<smem>>
    %1405 = vector.broadcast %1404 : f32 to vector<16x16xf32>
    %1406 = arith.mulf %1405, %1403 : vector<16x16xf32>
    %1407 = arith.addf %1389, %1406 : vector<16x16xf32>
    %c173 = arith.constant 173 : index
    %1408 = memref.load %arg1[%c173] : memref<392xf32, #tpu.memory_space<smem>>
    %1409 = vector.broadcast %1408 : f32 to vector<16x16xf32>
    %1410 = arith.mulf %1409, %1403 : vector<16x16xf32>
    %1411 = arith.addf %1393, %1410 : vector<16x16xf32>
    %c271 = arith.constant 271 : index
    %1412 = memref.load %arg1[%c271] : memref<392xf32, #tpu.memory_space<smem>>
    %1413 = vector.broadcast %1412 : f32 to vector<16x16xf32>
    %1414 = arith.mulf %1413, %1403 : vector<16x16xf32>
    %1415 = arith.addf %1397, %1414 : vector<16x16xf32>
    %c369 = arith.constant 369 : index
    %1416 = memref.load %arg1[%c369] : memref<392xf32, #tpu.memory_space<smem>>
    %1417 = vector.broadcast %1416 : f32 to vector<16x16xf32>
    %1418 = arith.mulf %1417, %1403 : vector<16x16xf32>
    %1419 = arith.addf %1401, %1418 : vector<16x16xf32>
    %c1_276 = arith.constant 1 : index
    %c9_277 = arith.constant 9 : index
    %c18_278 = arith.constant 18 : index
    %1420 = vector.load %arg5[%c1_276, %c9_277, %c18_278] : memref<2x34x34xf32, #tpu.memory_space<vmem>>, vector<1x16x16xf32>
    %1421 = vector.shape_cast %1420 : vector<1x16x16xf32> to vector<16x16xf32>
    %c76 = arith.constant 76 : index
    %1422 = memref.load %arg1[%c76] : memref<392xf32, #tpu.memory_space<smem>>
    %1423 = vector.broadcast %1422 : f32 to vector<16x16xf32>
    %1424 = arith.mulf %1423, %1421 : vector<16x16xf32>
    %1425 = arith.addf %1407, %1424 : vector<16x16xf32>
    %c174 = arith.constant 174 : index
    %1426 = memref.load %arg1[%c174] : memref<392xf32, #tpu.memory_space<smem>>
    %1427 = vector.broadcast %1426 : f32 to vector<16x16xf32>
    %1428 = arith.mulf %1427, %1421 : vector<16x16xf32>
    %1429 = arith.addf %1411, %1428 : vector<16x16xf32>
    %c272 = arith.constant 272 : index
    %1430 = memref.load %arg1[%c272] : memref<392xf32, #tpu.memory_space<smem>>
    %1431 = vector.broadcast %1430 : f32 to vector<16x16xf32>
    %1432 = arith.mulf %1431, %1421 : vector<16x16xf32>
    %1433 = arith.addf %1415, %1432 : vector<16x16xf32>
    %c370 = arith.constant 370 : index
    %1434 = memref.load %arg1[%c370] : memref<392xf32, #tpu.memory_space<smem>>
    %1435 = vector.broadcast %1434 : f32 to vector<16x16xf32>
    %1436 = arith.mulf %1435, %1421 : vector<16x16xf32>
    %1437 = arith.addf %1419, %1436 : vector<16x16xf32>
    %c1_279 = arith.constant 1 : index
    %c12_280 = arith.constant 12 : index
    %c0_281 = arith.constant 0 : index
    %1438 = vector.load %arg5[%c1_279, %c12_280, %c0_281] : memref<2x34x34xf32, #tpu.memory_space<vmem>>, vector<1x16x16xf32>
    %1439 = vector.shape_cast %1438 : vector<1x16x16xf32> to vector<16x16xf32>
    %c77 = arith.constant 77 : index
    %1440 = memref.load %arg1[%c77] : memref<392xf32, #tpu.memory_space<smem>>
    %1441 = vector.broadcast %1440 : f32 to vector<16x16xf32>
    %1442 = arith.mulf %1441, %1439 : vector<16x16xf32>
    %1443 = arith.addf %1425, %1442 : vector<16x16xf32>
    %c175 = arith.constant 175 : index
    %1444 = memref.load %arg1[%c175] : memref<392xf32, #tpu.memory_space<smem>>
    %1445 = vector.broadcast %1444 : f32 to vector<16x16xf32>
    %1446 = arith.mulf %1445, %1439 : vector<16x16xf32>
    %1447 = arith.addf %1429, %1446 : vector<16x16xf32>
    %c273 = arith.constant 273 : index
    %1448 = memref.load %arg1[%c273] : memref<392xf32, #tpu.memory_space<smem>>
    %1449 = vector.broadcast %1448 : f32 to vector<16x16xf32>
    %1450 = arith.mulf %1449, %1439 : vector<16x16xf32>
    %1451 = arith.addf %1433, %1450 : vector<16x16xf32>
    %c371 = arith.constant 371 : index
    %1452 = memref.load %arg1[%c371] : memref<392xf32, #tpu.memory_space<smem>>
    %1453 = vector.broadcast %1452 : f32 to vector<16x16xf32>
    %1454 = arith.mulf %1453, %1439 : vector<16x16xf32>
    %1455 = arith.addf %1437, %1454 : vector<16x16xf32>
    %c1_282 = arith.constant 1 : index
    %c12_283 = arith.constant 12 : index
    %c3_284 = arith.constant 3 : index
    %1456 = vector.load %arg5[%c1_282, %c12_283, %c3_284] : memref<2x34x34xf32, #tpu.memory_space<vmem>>, vector<1x16x16xf32>
    %1457 = vector.shape_cast %1456 : vector<1x16x16xf32> to vector<16x16xf32>
    %c78 = arith.constant 78 : index
    %1458 = memref.load %arg1[%c78] : memref<392xf32, #tpu.memory_space<smem>>
    %1459 = vector.broadcast %1458 : f32 to vector<16x16xf32>
    %1460 = arith.mulf %1459, %1457 : vector<16x16xf32>
    %1461 = arith.addf %1443, %1460 : vector<16x16xf32>
    %c176 = arith.constant 176 : index
    %1462 = memref.load %arg1[%c176] : memref<392xf32, #tpu.memory_space<smem>>
    %1463 = vector.broadcast %1462 : f32 to vector<16x16xf32>
    %1464 = arith.mulf %1463, %1457 : vector<16x16xf32>
    %1465 = arith.addf %1447, %1464 : vector<16x16xf32>
    %c274 = arith.constant 274 : index
    %1466 = memref.load %arg1[%c274] : memref<392xf32, #tpu.memory_space<smem>>
    %1467 = vector.broadcast %1466 : f32 to vector<16x16xf32>
    %1468 = arith.mulf %1467, %1457 : vector<16x16xf32>
    %1469 = arith.addf %1451, %1468 : vector<16x16xf32>
    %c372 = arith.constant 372 : index
    %1470 = memref.load %arg1[%c372] : memref<392xf32, #tpu.memory_space<smem>>
    %1471 = vector.broadcast %1470 : f32 to vector<16x16xf32>
    %1472 = arith.mulf %1471, %1457 : vector<16x16xf32>
    %1473 = arith.addf %1455, %1472 : vector<16x16xf32>
    %c1_285 = arith.constant 1 : index
    %c12_286 = arith.constant 12 : index
    %c6_287 = arith.constant 6 : index
    %1474 = vector.load %arg5[%c1_285, %c12_286, %c6_287] : memref<2x34x34xf32, #tpu.memory_space<vmem>>, vector<1x16x16xf32>
    %1475 = vector.shape_cast %1474 : vector<1x16x16xf32> to vector<16x16xf32>
    %c79 = arith.constant 79 : index
    %1476 = memref.load %arg1[%c79] : memref<392xf32, #tpu.memory_space<smem>>
    %1477 = vector.broadcast %1476 : f32 to vector<16x16xf32>
    %1478 = arith.mulf %1477, %1475 : vector<16x16xf32>
    %1479 = arith.addf %1461, %1478 : vector<16x16xf32>
    %c177 = arith.constant 177 : index
    %1480 = memref.load %arg1[%c177] : memref<392xf32, #tpu.memory_space<smem>>
    %1481 = vector.broadcast %1480 : f32 to vector<16x16xf32>
    %1482 = arith.mulf %1481, %1475 : vector<16x16xf32>
    %1483 = arith.addf %1465, %1482 : vector<16x16xf32>
    %c275 = arith.constant 275 : index
    %1484 = memref.load %arg1[%c275] : memref<392xf32, #tpu.memory_space<smem>>
    %1485 = vector.broadcast %1484 : f32 to vector<16x16xf32>
    %1486 = arith.mulf %1485, %1475 : vector<16x16xf32>
    %1487 = arith.addf %1469, %1486 : vector<16x16xf32>
    %c373 = arith.constant 373 : index
    %1488 = memref.load %arg1[%c373] : memref<392xf32, #tpu.memory_space<smem>>
    %1489 = vector.broadcast %1488 : f32 to vector<16x16xf32>
    %1490 = arith.mulf %1489, %1475 : vector<16x16xf32>
    %1491 = arith.addf %1473, %1490 : vector<16x16xf32>
    %c1_288 = arith.constant 1 : index
    %c12_289 = arith.constant 12 : index
    %c9_290 = arith.constant 9 : index
    %1492 = vector.load %arg5[%c1_288, %c12_289, %c9_290] : memref<2x34x34xf32, #tpu.memory_space<vmem>>, vector<1x16x16xf32>
    %1493 = vector.shape_cast %1492 : vector<1x16x16xf32> to vector<16x16xf32>
    %c80 = arith.constant 80 : index
    %1494 = memref.load %arg1[%c80] : memref<392xf32, #tpu.memory_space<smem>>
    %1495 = vector.broadcast %1494 : f32 to vector<16x16xf32>
    %1496 = arith.mulf %1495, %1493 : vector<16x16xf32>
    %1497 = arith.addf %1479, %1496 : vector<16x16xf32>
    %c178 = arith.constant 178 : index
    %1498 = memref.load %arg1[%c178] : memref<392xf32, #tpu.memory_space<smem>>
    %1499 = vector.broadcast %1498 : f32 to vector<16x16xf32>
    %1500 = arith.mulf %1499, %1493 : vector<16x16xf32>
    %1501 = arith.addf %1483, %1500 : vector<16x16xf32>
    %c276 = arith.constant 276 : index
    %1502 = memref.load %arg1[%c276] : memref<392xf32, #tpu.memory_space<smem>>
    %1503 = vector.broadcast %1502 : f32 to vector<16x16xf32>
    %1504 = arith.mulf %1503, %1493 : vector<16x16xf32>
    %1505 = arith.addf %1487, %1504 : vector<16x16xf32>
    %c374 = arith.constant 374 : index
    %1506 = memref.load %arg1[%c374] : memref<392xf32, #tpu.memory_space<smem>>
    %1507 = vector.broadcast %1506 : f32 to vector<16x16xf32>
    %1508 = arith.mulf %1507, %1493 : vector<16x16xf32>
    %1509 = arith.addf %1491, %1508 : vector<16x16xf32>
    %c1_291 = arith.constant 1 : index
    %c12_292 = arith.constant 12 : index
    %c12_293 = arith.constant 12 : index
    %1510 = vector.load %arg5[%c1_291, %c12_292, %c12_293] : memref<2x34x34xf32, #tpu.memory_space<vmem>>, vector<1x16x16xf32>
    %1511 = vector.shape_cast %1510 : vector<1x16x16xf32> to vector<16x16xf32>
    %c81 = arith.constant 81 : index
    %1512 = memref.load %arg1[%c81] : memref<392xf32, #tpu.memory_space<smem>>
    %1513 = vector.broadcast %1512 : f32 to vector<16x16xf32>
    %1514 = arith.mulf %1513, %1511 : vector<16x16xf32>
    %1515 = arith.addf %1497, %1514 : vector<16x16xf32>
    %c179 = arith.constant 179 : index
    %1516 = memref.load %arg1[%c179] : memref<392xf32, #tpu.memory_space<smem>>
    %1517 = vector.broadcast %1516 : f32 to vector<16x16xf32>
    %1518 = arith.mulf %1517, %1511 : vector<16x16xf32>
    %1519 = arith.addf %1501, %1518 : vector<16x16xf32>
    %c277 = arith.constant 277 : index
    %1520 = memref.load %arg1[%c277] : memref<392xf32, #tpu.memory_space<smem>>
    %1521 = vector.broadcast %1520 : f32 to vector<16x16xf32>
    %1522 = arith.mulf %1521, %1511 : vector<16x16xf32>
    %1523 = arith.addf %1505, %1522 : vector<16x16xf32>
    %c375 = arith.constant 375 : index
    %1524 = memref.load %arg1[%c375] : memref<392xf32, #tpu.memory_space<smem>>
    %1525 = vector.broadcast %1524 : f32 to vector<16x16xf32>
    %1526 = arith.mulf %1525, %1511 : vector<16x16xf32>
    %1527 = arith.addf %1509, %1526 : vector<16x16xf32>
    %c1_294 = arith.constant 1 : index
    %c12_295 = arith.constant 12 : index
    %c15_296 = arith.constant 15 : index
    %1528 = vector.load %arg5[%c1_294, %c12_295, %c15_296] : memref<2x34x34xf32, #tpu.memory_space<vmem>>, vector<1x16x16xf32>
    %1529 = vector.shape_cast %1528 : vector<1x16x16xf32> to vector<16x16xf32>
    %c82 = arith.constant 82 : index
    %1530 = memref.load %arg1[%c82] : memref<392xf32, #tpu.memory_space<smem>>
    %1531 = vector.broadcast %1530 : f32 to vector<16x16xf32>
    %1532 = arith.mulf %1531, %1529 : vector<16x16xf32>
    %1533 = arith.addf %1515, %1532 : vector<16x16xf32>
    %c180 = arith.constant 180 : index
    %1534 = memref.load %arg1[%c180] : memref<392xf32, #tpu.memory_space<smem>>
    %1535 = vector.broadcast %1534 : f32 to vector<16x16xf32>
    %1536 = arith.mulf %1535, %1529 : vector<16x16xf32>
    %1537 = arith.addf %1519, %1536 : vector<16x16xf32>
    %c278 = arith.constant 278 : index
    %1538 = memref.load %arg1[%c278] : memref<392xf32, #tpu.memory_space<smem>>
    %1539 = vector.broadcast %1538 : f32 to vector<16x16xf32>
    %1540 = arith.mulf %1539, %1529 : vector<16x16xf32>
    %1541 = arith.addf %1523, %1540 : vector<16x16xf32>
    %c376 = arith.constant 376 : index
    %1542 = memref.load %arg1[%c376] : memref<392xf32, #tpu.memory_space<smem>>
    %1543 = vector.broadcast %1542 : f32 to vector<16x16xf32>
    %1544 = arith.mulf %1543, %1529 : vector<16x16xf32>
    %1545 = arith.addf %1527, %1544 : vector<16x16xf32>
    %c1_297 = arith.constant 1 : index
    %c12_298 = arith.constant 12 : index
    %c18_299 = arith.constant 18 : index
    %1546 = vector.load %arg5[%c1_297, %c12_298, %c18_299] : memref<2x34x34xf32, #tpu.memory_space<vmem>>, vector<1x16x16xf32>
    %1547 = vector.shape_cast %1546 : vector<1x16x16xf32> to vector<16x16xf32>
    %c83 = arith.constant 83 : index
    %1548 = memref.load %arg1[%c83] : memref<392xf32, #tpu.memory_space<smem>>
    %1549 = vector.broadcast %1548 : f32 to vector<16x16xf32>
    %1550 = arith.mulf %1549, %1547 : vector<16x16xf32>
    %1551 = arith.addf %1533, %1550 : vector<16x16xf32>
    %c181 = arith.constant 181 : index
    %1552 = memref.load %arg1[%c181] : memref<392xf32, #tpu.memory_space<smem>>
    %1553 = vector.broadcast %1552 : f32 to vector<16x16xf32>
    %1554 = arith.mulf %1553, %1547 : vector<16x16xf32>
    %1555 = arith.addf %1537, %1554 : vector<16x16xf32>
    %c279 = arith.constant 279 : index
    %1556 = memref.load %arg1[%c279] : memref<392xf32, #tpu.memory_space<smem>>
    %1557 = vector.broadcast %1556 : f32 to vector<16x16xf32>
    %1558 = arith.mulf %1557, %1547 : vector<16x16xf32>
    %1559 = arith.addf %1541, %1558 : vector<16x16xf32>
    %c377 = arith.constant 377 : index
    %1560 = memref.load %arg1[%c377] : memref<392xf32, #tpu.memory_space<smem>>
    %1561 = vector.broadcast %1560 : f32 to vector<16x16xf32>
    %1562 = arith.mulf %1561, %1547 : vector<16x16xf32>
    %1563 = arith.addf %1545, %1562 : vector<16x16xf32>
    %c1_300 = arith.constant 1 : index
    %c15_301 = arith.constant 15 : index
    %c0_302 = arith.constant 0 : index
    %1564 = vector.load %arg5[%c1_300, %c15_301, %c0_302] : memref<2x34x34xf32, #tpu.memory_space<vmem>>, vector<1x16x16xf32>
    %1565 = vector.shape_cast %1564 : vector<1x16x16xf32> to vector<16x16xf32>
    %c84 = arith.constant 84 : index
    %1566 = memref.load %arg1[%c84] : memref<392xf32, #tpu.memory_space<smem>>
    %1567 = vector.broadcast %1566 : f32 to vector<16x16xf32>
    %1568 = arith.mulf %1567, %1565 : vector<16x16xf32>
    %1569 = arith.addf %1551, %1568 : vector<16x16xf32>
    %c182 = arith.constant 182 : index
    %1570 = memref.load %arg1[%c182] : memref<392xf32, #tpu.memory_space<smem>>
    %1571 = vector.broadcast %1570 : f32 to vector<16x16xf32>
    %1572 = arith.mulf %1571, %1565 : vector<16x16xf32>
    %1573 = arith.addf %1555, %1572 : vector<16x16xf32>
    %c280 = arith.constant 280 : index
    %1574 = memref.load %arg1[%c280] : memref<392xf32, #tpu.memory_space<smem>>
    %1575 = vector.broadcast %1574 : f32 to vector<16x16xf32>
    %1576 = arith.mulf %1575, %1565 : vector<16x16xf32>
    %1577 = arith.addf %1559, %1576 : vector<16x16xf32>
    %c378 = arith.constant 378 : index
    %1578 = memref.load %arg1[%c378] : memref<392xf32, #tpu.memory_space<smem>>
    %1579 = vector.broadcast %1578 : f32 to vector<16x16xf32>
    %1580 = arith.mulf %1579, %1565 : vector<16x16xf32>
    %1581 = arith.addf %1563, %1580 : vector<16x16xf32>
    %c1_303 = arith.constant 1 : index
    %c15_304 = arith.constant 15 : index
    %c3_305 = arith.constant 3 : index
    %1582 = vector.load %arg5[%c1_303, %c15_304, %c3_305] : memref<2x34x34xf32, #tpu.memory_space<vmem>>, vector<1x16x16xf32>
    %1583 = vector.shape_cast %1582 : vector<1x16x16xf32> to vector<16x16xf32>
    %c85 = arith.constant 85 : index
    %1584 = memref.load %arg1[%c85] : memref<392xf32, #tpu.memory_space<smem>>
    %1585 = vector.broadcast %1584 : f32 to vector<16x16xf32>
    %1586 = arith.mulf %1585, %1583 : vector<16x16xf32>
    %1587 = arith.addf %1569, %1586 : vector<16x16xf32>
    %c183 = arith.constant 183 : index
    %1588 = memref.load %arg1[%c183] : memref<392xf32, #tpu.memory_space<smem>>
    %1589 = vector.broadcast %1588 : f32 to vector<16x16xf32>
    %1590 = arith.mulf %1589, %1583 : vector<16x16xf32>
    %1591 = arith.addf %1573, %1590 : vector<16x16xf32>
    %c281 = arith.constant 281 : index
    %1592 = memref.load %arg1[%c281] : memref<392xf32, #tpu.memory_space<smem>>
    %1593 = vector.broadcast %1592 : f32 to vector<16x16xf32>
    %1594 = arith.mulf %1593, %1583 : vector<16x16xf32>
    %1595 = arith.addf %1577, %1594 : vector<16x16xf32>
    %c379 = arith.constant 379 : index
    %1596 = memref.load %arg1[%c379] : memref<392xf32, #tpu.memory_space<smem>>
    %1597 = vector.broadcast %1596 : f32 to vector<16x16xf32>
    %1598 = arith.mulf %1597, %1583 : vector<16x16xf32>
    %1599 = arith.addf %1581, %1598 : vector<16x16xf32>
    %c1_306 = arith.constant 1 : index
    %c15_307 = arith.constant 15 : index
    %c6_308 = arith.constant 6 : index
    %1600 = vector.load %arg5[%c1_306, %c15_307, %c6_308] : memref<2x34x34xf32, #tpu.memory_space<vmem>>, vector<1x16x16xf32>
    %1601 = vector.shape_cast %1600 : vector<1x16x16xf32> to vector<16x16xf32>
    %c86 = arith.constant 86 : index
    %1602 = memref.load %arg1[%c86] : memref<392xf32, #tpu.memory_space<smem>>
    %1603 = vector.broadcast %1602 : f32 to vector<16x16xf32>
    %1604 = arith.mulf %1603, %1601 : vector<16x16xf32>
    %1605 = arith.addf %1587, %1604 : vector<16x16xf32>
    %c184 = arith.constant 184 : index
    %1606 = memref.load %arg1[%c184] : memref<392xf32, #tpu.memory_space<smem>>
    %1607 = vector.broadcast %1606 : f32 to vector<16x16xf32>
    %1608 = arith.mulf %1607, %1601 : vector<16x16xf32>
    %1609 = arith.addf %1591, %1608 : vector<16x16xf32>
    %c282 = arith.constant 282 : index
    %1610 = memref.load %arg1[%c282] : memref<392xf32, #tpu.memory_space<smem>>
    %1611 = vector.broadcast %1610 : f32 to vector<16x16xf32>
    %1612 = arith.mulf %1611, %1601 : vector<16x16xf32>
    %1613 = arith.addf %1595, %1612 : vector<16x16xf32>
    %c380 = arith.constant 380 : index
    %1614 = memref.load %arg1[%c380] : memref<392xf32, #tpu.memory_space<smem>>
    %1615 = vector.broadcast %1614 : f32 to vector<16x16xf32>
    %1616 = arith.mulf %1615, %1601 : vector<16x16xf32>
    %1617 = arith.addf %1599, %1616 : vector<16x16xf32>
    %c1_309 = arith.constant 1 : index
    %c15_310 = arith.constant 15 : index
    %c9_311 = arith.constant 9 : index
    %1618 = vector.load %arg5[%c1_309, %c15_310, %c9_311] : memref<2x34x34xf32, #tpu.memory_space<vmem>>, vector<1x16x16xf32>
    %1619 = vector.shape_cast %1618 : vector<1x16x16xf32> to vector<16x16xf32>
    %c87 = arith.constant 87 : index
    %1620 = memref.load %arg1[%c87] : memref<392xf32, #tpu.memory_space<smem>>
    %1621 = vector.broadcast %1620 : f32 to vector<16x16xf32>
    %1622 = arith.mulf %1621, %1619 : vector<16x16xf32>
    %1623 = arith.addf %1605, %1622 : vector<16x16xf32>
    %c185 = arith.constant 185 : index
    %1624 = memref.load %arg1[%c185] : memref<392xf32, #tpu.memory_space<smem>>
    %1625 = vector.broadcast %1624 : f32 to vector<16x16xf32>
    %1626 = arith.mulf %1625, %1619 : vector<16x16xf32>
    %1627 = arith.addf %1609, %1626 : vector<16x16xf32>
    %c283 = arith.constant 283 : index
    %1628 = memref.load %arg1[%c283] : memref<392xf32, #tpu.memory_space<smem>>
    %1629 = vector.broadcast %1628 : f32 to vector<16x16xf32>
    %1630 = arith.mulf %1629, %1619 : vector<16x16xf32>
    %1631 = arith.addf %1613, %1630 : vector<16x16xf32>
    %c381 = arith.constant 381 : index
    %1632 = memref.load %arg1[%c381] : memref<392xf32, #tpu.memory_space<smem>>
    %1633 = vector.broadcast %1632 : f32 to vector<16x16xf32>
    %1634 = arith.mulf %1633, %1619 : vector<16x16xf32>
    %1635 = arith.addf %1617, %1634 : vector<16x16xf32>
    %c1_312 = arith.constant 1 : index
    %c15_313 = arith.constant 15 : index
    %c12_314 = arith.constant 12 : index
    %1636 = vector.load %arg5[%c1_312, %c15_313, %c12_314] : memref<2x34x34xf32, #tpu.memory_space<vmem>>, vector<1x16x16xf32>
    %1637 = vector.shape_cast %1636 : vector<1x16x16xf32> to vector<16x16xf32>
    %c88 = arith.constant 88 : index
    %1638 = memref.load %arg1[%c88] : memref<392xf32, #tpu.memory_space<smem>>
    %1639 = vector.broadcast %1638 : f32 to vector<16x16xf32>
    %1640 = arith.mulf %1639, %1637 : vector<16x16xf32>
    %1641 = arith.addf %1623, %1640 : vector<16x16xf32>
    %c186 = arith.constant 186 : index
    %1642 = memref.load %arg1[%c186] : memref<392xf32, #tpu.memory_space<smem>>
    %1643 = vector.broadcast %1642 : f32 to vector<16x16xf32>
    %1644 = arith.mulf %1643, %1637 : vector<16x16xf32>
    %1645 = arith.addf %1627, %1644 : vector<16x16xf32>
    %c284 = arith.constant 284 : index
    %1646 = memref.load %arg1[%c284] : memref<392xf32, #tpu.memory_space<smem>>
    %1647 = vector.broadcast %1646 : f32 to vector<16x16xf32>
    %1648 = arith.mulf %1647, %1637 : vector<16x16xf32>
    %1649 = arith.addf %1631, %1648 : vector<16x16xf32>
    %c382 = arith.constant 382 : index
    %1650 = memref.load %arg1[%c382] : memref<392xf32, #tpu.memory_space<smem>>
    %1651 = vector.broadcast %1650 : f32 to vector<16x16xf32>
    %1652 = arith.mulf %1651, %1637 : vector<16x16xf32>
    %1653 = arith.addf %1635, %1652 : vector<16x16xf32>
    %c1_315 = arith.constant 1 : index
    %c15_316 = arith.constant 15 : index
    %c15_317 = arith.constant 15 : index
    %1654 = vector.load %arg5[%c1_315, %c15_316, %c15_317] : memref<2x34x34xf32, #tpu.memory_space<vmem>>, vector<1x16x16xf32>
    %1655 = vector.shape_cast %1654 : vector<1x16x16xf32> to vector<16x16xf32>
    %c89 = arith.constant 89 : index
    %1656 = memref.load %arg1[%c89] : memref<392xf32, #tpu.memory_space<smem>>
    %1657 = vector.broadcast %1656 : f32 to vector<16x16xf32>
    %1658 = arith.mulf %1657, %1655 : vector<16x16xf32>
    %1659 = arith.addf %1641, %1658 : vector<16x16xf32>
    %c187 = arith.constant 187 : index
    %1660 = memref.load %arg1[%c187] : memref<392xf32, #tpu.memory_space<smem>>
    %1661 = vector.broadcast %1660 : f32 to vector<16x16xf32>
    %1662 = arith.mulf %1661, %1655 : vector<16x16xf32>
    %1663 = arith.addf %1645, %1662 : vector<16x16xf32>
    %c285 = arith.constant 285 : index
    %1664 = memref.load %arg1[%c285] : memref<392xf32, #tpu.memory_space<smem>>
    %1665 = vector.broadcast %1664 : f32 to vector<16x16xf32>
    %1666 = arith.mulf %1665, %1655 : vector<16x16xf32>
    %1667 = arith.addf %1649, %1666 : vector<16x16xf32>
    %c383 = arith.constant 383 : index
    %1668 = memref.load %arg1[%c383] : memref<392xf32, #tpu.memory_space<smem>>
    %1669 = vector.broadcast %1668 : f32 to vector<16x16xf32>
    %1670 = arith.mulf %1669, %1655 : vector<16x16xf32>
    %1671 = arith.addf %1653, %1670 : vector<16x16xf32>
    %c1_318 = arith.constant 1 : index
    %c15_319 = arith.constant 15 : index
    %c18_320 = arith.constant 18 : index
    %1672 = vector.load %arg5[%c1_318, %c15_319, %c18_320] : memref<2x34x34xf32, #tpu.memory_space<vmem>>, vector<1x16x16xf32>
    %1673 = vector.shape_cast %1672 : vector<1x16x16xf32> to vector<16x16xf32>
    %c90 = arith.constant 90 : index
    %1674 = memref.load %arg1[%c90] : memref<392xf32, #tpu.memory_space<smem>>
    %1675 = vector.broadcast %1674 : f32 to vector<16x16xf32>
    %1676 = arith.mulf %1675, %1673 : vector<16x16xf32>
    %1677 = arith.addf %1659, %1676 : vector<16x16xf32>
    %c188 = arith.constant 188 : index
    %1678 = memref.load %arg1[%c188] : memref<392xf32, #tpu.memory_space<smem>>
    %1679 = vector.broadcast %1678 : f32 to vector<16x16xf32>
    %1680 = arith.mulf %1679, %1673 : vector<16x16xf32>
    %1681 = arith.addf %1663, %1680 : vector<16x16xf32>
    %c286 = arith.constant 286 : index
    %1682 = memref.load %arg1[%c286] : memref<392xf32, #tpu.memory_space<smem>>
    %1683 = vector.broadcast %1682 : f32 to vector<16x16xf32>
    %1684 = arith.mulf %1683, %1673 : vector<16x16xf32>
    %1685 = arith.addf %1667, %1684 : vector<16x16xf32>
    %c384 = arith.constant 384 : index
    %1686 = memref.load %arg1[%c384] : memref<392xf32, #tpu.memory_space<smem>>
    %1687 = vector.broadcast %1686 : f32 to vector<16x16xf32>
    %1688 = arith.mulf %1687, %1673 : vector<16x16xf32>
    %1689 = arith.addf %1671, %1688 : vector<16x16xf32>
    %c1_321 = arith.constant 1 : index
    %c18_322 = arith.constant 18 : index
    %c0_323 = arith.constant 0 : index
    %1690 = vector.load %arg5[%c1_321, %c18_322, %c0_323] : memref<2x34x34xf32, #tpu.memory_space<vmem>>, vector<1x16x16xf32>
    %1691 = vector.shape_cast %1690 : vector<1x16x16xf32> to vector<16x16xf32>
    %c91 = arith.constant 91 : index
    %1692 = memref.load %arg1[%c91] : memref<392xf32, #tpu.memory_space<smem>>
    %1693 = vector.broadcast %1692 : f32 to vector<16x16xf32>
    %1694 = arith.mulf %1693, %1691 : vector<16x16xf32>
    %1695 = arith.addf %1677, %1694 : vector<16x16xf32>
    %c189 = arith.constant 189 : index
    %1696 = memref.load %arg1[%c189] : memref<392xf32, #tpu.memory_space<smem>>
    %1697 = vector.broadcast %1696 : f32 to vector<16x16xf32>
    %1698 = arith.mulf %1697, %1691 : vector<16x16xf32>
    %1699 = arith.addf %1681, %1698 : vector<16x16xf32>
    %c287 = arith.constant 287 : index
    %1700 = memref.load %arg1[%c287] : memref<392xf32, #tpu.memory_space<smem>>
    %1701 = vector.broadcast %1700 : f32 to vector<16x16xf32>
    %1702 = arith.mulf %1701, %1691 : vector<16x16xf32>
    %1703 = arith.addf %1685, %1702 : vector<16x16xf32>
    %c385 = arith.constant 385 : index
    %1704 = memref.load %arg1[%c385] : memref<392xf32, #tpu.memory_space<smem>>
    %1705 = vector.broadcast %1704 : f32 to vector<16x16xf32>
    %1706 = arith.mulf %1705, %1691 : vector<16x16xf32>
    %1707 = arith.addf %1689, %1706 : vector<16x16xf32>
    %c1_324 = arith.constant 1 : index
    %c18_325 = arith.constant 18 : index
    %c3_326 = arith.constant 3 : index
    %1708 = vector.load %arg5[%c1_324, %c18_325, %c3_326] : memref<2x34x34xf32, #tpu.memory_space<vmem>>, vector<1x16x16xf32>
    %1709 = vector.shape_cast %1708 : vector<1x16x16xf32> to vector<16x16xf32>
    %c92 = arith.constant 92 : index
    %1710 = memref.load %arg1[%c92] : memref<392xf32, #tpu.memory_space<smem>>
    %1711 = vector.broadcast %1710 : f32 to vector<16x16xf32>
    %1712 = arith.mulf %1711, %1709 : vector<16x16xf32>
    %1713 = arith.addf %1695, %1712 : vector<16x16xf32>
    %c190 = arith.constant 190 : index
    %1714 = memref.load %arg1[%c190] : memref<392xf32, #tpu.memory_space<smem>>
    %1715 = vector.broadcast %1714 : f32 to vector<16x16xf32>
    %1716 = arith.mulf %1715, %1709 : vector<16x16xf32>
    %1717 = arith.addf %1699, %1716 : vector<16x16xf32>
    %c288 = arith.constant 288 : index
    %1718 = memref.load %arg1[%c288] : memref<392xf32, #tpu.memory_space<smem>>
    %1719 = vector.broadcast %1718 : f32 to vector<16x16xf32>
    %1720 = arith.mulf %1719, %1709 : vector<16x16xf32>
    %1721 = arith.addf %1703, %1720 : vector<16x16xf32>
    %c386 = arith.constant 386 : index
    %1722 = memref.load %arg1[%c386] : memref<392xf32, #tpu.memory_space<smem>>
    %1723 = vector.broadcast %1722 : f32 to vector<16x16xf32>
    %1724 = arith.mulf %1723, %1709 : vector<16x16xf32>
    %1725 = arith.addf %1707, %1724 : vector<16x16xf32>
    %c1_327 = arith.constant 1 : index
    %c18_328 = arith.constant 18 : index
    %c6_329 = arith.constant 6 : index
    %1726 = vector.load %arg5[%c1_327, %c18_328, %c6_329] : memref<2x34x34xf32, #tpu.memory_space<vmem>>, vector<1x16x16xf32>
    %1727 = vector.shape_cast %1726 : vector<1x16x16xf32> to vector<16x16xf32>
    %c93 = arith.constant 93 : index
    %1728 = memref.load %arg1[%c93] : memref<392xf32, #tpu.memory_space<smem>>
    %1729 = vector.broadcast %1728 : f32 to vector<16x16xf32>
    %1730 = arith.mulf %1729, %1727 : vector<16x16xf32>
    %1731 = arith.addf %1713, %1730 : vector<16x16xf32>
    %c191 = arith.constant 191 : index
    %1732 = memref.load %arg1[%c191] : memref<392xf32, #tpu.memory_space<smem>>
    %1733 = vector.broadcast %1732 : f32 to vector<16x16xf32>
    %1734 = arith.mulf %1733, %1727 : vector<16x16xf32>
    %1735 = arith.addf %1717, %1734 : vector<16x16xf32>
    %c289 = arith.constant 289 : index
    %1736 = memref.load %arg1[%c289] : memref<392xf32, #tpu.memory_space<smem>>
    %1737 = vector.broadcast %1736 : f32 to vector<16x16xf32>
    %1738 = arith.mulf %1737, %1727 : vector<16x16xf32>
    %1739 = arith.addf %1721, %1738 : vector<16x16xf32>
    %c387 = arith.constant 387 : index
    %1740 = memref.load %arg1[%c387] : memref<392xf32, #tpu.memory_space<smem>>
    %1741 = vector.broadcast %1740 : f32 to vector<16x16xf32>
    %1742 = arith.mulf %1741, %1727 : vector<16x16xf32>
    %1743 = arith.addf %1725, %1742 : vector<16x16xf32>
    %c1_330 = arith.constant 1 : index
    %c18_331 = arith.constant 18 : index
    %c9_332 = arith.constant 9 : index
    %1744 = vector.load %arg5[%c1_330, %c18_331, %c9_332] : memref<2x34x34xf32, #tpu.memory_space<vmem>>, vector<1x16x16xf32>
    %1745 = vector.shape_cast %1744 : vector<1x16x16xf32> to vector<16x16xf32>
    %c94 = arith.constant 94 : index
    %1746 = memref.load %arg1[%c94] : memref<392xf32, #tpu.memory_space<smem>>
    %1747 = vector.broadcast %1746 : f32 to vector<16x16xf32>
    %1748 = arith.mulf %1747, %1745 : vector<16x16xf32>
    %1749 = arith.addf %1731, %1748 : vector<16x16xf32>
    %c192 = arith.constant 192 : index
    %1750 = memref.load %arg1[%c192] : memref<392xf32, #tpu.memory_space<smem>>
    %1751 = vector.broadcast %1750 : f32 to vector<16x16xf32>
    %1752 = arith.mulf %1751, %1745 : vector<16x16xf32>
    %1753 = arith.addf %1735, %1752 : vector<16x16xf32>
    %c290 = arith.constant 290 : index
    %1754 = memref.load %arg1[%c290] : memref<392xf32, #tpu.memory_space<smem>>
    %1755 = vector.broadcast %1754 : f32 to vector<16x16xf32>
    %1756 = arith.mulf %1755, %1745 : vector<16x16xf32>
    %1757 = arith.addf %1739, %1756 : vector<16x16xf32>
    %c388 = arith.constant 388 : index
    %1758 = memref.load %arg1[%c388] : memref<392xf32, #tpu.memory_space<smem>>
    %1759 = vector.broadcast %1758 : f32 to vector<16x16xf32>
    %1760 = arith.mulf %1759, %1745 : vector<16x16xf32>
    %1761 = arith.addf %1743, %1760 : vector<16x16xf32>
    %c1_333 = arith.constant 1 : index
    %c18_334 = arith.constant 18 : index
    %c12_335 = arith.constant 12 : index
    %1762 = vector.load %arg5[%c1_333, %c18_334, %c12_335] : memref<2x34x34xf32, #tpu.memory_space<vmem>>, vector<1x16x16xf32>
    %1763 = vector.shape_cast %1762 : vector<1x16x16xf32> to vector<16x16xf32>
    %c95 = arith.constant 95 : index
    %1764 = memref.load %arg1[%c95] : memref<392xf32, #tpu.memory_space<smem>>
    %1765 = vector.broadcast %1764 : f32 to vector<16x16xf32>
    %1766 = arith.mulf %1765, %1763 : vector<16x16xf32>
    %1767 = arith.addf %1749, %1766 : vector<16x16xf32>
    %c193 = arith.constant 193 : index
    %1768 = memref.load %arg1[%c193] : memref<392xf32, #tpu.memory_space<smem>>
    %1769 = vector.broadcast %1768 : f32 to vector<16x16xf32>
    %1770 = arith.mulf %1769, %1763 : vector<16x16xf32>
    %1771 = arith.addf %1753, %1770 : vector<16x16xf32>
    %c291 = arith.constant 291 : index
    %1772 = memref.load %arg1[%c291] : memref<392xf32, #tpu.memory_space<smem>>
    %1773 = vector.broadcast %1772 : f32 to vector<16x16xf32>
    %1774 = arith.mulf %1773, %1763 : vector<16x16xf32>
    %1775 = arith.addf %1757, %1774 : vector<16x16xf32>
    %c389 = arith.constant 389 : index
    %1776 = memref.load %arg1[%c389] : memref<392xf32, #tpu.memory_space<smem>>
    %1777 = vector.broadcast %1776 : f32 to vector<16x16xf32>
    %1778 = arith.mulf %1777, %1763 : vector<16x16xf32>
    %1779 = arith.addf %1761, %1778 : vector<16x16xf32>
    %c1_336 = arith.constant 1 : index
    %c18_337 = arith.constant 18 : index
    %c15_338 = arith.constant 15 : index
    %1780 = vector.load %arg5[%c1_336, %c18_337, %c15_338] : memref<2x34x34xf32, #tpu.memory_space<vmem>>, vector<1x16x16xf32>
    %1781 = vector.shape_cast %1780 : vector<1x16x16xf32> to vector<16x16xf32>
    %c96 = arith.constant 96 : index
    %1782 = memref.load %arg1[%c96] : memref<392xf32, #tpu.memory_space<smem>>
    %1783 = vector.broadcast %1782 : f32 to vector<16x16xf32>
    %1784 = arith.mulf %1783, %1781 : vector<16x16xf32>
    %1785 = arith.addf %1767, %1784 : vector<16x16xf32>
    %c194 = arith.constant 194 : index
    %1786 = memref.load %arg1[%c194] : memref<392xf32, #tpu.memory_space<smem>>
    %1787 = vector.broadcast %1786 : f32 to vector<16x16xf32>
    %1788 = arith.mulf %1787, %1781 : vector<16x16xf32>
    %1789 = arith.addf %1771, %1788 : vector<16x16xf32>
    %c292 = arith.constant 292 : index
    %1790 = memref.load %arg1[%c292] : memref<392xf32, #tpu.memory_space<smem>>
    %1791 = vector.broadcast %1790 : f32 to vector<16x16xf32>
    %1792 = arith.mulf %1791, %1781 : vector<16x16xf32>
    %1793 = arith.addf %1775, %1792 : vector<16x16xf32>
    %c390 = arith.constant 390 : index
    %1794 = memref.load %arg1[%c390] : memref<392xf32, #tpu.memory_space<smem>>
    %1795 = vector.broadcast %1794 : f32 to vector<16x16xf32>
    %1796 = arith.mulf %1795, %1781 : vector<16x16xf32>
    %1797 = arith.addf %1779, %1796 : vector<16x16xf32>
    %c1_339 = arith.constant 1 : index
    %c18_340 = arith.constant 18 : index
    %c18_341 = arith.constant 18 : index
    %1798 = vector.load %arg5[%c1_339, %c18_340, %c18_341] : memref<2x34x34xf32, #tpu.memory_space<vmem>>, vector<1x16x16xf32>
    %1799 = vector.shape_cast %1798 : vector<1x16x16xf32> to vector<16x16xf32>
    %c97 = arith.constant 97 : index
    %1800 = memref.load %arg1[%c97] : memref<392xf32, #tpu.memory_space<smem>>
    %1801 = vector.broadcast %1800 : f32 to vector<16x16xf32>
    %1802 = arith.mulf %1801, %1799 : vector<16x16xf32>
    %1803 = arith.addf %1785, %1802 : vector<16x16xf32>
    %c195 = arith.constant 195 : index
    %1804 = memref.load %arg1[%c195] : memref<392xf32, #tpu.memory_space<smem>>
    %1805 = vector.broadcast %1804 : f32 to vector<16x16xf32>
    %1806 = arith.mulf %1805, %1799 : vector<16x16xf32>
    %1807 = arith.addf %1789, %1806 : vector<16x16xf32>
    %c293 = arith.constant 293 : index
    %1808 = memref.load %arg1[%c293] : memref<392xf32, #tpu.memory_space<smem>>
    %1809 = vector.broadcast %1808 : f32 to vector<16x16xf32>
    %1810 = arith.mulf %1809, %1799 : vector<16x16xf32>
    %1811 = arith.addf %1793, %1810 : vector<16x16xf32>
    %c391 = arith.constant 391 : index
    %1812 = memref.load %arg1[%c391] : memref<392xf32, #tpu.memory_space<smem>>
    %1813 = vector.broadcast %1812 : f32 to vector<16x16xf32>
    %1814 = arith.mulf %1813, %1799 : vector<16x16xf32>
    %1815 = arith.addf %1797, %1814 : vector<16x16xf32>
    %1816 = arith.negf %1803 : vector<16x16xf32>
    %1817 = math.exp %1816 : vector<16x16xf32>
    %cst_342 = arith.constant 1.000000e+00 : f32
    %1818 = vector.broadcast %cst_342 : f32 to vector<16x16xf32>
    %1819 = arith.addf %1818, %1817 : vector<16x16xf32>
    %1820 = arith.divf %1818, %1819 : vector<16x16xf32>
    %c0_343 = arith.constant 0 : index
    %c0_344 = arith.constant 0 : index
    %c0_345 = arith.constant 0 : index
    %c0_346 = arith.constant 0 : index
    %1821 = vector.load %arg4[%c0_343, %c0_344, %c0_345, %c0_346] : memref<1x4x16x16xf32, #tpu.memory_space<vmem>>, vector<1x1x16x16xf32>
    %1822 = vector.shape_cast %1821 : vector<1x1x16x16xf32> to vector<16x16xf32>
    %1823 = vector.shape_cast %1820 : vector<16x16xf32> to vector<1x1x16x16xf32>
    tpu.vector_store %arg4[%c0_343, %c0_344, %c0_345, %c0_346], %1823 {strides = array<i32>} : memref<1x4x16x16xf32, #tpu.memory_space<vmem>>, vector<1x1x16x16xf32>,
    %1824 = arith.negf %1807 : vector<16x16xf32>
    %1825 = math.exp %1824 : vector<16x16xf32>
    %cst_347 = arith.constant 1.000000e+00 : f32
    %1826 = vector.broadcast %cst_347 : f32 to vector<16x16xf32>
    %1827 = arith.addf %1826, %1825 : vector<16x16xf32>
    %1828 = arith.divf %1826, %1827 : vector<16x16xf32>
    %c0_348 = arith.constant 0 : index
    %c1_349 = arith.constant 1 : index
    %c0_350 = arith.constant 0 : index
    %c0_351 = arith.constant 0 : index
    %1829 = vector.load %arg4[%c0_348, %c1_349, %c0_350, %c0_351] : memref<1x4x16x16xf32, #tpu.memory_space<vmem>>, vector<1x1x16x16xf32>
    %1830 = vector.shape_cast %1829 : vector<1x1x16x16xf32> to vector<16x16xf32>
    %1831 = vector.shape_cast %1828 : vector<16x16xf32> to vector<1x1x16x16xf32>
    tpu.vector_store %arg4[%c0_348, %c1_349, %c0_350, %c0_351], %1831 {strides = array<i32>} : memref<1x4x16x16xf32, #tpu.memory_space<vmem>>, vector<1x1x16x16xf32>,
    %1832 = arith.negf %1811 : vector<16x16xf32>
    %1833 = math.exp %1832 : vector<16x16xf32>
    %cst_352 = arith.constant 1.000000e+00 : f32
    %1834 = vector.broadcast %cst_352 : f32 to vector<16x16xf32>
    %1835 = arith.addf %1834, %1833 : vector<16x16xf32>
    %1836 = arith.divf %1834, %1835 : vector<16x16xf32>
    %c0_353 = arith.constant 0 : index
    %c2_354 = arith.constant 2 : index
    %c0_355 = arith.constant 0 : index
    %c0_356 = arith.constant 0 : index
    %1837 = vector.load %arg4[%c0_353, %c2_354, %c0_355, %c0_356] : memref<1x4x16x16xf32, #tpu.memory_space<vmem>>, vector<1x1x16x16xf32>
    %1838 = vector.shape_cast %1837 : vector<1x1x16x16xf32> to vector<16x16xf32>
    %1839 = vector.shape_cast %1836 : vector<16x16xf32> to vector<1x1x16x16xf32>
    tpu.vector_store %arg4[%c0_353, %c2_354, %c0_355, %c0_356], %1839 {strides = array<i32>} : memref<1x4x16x16xf32, #tpu.memory_space<vmem>>, vector<1x1x16x16xf32>,
    %1840 = arith.negf %1815 : vector<16x16xf32>
    %1841 = math.exp %1840 : vector<16x16xf32>
    %cst_357 = arith.constant 1.000000e+00 : f32
    %1842 = vector.broadcast %cst_357 : f32 to vector<16x16xf32>
    %1843 = arith.addf %1842, %1841 : vector<16x16xf32>
    %1844 = arith.divf %1842, %1843 : vector<16x16xf32>
    %c0_358 = arith.constant 0 : index
    %c3_359 = arith.constant 3 : index
    %c0_360 = arith.constant 0 : index
    %c0_361 = arith.constant 0 : index
    %1845 = vector.load %arg4[%c0_358, %c3_359, %c0_360, %c0_361] : memref<1x4x16x16xf32, #tpu.memory_space<vmem>>, vector<1x1x16x16xf32>
    %1846 = vector.shape_cast %1845 : vector<1x1x16x16xf32> to vector<16x16xf32>
    %1847 = vector.shape_cast %1844 : vector<16x16xf32> to vector<1x1x16x16xf32>
    tpu.vector_store %arg4[%c0_358, %c3_359, %c0_360, %c0_361], %1847 {strides = array<i32>} : memref<1x4x16x16xf32, #tpu.memory_space<vmem>>, vector<1x1x16x16xf32>,
    return
  }
  func.func @transform_0(%arg0: i32) -> i32 {
    %c0_i32 = arith.constant 0 : i32
    %c0_i32_0 = arith.constant 0 : i32
    return %c0_i32 : i32
  }
  func.func @transform_1(%arg0: i32) -> i32 {
    %c0_i32 = arith.constant 0 : i32
    %c0_i32_0 = arith.constant 0 : i32
    return %c0_i32 : i32
  }
  func.func @transform_2(%arg0: i32) -> (i32, i32, i32, i32) {
    %c0_i32 = arith.constant 0 : i32
    %c0_i32_0 = arith.constant 0 : i32
    %c0_i32_1 = arith.constant 0 : i32
    %c0_i32_2 = arith.constant 0 : i32
    return %arg0, %c0_i32, %c0_i32_0, %c0_i32_1 : i32, i32, i32, i32
  }
  func.func @transform_3(%arg0: i32) -> (i32, i32, i32, i32) {
    %c0_i32 = arith.constant 0 : i32
    %c0_i32_0 = arith.constant 0 : i32
    %c0_i32_1 = arith.constant 0 : i32
    %c0_i32_2 = arith.constant 0 : i32
    return %arg0, %c0_i32, %c0_i32_0, %c0_i32_1 : i32, i32, i32, i32
  }
}

</mosaic_0001>

<llo_original>
// kernel: tpu_custom_call.1
$region0: #{tpu_custom_call.1}
  #allocation0 [shape = 'u32[]', space=smem, size = 0x4, offset = 0x4, fixed_abs, tag = 'smem constant byte address 0x4 - core index']
  #allocation1 [shape = 'u32[72,128]{1,0:T(1,128)}', space=vmem, size = 0x9000, scoped, tag = 'internal scratch']
  #allocation2 [shape = 'f32[2,34,34]{2,1,0:T(8,128)}', space=vmem, size = 0xa000, scoped, tag = 'scratch operand']
  %s0 = inlined_call_operand.hbm [shape: f32[392], index: 0, kind: input, shape index: {}]
  %s1 = inlined_call_operand.hbm [shape: f32[4], index: 1, kind: input, shape index: {}]
  %s2 = inlined_call_operand.hbm [shape: f32[2,4,16,16], index: 2, kind: input, shape index: {}]
  %s3 = inlined_call_operand.hbm [shape: f32[2,4,16,16], index: 3, kind: output, shape index: {}]
  %s4 = sld [smem:[#allocation0]]
  $region57: #{tpu_custom_call.1} parent=0
    _
  %s6 = ssub.s32 1, %s4
  %s7 = scalar_select 0, %s6, %s4
  $region1: #{tpu_custom_call.1} parent=0
    #allocation3 [shape = 'u8[2048]{0}', space=smem, size = 0x800, scoped, tag = 'input window, operand 0, single buffered']
    #allocation4 [shape = 's32[2]{0}', space=sflag, size = 0x8, scoped, tag = 'scoped memory for tpu_custom_call.1']
    #allocation5 [shape = 's32[2]{0}', space=sflag, size = 0x8, scoped, tag = 'scoped memory for tpu_custom_call.1']
    #allocation6 [shape = 's32[2]{0}', space=sflag, size = 0x8, scoped, tag = 'scoped memory for tpu_custom_call.1']
    #allocation7 [shape = 'u8[512]{0}', space=smem, size = 0x200, scoped, tag = 'input window, operand 1, single buffered']
    #allocation8 [shape = 's32[1]{0}', space=sflag, size = 0x4, scoped, tag = 'scoped memory for tpu_custom_call.1']
    #allocation9 [shape = 'u8[65536]{0}', space=vmem, size = 0x10000, scoped, tag = 'input window, operand 2']
    #allocation10 [shape = 'u8[65536]{0}', space=vmem, size = 0x10000, scoped, tag = 'output window, operand 0']
    %8 = vsyncpa [#allocation6], 0
    %9 = vsyncpa [#allocation8], 0
    %10 = vsyncpa [#allocation4], 0
    %s11 = scalar_lea.sflag [#allocation4], 1
    %12 = vsyncpa %s11, 0
    %13 = vsyncpa [#allocation5], 0
    %s14 = scalar_lea.sflag [#allocation5], 1
    %15 = vsyncpa %s14, 0
    loop: start=0, step=1, limit=4
    $region2: #{tpu_custom_call.1} parent=1 // loop_pre_header
      _
    $region3: #{tpu_custom_call.1} parent=1 // loop_header
      %s17 = sphi 0, %s21
      %p18 = scmp.ge.s32.totalorder %s17, 4
      %s25 = sphi 0, %s25
      %s27 = sphi 0, %s25
      %s28 = sphi 0, %s27
      %s42 = sphi 0, %s28
      %s46 = sphi 0, %s46
      %s48 = sphi 0, %s46
      %s49 = sphi 0, %s48
      %s63 = sphi 0, %s49
      %s69 = sphi 0, %s71
      %s72 = sphi 0, %s69
      %s73 = sphi 0, %s72
      %s89 = sphi 0, %s73
      %s95 = sphi 0, %s97
      %s98 = sphi 0, %s95
      %s99 = sphi 0, %s98
      %s115 = sphi 0, %s99
    $region4: #{tpu_custom_call.1} parent=1 // loop_header_branch
      %20 = sbr.rel (%p18) target = $region8
    $region5: #{tpu_custom_call.1} parent=1 // loop_body
      %s22 = ssub.s32 %s17, 1
      %s23 = ssub.s32 %s17, 2
      %s24 = sadd.s32 %s17, 1
      %s26 = sadd.s32 %s25, 1
      %p29 = scmp.eq.s32.totalorder %s17, 1
      %p30 = scmp.ne.s32.totalorder %s25, %s27
      %p31 = scmp.eq.s32.totalorder %s17, 0
      %p32 = por %p30, %p31
      %p33 = scmp.ne.s32.totalorder %s25, %s27
      %p34 = scmp.eq.s32.totalorder %s22, 1
      %p35 = por %p33, %p34
      %p36 = scmp.ne.s32.totalorder %s27, %s28
      %p37 = scmp.eq.s32.totalorder %s22, 0
      %p38 = por %p36, %p37
      %p39 = scmp.ne.s32.totalorder %s27, %s28
      %p40 = scmp.eq.s32.totalorder %s23, 1
      %p41 = por %p39, %p40
      %p43 = scmp.ne.s32.totalorder %s28, %s42
      %p44 = scmp.eq.s32.totalorder %s23, 0
      %p45 = por %p43, %p44
      %s47 = sadd.s32 %s46, 1
      %p50 = scmp.eq.s32.totalorder %s17, 1
      %p51 = scmp.ne.s32.totalorder %s46, %s48
      %p52 = scmp.eq.s32.totalorder %s17, 0
      %p53 = por %p51, %p52
      %p54 = scmp.ne.s32.totalorder %s46, %s48
      %p55 = scmp.eq.s32.totalorder %s22, 1
      %p56 = por %p54, %p55
      %p57 = scmp.ne.s32.totalorder %s48, %s49
      %p58 = scmp.eq.s32.totalorder %s22, 0
      %p59 = por %p57, %p58
      %p60 = scmp.ne.s32.totalorder %s48, %s49
      %p61 = scmp.eq.s32.totalorder %s23, 1
      %p62 = por %p60, %p61
      %p64 = scmp.ne.s32.totalorder %s49, %s63
      %p65 = scmp.eq.s32.totalorder %s23, 0
      %p66 = por %p64, %p65
      %s67 = ssub.s32 %s17, %s24
      %p68 = scmp.eq.s32.totalorder %s67, 0
      %s70 = sadd.s32 %s69, 1
      %s71 = scalar_select %p68, %s69, %s70
      %p74 = pneg %p68
      %p75 = scmp.eq.s32.totalorder %s17, 1
      %p76 = por %p74, %p75
      %p77 = scmp.ne.s32.totalorder %s69, %s72
      %p78 = scmp.eq.s32.totalorder %s17, 0
      %p79 = por %p77, %p78
      %p80 = scmp.ne.s32.totalorder %s69, %s72
      %p81 = scmp.eq.s32.totalorder %s22, 1
      %p82 = por %p80, %p81
      %p83 = scmp.ne.s32.totalorder %s72, %s73
      %p84 = scmp.eq.s32.totalorder %s22, 0
      %p85 = por %p83, %p84
      %p86 = scmp.ne.s32.totalorder %s72, %s73
      %p87 = scmp.eq.s32.totalorder %s23, 1
      %p88 = por %p86, %p87
      %p90 = scmp.ne.s32.totalorder %s73, %s89
      %p91 = scmp.eq.s32.totalorder %s23, 0
      %p92 = por %p90, %p91
      %s93 = ssub.s32 %s17, %s24
      %p94 = scmp.eq.s32.totalorder %s93, 0
      %s96 = sadd.s32 %s95, 1
      %s97 = scalar_select %p94, %s95, %s96
      %p100 = pneg %p94
      %p101 = scmp.eq.s32.totalorder %s17, 1
      %p102 = por %p100, %p101
      %p103 = scmp.ne.s32.totalorder %s95, %s98
      %p104 = scmp.eq.s32.totalorder %s17, 0
      %p105 = por %p103, %p104
      %p106 = scmp.ne.s32.totalorder %s95, %s98
      %p107 = scmp.eq.s32.totalorder %s22, 1
      %p108 = por %p106, %p107
      %p109 = scmp.ne.s32.totalorder %s98, %s99
      %p110 = scmp.eq.s32.totalorder %s22, 0
      %p111 = por %p109, %p110
      %p112 = scmp.ne.s32.totalorder %s98, %s99
      %p113 = scmp.eq.s32.totalorder %s23, 1
      %p114 = por %p112, %p113
      %p116 = scmp.ne.s32.totalorder %s99, %s115
      %p117 = scmp.eq.s32.totalorder %s23, 0
      %p118 = por %p116, %p117
      %p119 = scmp.le.s32.totalorder 1, %s17
      %p120 = scmp.lt.s32.totalorder %s17, 3
      %p121 = pnand %p119, %p120
      %p122 = pneg %p121
      // Predicated region
      $region9: #{tpu_custom_call.1} parent=5 // pred_check
        _
      $region10: #{tpu_custom_call.1} parent=5 // pred_check_branch
        %124 = sbr.rel (%p121) target = $region12
      $region11: #{tpu_custom_call.1} parent=5 // pred_region
        %s125 = ssub.s32 %s17, 1
        // Predicated region
        $region13: #{tpu_custom_call.1} parent=11 // pred_check
          %p126 = pneg %p38
        $region14: #{tpu_custom_call.1} parent=11 // pred_check_branch
          %128 = sbr.rel (%p126) target = $region16
        $region15: #{tpu_custom_call.1} parent=11 // pred_region
          %130 = vsyncadd [#allocation6], 0
          %s132 = sshll.u32 %s0, 4
          %s133 = int_to_ptr.hbm [resolvable:$true] %s132
          %135 = dma.hbm_to_smem %s133, 64, [#allocation3], [#allocation6]
        $region16: #{tpu_custom_call.1} parent=11 // pred_fallthru
          _
        // Predicated region
        $region17: #{tpu_custom_call.1} parent=11 // pred_check
          %p136 = pneg %p59
        $region18: #{tpu_custom_call.1} parent=11 // pred_check_branch
          %138 = sbr.rel (%p136) target = $region20
        $region19: #{tpu_custom_call.1} parent=11 // pred_region
          %140 = vsyncadd [#allocation8], 0
          %s142 = sshll.u32 %s1, 4
          %s143 = int_to_ptr.hbm [resolvable:$true] %s142
          %145 = dma.hbm_to_smem %s143, 16, [#allocation7], [#allocation8]
        $region20: #{tpu_custom_call.1} parent=11 // pred_fallthru
          _
      $region12: #{tpu_custom_call.1} parent=5 // pred_fallthru
        _
      %p146 = scmp.lt.s32.totalorder %s17, 2
      // Predicated region
      $region21: #{tpu_custom_call.1} parent=5 // pred_check
        %p147 = pneg %p146
      $region22: #{tpu_custom_call.1} parent=5 // pred_check_branch
        %149 = sbr.rel (%p147) target = $region24
      $region23: #{tpu_custom_call.1} parent=5 // pred_region
        // Predicated region
        $region25: #{tpu_custom_call.1} parent=23 // pred_check
          %p150 = pneg %p79
        $region26: #{tpu_custom_call.1} parent=23 // pred_check_branch
          %152 = sbr.rel (%p150) target = $region28
        $region27: #{tpu_custom_call.1} parent=23 // pred_region
          %s153 = sand.u32 %s69, 1
          %s154 = scalar_lea.sflag [#allocation4], %s153
          %s155 = sand.u32 %s69, 1
          %s156 = smul.addr %s155, 64
          %s157 = scalar_lea.vmem [#allocation9], %s156
          %159 = vsyncadd %s154, 0
          %s160 = smul.addr %s17, 8
          %s161 = smul.addr %s160, 8
          %s162 = scalar_lea.hbm %s2, %s161
          %s163 = sshll.u32 %s162, 4
          %s164 = int_to_ptr.hbm [resolvable:$true] %s163
          %s165 = sshll.u32 %s157, 4
          %s166 = int_to_ptr.vmem [resolvable:$true] %s165
          %171 = dma.hbm_to_vmem [thread:$0]  %s164, 1024, %s166, %s154, 128, 128, 8
        $region28: #{tpu_custom_call.1} parent=23 // pred_fallthru
          _
      $region24: #{tpu_custom_call.1} parent=5 // pred_fallthru
        _
      %p172 = scmp.le.s32.totalorder 1, %s17
      %p173 = scmp.lt.s32.totalorder %s17, 3
      %p174 = pnand %p172, %p173
      %p175 = pneg %p174
      // Predicated region
      $region29: #{tpu_custom_call.1} parent=5 // pred_check
        _
      $region30: #{tpu_custom_call.1} parent=5 // pred_check_branch
        %177 = sbr.rel (%p174) target = $region32
      $region31: #{tpu_custom_call.1} parent=5 // pred_region
        %s178 = ssub.s32 %s17, 1
        // Predicated region
        $region33: #{tpu_custom_call.1} parent=31 // pred_check
          %p179 = pneg %p38
        $region34: #{tpu_custom_call.1} parent=31 // pred_check_branch
          %181 = sbr.rel (%p179) target = $region36
        $region35: #{tpu_custom_call.1} parent=31 // pred_region
          %183 = dma.done [#allocation6], 64
        $region36: #{tpu_custom_call.1} parent=31 // pred_fallthru
          _
        // Predicated region
        $region37: #{tpu_custom_call.1} parent=31 // pred_check
          %p184 = pneg %p59
        $region38: #{tpu_custom_call.1} parent=31 // pred_check_branch
          %186 = sbr.rel (%p184) target = $region40
        $region39: #{tpu_custom_call.1} parent=31 // pred_region
          %188 = dma.done [#allocation8], 16
        $region40: #{tpu_custom_call.1} parent=31 // pred_fallthru
          _
        %s189 = sand.u32 %s72, 1
        %s190 = scalar_lea.sflag [#allocation4], %s189
        %s191 = sand.u32 %s72, 1
        %s192 = smul.addr %s191, 64
        %s193 = scalar_lea.vmem [#allocation9], %s192
        // Predicated region
        $region41: #{tpu_custom_call.1} parent=31 // pred_check
          %p194 = pneg %p85
        $region42: #{tpu_custom_call.1} parent=31 // pred_check_branch
          %196 = sbr.rel (%p194) target = $region44
        $region43: #{tpu_custom_call.1} parent=31 // pred_region
          %198 = dma.done %s190, 1024
        $region44: #{tpu_custom_call.1} parent=31 // pred_fallthru
          _
        %199 = sfence
        %p200 = pneg %p38
        %p201 = pneg %p35
        %p202 = pneg %p59
        %p203 = pneg %p56
        %s204 = sand.u32 %s72, 1
        %s205 = scalar_lea.sflag [#allocation4], %s204
        %s206 = sand.u32 %s72, 1
        %s207 = smul.addr %s206, 64
        %s208 = scalar_lea.vmem [#allocation9], %s207
        %p209 = pneg %p85
        %p210 = pneg %p82
        %p211 = pneg %p111
        %p212 = pneg %p108
        %s213 = sand.u32 %s98, 1
        %s214 = scalar_lea.sflag [#allocation5], %s213
        %s215 = sand.u32 %s98, 1
        %s216 = smul.addr %s215, 64
        %s217 = scalar_lea.vmem [#allocation10], %s216
        %v218 = vld [vmem:[%s193] sm:$0xff]
        %v219 = vld [vmem:[%s193 + $0x8] sm:$0xff]
        %v220 = vld [vmem:[%s193 + $0x10] sm:$0xff]
        %v221 = vld [vmem:[%s193 + $0x18] sm:$0xff]
        %v222 = vld [vmem:[%s193 + $0x20] sm:$0xff]
        %v223 = vld [vmem:[%s193 + $0x28] sm:$0xff]
        %v224 = vld [vmem:[%s193 + $0x30] sm:$0xff]
        %v225 = vld [vmem:[%s193 + $0x38] sm:$0xff]
        %vm226 = vcmask 130048
        %v227 = vsel %vm226, %v218, 0.0
        %v228 = vsel %vm226, %v220, 0.0
        %v229 = vadd.f32 %v227, %v228
        %v230 = vsel %vm226, %v222, 0.0
        %v231 = vadd.f32 %v229, %v230
        %v232 = vsel %vm226, %v224, 0.0
        %v233 = vadd.f32 %v231, %v232
        %v234 = vsel %vm226, %v219, 0.0
        %v235 = vsel %vm226, %v221, 0.0
        %v236 = vadd.f32 %v234, %v235
        %v237 = vsel %vm226, %v223, 0.0
        %v238 = vadd.f32 %v236, %v237
        %v239 = vsel %vm226, %v225, 0.0
        %v240 = vadd.f32 %v238, %v239
        %v241 = vmul.f32 %v233, 0.25
        %v242 = vmul.f32 %v240, 0.25
        %v243 = vsel %vm226, %v218, -inf
        %v244 = vsel %vm226, %v220, -inf
        %v245 = vsel %vm226, %v222, -inf
        %v246 = vmax.f32 %v243, %v245
        %v247 = vsel %vm226, %v224, -inf
        %v248 = vmax.f32 %v244, %v247
        %v249 = vmax.f32 %v246, %v248
        %v250 = vsel %vm226, %v219, -inf
        %v251 = vsel %vm226, %v221, -inf
        %v252 = vsel %vm226, %v223, -inf
        %v253 = vmax.f32 %v250, %v252
        %v254 = vsel %vm226, %v225, -inf
        %v255 = vmax.f32 %v251, %v254
        %v256 = vmax.f32 %v253, %v255
        %vm257 = vcmask 277504
        %258 = vst.msk [vmem:[#allocation2] sm:$0xff] %vm257, 0.0
        %vm259 = vcmask 270336
        %260 = vst.msk [vmem:[#allocation2 + $0x8] sm:$0x1] %vm259, 0.0
        %261 = vst.msk [vmem:[#allocation2 + $0x19] sm:$0xff] %vm257, 0.0
        %262 = vst.msk [vmem:[#allocation2 + $0x21] sm:$0x1] %vm259, 0.0
        %vm263 = vcmask 72704
        %264 = vst.msk [vmem:[#allocation2 + $0x9] sm:$0xff] %vm263, 0.0
        %265 = vst.msk [vmem:[#allocation2 + $0x11] sm:$0xff] %vm263, 0.0
        %vm266 = vcmask 277704
        %267 = vst.msk [vmem:[#allocation2 + $0x9] sm:$0xff] %vm266, 0.0
        %268 = vst.msk [vmem:[#allocation2 + $0x11] sm:$0xff] %vm266, 0.0
        %s269 = scalar_lea.vmem [#allocation2], 40
        %270 = vst.msk [vmem:[%s269] sm:$0xff] %vm257, 0.0
        %271 = vst.msk [vmem:[%s269 + $0x8] sm:$0x1] %vm259, 0.0
        %272 = vst.msk [vmem:[%s269 + $0x19] sm:$0xff] %vm257, 0.0
        %273 = vst.msk [vmem:[%s269 + $0x21] sm:$0x1] %vm259, 0.0
        %274 = vst.msk [vmem:[%s269 + $0x9] sm:$0xff] %vm263, 0.0
        %275 = vst.msk [vmem:[%s269 + $0x11] sm:$0xff] %vm263, 0.0
        %276 = vst.msk [vmem:[%s269 + $0x9] sm:$0xff] %vm266, 0.0
        %277 = vst.msk [vmem:[%s269 + $0x11] sm:$0xff] %vm266, 0.0
        %280 = vrot.lane.b32.xlu0 %v241, 9
        %v281 = vpop.permute.xlu0 %280
        %282 = vrot.lane.b32.xlu0 %v242, 9
        %v283 = vpop.permute.xlu0 %282
        %vm286 = vcmask 203848
        %287 = vst.msk [vmem:[#allocation2 + $0x9] sm:$0xff] %vm286, %v281
        %288 = vst.msk [vmem:[#allocation2 + $0x11] sm:$0xff] %vm286, %v283
        %291 = vrot.lane.b32.xlu0 %v249, 9
        %v292 = vpop.permute.xlu0 %291
        %293 = vrot.lane.b32.xlu0 %v256, 9
        %v294 = vpop.permute.xlu0 %293
        %297 = vst.msk [vmem:[%s269 + $0x9] sm:$0xff] %vm286, %v292
        %298 = vst.msk [vmem:[%s269 + $0x11] sm:$0xff] %vm286, %v294
        %s299 = sld [smem:[#allocation7]]
        %v300 = vstv %s299
        %s301 = sld [smem:[#allocation7 + $0x1]]
        %v302 = vstv %s301
        %s303 = sld [smem:[#allocation7 + $0x2]]
        %v304 = vstv %s303
        %s305 = sld [smem:[#allocation7 + $0x3]]
        %v306 = vstv %s305
        %v307 = vld [vmem:[#allocation2] sm:$0xff]
        %v308 = vld [vmem:[#allocation2 + $0x8] sm:$0xff]
        %s309 = sld [smem:[#allocation3]]
        %v310 = vstv %s309
        %v311 = vmul.f32 %v310, %v307
        %v312 = vmul.f32 %v310, %v308
        %v313 = vadd.f32 %v300, %v311
        %v314 = vadd.f32 %v300, %v312
        %s315 = sld [smem:[#allocation3 + $0x62]]
        %v316 = vstv %s315
        %v317 = vmul.f32 %v316, %v307
        %v318 = vmul.f32 %v316, %v308
        %v319 = vadd.f32 %v302, %v317
        %v320 = vadd.f32 %v302, %v318
        %s321 = sld [smem:[#allocation3 + $0xc4]]
        %v322 = vstv %s321
        %v323 = vmul.f32 %v322, %v307
        %v324 = vmul.f32 %v322, %v308
        %v325 = vadd.f32 %v304, %v323
        %v326 = vadd.f32 %v304, %v324
        %s327 = sld [smem:[#allocation3 + $0x126]]
        %v328 = vstv %s327
        %v329 = vmul.f32 %v328, %v307
        %v330 = vmul.f32 %v328, %v308
        %v331 = vadd.f32 %v306, %v329
        %v332 = vadd.f32 %v306, %v330
        %s333 = sld [smem:[#allocation3 + $0x1]]
        %v334 = vstv %s333
        %v335 = vmul.f32 %v334, %v307
        %v336 = vmul.f32 %v334, %v308
        %339 = vrot.lane.b32.xlu0 %v335, 125
        %v340 = vpop.permute.xlu0 %339
        %341 = vrot.lane.b32.xlu0 %v336, 125
        %v342 = vpop.permute.xlu0 %341
        %v345 = vadd.f32 %v313, %v340
        %v346 = vadd.f32 %v314, %v342
        %s347 = sld [smem:[#allocation3 + $0x63]]
        %v348 = vstv %s347
        %v349 = vmul.f32 %v348, %v307
        %v350 = vmul.f32 %v348, %v308
        %353 = vrot.lane.b32.xlu0 %v349, 125
        %v354 = vpop.permute.xlu0 %353
        %355 = vrot.lane.b32.xlu0 %v350, 125
        %v356 = vpop.permute.xlu0 %355
        %v359 = vadd.f32 %v319, %v354
        %v360 = vadd.f32 %v320, %v356
        %s361 = sld [smem:[#allocation3 + $0xc5]]
        %v362 = vstv %s361
        %v363 = vmul.f32 %v362, %v307
        %v364 = vmul.f32 %v362, %v308
        %367 = vrot.lane.b32.xlu0 %v363, 125
        %v368 = vpop.permute.xlu0 %367
        %369 = vrot.lane.b32.xlu0 %v364, 125
        %v370 = vpop.permute.xlu0 %369
        %v373 = vadd.f32 %v325, %v368
        %v374 = vadd.f32 %v326, %v370
        %s375 = sld [smem:[#allocation3 + $0x127]]
        %v376 = vstv %s375
        %v377 = vmul.f32 %v376, %v307
        %v378 = vmul.f32 %v376, %v308
        %381 = vrot.lane.b32.xlu0 %v377, 125
        %v382 = vpop.permute.xlu0 %381
        %383 = vrot.lane.b32.xlu0 %v378, 125
        %v384 = vpop.permute.xlu0 %383
        %v387 = vadd.f32 %v331, %v382
        %v388 = vadd.f32 %v332, %v384
        %s389 = sld [smem:[#allocation3 + $0x2]]
        %v390 = vstv %s389
        %v391 = vmul.f32 %v390, %v307
        %v392 = vmul.f32 %v390, %v308
        %395 = vrot.lane.b32.xlu0 %v391, 122
        %v396 = vpop.permute.xlu0 %395
        %397 = vrot.lane.b32.xlu0 %v392, 122
        %v398 = vpop.permute.xlu0 %397
        %v401 = vadd.f32 %v345, %v396
        %v402 = vadd.f32 %v346, %v398
        %s403 = sld [smem:[#allocation3 + $0x64]]
        %v404 = vstv %s403
        %v405 = vmul.f32 %v404, %v307
        %v406 = vmul.f32 %v404, %v308
        %409 = vrot.lane.b32.xlu0 %v405, 122
        %v410 = vpop.permute.xlu0 %409
        %411 = vrot.lane.b32.xlu0 %v406, 122
        %v412 = vpop.permute.xlu0 %411
        %v415 = vadd.f32 %v359, %v410
        %v416 = vadd.f32 %v360, %v412
        %s417 = sld [smem:[#allocation3 + $0xc6]]
        %v418 = vstv %s417
        %v419 = vmul.f32 %v418, %v307
        %v420 = vmul.f32 %v418, %v308
        %423 = vrot.lane.b32.xlu0 %v419, 122
        %v424 = vpop.permute.xlu0 %423
        %425 = vrot.lane.b32.xlu0 %v420, 122
        %v426 = vpop.permute.xlu0 %425
        %v429 = vadd.f32 %v373, %v424
        %v430 = vadd.f32 %v374, %v426
        %s431 = sld [smem:[#allocation3 + $0x128]]
        %v432 = vstv %s431
        %v433 = vmul.f32 %v432, %v307
        %v434 = vmul.f32 %v432, %v308
        %437 = vrot.lane.b32.xlu0 %v433, 122
        %v438 = vpop.permute.xlu0 %437
        %439 = vrot.lane.b32.xlu0 %v434, 122
        %v440 = vpop.permute.xlu0 %439
        %v443 = vadd.f32 %v387, %v438
        %v444 = vadd.f32 %v388, %v440
        %s445 = sld [smem:[#allocation3 + $0x3]]
        %v446 = vstv %s445
        %v447 = vmul.f32 %v446, %v307
        %v448 = vmul.f32 %v446, %v308
        %451 = vrot.lane.b32.xlu0 %v447, 119
        %v452 = vpop.permute.xlu0 %451
        %453 = vrot.lane.b32.xlu0 %v448, 119
        %v454 = vpop.permute.xlu0 %453
        %v457 = vadd.f32 %v401, %v452
        %v458 = vadd.f32 %v402, %v454
        %s459 = sld [smem:[#allocation3 + $0x65]]
        %v460 = vstv %s459
        %v461 = vmul.f32 %v460, %v307
        %v462 = vmul.f32 %v460, %v308
        %465 = vrot.lane.b32.xlu0 %v461, 119
        %v466 = vpop.permute.xlu0 %465
        %467 = vrot.lane.b32.xlu0 %v462, 119
        %v468 = vpop.permute.xlu0 %467
        %v471 = vadd.f32 %v415, %v466
        %v472 = vadd.f32 %v416, %v468
        %s473 = sld [smem:[#allocation3 + $0xc7]]
        %v474 = vstv %s473
        %v475 = vmul.f32 %v474, %v307
        %v476 = vmul.f32 %v474, %v308
        %479 = vrot.lane.b32.xlu0 %v475, 119
        %v480 = vpop.permute.xlu0 %479
        %481 = vrot.lane.b32.xlu0 %v476, 119
        %v482 = vpop.permute.xlu0 %481
        %v485 = vadd.f32 %v429, %v480
        %v486 = vadd.f32 %v430, %v482
        %s487 = sld [smem:[#allocation3 + $0x129]]
        %v488 = vstv %s487
        %v489 = vmul.f32 %v488, %v307
        %v490 = vmul.f32 %v488, %v308
        %493 = vrot.lane.b32.xlu0 %v489, 119
        %v494 = vpop.permute.xlu0 %493
        %495 = vrot.lane.b32.xlu0 %v490, 119
        %v496 = vpop.permute.xlu0 %495
        %v499 = vadd.f32 %v443, %v494
        %v500 = vadd.f32 %v444, %v496
        %s501 = sld [smem:[#allocation3 + $0x4]]
        %v502 = vstv %s501
        %v503 = vmul.f32 %v502, %v307
        %v504 = vmul.f32 %v502, %v308
        %507 = vrot.lane.b32.xlu0 %v503, 116
        %v508 = vpop.permute.xlu0 %507
        %509 = vrot.lane.b32.xlu0 %v504, 116
        %v510 = vpop.permute.xlu0 %509
        %v513 = vadd.f32 %v457, %v508
        %v514 = vadd.f32 %v458, %v510
        %s515 = sld [smem:[#allocation3 + $0x66]]
        %v516 = vstv %s515
        %v517 = vmul.f32 %v516, %v307
        %v518 = vmul.f32 %v516, %v308
        %521 = vrot.lane.b32.xlu0 %v517, 116
        %v522 = vpop.permute.xlu0 %521
        %523 = vrot.lane.b32.xlu0 %v518, 116
        %v524 = vpop.permute.xlu0 %523
        %v527 = vadd.f32 %v471, %v522
        %v528 = vadd.f32 %v472, %v524
        %s529 = sld [smem:[#allocation3 + $0xc8]]
        %v530 = vstv %s529
        %v531 = vmul.f32 %v530, %v307
        %v532 = vmul.f32 %v530, %v308
        %535 = vrot.lane.b32.xlu0 %v531, 116
        %v536 = vpop.permute.xlu0 %535
        %537 = vrot.lane.b32.xlu0 %v532, 116
        %v538 = vpop.permute.xlu0 %537
        %v541 = vadd.f32 %v485, %v536
        %v542 = vadd.f32 %v486, %v538
        %s543 = sld [smem:[#allocation3 + $0x12a]]
        %v544 = vstv %s543
        %v545 = vmul.f32 %v544, %v307
        %v546 = vmul.f32 %v544, %v308
        %549 = vrot.lane.b32.xlu0 %v545, 116
        %v550 = vpop.permute.xlu0 %549
        %551 = vrot.lane.b32.xlu0 %v546, 116
        %v552 = vpop.permute.xlu0 %551
        %v555 = vadd.f32 %v499, %v550
        %v556 = vadd.f32 %v500, %v552
        %s557 = sld [smem:[#allocation3 + $0x5]]
        %v558 = vstv %s557
        %v559 = vmul.f32 %v558, %v307
        %v560 = vmul.f32 %v558, %v308
        %563 = vrot.lane.b32.xlu0 %v559, 113
        %v564 = vpop.permute.xlu0 %563
        %565 = vrot.lane.b32.xlu0 %v560, 113
        %v566 = vpop.permute.xlu0 %565
        %v569 = vadd.f32 %v513, %v564
        %v570 = vadd.f32 %v514, %v566
        %s571 = sld [smem:[#allocation3 + $0x67]]
        %v572 = vstv %s571
        %v573 = vmul.f32 %v572, %v307
        %v574 = vmul.f32 %v572, %v308
        %577 = vrot.lane.b32.xlu0 %v573, 113
        %v578 = vpop.permute.xlu0 %577
        %579 = vrot.lane.b32.xlu0 %v574, 113
        %v580 = vpop.permute.xlu0 %579
        %v583 = vadd.f32 %v527, %v578
        %v584 = vadd.f32 %v528, %v580
        %s585 = sld [smem:[#allocation3 + $0xc9]]
        %v586 = vstv %s585
        %v587 = vmul.f32 %v586, %v307
        %v588 = vmul.f32 %v586, %v308
        %591 = vrot.lane.b32.xlu0 %v587, 113
        %v592 = vpop.permute.xlu0 %591
        %593 = vrot.lane.b32.xlu0 %v588, 113
        %v594 = vpop.permute.xlu0 %593
        %v597 = vadd.f32 %v541, %v592
        %v598 = vadd.f32 %v542, %v594
        %s599 = sld [smem:[#allocation3 + $0x12b]]
        %v600 = vstv %s599
        %v601 = vmul.f32 %v600, %v307
        %v602 = vmul.f32 %v600, %v308
        %605 = vrot.lane.b32.xlu0 %v601, 113
        %v606 = vpop.permute.xlu0 %605
        %607 = vrot.lane.b32.xlu0 %v602, 113
        %v608 = vpop.permute.xlu0 %607
        %v611 = vadd.f32 %v555, %v606
        %v612 = vadd.f32 %v556, %v608
        %s613 = sld [smem:[#allocation3 + $0x6]]
        %v614 = vstv %s613
        %v615 = vmul.f32 %v614, %v307
        %v616 = vmul.f32 %v614, %v308
        %619 = vrot.lane.b32.xlu0 %v615, 110
        %v620 = vpop.permute.xlu0 %619
        %621 = vrot.lane.b32.xlu0 %v616, 110
        %v622 = vpop.permute.xlu0 %621
        %v625 = vadd.f32 %v569, %v620
        %v626 = vadd.f32 %v570, %v622
        %s627 = sld [smem:[#allocation3 + $0x68]]
        %v628 = vstv %s627
        %v629 = vmul.f32 %v628, %v307
        %v630 = vmul.f32 %v628, %v308
        %633 = vrot.lane.b32.xlu0 %v629, 110
        %v634 = vpop.permute.xlu0 %633
        %635 = vrot.lane.b32.xlu0 %v630, 110
        %v636 = vpop.permute.xlu0 %635
        %v639 = vadd.f32 %v583, %v634
        %v640 = vadd.f32 %v584, %v636
        %s641 = sld [smem:[#allocation3 + $0xca]]
        %v642 = vstv %s641
        %v643 = vmul.f32 %v642, %v307
        %v644 = vmul.f32 %v642, %v308
        %647 = vrot.lane.b32.xlu0 %v643, 110
        %v648 = vpop.permute.xlu0 %647
        %649 = vrot.lane.b32.xlu0 %v644, 110
        %v650 = vpop.permute.xlu0 %649
        %v653 = vadd.f32 %v597, %v648
        %v654 = vadd.f32 %v598, %v650
        %s655 = sld [smem:[#allocation3 + $0x12c]]
        %v656 = vstv %s655
        %v657 = vmul.f32 %v656, %v307
        %v658 = vmul.f32 %v656, %v308
        %661 = vrot.lane.b32.xlu0 %v657, 110
        %v662 = vpop.permute.xlu0 %661
        %663 = vrot.lane.b32.xlu0 %v658, 110
        %v664 = vpop.permute.xlu0 %663
        %v667 = vadd.f32 %v611, %v662
        %v668 = vadd.f32 %v612, %v664
        %v669 = vld [vmem:[#allocation2 + $0x3] sm:$0xff]
        %v670 = vld [vmem:[#allocation2 + $0xb] sm:$0xff]
        %s671 = sld [smem:[#allocation3 + $0x7]]
        %v672 = vstv %s671
        %v673 = vmul.f32 %v672, %v669
        %v674 = vmul.f32 %v672, %v670
        %v675 = vadd.f32 %v625, %v673
        %v676 = vadd.f32 %v626, %v674
        %s677 = sld [smem:[#allocation3 + $0x69]]
        %v678 = vstv %s677
        %v679 = vmul.f32 %v678, %v669
        %v680 = vmul.f32 %v678, %v670
        %v681 = vadd.f32 %v639, %v679
        %v682 = vadd.f32 %v640, %v680
        %s683 = sld [smem:[#allocation3 + $0xcb]]
        %v684 = vstv %s683
        %v685 = vmul.f32 %v684, %v669
        %v686 = vmul.f32 %v684, %v670
        %v687 = vadd.f32 %v653, %v685
        %v688 = vadd.f32 %v654, %v686
        %s689 = sld [smem:[#allocation3 + $0x12d]]
        %v690 = vstv %s689
        %v691 = vmul.f32 %v690, %v669
        %v692 = vmul.f32 %v690, %v670
        %v693 = vadd.f32 %v667, %v691
        %v694 = vadd.f32 %v668, %v692
        %s695 = sld [smem:[#allocation3 + $0x8]]
        %v696 = vstv %s695
        %v697 = vmul.f32 %v696, %v669
        %v698 = vmul.f32 %v696, %v670
        %701 = vrot.lane.b32.xlu0 %v697, 125
        %v702 = vpop.permute.xlu0 %701
        %703 = vrot.lane.b32.xlu0 %v698, 125
        %v704 = vpop.permute.xlu0 %703
        %v707 = vadd.f32 %v675, %v702
        %v708 = vadd.f32 %v676, %v704
        %s709 = sld [smem:[#allocation3 + $0x6a]]
        %v710 = vstv %s709
        %v711 = vmul.f32 %v710, %v669
        %v712 = vmul.f32 %v710, %v670
        %715 = vrot.lane.b32.xlu0 %v711, 125
        %v716 = vpop.permute.xlu0 %715
        %717 = vrot.lane.b32.xlu0 %v712, 125
        %v718 = vpop.permute.xlu0 %717
        %v721 = vadd.f32 %v681, %v716
        %v722 = vadd.f32 %v682, %v718
        %s723 = sld [smem:[#allocation3 + $0xcc]]
        %v724 = vstv %s723
        %v725 = vmul.f32 %v724, %v669
        %v726 = vmul.f32 %v724, %v670
        %729 = vrot.lane.b32.xlu0 %v725, 125
        %v730 = vpop.permute.xlu0 %729
        %731 = vrot.lane.b32.xlu0 %v726, 125
        %v732 = vpop.permute.xlu0 %731
        %v735 = vadd.f32 %v687, %v730
        %v736 = vadd.f32 %v688, %v732
        %s737 = sld [smem:[#allocation3 + $0x12e]]
        %v738 = vstv %s737
        %v739 = vmul.f32 %v738, %v669
        %v740 = vmul.f32 %v738, %v670
        %743 = vrot.lane.b32.xlu0 %v739, 125
        %v744 = vpop.permute.xlu0 %743
        %745 = vrot.lane.b32.xlu0 %v740, 125
        %v746 = vpop.permute.xlu0 %745
        %v749 = vadd.f32 %v693, %v744
        %v750 = vadd.f32 %v694, %v746
        %s751 = sld [smem:[#allocation3 + $0x9]]
        %v752 = vstv %s751
        %v753 = vmul.f32 %v752, %v669
        %v754 = vmul.f32 %v752, %v670
        %757 = vrot.lane.b32.xlu0 %v753, 122
        %v758 = vpop.permute.xlu0 %757
        %759 = vrot.lane.b32.xlu0 %v754, 122
        %v760 = vpop.permute.xlu0 %759
        %v763 = vadd.f32 %v707, %v758
        %v764 = vadd.f32 %v708, %v760
        %s765 = sld [smem:[#allocation3 + $0x6b]]
        %v766 = vstv %s765
        %v767 = vmul.f32 %v766, %v669
        %v768 = vmul.f32 %v766, %v670
        %771 = vrot.lane.b32.xlu0 %v767, 122
        %v772 = vpop.permute.xlu0 %771
        %773 = vrot.lane.b32.xlu0 %v768, 122
        %v774 = vpop.permute.xlu0 %773
        %v777 = vadd.f32 %v721, %v772
        %v778 = vadd.f32 %v722, %v774
        %s779 = sld [smem:[#allocation3 + $0xcd]]
        %v780 = vstv %s779
        %v781 = vmul.f32 %v780, %v669
        %v782 = vmul.f32 %v780, %v670
        %785 = vrot.lane.b32.xlu0 %v781, 122
        %v786 = vpop.permute.xlu0 %785
        %787 = vrot.lane.b32.xlu0 %v782, 122
        %v788 = vpop.permute.xlu0 %787
        %v791 = vadd.f32 %v735, %v786
        %v792 = vadd.f32 %v736, %v788
        %s793 = sld [smem:[#allocation3 + $0x12f]]
        %v794 = vstv %s793
        %v795 = vmul.f32 %v794, %v669
        %v796 = vmul.f32 %v794, %v670
        %799 = vrot.lane.b32.xlu0 %v795, 122
        %v800 = vpop.permute.xlu0 %799
        %801 = vrot.lane.b32.xlu0 %v796, 122
        %v802 = vpop.permute.xlu0 %801
        %v805 = vadd.f32 %v749, %v800
        %v806 = vadd.f32 %v750, %v802
        %s807 = sld [smem:[#allocation3 + $0xa]]
        %v808 = vstv %s807
        %v809 = vmul.f32 %v808, %v669
        %v810 = vmul.f32 %v808, %v670
        %813 = vrot.lane.b32.xlu0 %v809, 119
        %v814 = vpop.permute.xlu0 %813
        %815 = vrot.lane.b32.xlu0 %v810, 119
        %v816 = vpop.permute.xlu0 %815
        %v819 = vadd.f32 %v763, %v814
        %v820 = vadd.f32 %v764, %v816
        %s821 = sld [smem:[#allocation3 + $0x6c]]
        %v822 = vstv %s821
        %v823 = vmul.f32 %v822, %v669
        %v824 = vmul.f32 %v822, %v670
        %827 = vrot.lane.b32.xlu0 %v823, 119
        %v828 = vpop.permute.xlu0 %827
        %829 = vrot.lane.b32.xlu0 %v824, 119
        %v830 = vpop.permute.xlu0 %829
        %v833 = vadd.f32 %v777, %v828
        %v834 = vadd.f32 %v778, %v830
        %s835 = sld [smem:[#allocation3 + $0xce]]
        %v836 = vstv %s835
        %v837 = vmul.f32 %v836, %v669
        %v838 = vmul.f32 %v836, %v670
        %841 = vrot.lane.b32.xlu0 %v837, 119
        %v842 = vpop.permute.xlu0 %841
        %843 = vrot.lane.b32.xlu0 %v838, 119
        %v844 = vpop.permute.xlu0 %843
        %v847 = vadd.f32 %v791, %v842
        %v848 = vadd.f32 %v792, %v844
        %s849 = sld [smem:[#allocation3 + $0x130]]
        %v850 = vstv %s849
        %v851 = vmul.f32 %v850, %v669
        %v852 = vmul.f32 %v850, %v670
        %855 = vrot.lane.b32.xlu0 %v851, 119
        %v856 = vpop.permute.xlu0 %855
        %857 = vrot.lane.b32.xlu0 %v852, 119
        %v858 = vpop.permute.xlu0 %857
        %v861 = vadd.f32 %v805, %v856
        %v862 = vadd.f32 %v806, %v858
        %s863 = sld [smem:[#allocation3 + $0xb]]
        %v864 = vstv %s863
        %v865 = vmul.f32 %v864, %v669
        %v866 = vmul.f32 %v864, %v670
        %869 = vrot.lane.b32.xlu0 %v865, 116
        %v870 = vpop.permute.xlu0 %869
        %871 = vrot.lane.b32.xlu0 %v866, 116
        %v872 = vpop.permute.xlu0 %871
        %v875 = vadd.f32 %v819, %v870
        %v876 = vadd.f32 %v820, %v872
        %s877 = sld [smem:[#allocation3 + $0x6d]]
        %v878 = vstv %s877
        %v879 = vmul.f32 %v878, %v669
        %v880 = vmul.f32 %v878, %v670
        %883 = vrot.lane.b32.xlu0 %v879, 116
        %v884 = vpop.permute.xlu0 %883
        %885 = vrot.lane.b32.xlu0 %v880, 116
        %v886 = vpop.permute.xlu0 %885
        %v889 = vadd.f32 %v833, %v884
        %v890 = vadd.f32 %v834, %v886
        %s891 = sld [smem:[#allocation3 + $0xcf]]
        %v892 = vstv %s891
        %v893 = vmul.f32 %v892, %v669
        %v894 = vmul.f32 %v892, %v670
        %897 = vrot.lane.b32.xlu0 %v893, 116
        %v898 = vpop.permute.xlu0 %897
        %899 = vrot.lane.b32.xlu0 %v894, 116
        %v900 = vpop.permute.xlu0 %899
        %v903 = vadd.f32 %v847, %v898
        %v904 = vadd.f32 %v848, %v900
        %s905 = sld [smem:[#allocation3 + $0x131]]
        %v906 = vstv %s905
        %v907 = vmul.f32 %v906, %v669
        %v908 = vmul.f32 %v906, %v670
        %911 = vrot.lane.b32.xlu0 %v907, 116
        %v912 = vpop.permute.xlu0 %911
        %913 = vrot.lane.b32.xlu0 %v908, 116
        %v914 = vpop.permute.xlu0 %913
        %v917 = vadd.f32 %v861, %v912
        %v918 = vadd.f32 %v862, %v914
        %s919 = sld [smem:[#allocation3 + $0xc]]
        %v920 = vstv %s919
        %v921 = vmul.f32 %v920, %v669
        %v922 = vmul.f32 %v920, %v670
        %925 = vrot.lane.b32.xlu0 %v921, 113
        %v926 = vpop.permute.xlu0 %925
        %927 = vrot.lane.b32.xlu0 %v922, 113
        %v928 = vpop.permute.xlu0 %927
        %v931 = vadd.f32 %v875, %v926
        %v932 = vadd.f32 %v876, %v928
        %s933 = sld [smem:[#allocation3 + $0x6e]]
        %v934 = vstv %s933
        %v935 = vmul.f32 %v934, %v669
        %v936 = vmul.f32 %v934, %v670
        %939 = vrot.lane.b32.xlu0 %v935, 113
        %v940 = vpop.permute.xlu0 %939
        %941 = vrot.lane.b32.xlu0 %v936, 113
        %v942 = vpop.permute.xlu0 %941
        %v945 = vadd.f32 %v889, %v940
        %v946 = vadd.f32 %v890, %v942
        %s947 = sld [smem:[#allocation3 + $0xd0]]
        %v948 = vstv %s947
        %v949 = vmul.f32 %v948, %v669
        %v950 = vmul.f32 %v948, %v670
        %953 = vrot.lane.b32.xlu0 %v949, 113
        %v954 = vpop.permute.xlu0 %953
        %955 = vrot.lane.b32.xlu0 %v950, 113
        %v956 = vpop.permute.xlu0 %955
        %v959 = vadd.f32 %v903, %v954
        %v960 = vadd.f32 %v904, %v956
        %s961 = sld [smem:[#allocation3 + $0x132]]
        %v962 = vstv %s961
        %v963 = vmul.f32 %v962, %v669
        %v964 = vmul.f32 %v962, %v670
        %967 = vrot.lane.b32.xlu0 %v963, 113
        %v968 = vpop.permute.xlu0 %967
        %969 = vrot.lane.b32.xlu0 %v964, 113
        %v970 = vpop.permute.xlu0 %969
        %v973 = vadd.f32 %v917, %v968
        %v974 = vadd.f32 %v918, %v970
        %s975 = sld [smem:[#allocation3 + $0xd]]
        %v976 = vstv %s975
        %v977 = vmul.f32 %v976, %v669
        %v978 = vmul.f32 %v976, %v670
        %981 = vrot.lane.b32.xlu0 %v977, 110
        %v982 = vpop.permute.xlu0 %981
        %983 = vrot.lane.b32.xlu0 %v978, 110
        %v984 = vpop.permute.xlu0 %983
        %v987 = vadd.f32 %v931, %v982
        %v988 = vadd.f32 %v932, %v984
        %s989 = sld [smem:[#allocation3 + $0x6f]]
        %v990 = vstv %s989
        %v991 = vmul.f32 %v990, %v669
        %v992 = vmul.f32 %v990, %v670
        %995 = vrot.lane.b32.xlu0 %v991, 110
        %v996 = vpop.permute.xlu0 %995
        %997 = vrot.lane.b32.xlu0 %v992, 110
        %v998 = vpop.permute.xlu0 %997
        %v1001 = vadd.f32 %v945, %v996
        %v1002 = vadd.f32 %v946, %v998
        %s1003 = sld [smem:[#allocation3 + $0xd1]]
        %v1004 = vstv %s1003
        %v1005 = vmul.f32 %v1004, %v669
        %v1006 = vmul.f32 %v1004, %v670
        %1009 = vrot.lane.b32.xlu0 %v1005, 110
        %v1010 = vpop.permute.xlu0 %1009
        %1011 = vrot.lane.b32.xlu0 %v1006, 110
        %v1012 = vpop.permute.xlu0 %1011
        %v1015 = vadd.f32 %v959, %v1010
        %v1016 = vadd.f32 %v960, %v1012
        %s1017 = sld [smem:[#allocation3 + $0x133]]
        %v1018 = vstv %s1017
        %v1019 = vmul.f32 %v1018, %v669
        %v1020 = vmul.f32 %v1018, %v670
        %1023 = vrot.lane.b32.xlu0 %v1019, 110
        %v1024 = vpop.permute.xlu0 %1023
        %1025 = vrot.lane.b32.xlu0 %v1020, 110
        %v1026 = vpop.permute.xlu0 %1025
        %v1029 = vadd.f32 %v973, %v1024
        %v1030 = vadd.f32 %v974, %v1026
        %v1031 = vld [vmem:[#allocation2 + $0x6] sm:$0xff]
        %v1032 = vld [vmem:[#allocation2 + $0xe] sm:$0xff]
        %s1033 = sld [smem:[#allocation3 + $0xe]]
        %v1034 = vstv %s1033
        %v1035 = vmul.f32 %v1034, %v1031
        %v1036 = vmul.f32 %v1034, %v1032
        %v1037 = vadd.f32 %v987, %v1035
        %v1038 = vadd.f32 %v988, %v1036
        %s1039 = sld [smem:[#allocation3 + $0x70]]
        %v1040 = vstv %s1039
        %v1041 = vmul.f32 %v1040, %v1031
        %v1042 = vmul.f32 %v1040, %v1032
        %v1043 = vadd.f32 %v1001, %v1041
        %v1044 = vadd.f32 %v1002, %v1042
        %s1045 = sld [smem:[#allocation3 + $0xd2]]
        %v1046 = vstv %s1045
        %v1047 = vmul.f32 %v1046, %v1031
        %v1048 = vmul.f32 %v1046, %v1032
        %v1049 = vadd.f32 %v1015, %v1047
        %v1050 = vadd.f32 %v1016, %v1048
        %s1051 = sld [smem:[#allocation3 + $0x134]]
        %v1052 = vstv %s1051
        %v1053 = vmul.f32 %v1052, %v1031
        %v1054 = vmul.f32 %v1052, %v1032
        %v1055 = vadd.f32 %v1029, %v1053
        %v1056 = vadd.f32 %v1030, %v1054
        %s1057 = sld [smem:[#allocation3 + $0xf]]
        %v1058 = vstv %s1057
        %v1059 = vmul.f32 %v1058, %v1031
        %v1060 = vmul.f32 %v1058, %v1032
        %1063 = vrot.lane.b32.xlu0 %v1059, 125
        %v1064 = vpop.permute.xlu0 %1063
        %1065 = vrot.lane.b32.xlu0 %v1060, 125
        %v1066 = vpop.permute.xlu0 %1065
        %v1069 = vadd.f32 %v1037, %v1064
        %v1070 = vadd.f32 %v1038, %v1066
        %s1071 = sld [smem:[#allocation3 + $0x71]]
        %v1072 = vstv %s1071
        %v1073 = vmul.f32 %v1072, %v1031
        %v1074 = vmul.f32 %v1072, %v1032
        %1077 = vrot.lane.b32.xlu0 %v1073, 125
        %v1078 = vpop.permute.xlu0 %1077
        %1079 = vrot.lane.b32.xlu0 %v1074, 125
        %v1080 = vpop.permute.xlu0 %1079
        %v1083 = vadd.f32 %v1043, %v1078
        %v1084 = vadd.f32 %v1044, %v1080
        %s1085 = sld [smem:[#allocation3 + $0xd3]]
        %v1086 = vstv %s1085
        %v1087 = vmul.f32 %v1086, %v1031
        %v1088 = vmul.f32 %v1086, %v1032
        %1091 = vrot.lane.b32.xlu0 %v1087, 125
        %v1092 = vpop.permute.xlu0 %1091
        %1093 = vrot.lane.b32.xlu0 %v1088, 125
        %v1094 = vpop.permute.xlu0 %1093
        %v1097 = vadd.f32 %v1049, %v1092
        %v1098 = vadd.f32 %v1050, %v1094
        %s1099 = sld [smem:[#allocation3 + $0x135]]
        %v1100 = vstv %s1099
        %v1101 = vmul.f32 %v1100, %v1031
        %v1102 = vmul.f32 %v1100, %v1032
        %1105 = vrot.lane.b32.xlu0 %v1101, 125
        %v1106 = vpop.permute.xlu0 %1105
        %1107 = vrot.lane.b32.xlu0 %v1102, 125
        %v1108 = vpop.permute.xlu0 %1107
        %v1111 = vadd.f32 %v1055, %v1106
        %v1112 = vadd.f32 %v1056, %v1108
        %s1113 = sld [smem:[#allocation3 + $0x10]]
        %v1114 = vstv %s1113
        %v1115 = vmul.f32 %v1114, %v1031
        %v1116 = vmul.f32 %v1114, %v1032
        %1119 = vrot.lane.b32.xlu0 %v1115, 122
        %v1120 = vpop.permute.xlu0 %1119
        %1121 = vrot.lane.b32.xlu0 %v1116, 122
        %v1122 = vpop.permute.xlu0 %1121
        %v1125 = vadd.f32 %v1069, %v1120
        %v1126 = vadd.f32 %v1070, %v1122
        %s1127 = sld [smem:[#allocation3 + $0x72]]
        %v1128 = vstv %s1127
        %v1129 = vmul.f32 %v1128, %v1031
        %v1130 = vmul.f32 %v1128, %v1032
        %1133 = vrot.lane.b32.xlu0 %v1129, 122
        %v1134 = vpop.permute.xlu0 %1133
        %1135 = vrot.lane.b32.xlu0 %v1130, 122
        %v1136 = vpop.permute.xlu0 %1135
        %v1139 = vadd.f32 %v1083, %v1134
        %v1140 = vadd.f32 %v1084, %v1136
        %s1141 = sld [smem:[#allocation3 + $0xd4]]
        %v1142 = vstv %s1141
        %v1143 = vmul.f32 %v1142, %v1031
        %v1144 = vmul.f32 %v1142, %v1032
        %1147 = vrot.lane.b32.xlu0 %v1143, 122
        %v1148 = vpop.permute.xlu0 %1147
        %1149 = vrot.lane.b32.xlu0 %v1144, 122
        %v1150 = vpop.permute.xlu0 %1149
        %v1153 = vadd.f32 %v1097, %v1148
        %v1154 = vadd.f32 %v1098, %v1150
        %s1155 = sld [smem:[#allocation3 + $0x136]]
        %v1156 = vstv %s1155
        %v1157 = vmul.f32 %v1156, %v1031
        %v1158 = vmul.f32 %v1156, %v1032
        %1161 = vrot.lane.b32.xlu0 %v1157, 122
        %v1162 = vpop.permute.xlu0 %1161
        %1163 = vrot.lane.b32.xlu0 %v1158, 122
        %v1164 = vpop.permute.xlu0 %1163
        %v1167 = vadd.f32 %v1111, %v1162
        %v1168 = vadd.f32 %v1112, %v1164
        %s1169 = sld [smem:[#allocation3 + $0x11]]
        %v1170 = vstv %s1169
        %v1171 = vmul.f32 %v1170, %v1031
        %v1172 = vmul.f32 %v1170, %v1032
        %1175 = vrot.lane.b32.xlu0 %v1171, 119
        %v1176 = vpop.permute.xlu0 %1175
        %1177 = vrot.lane.b32.xlu0 %v1172, 119
        %v1178 = vpop.permute.xlu0 %1177
        %v1181 = vadd.f32 %v1125, %v1176
        %v1182 = vadd.f32 %v1126, %v1178
        %s1183 = sld [smem:[#allocation3 + $0x73]]
        %v1184 = vstv %s1183
        %v1185 = vmul.f32 %v1184, %v1031
        %v1186 = vmul.f32 %v1184, %v1032
        %1189 = vrot.lane.b32.xlu0 %v1185, 119
        %v1190 = vpop.permute.xlu0 %1189
        %1191 = vrot.lane.b32.xlu0 %v1186, 119
        %v1192 = vpop.permute.xlu0 %1191
        %v1195 = vadd.f32 %v1139, %v1190
        %v1196 = vadd.f32 %v1140, %v1192
        %s1197 = sld [smem:[#allocation3 + $0xd5]]
        %v1198 = vstv %s1197
        %v1199 = vmul.f32 %v1198, %v1031
        %v1200 = vmul.f32 %v1198, %v1032
        %1203 = vrot.lane.b32.xlu0 %v1199, 119
        %v1204 = vpop.permute.xlu0 %1203
        %1205 = vrot.lane.b32.xlu0 %v1200, 119
        %v1206 = vpop.permute.xlu0 %1205
        %v1209 = vadd.f32 %v1153, %v1204
        %v1210 = vadd.f32 %v1154, %v1206
        %s1211 = sld [smem:[#allocation3 + $0x137]]
        %v1212 = vstv %s1211
        %v1213 = vmul.f32 %v1212, %v1031
        %v1214 = vmul.f32 %v1212, %v1032
        %1217 = vrot.lane.b32.xlu0 %v1213, 119
        %v1218 = vpop.permute.xlu0 %1217
        %1219 = vrot.lane.b32.xlu0 %v1214, 119
        %v1220 = vpop.permute.xlu0 %1219
        %v1223 = vadd.f32 %v1167, %v1218
        %v1224 = vadd.f32 %v1168, %v1220
        %s1225 = sld [smem:[#allocation3 + $0x12]]
        %v1226 = vstv %s1225
        %v1227 = vmul.f32 %v1226, %v1031
        %v1228 = vmul.f32 %v1226, %v1032
        %1231 = vrot.lane.b32.xlu0 %v1227, 116
        %v1232 = vpop.permute.xlu0 %1231
        %1233 = vrot.lane.b32.xlu0 %v1228, 116
        %v1234 = vpop.permute.xlu0 %1233
        %v1237 = vadd.f32 %v1181, %v1232
        %v1238 = vadd.f32 %v1182, %v1234
        %s1239 = sld [smem:[#allocation3 + $0x74]]
        %v1240 = vstv %s1239
        %v1241 = vmul.f32 %v1240, %v1031
        %v1242 = vmul.f32 %v1240, %v1032
        %1245 = vrot.lane.b32.xlu0 %v1241, 116
        %v1246 = vpop.permute.xlu0 %1245
        %1247 = vrot.lane.b32.xlu0 %v1242, 116
        %v1248 = vpop.permute.xlu0 %1247
        %v1251 = vadd.f32 %v1195, %v1246
        %v1252 = vadd.f32 %v1196, %v1248
        %s1253 = sld [smem:[#allocation3 + $0xd6]]
        %v1254 = vstv %s1253
        %v1255 = vmul.f32 %v1254, %v1031
        %v1256 = vmul.f32 %v1254, %v1032
        %1259 = vrot.lane.b32.xlu0 %v1255, 116
        %v1260 = vpop.permute.xlu0 %1259
        %1261 = vrot.lane.b32.xlu0 %v1256, 116
        %v1262 = vpop.permute.xlu0 %1261
        %v1265 = vadd.f32 %v1209, %v1260
        %v1266 = vadd.f32 %v1210, %v1262
        %s1267 = sld [smem:[#allocation3 + $0x138]]
        %v1268 = vstv %s1267
        %v1269 = vmul.f32 %v1268, %v1031
        %v1270 = vmul.f32 %v1268, %v1032
        %1273 = vrot.lane.b32.xlu0 %v1269, 116
        %v1274 = vpop.permute.xlu0 %1273
        %1275 = vrot.lane.b32.xlu0 %v1270, 116
        %v1276 = vpop.permute.xlu0 %1275
        %v1279 = vadd.f32 %v1223, %v1274
        %v1280 = vadd.f32 %v1224, %v1276
        %s1281 = sld [smem:[#allocation3 + $0x13]]
        %v1282 = vstv %s1281
        %v1283 = vmul.f32 %v1282, %v1031
        %v1284 = vmul.f32 %v1282, %v1032
        %1287 = vrot.lane.b32.xlu0 %v1283, 113
        %v1288 = vpop.permute.xlu0 %1287
        %1289 = vrot.lane.b32.xlu0 %v1284, 113
        %v1290 = vpop.permute.xlu0 %1289
        %v1293 = vadd.f32 %v1237, %v1288
        %v1294 = vadd.f32 %v1238, %v1290
        %s1295 = sld [smem:[#allocation3 + $0x75]]
        %v1296 = vstv %s1295
        %v1297 = vmul.f32 %v1296, %v1031
        %v1298 = vmul.f32 %v1296, %v1032
        %1301 = vrot.lane.b32.xlu0 %v1297, 113
        %v1302 = vpop.permute.xlu0 %1301
        %1303 = vrot.lane.b32.xlu0 %v1298, 113
        %v1304 = vpop.permute.xlu0 %1303
        %v1307 = vadd.f32 %v1251, %v1302
        %v1308 = vadd.f32 %v1252, %v1304
        %s1309 = sld [smem:[#allocation3 + $0xd7]]
        %v1310 = vstv %s1309
        %v1311 = vmul.f32 %v1310, %v1031
        %v1312 = vmul.f32 %v1310, %v1032
        %1315 = vrot.lane.b32.xlu0 %v1311, 113
        %v1316 = vpop.permute.xlu0 %1315
        %1317 = vrot.lane.b32.xlu0 %v1312, 113
        %v1318 = vpop.permute.xlu0 %1317
        %v1321 = vadd.f32 %v1265, %v1316
        %v1322 = vadd.f32 %v1266, %v1318
        %s1323 = sld [smem:[#allocation3 + $0x139]]
        %v1324 = vstv %s1323
        %v1325 = vmul.f32 %v1324, %v1031
        %v1326 = vmul.f32 %v1324, %v1032
        %1329 = vrot.lane.b32.xlu0 %v1325, 113
        %v1330 = vpop.permute.xlu0 %1329
        %1331 = vrot.lane.b32.xlu0 %v1326, 113
        %v1332 = vpop.permute.xlu0 %1331
        %v1335 = vadd.f32 %v1279, %v1330
        %v1336 = vadd.f32 %v1280, %v1332
        %s1337 = sld [smem:[#allocation3 + $0x14]]
        %v1338 = vstv %s1337
        %v1339 = vmul.f32 %v1338, %v1031
        %v1340 = vmul.f32 %v1338, %v1032
        %1343 = vrot.lane.b32.xlu0 %v1339, 110
        %v1344 = vpop.permute.xlu0 %1343
        %1345 = vrot.lane.b32.xlu0 %v1340, 110
        %v1346 = vpop.permute.xlu0 %1345
        %v1349 = vadd.f32 %v1293, %v1344
        %v1350 = vadd.f32 %v1294, %v1346
        %s1351 = sld [smem:[#allocation3 + $0x76]]
        %v1352 = vstv %s1351
        %v1353 = vmul.f32 %v1352, %v1031
        %v1354 = vmul.f32 %v1352, %v1032
        %1357 = vrot.lane.b32.xlu0 %v1353, 110
        %v1358 = vpop.permute.xlu0 %1357
        %1359 = vrot.lane.b32.xlu0 %v1354, 110
        %v1360 = vpop.permute.xlu0 %1359
        %v1363 = vadd.f32 %v1307, %v1358
        %v1364 = vadd.f32 %v1308, %v1360
        %s1365 = sld [smem:[#allocation3 + $0xd8]]
        %v1366 = vstv %s1365
        %v1367 = vmul.f32 %v1366, %v1031
        %v1368 = vmul.f32 %v1366, %v1032
        %1371 = vrot.lane.b32.xlu0 %v1367, 110
        %v1372 = vpop.permute.xlu0 %1371
        %1373 = vrot.lane.b32.xlu0 %v1368, 110
        %v1374 = vpop.permute.xlu0 %1373
        %v1377 = vadd.f32 %v1321, %v1372
        %v1378 = vadd.f32 %v1322, %v1374
        %s1379 = sld [smem:[#allocation3 + $0x13a]]
        %v1380 = vstv %s1379
        %v1381 = vmul.f32 %v1380, %v1031
        %v1382 = vmul.f32 %v1380, %v1032
        %1385 = vrot.lane.b32.xlu0 %v1381, 110
        %v1386 = vpop.permute.xlu0 %1385
        %1387 = vrot.lane.b32.xlu0 %v1382, 110
        %v1388 = vpop.permute.xlu0 %1387
        %v1391 = vadd.f32 %v1335, %v1386
        %v1392 = vadd.f32 %v1336, %v1388
        %v1393 = vld [vmem:[#allocation2 + $0x9] sm:$0xff]
        %v1394 = vld [vmem:[#allocation2 + $0x11] sm:$0xff]
        %s1395 = sld [smem:[#allocation3 + $0x15]]
        %v1396 = vstv %s1395
        %v1397 = vmul.f32 %v1396, %v1393
        %v1398 = vmul.f32 %v1396, %v1394
        %v1399 = vadd.f32 %v1349, %v1397
        %v1400 = vadd.f32 %v1350, %v1398
        %s1401 = sld [smem:[#allocation3 + $0x77]]
        %v1402 = vstv %s1401
        %v1403 = vmul.f32 %v1402, %v1393
        %v1404 = vmul.f32 %v1402, %v1394
        %v1405 = vadd.f32 %v1363, %v1403
        %v1406 = vadd.f32 %v1364, %v1404
        %s1407 = sld [smem:[#allocation3 + $0xd9]]
        %v1408 = vstv %s1407
        %v1409 = vmul.f32 %v1408, %v1393
        %v1410 = vmul.f32 %v1408, %v1394
        %v1411 = vadd.f32 %v1377, %v1409
        %v1412 = vadd.f32 %v1378, %v1410
        %s1413 = sld [smem:[#allocation3 + $0x13b]]
        %v1414 = vstv %s1413
        %v1415 = vmul.f32 %v1414, %v1393
        %v1416 = vmul.f32 %v1414, %v1394
        %v1417 = vadd.f32 %v1391, %v1415
        %v1418 = vadd.f32 %v1392, %v1416
        %s1419 = sld [smem:[#allocation3 + $0x16]]
        %v1420 = vstv %s1419
        %v1421 = vmul.f32 %v1420, %v1393
        %v1422 = vmul.f32 %v1420, %v1394
        %1425 = vrot.lane.b32.xlu0 %v1421, 125
        %v1426 = vpop.permute.xlu0 %1425
        %1427 = vrot.lane.b32.xlu0 %v1422, 125
        %v1428 = vpop.permute.xlu0 %1427
        %v1431 = vadd.f32 %v1399, %v1426
        %v1432 = vadd.f32 %v1400, %v1428
        %s1433 = sld [smem:[#allocation3 + $0x78]]
        %v1434 = vstv %s1433
        %v1435 = vmul.f32 %v1434, %v1393
        %v1436 = vmul.f32 %v1434, %v1394
        %1439 = vrot.lane.b32.xlu0 %v1435, 125
        %v1440 = vpop.permute.xlu0 %1439
        %1441 = vrot.lane.b32.xlu0 %v1436, 125
        %v1442 = vpop.permute.xlu0 %1441
        %v1445 = vadd.f32 %v1405, %v1440
        %v1446 = vadd.f32 %v1406, %v1442
        %s1447 = sld [smem:[#allocation3 + $0xda]]
        %v1448 = vstv %s1447
        %v1449 = vmul.f32 %v1448, %v1393
        %v1450 = vmul.f32 %v1448, %v1394
        %1453 = vrot.lane.b32.xlu0 %v1449, 125
        %v1454 = vpop.permute.xlu0 %1453
        %1455 = vrot.lane.b32.xlu0 %v1450, 125
        %v1456 = vpop.permute.xlu0 %1455
        %v1459 = vadd.f32 %v1411, %v1454
        %v1460 = vadd.f32 %v1412, %v1456
        %s1461 = sld [smem:[#allocation3 + $0x13c]]
        %v1462 = vstv %s1461
        %v1463 = vmul.f32 %v1462, %v1393
        %v1464 = vmul.f32 %v1462, %v1394
        %1467 = vrot.lane.b32.xlu0 %v1463, 125
        %v1468 = vpop.permute.xlu0 %1467
        %1469 = vrot.lane.b32.xlu0 %v1464, 125
        %v1470 = vpop.permute.xlu0 %1469
        %v1473 = vadd.f32 %v1417, %v1468
        %v1474 = vadd.f32 %v1418, %v1470
        %s1475 = sld [smem:[#allocation3 + $0x17]]
        %v1476 = vstv %s1475
        %v1477 = vmul.f32 %v1476, %v1393
        %v1478 = vmul.f32 %v1476, %v1394
        %1481 = vrot.lane.b32.xlu0 %v1477, 122
        %v1482 = vpop.permute.xlu0 %1481
        %1483 = vrot.lane.b32.xlu0 %v1478, 122
        %v1484 = vpop.permute.xlu0 %1483
        %v1487 = vadd.f32 %v1431, %v1482
        %v1488 = vadd.f32 %v1432, %v1484
        %s1489 = sld [smem:[#allocation3 + $0x79]]
        %v1490 = vstv %s1489
        %v1491 = vmul.f32 %v1490, %v1393
        %v1492 = vmul.f32 %v1490, %v1394
        %1495 = vrot.lane.b32.xlu0 %v1491, 122
        %v1496 = vpop.permute.xlu0 %1495
        %1497 = vrot.lane.b32.xlu0 %v1492, 122
        %v1498 = vpop.permute.xlu0 %1497
        %v1501 = vadd.f32 %v1445, %v1496
        %v1502 = vadd.f32 %v1446, %v1498
        %s1503 = sld [smem:[#allocation3 + $0xdb]]
        %v1504 = vstv %s1503
        %v1505 = vmul.f32 %v1504, %v1393
        %v1506 = vmul.f32 %v1504, %v1394
        %1509 = vrot.lane.b32.xlu0 %v1505, 122
        %v1510 = vpop.permute.xlu0 %1509
        %1511 = vrot.lane.b32.xlu0 %v1506, 122
        %v1512 = vpop.permute.xlu0 %1511
        %v1515 = vadd.f32 %v1459, %v1510
        %v1516 = vadd.f32 %v1460, %v1512
        %s1517 = sld [smem:[#allocation3 + $0x13d]]
        %v1518 = vstv %s1517
        %v1519 = vmul.f32 %v1518, %v1393
        %v1520 = vmul.f32 %v1518, %v1394
        %1523 = vrot.lane.b32.xlu0 %v1519, 122
        %v1524 = vpop.permute.xlu0 %1523
        %1525 = vrot.lane.b32.xlu0 %v1520, 122
        %v1526 = vpop.permute.xlu0 %1525
        %v1529 = vadd.f32 %v1473, %v1524
        %v1530 = vadd.f32 %v1474, %v1526
        %s1531 = sld [smem:[#allocation3 + $0x18]]
        %v1532 = vstv %s1531
        %v1533 = vmul.f32 %v1532, %v1393
        %v1534 = vmul.f32 %v1532, %v1394
        %1537 = vrot.lane.b32.xlu0 %v1533, 119
        %v1538 = vpop.permute.xlu0 %1537
        %1539 = vrot.lane.b32.xlu0 %v1534, 119
        %v1540 = vpop.permute.xlu0 %1539
        %v1543 = vadd.f32 %v1487, %v1538
        %v1544 = vadd.f32 %v1488, %v1540
        %s1545 = sld [smem:[#allocation3 + $0x7a]]
        %v1546 = vstv %s1545
        %v1547 = vmul.f32 %v1546, %v1393
        %v1548 = vmul.f32 %v1546, %v1394
        %1551 = vrot.lane.b32.xlu0 %v1547, 119
        %v1552 = vpop.permute.xlu0 %1551
        %1553 = vrot.lane.b32.xlu0 %v1548, 119
        %v1554 = vpop.permute.xlu0 %1553
        %v1557 = vadd.f32 %v1501, %v1552
        %v1558 = vadd.f32 %v1502, %v1554
        %s1559 = sld [smem:[#allocation3 + $0xdc]]
        %v1560 = vstv %s1559
        %v1561 = vmul.f32 %v1560, %v1393
        %v1562 = vmul.f32 %v1560, %v1394
        %1565 = vrot.lane.b32.xlu0 %v1561, 119
        %v1566 = vpop.permute.xlu0 %1565
        %1567 = vrot.lane.b32.xlu0 %v1562, 119
        %v1568 = vpop.permute.xlu0 %1567
        %v1571 = vadd.f32 %v1515, %v1566
        %v1572 = vadd.f32 %v1516, %v1568
        %s1573 = sld [smem:[#allocation3 + $0x13e]]
        %v1574 = vstv %s1573
        %v1575 = vmul.f32 %v1574, %v1393
        %v1576 = vmul.f32 %v1574, %v1394
        %1579 = vrot.lane.b32.xlu0 %v1575, 119
        %v1580 = vpop.permute.xlu0 %1579
        %1581 = vrot.lane.b32.xlu0 %v1576, 119
        %v1582 = vpop.permute.xlu0 %1581
        %v1585 = vadd.f32 %v1529, %v1580
        %v1586 = vadd.f32 %v1530, %v1582
        %s1587 = sld [smem:[#allocation3 + $0x19]]
        %v1588 = vstv %s1587
        %v1589 = vmul.f32 %v1588, %v1393
        %v1590 = vmul.f32 %v1588, %v1394
        %1593 = vrot.lane.b32.xlu0 %v1589, 116
        %v1594 = vpop.permute.xlu0 %1593
        %1595 = vrot.lane.b32.xlu0 %v1590, 116
        %v1596 = vpop.permute.xlu0 %1595
        %v1599 = vadd.f32 %v1543, %v1594
        %v1600 = vadd.f32 %v1544, %v1596
        %s1601 = sld [smem:[#allocation3 + $0x7b]]
        %v1602 = vstv %s1601
        %v1603 = vmul.f32 %v1602, %v1393
        %v1604 = vmul.f32 %v1602, %v1394
        %1607 = vrot.lane.b32.xlu0 %v1603, 116
        %v1608 = vpop.permute.xlu0 %1607
        %1609 = vrot.lane.b32.xlu0 %v1604, 116
        %v1610 = vpop.permute.xlu0 %1609
        %v1613 = vadd.f32 %v1557, %v1608
        %v1614 = vadd.f32 %v1558, %v1610
        %s1615 = sld [smem:[#allocation3 + $0xdd]]
        %v1616 = vstv %s1615
        %v1617 = vmul.f32 %v1616, %v1393
        %v1618 = vmul.f32 %v1616, %v1394
        %1621 = vrot.lane.b32.xlu0 %v1617, 116
        %v1622 = vpop.permute.xlu0 %1621
        %1623 = vrot.lane.b32.xlu0 %v1618, 116
        %v1624 = vpop.permute.xlu0 %1623
        %v1627 = vadd.f32 %v1571, %v1622
        %v1628 = vadd.f32 %v1572, %v1624
        %s1629 = sld [smem:[#allocation3 + $0x13f]]
        %v1630 = vstv %s1629
        %v1631 = vmul.f32 %v1630, %v1393
        %v1632 = vmul.f32 %v1630, %v1394
        %1635 = vrot.lane.b32.xlu0 %v1631, 116
        %v1636 = vpop.permute.xlu0 %1635
        %1637 = vrot.lane.b32.xlu0 %v1632, 116
        %v1638 = vpop.permute.xlu0 %1637
        %v1641 = vadd.f32 %v1585, %v1636
        %v1642 = vadd.f32 %v1586, %v1638
        %s1643 = sld [smem:[#allocation3 + $0x1a]]
        %v1644 = vstv %s1643
        %v1645 = vmul.f32 %v1644, %v1393
        %v1646 = vmul.f32 %v1644, %v1394
        %1649 = vrot.lane.b32.xlu0 %v1645, 113
        %v1650 = vpop.permute.xlu0 %1649
        %1651 = vrot.lane.b32.xlu0 %v1646, 113
        %v1652 = vpop.permute.xlu0 %1651
        %v1655 = vadd.f32 %v1599, %v1650
        %v1656 = vadd.f32 %v1600, %v1652
        %s1657 = sld [smem:[#allocation3 + $0x7c]]
        %v1658 = vstv %s1657
        %v1659 = vmul.f32 %v1658, %v1393
        %v1660 = vmul.f32 %v1658, %v1394
        %1663 = vrot.lane.b32.xlu0 %v1659, 113
        %v1664 = vpop.permute.xlu0 %1663
        %1665 = vrot.lane.b32.xlu0 %v1660, 113
        %v1666 = vpop.permute.xlu0 %1665
        %v1669 = vadd.f32 %v1613, %v1664
        %v1670 = vadd.f32 %v1614, %v1666
        %s1671 = sld [smem:[#allocation3 + $0xde]]
        %v1672 = vstv %s1671
        %v1673 = vmul.f32 %v1672, %v1393
        %v1674 = vmul.f32 %v1672, %v1394
        %1677 = vrot.lane.b32.xlu0 %v1673, 113
        %v1678 = vpop.permute.xlu0 %1677
        %1679 = vrot.lane.b32.xlu0 %v1674, 113
        %v1680 = vpop.permute.xlu0 %1679
        %v1683 = vadd.f32 %v1627, %v1678
        %v1684 = vadd.f32 %v1628, %v1680
        %s1685 = sld [smem:[#allocation3 + $0x140]]
        %v1686 = vstv %s1685
        %v1687 = vmul.f32 %v1686, %v1393
        %v1688 = vmul.f32 %v1686, %v1394
        %1691 = vrot.lane.b32.xlu0 %v1687, 113
        %v1692 = vpop.permute.xlu0 %1691
        %1693 = vrot.lane.b32.xlu0 %v1688, 113
        %v1694 = vpop.permute.xlu0 %1693
        %v1697 = vadd.f32 %v1641, %v1692
        %v1698 = vadd.f32 %v1642, %v1694
        %s1699 = sld [smem:[#allocation3 + $0x1b]]
        %v1700 = vstv %s1699
        %v1701 = vmul.f32 %v1700, %v1393
        %v1702 = vmul.f32 %v1700, %v1394
        %1705 = vrot.lane.b32.xlu0 %v1701, 110
        %v1706 = vpop.permute.xlu0 %1705
        %1707 = vrot.lane.b32.xlu0 %v1702, 110
        %v1708 = vpop.permute.xlu0 %1707
        %v1711 = vadd.f32 %v1655, %v1706
        %v1712 = vadd.f32 %v1656, %v1708
        %s1713 = sld [smem:[#allocation3 + $0x7d]]
        %v1714 = vstv %s1713
        %v1715 = vmul.f32 %v1714, %v1393
        %v1716 = vmul.f32 %v1714, %v1394
        %1719 = vrot.lane.b32.xlu0 %v1715, 110
        %v1720 = vpop.permute.xlu0 %1719
        %1721 = vrot.lane.b32.xlu0 %v1716, 110
        %v1722 = vpop.permute.xlu0 %1721
        %v1725 = vadd.f32 %v1669, %v1720
        %v1726 = vadd.f32 %v1670, %v1722
        %s1727 = sld [smem:[#allocation3 + $0xdf]]
        %v1728 = vstv %s1727
        %v1729 = vmul.f32 %v1728, %v1393
        %v1730 = vmul.f32 %v1728, %v1394
        %1733 = vrot.lane.b32.xlu0 %v1729, 110
        %v1734 = vpop.permute.xlu0 %1733
        %1735 = vrot.lane.b32.xlu0 %v1730, 110
        %v1736 = vpop.permute.xlu0 %1735
        %v1739 = vadd.f32 %v1683, %v1734
        %v1740 = vadd.f32 %v1684, %v1736
        %s1741 = sld [smem:[#allocation3 + $0x141]]
        %v1742 = vstv %s1741
        %v1743 = vmul.f32 %v1742, %v1393
        %v1744 = vmul.f32 %v1742, %v1394
        %1747 = vrot.lane.b32.xlu0 %v1743, 110
        %v1748 = vpop.permute.xlu0 %1747
        %1749 = vrot.lane.b32.xlu0 %v1744, 110
        %v1750 = vpop.permute.xlu0 %1749
        %v1753 = vadd.f32 %v1697, %v1748
        %v1754 = vadd.f32 %v1698, %v1750
        %v1755 = vld [vmem:[#allocation2 + $0xc] sm:$0xff]
        %v1756 = vld [vmem:[#allocation2 + $0x14] sm:$0xff]
        %s1757 = sld [smem:[#allocation3 + $0x1c]]
        %v1758 = vstv %s1757
        %v1759 = vmul.f32 %v1758, %v1755
        %v1760 = vmul.f32 %v1758, %v1756
        %v1761 = vadd.f32 %v1711, %v1759
        %v1762 = vadd.f32 %v1712, %v1760
        %s1763 = sld [smem:[#allocation3 + $0x7e]]
        %v1764 = vstv %s1763
        %v1765 = vmul.f32 %v1764, %v1755
        %v1766 = vmul.f32 %v1764, %v1756
        %v1767 = vadd.f32 %v1725, %v1765
        %v1768 = vadd.f32 %v1726, %v1766
        %s1769 = sld [smem:[#allocation3 + $0xe0]]
        %v1770 = vstv %s1769
        %v1771 = vmul.f32 %v1770, %v1755
        %v1772 = vmul.f32 %v1770, %v1756
        %v1773 = vadd.f32 %v1739, %v1771
        %v1774 = vadd.f32 %v1740, %v1772
        %s1775 = sld [smem:[#allocation3 + $0x142]]
        %v1776 = vstv %s1775
        %v1777 = vmul.f32 %v1776, %v1755
        %v1778 = vmul.f32 %v1776, %v1756
        %v1779 = vadd.f32 %v1753, %v1777
        %v1780 = vadd.f32 %v1754, %v1778
        %s1781 = sld [smem:[#allocation3 + $0x1d]]
        %v1782 = vstv %s1781
        %v1783 = vmul.f32 %v1782, %v1755
        %v1784 = vmul.f32 %v1782, %v1756
        %1787 = vrot.lane.b32.xlu0 %v1783, 125
        %v1788 = vpop.permute.xlu0 %1787
        %1789 = vrot.lane.b32.xlu0 %v1784, 125
        %v1790 = vpop.permute.xlu0 %1789
        %v1793 = vadd.f32 %v1761, %v1788
        %v1794 = vadd.f32 %v1762, %v1790
        %s1795 = sld [smem:[#allocation3 + $0x7f]]
        %v1796 = vstv %s1795
        %v1797 = vmul.f32 %v1796, %v1755
        %v1798 = vmul.f32 %v1796, %v1756
        %1801 = vrot.lane.b32.xlu0 %v1797, 125
        %v1802 = vpop.permute.xlu0 %1801
        %1803 = vrot.lane.b32.xlu0 %v1798, 125
        %v1804 = vpop.permute.xlu0 %1803
        %v1807 = vadd.f32 %v1767, %v1802
        %v1808 = vadd.f32 %v1768, %v1804
        %s1809 = sld [smem:[#allocation3 + $0xe1]]
        %v1810 = vstv %s1809
        %v1811 = vmul.f32 %v1810, %v1755
        %v1812 = vmul.f32 %v1810, %v1756
        %1815 = vrot.lane.b32.xlu0 %v1811, 125
        %v1816 = vpop.permute.xlu0 %1815
        %1817 = vrot.lane.b32.xlu0 %v1812, 125
        %v1818 = vpop.permute.xlu0 %1817
        %v1821 = vadd.f32 %v1773, %v1816
        %v1822 = vadd.f32 %v1774, %v1818
        %s1823 = sld [smem:[#allocation3 + $0x143]]
        %v1824 = vstv %s1823
        %v1825 = vmul.f32 %v1824, %v1755
        %v1826 = vmul.f32 %v1824, %v1756
        %1829 = vrot.lane.b32.xlu0 %v1825, 125
        %v1830 = vpop.permute.xlu0 %1829
        %1831 = vrot.lane.b32.xlu0 %v1826, 125
        %v1832 = vpop.permute.xlu0 %1831
        %v1835 = vadd.f32 %v1779, %v1830
        %v1836 = vadd.f32 %v1780, %v1832
        %s1837 = sld [smem:[#allocation3 + $0x1e]]
        %v1838 = vstv %s1837
        %v1839 = vmul.f32 %v1838, %v1755
        %v1840 = vmul.f32 %v1838, %v1756
        %1843 = vrot.lane.b32.xlu0 %v1839, 122
        %v1844 = vpop.permute.xlu0 %1843
        %1845 = vrot.lane.b32.xlu0 %v1840, 122
        %v1846 = vpop.permute.xlu0 %1845
        %v1849 = vadd.f32 %v1793, %v1844
        %v1850 = vadd.f32 %v1794, %v1846
        %s1851 = sld [smem:[#allocation3 + $0x80]]
        %v1852 = vstv %s1851
        %v1853 = vmul.f32 %v1852, %v1755
        %v1854 = vmul.f32 %v1852, %v1756
        %1857 = vrot.lane.b32.xlu0 %v1853, 122
        %v1858 = vpop.permute.xlu0 %1857
        %1859 = vrot.lane.b32.xlu0 %v1854, 122
        %v1860 = vpop.permute.xlu0 %1859
        %v1863 = vadd.f32 %v1807, %v1858
        %v1864 = vadd.f32 %v1808, %v1860
        %s1865 = sld [smem:[#allocation3 + $0xe2]]
        %v1866 = vstv %s1865
        %v1867 = vmul.f32 %v1866, %v1755
        %v1868 = vmul.f32 %v1866, %v1756
        %1871 = vrot.lane.b32.xlu0 %v1867, 122
        %v1872 = vpop.permute.xlu0 %1871
        %1873 = vrot.lane.b32.xlu0 %v1868, 122
        %v1874 = vpop.permute.xlu0 %1873
        %v1877 = vadd.f32 %v1821, %v1872
        %v1878 = vadd.f32 %v1822, %v1874
        %s1879 = sld [smem:[#allocation3 + $0x144]]
        %v1880 = vstv %s1879
        %v1881 = vmul.f32 %v1880, %v1755
        %v1882 = vmul.f32 %v1880, %v1756
        %1885 = vrot.lane.b32.xlu0 %v1881, 122
        %v1886 = vpop.permute.xlu0 %1885
        %1887 = vrot.lane.b32.xlu0 %v1882, 122
        %v1888 = vpop.permute.xlu0 %1887
        %v1891 = vadd.f32 %v1835, %v1886
        %v1892 = vadd.f32 %v1836, %v1888
        %s1893 = sld [smem:[#allocation3 + $0x1f]]
        %v1894 = vstv %s1893
        %v1895 = vmul.f32 %v1894, %v1755
        %v1896 = vmul.f32 %v1894, %v1756
        %1899 = vrot.lane.b32.xlu0 %v1895, 119
        %v1900 = vpop.permute.xlu0 %1899
        %1901 = vrot.lane.b32.xlu0 %v1896, 119
        %v1902 = vpop.permute.xlu0 %1901
        %v1905 = vadd.f32 %v1849, %v1900
        %v1906 = vadd.f32 %v1850, %v1902
        %s1907 = sld [smem:[#allocation3 + $0x81]]
        %v1908 = vstv %s1907
        %v1909 = vmul.f32 %v1908, %v1755
        %v1910 = vmul.f32 %v1908, %v1756
        %1913 = vrot.lane.b32.xlu0 %v1909, 119
        %v1914 = vpop.permute.xlu0 %1913
        %1915 = vrot.lane.b32.xlu0 %v1910, 119
        %v1916 = vpop.permute.xlu0 %1915
        %v1919 = vadd.f32 %v1863, %v1914
        %v1920 = vadd.f32 %v1864, %v1916
        %s1921 = sld [smem:[#allocation3 + $0xe3]]
        %v1922 = vstv %s1921
        %v1923 = vmul.f32 %v1922, %v1755
        %v1924 = vmul.f32 %v1922, %v1756
        %1927 = vrot.lane.b32.xlu0 %v1923, 119
        %v1928 = vpop.permute.xlu0 %1927
        %1929 = vrot.lane.b32.xlu0 %v1924, 119
        %v1930 = vpop.permute.xlu0 %1929
        %v1933 = vadd.f32 %v1877, %v1928
        %v1934 = vadd.f32 %v1878, %v1930
        %s1935 = sld [smem:[#allocation3 + $0x145]]
        %v1936 = vstv %s1935
        %v1937 = vmul.f32 %v1936, %v1755
        %v1938 = vmul.f32 %v1936, %v1756
        %1941 = vrot.lane.b32.xlu0 %v1937, 119
        %v1942 = vpop.permute.xlu0 %1941
        %1943 = vrot.lane.b32.xlu0 %v1938, 119
        %v1944 = vpop.permute.xlu0 %1943
        %v1947 = vadd.f32 %v1891, %v1942
        %v1948 = vadd.f32 %v1892, %v1944
        %s1949 = sld [smem:[#allocation3 + $0x20]]
        %v1950 = vstv %s1949
        %v1951 = vmul.f32 %v1950, %v1755
        %v1952 = vmul.f32 %v1950, %v1756
        %1955 = vrot.lane.b32.xlu0 %v1951, 116
        %v1956 = vpop.permute.xlu0 %1955
        %1957 = vrot.lane.b32.xlu0 %v1952, 116
        %v1958 = vpop.permute.xlu0 %1957
        %v1961 = vadd.f32 %v1905, %v1956
        %v1962 = vadd.f32 %v1906, %v1958
        %s1963 = sld [smem:[#allocation3 + $0x82]]
        %v1964 = vstv %s1963
        %v1965 = vmul.f32 %v1964, %v1755
        %v1966 = vmul.f32 %v1964, %v1756
        %1969 = vrot.lane.b32.xlu0 %v1965, 116
        %v1970 = vpop.permute.xlu0 %1969
        %1971 = vrot.lane.b32.xlu0 %v1966, 116
        %v1972 = vpop.permute.xlu0 %1971
        %v1975 = vadd.f32 %v1919, %v1970
        %v1976 = vadd.f32 %v1920, %v1972
        %s1977 = sld [smem:[#allocation3 + $0xe4]]
        %v1978 = vstv %s1977
        %v1979 = vmul.f32 %v1978, %v1755
        %v1980 = vmul.f32 %v1978, %v1756
        %1983 = vrot.lane.b32.xlu0 %v1979, 116
        %v1984 = vpop.permute.xlu0 %1983
        %1985 = vrot.lane.b32.xlu0 %v1980, 116
        %v1986 = vpop.permute.xlu0 %1985
        %v1989 = vadd.f32 %v1933, %v1984
        %v1990 = vadd.f32 %v1934, %v1986
        %s1991 = sld [smem:[#allocation3 + $0x146]]
        %v1992 = vstv %s1991
        %v1993 = vmul.f32 %v1992, %v1755
        %v1994 = vmul.f32 %v1992, %v1756
        %1997 = vrot.lane.b32.xlu0 %v1993, 116
        %v1998 = vpop.permute.xlu0 %1997
        %1999 = vrot.lane.b32.xlu0 %v1994, 116
        %v2000 = vpop.permute.xlu0 %1999
        %v2003 = vadd.f32 %v1947, %v1998
        %v2004 = vadd.f32 %v1948, %v2000
        %s2005 = sld [smem:[#allocation3 + $0x21]]
        %v2006 = vstv %s2005
        %v2007 = vmul.f32 %v2006, %v1755
        %v2008 = vmul.f32 %v2006, %v1756
        %2011 = vrot.lane.b32.xlu0 %v2007, 113
        %v2012 = vpop.permute.xlu0 %2011
        %2013 = vrot.lane.b32.xlu0 %v2008, 113
        %v2014 = vpop.permute.xlu0 %2013
        %v2017 = vadd.f32 %v1961, %v2012
        %v2018 = vadd.f32 %v1962, %v2014
        %s2019 = sld [smem:[#allocation3 + $0x83]]
        %v2020 = vstv %s2019
        %v2021 = vmul.f32 %v2020, %v1755
        %v2022 = vmul.f32 %v2020, %v1756
        %2025 = vrot.lane.b32.xlu0 %v2021, 113
        %v2026 = vpop.permute.xlu0 %2025
        %2027 = vrot.lane.b32.xlu0 %v2022, 113
        %v2028 = vpop.permute.xlu0 %2027
        %v2031 = vadd.f32 %v1975, %v2026
        %v2032 = vadd.f32 %v1976, %v2028
        %s2033 = sld [smem:[#allocation3 + $0xe5]]
        %v2034 = vstv %s2033
        %v2035 = vmul.f32 %v2034, %v1755
        %v2036 = vmul.f32 %v2034, %v1756
        %2039 = vrot.lane.b32.xlu0 %v2035, 113
        %v2040 = vpop.permute.xlu0 %2039
        %2041 = vrot.lane.b32.xlu0 %v2036, 113
        %v2042 = vpop.permute.xlu0 %2041
        %v2045 = vadd.f32 %v1989, %v2040
        %v2046 = vadd.f32 %v1990, %v2042
        %s2047 = sld [smem:[#allocation3 + $0x147]]
        %v2048 = vstv %s2047
        %v2049 = vmul.f32 %v2048, %v1755
        %v2050 = vmul.f32 %v2048, %v1756
        %2053 = vrot.lane.b32.xlu0 %v2049, 113
        %v2054 = vpop.permute.xlu0 %2053
        %2055 = vrot.lane.b32.xlu0 %v2050, 113
        %v2056 = vpop.permute.xlu0 %2055
        %v2059 = vadd.f32 %v2003, %v2054
        %v2060 = vadd.f32 %v2004, %v2056
        %s2061 = sld [smem:[#allocation3 + $0x22]]
        %v2062 = vstv %s2061
        %v2063 = vmul.f32 %v2062, %v1755
        %v2064 = vmul.f32 %v2062, %v1756
        %2067 = vrot.lane.b32.xlu0 %v2063, 110
        %v2068 = vpop.permute.xlu0 %2067
        %2069 = vrot.lane.b32.xlu0 %v2064, 110
        %v2070 = vpop.permute.xlu0 %2069
        %v2073 = vadd.f32 %v2017, %v2068
        %v2074 = vadd.f32 %v2018, %v2070
        %s2075 = sld [smem:[#allocation3 + $0x84]]
        %v2076 = vstv %s2075
        %v2077 = vmul.f32 %v2076, %v1755
        %v2078 = vmul.f32 %v2076, %v1756
        %2081 = vrot.lane.b32.xlu0 %v2077, 110
        %v2082 = vpop.permute.xlu0 %2081
        %2083 = vrot.lane.b32.xlu0 %v2078, 110
        %v2084 = vpop.permute.xlu0 %2083
        %v2087 = vadd.f32 %v2031, %v2082
        %v2088 = vadd.f32 %v2032, %v2084
        %s2089 = sld [smem:[#allocation3 + $0xe6]]
        %v2090 = vstv %s2089
        %v2091 = vmul.f32 %v2090, %v1755
        %v2092 = vmul.f32 %v2090, %v1756
        %2095 = vrot.lane.b32.xlu0 %v2091, 110
        %v2096 = vpop.permute.xlu0 %2095
        %2097 = vrot.lane.b32.xlu0 %v2092, 110
        %v2098 = vpop.permute.xlu0 %2097
        %v2101 = vadd.f32 %v2045, %v2096
        %v2102 = vadd.f32 %v2046, %v2098
        %s2103 = sld [smem:[#allocation3 + $0x148]]
        %v2104 = vstv %s2103
        %v2105 = vmul.f32 %v2104, %v1755
        %v2106 = vmul.f32 %v2104, %v1756
        %2109 = vrot.lane.b32.xlu0 %v2105, 110
        %v2110 = vpop.permute.xlu0 %2109
        %2111 = vrot.lane.b32.xlu0 %v2106, 110
        %v2112 = vpop.permute.xlu0 %2111
        %v2115 = vadd.f32 %v2059, %v2110
        %v2116 = vadd.f32 %v2060, %v2112
        %v2117 = vld [vmem:[#allocation2 + $0xf] sm:$0xff]
        %v2118 = vld [vmem:[#allocation2 + $0x17] sm:$0xff]
        %s2119 = sld [smem:[#allocation3 + $0x23]]
        %v2120 = vstv %s2119
        %v2121 = vmul.f32 %v2120, %v2117
        %v2122 = vmul.f32 %v2120, %v2118
        %v2123 = vadd.f32 %v2073, %v2121
        %v2124 = vadd.f32 %v2074, %v2122
        %s2125 = sld [smem:[#allocation3 + $0x85]]
        %v2126 = vstv %s2125
        %v2127 = vmul.f32 %v2126, %v2117
        %v2128 = vmul.f32 %v2126, %v2118
        %v2129 = vadd.f32 %v2087, %v2127
        %v2130 = vadd.f32 %v2088, %v2128
        %s2131 = sld [smem:[#allocation3 + $0xe7]]
        %v2132 = vstv %s2131
        %v2133 = vmul.f32 %v2132, %v2117
        %v2134 = vmul.f32 %v2132, %v2118
        %v2135 = vadd.f32 %v2101, %v2133
        %v2136 = vadd.f32 %v2102, %v2134
        %s2137 = sld [smem:[#allocation3 + $0x149]]
        %v2138 = vstv %s2137
        %v2139 = vmul.f32 %v2138, %v2117
        %v2140 = vmul.f32 %v2138, %v2118
        %v2141 = vadd.f32 %v2115, %v2139
        %v2142 = vadd.f32 %v2116, %v2140
        %s2143 = sld [smem:[#allocation3 + $0x24]]
        %v2144 = vstv %s2143
        %v2145 = vmul.f32 %v2144, %v2117
        %v2146 = vmul.f32 %v2144, %v2118
        %2149 = vrot.lane.b32.xlu0 %v2145, 125
        %v2150 = vpop.permute.xlu0 %2149
        %2151 = vrot.lane.b32.xlu0 %v2146, 125
        %v2152 = vpop.permute.xlu0 %2151
        %v2155 = vadd.f32 %v2123, %v2150
        %v2156 = vadd.f32 %v2124, %v2152
        %s2157 = sld [smem:[#allocation3 + $0x86]]
        %v2158 = vstv %s2157
        %v2159 = vmul.f32 %v2158, %v2117
        %v2160 = vmul.f32 %v2158, %v2118
        %2163 = vrot.lane.b32.xlu0 %v2159, 125
        %v2164 = vpop.permute.xlu0 %2163
        %2165 = vrot.lane.b32.xlu0 %v2160, 125
        %v2166 = vpop.permute.xlu0 %2165
        %v2169 = vadd.f32 %v2129, %v2164
        %v2170 = vadd.f32 %v2130, %v2166
        %s2171 = sld [smem:[#allocation3 + $0xe8]]
        %v2172 = vstv %s2171
        %v2173 = vmul.f32 %v2172, %v2117
        %v2174 = vmul.f32 %v2172, %v2118
        %2177 = vrot.lane.b32.xlu0 %v2173, 125
        %v2178 = vpop.permute.xlu0 %2177
        %2179 = vrot.lane.b32.xlu0 %v2174, 125
        %v2180 = vpop.permute.xlu0 %2179
        %v2183 = vadd.f32 %v2135, %v2178
        %v2184 = vadd.f32 %v2136, %v2180
        %s2185 = sld [smem:[#allocation3 + $0x14a]]
        %v2186 = vstv %s2185
        %v2187 = vmul.f32 %v2186, %v2117
        %v2188 = vmul.f32 %v2186, %v2118
        %2191 = vrot.lane.b32.xlu0 %v2187, 125
        %v2192 = vpop.permute.xlu0 %2191
        %2193 = vrot.lane.b32.xlu0 %v2188, 125
        %v2194 = vpop.permute.xlu0 %2193
        %v2197 = vadd.f32 %v2141, %v2192
        %v2198 = vadd.f32 %v2142, %v2194
        %s2199 = sld [smem:[#allocation3 + $0x25]]
        %v2200 = vstv %s2199
        %v2201 = vmul.f32 %v2200, %v2117
        %v2202 = vmul.f32 %v2200, %v2118
        %2205 = vrot.lane.b32.xlu0 %v2201, 122
        %v2206 = vpop.permute.xlu0 %2205
        %2207 = vrot.lane.b32.xlu0 %v2202, 122
        %v2208 = vpop.permute.xlu0 %2207
        %v2211 = vadd.f32 %v2155, %v2206
        %v2212 = vadd.f32 %v2156, %v2208
        %s2213 = sld [smem:[#allocation3 + $0x87]]
        %v2214 = vstv %s2213
        %v2215 = vmul.f32 %v2214, %v2117
        %v2216 = vmul.f32 %v2214, %v2118
        %2219 = vrot.lane.b32.xlu0 %v2215, 122
        %v2220 = vpop.permute.xlu0 %2219
        %2221 = vrot.lane.b32.xlu0 %v2216, 122
        %v2222 = vpop.permute.xlu0 %2221
        %v2225 = vadd.f32 %v2169, %v2220
        %v2226 = vadd.f32 %v2170, %v2222
        %s2227 = sld [smem:[#allocation3 + $0xe9]]
        %v2228 = vstv %s2227
        %v2229 = vmul.f32 %v2228, %v2117
        %v2230 = vmul.f32 %v2228, %v2118
        %2233 = vrot.lane.b32.xlu0 %v2229, 122
        %v2234 = vpop.permute.xlu0 %2233
        %2235 = vrot.lane.b32.xlu0 %v2230, 122
        %v2236 = vpop.permute.xlu0 %2235
        %v2239 = vadd.f32 %v2183, %v2234
        %v2240 = vadd.f32 %v2184, %v2236
        %s2241 = sld [smem:[#allocation3 + $0x14b]]
        %v2242 = vstv %s2241
        %v2243 = vmul.f32 %v2242, %v2117
        %v2244 = vmul.f32 %v2242, %v2118
        %2247 = vrot.lane.b32.xlu0 %v2243, 122
        %v2248 = vpop.permute.xlu0 %2247
        %2249 = vrot.lane.b32.xlu0 %v2244, 122
        %v2250 = vpop.permute.xlu0 %2249
        %v2253 = vadd.f32 %v2197, %v2248
        %v2254 = vadd.f32 %v2198, %v2250
        %s2255 = sld [smem:[#allocation3 + $0x26]]
        %v2256 = vstv %s2255
        %v2257 = vmul.f32 %v2256, %v2117
        %v2258 = vmul.f32 %v2256, %v2118
        %2261 = vrot.lane.b32.xlu0 %v2257, 119
        %v2262 = vpop.permute.xlu0 %2261
        %2263 = vrot.lane.b32.xlu0 %v2258, 119
        %v2264 = vpop.permute.xlu0 %2263
        %v2267 = vadd.f32 %v2211, %v2262
        %v2268 = vadd.f32 %v2212, %v2264
        %s2269 = sld [smem:[#allocation3 + $0x88]]
        %v2270 = vstv %s2269
        %v2271 = vmul.f32 %v2270, %v2117
        %v2272 = vmul.f32 %v2270, %v2118
        %2275 = vrot.lane.b32.xlu0 %v2271, 119
        %v2276 = vpop.permute.xlu0 %2275
        %2277 = vrot.lane.b32.xlu0 %v2272, 119
        %v2278 = vpop.permute.xlu0 %2277
        %v2281 = vadd.f32 %v2225, %v2276
        %v2282 = vadd.f32 %v2226, %v2278
        %s2283 = sld [smem:[#allocation3 + $0xea]]
        %v2284 = vstv %s2283
        %v2285 = vmul.f32 %v2284, %v2117
        %v2286 = vmul.f32 %v2284, %v2118
        %2289 = vrot.lane.b32.xlu0 %v2285, 119
        %v2290 = vpop.permute.xlu0 %2289
        %2291 = vrot.lane.b32.xlu0 %v2286, 119
        %v2292 = vpop.permute.xlu0 %2291
        %v2295 = vadd.f32 %v2239, %v2290
        %v2296 = vadd.f32 %v2240, %v2292
        %s2297 = sld [smem:[#allocation3 + $0x14c]]
        %v2298 = vstv %s2297
        %v2299 = vmul.f32 %v2298, %v2117
        %v2300 = vmul.f32 %v2298, %v2118
        %2303 = vrot.lane.b32.xlu0 %v2299, 119
        %v2304 = vpop.permute.xlu0 %2303
        %2305 = vrot.lane.b32.xlu0 %v2300, 119
        %v2306 = vpop.permute.xlu0 %2305
        %v2309 = vadd.f32 %v2253, %v2304
        %v2310 = vadd.f32 %v2254, %v2306
        %s2311 = sld [smem:[#allocation3 + $0x27]]
        %v2312 = vstv %s2311
        %v2313 = vmul.f32 %v2312, %v2117
        %v2314 = vmul.f32 %v2312, %v2118
        %2317 = vrot.lane.b32.xlu0 %v2313, 116
        %v2318 = vpop.permute.xlu0 %2317
        %2319 = vrot.lane.b32.xlu0 %v2314, 116
        %v2320 = vpop.permute.xlu0 %2319
        %v2323 = vadd.f32 %v2267, %v2318
        %v2324 = vadd.f32 %v2268, %v2320
        %s2325 = sld [smem:[#allocation3 + $0x89]]
        %v2326 = vstv %s2325
        %v2327 = vmul.f32 %v2326, %v2117
        %v2328 = vmul.f32 %v2326, %v2118
        %2331 = vrot.lane.b32.xlu0 %v2327, 116
        %v2332 = vpop.permute.xlu0 %2331
        %2333 = vrot.lane.b32.xlu0 %v2328, 116
        %v2334 = vpop.permute.xlu0 %2333
        %v2337 = vadd.f32 %v2281, %v2332
        %v2338 = vadd.f32 %v2282, %v2334
        %s2339 = sld [smem:[#allocation3 + $0xeb]]
        %v2340 = vstv %s2339
        %v2341 = vmul.f32 %v2340, %v2117
        %v2342 = vmul.f32 %v2340, %v2118
        %2345 = vrot.lane.b32.xlu0 %v2341, 116
        %v2346 = vpop.permute.xlu0 %2345
        %2347 = vrot.lane.b32.xlu0 %v2342, 116
        %v2348 = vpop.permute.xlu0 %2347
        %v2351 = vadd.f32 %v2295, %v2346
        %v2352 = vadd.f32 %v2296, %v2348
        %s2353 = sld [smem:[#allocation3 + $0x14d]]
        %v2354 = vstv %s2353
        %v2355 = vmul.f32 %v2354, %v2117
        %v2356 = vmul.f32 %v2354, %v2118
        %2359 = vrot.lane.b32.xlu0 %v2355, 116
        %v2360 = vpop.permute.xlu0 %2359
        %2361 = vrot.lane.b32.xlu0 %v2356, 116
        %v2362 = vpop.permute.xlu0 %2361
        %v2365 = vadd.f32 %v2309, %v2360
        %v2366 = vadd.f32 %v2310, %v2362
        %s2367 = sld [smem:[#allocation3 + $0x28]]
        %v2368 = vstv %s2367
        %v2369 = vmul.f32 %v2368, %v2117
        %v2370 = vmul.f32 %v2368, %v2118
        %2373 = vrot.lane.b32.xlu0 %v2369, 113
        %v2374 = vpop.permute.xlu0 %2373
        %2375 = vrot.lane.b32.xlu0 %v2370, 113
        %v2376 = vpop.permute.xlu0 %2375
        %v2379 = vadd.f32 %v2323, %v2374
        %v2380 = vadd.f32 %v2324, %v2376
        %s2381 = sld [smem:[#allocation3 + $0x8a]]
        %v2382 = vstv %s2381
        %v2383 = vmul.f32 %v2382, %v2117
        %v2384 = vmul.f32 %v2382, %v2118
        %2387 = vrot.lane.b32.xlu0 %v2383, 113
        %v2388 = vpop.permute.xlu0 %2387
        %2389 = vrot.lane.b32.xlu0 %v2384, 113
        %v2390 = vpop.permute.xlu0 %2389
        %v2393 = vadd.f32 %v2337, %v2388
        %v2394 = vadd.f32 %v2338, %v2390
        %s2395 = sld [smem:[#allocation3 + $0xec]]
        %v2396 = vstv %s2395
        %v2397 = vmul.f32 %v2396, %v2117
        %v2398 = vmul.f32 %v2396, %v2118
        %2401 = vrot.lane.b32.xlu0 %v2397, 113
        %v2402 = vpop.permute.xlu0 %2401
        %2403 = vrot.lane.b32.xlu0 %v2398, 113
        %v2404 = vpop.permute.xlu0 %2403
        %v2407 = vadd.f32 %v2351, %v2402
        %v2408 = vadd.f32 %v2352, %v2404
        %s2409 = sld [smem:[#allocation3 + $0x14e]]
        %v2410 = vstv %s2409
        %v2411 = vmul.f32 %v2410, %v2117
        %v2412 = vmul.f32 %v2410, %v2118
        %2415 = vrot.lane.b32.xlu0 %v2411, 113
        %v2416 = vpop.permute.xlu0 %2415
        %2417 = vrot.lane.b32.xlu0 %v2412, 113
        %v2418 = vpop.permute.xlu0 %2417
        %v2421 = vadd.f32 %v2365, %v2416
        %v2422 = vadd.f32 %v2366, %v2418
        %s2423 = sld [smem:[#allocation3 + $0x29]]
        %v2424 = vstv %s2423
        %v2425 = vmul.f32 %v2424, %v2117
        %v2426 = vmul.f32 %v2424, %v2118
        %2429 = vrot.lane.b32.xlu0 %v2425, 110
        %v2430 = vpop.permute.xlu0 %2429
        %2431 = vrot.lane.b32.xlu0 %v2426, 110
        %v2432 = vpop.permute.xlu0 %2431
        %v2435 = vadd.f32 %v2379, %v2430
        %v2436 = vadd.f32 %v2380, %v2432
        %s2437 = sld [smem:[#allocation3 + $0x8b]]
        %v2438 = vstv %s2437
        %v2439 = vmul.f32 %v2438, %v2117
        %v2440 = vmul.f32 %v2438, %v2118
        %2443 = vrot.lane.b32.xlu0 %v2439, 110
        %v2444 = vpop.permute.xlu0 %2443
        %2445 = vrot.lane.b32.xlu0 %v2440, 110
        %v2446 = vpop.permute.xlu0 %2445
        %v2449 = vadd.f32 %v2393, %v2444
        %v2450 = vadd.f32 %v2394, %v2446
        %s2451 = sld [smem:[#allocation3 + $0xed]]
        %v2452 = vstv %s2451
        %v2453 = vmul.f32 %v2452, %v2117
        %v2454 = vmul.f32 %v2452, %v2118
        %2457 = vrot.lane.b32.xlu0 %v2453, 110
        %v2458 = vpop.permute.xlu0 %2457
        %2459 = vrot.lane.b32.xlu0 %v2454, 110
        %v2460 = vpop.permute.xlu0 %2459
        %v2463 = vadd.f32 %v2407, %v2458
        %v2464 = vadd.f32 %v2408, %v2460
        %s2465 = sld [smem:[#allocation3 + $0x14f]]
        %v2466 = vstv %s2465
        %v2467 = vmul.f32 %v2466, %v2117
        %v2468 = vmul.f32 %v2466, %v2118
        %2471 = vrot.lane.b32.xlu0 %v2467, 110
        %v2472 = vpop.permute.xlu0 %2471
        %2473 = vrot.lane.b32.xlu0 %v2468, 110
        %v2474 = vpop.permute.xlu0 %2473
        %v2477 = vadd.f32 %v2421, %v2472
        %v2478 = vadd.f32 %v2422, %v2474
        %v2479 = vld [vmem:[#allocation2 + $0x12] sm:$0xff]
        %v2480 = vld [vmem:[#allocation2 + $0x1a] sm:$0xff]
        %s2481 = sld [smem:[#allocation3 + $0x2a]]
        %v2482 = vstv %s2481
        %v2483 = vmul.f32 %v2482, %v2479
        %v2484 = vmul.f32 %v2482, %v2480
        %v2485 = vadd.f32 %v2435, %v2483
        %v2486 = vadd.f32 %v2436, %v2484
        %s2487 = sld [smem:[#allocation3 + $0x8c]]
        %v2488 = vstv %s2487
        %v2489 = vmul.f32 %v2488, %v2479
        %v2490 = vmul.f32 %v2488, %v2480
        %v2491 = vadd.f32 %v2449, %v2489
        %v2492 = vadd.f32 %v2450, %v2490
        %s2493 = sld [smem:[#allocation3 + $0xee]]
        %v2494 = vstv %s2493
        %v2495 = vmul.f32 %v2494, %v2479
        %v2496 = vmul.f32 %v2494, %v2480
        %v2497 = vadd.f32 %v2463, %v2495
        %v2498 = vadd.f32 %v2464, %v2496
        %s2499 = sld [smem:[#allocation3 + $0x150]]
        %v2500 = vstv %s2499
        %v2501 = vmul.f32 %v2500, %v2479
        %v2502 = vmul.f32 %v2500, %v2480
        %v2503 = vadd.f32 %v2477, %v2501
        %v2504 = vadd.f32 %v2478, %v2502
        %s2505 = sld [smem:[#allocation3 + $0x2b]]
        %v2506 = vstv %s2505
        %v2507 = vmul.f32 %v2506, %v2479
        %v2508 = vmul.f32 %v2506, %v2480
        %2511 = vrot.lane.b32.xlu0 %v2507, 125
        %v2512 = vpop.permute.xlu0 %2511
        %2513 = vrot.lane.b32.xlu0 %v2508, 125
        %v2514 = vpop.permute.xlu0 %2513
        %v2517 = vadd.f32 %v2485, %v2512
        %v2518 = vadd.f32 %v2486, %v2514
        %s2519 = sld [smem:[#allocation3 + $0x8d]]
        %v2520 = vstv %s2519
        %v2521 = vmul.f32 %v2520, %v2479
        %v2522 = vmul.f32 %v2520, %v2480
        %2525 = vrot.lane.b32.xlu0 %v2521, 125
        %v2526 = vpop.permute.xlu0 %2525
        %2527 = vrot.lane.b32.xlu0 %v2522, 125
        %v2528 = vpop.permute.xlu0 %2527
        %v2531 = vadd.f32 %v2491, %v2526
        %v2532 = vadd.f32 %v2492, %v2528
        %s2533 = sld [smem:[#allocation3 + $0xef]]
        %v2534 = vstv %s2533
        %v2535 = vmul.f32 %v2534, %v2479
        %v2536 = vmul.f32 %v2534, %v2480
        %2539 = vrot.lane.b32.xlu0 %v2535, 125
        %v2540 = vpop.permute.xlu0 %2539
        %2541 = vrot.lane.b32.xlu0 %v2536, 125
        %v2542 = vpop.permute.xlu0 %2541
        %v2545 = vadd.f32 %v2497, %v2540
        %v2546 = vadd.f32 %v2498, %v2542
        %s2547 = sld [smem:[#allocation3 + $0x151]]
        %v2548 = vstv %s2547
        %v2549 = vmul.f32 %v2548, %v2479
        %v2550 = vmul.f32 %v2548, %v2480
        %2553 = vrot.lane.b32.xlu0 %v2549, 125
        %v2554 = vpop.permute.xlu0 %2553
        %2555 = vrot.lane.b32.xlu0 %v2550, 125
        %v2556 = vpop.permute.xlu0 %2555
        %v2559 = vadd.f32 %v2503, %v2554
        %v2560 = vadd.f32 %v2504, %v2556
        %s2561 = sld [smem:[#allocation3 + $0x2c]]
        %v2562 = vstv %s2561
        %v2563 = vmul.f32 %v2562, %v2479
        %v2564 = vmul.f32 %v2562, %v2480
        %2567 = vrot.lane.b32.xlu0 %v2563, 122
        %v2568 = vpop.permute.xlu0 %2567
        %2569 = vrot.lane.b32.xlu0 %v2564, 122
        %v2570 = vpop.permute.xlu0 %2569
        %v2573 = vadd.f32 %v2517, %v2568
        %v2574 = vadd.f32 %v2518, %v2570
        %s2575 = sld [smem:[#allocation3 + $0x8e]]
        %v2576 = vstv %s2575
        %v2577 = vmul.f32 %v2576, %v2479
        %v2578 = vmul.f32 %v2576, %v2480
        %2581 = vrot.lane.b32.xlu0 %v2577, 122
        %v2582 = vpop.permute.xlu0 %2581
        %2583 = vrot.lane.b32.xlu0 %v2578, 122
        %v2584 = vpop.permute.xlu0 %2583
        %v2587 = vadd.f32 %v2531, %v2582
        %v2588 = vadd.f32 %v2532, %v2584
        %s2589 = sld [smem:[#allocation3 + $0xf0]]
        %v2590 = vstv %s2589
        %v2591 = vmul.f32 %v2590, %v2479
        %v2592 = vmul.f32 %v2590, %v2480
        %2595 = vrot.lane.b32.xlu0 %v2591, 122
        %v2596 = vpop.permute.xlu0 %2595
        %2597 = vrot.lane.b32.xlu0 %v2592, 122
        %v2598 = vpop.permute.xlu0 %2597
        %v2601 = vadd.f32 %v2545, %v2596
        %v2602 = vadd.f32 %v2546, %v2598
        %s2603 = sld [smem:[#allocation3 + $0x152]]
        %v2604 = vstv %s2603
        %v2605 = vmul.f32 %v2604, %v2479
        %v2606 = vmul.f32 %v2604, %v2480
        %2609 = vrot.lane.b32.xlu0 %v2605, 122
        %v2610 = vpop.permute.xlu0 %2609
        %2611 = vrot.lane.b32.xlu0 %v2606, 122
        %v2612 = vpop.permute.xlu0 %2611
        %v2615 = vadd.f32 %v2559, %v2610
        %v2616 = vadd.f32 %v2560, %v2612
        %s2617 = sld [smem:[#allocation3 + $0x2d]]
        %v2618 = vstv %s2617
        %v2619 = vmul.f32 %v2618, %v2479
        %v2620 = vmul.f32 %v2618, %v2480
        %2623 = vrot.lane.b32.xlu0 %v2619, 119
        %v2624 = vpop.permute.xlu0 %2623
        %2625 = vrot.lane.b32.xlu0 %v2620, 119
        %v2626 = vpop.permute.xlu0 %2625
        %v2629 = vadd.f32 %v2573, %v2624
        %v2630 = vadd.f32 %v2574, %v2626
        %s2631 = sld [smem:[#allocation3 + $0x8f]]
        %v2632 = vstv %s2631
        %v2633 = vmul.f32 %v2632, %v2479
        %v2634 = vmul.f32 %v2632, %v2480
        %2637 = vrot.lane.b32.xlu0 %v2633, 119
        %v2638 = vpop.permute.xlu0 %2637
        %2639 = vrot.lane.b32.xlu0 %v2634, 119
        %v2640 = vpop.permute.xlu0 %2639
        %v2643 = vadd.f32 %v2587, %v2638
        %v2644 = vadd.f32 %v2588, %v2640
        %s2645 = sld [smem:[#allocation3 + $0xf1]]
        %v2646 = vstv %s2645
        %v2647 = vmul.f32 %v2646, %v2479
        %v2648 = vmul.f32 %v2646, %v2480
        %2651 = vrot.lane.b32.xlu0 %v2647, 119
        %v2652 = vpop.permute.xlu0 %2651
        %2653 = vrot.lane.b32.xlu0 %v2648, 119
        %v2654 = vpop.permute.xlu0 %2653
        %v2657 = vadd.f32 %v2601, %v2652
        %v2658 = vadd.f32 %v2602, %v2654
        %s2659 = sld [smem:[#allocation3 + $0x153]]
        %v2660 = vstv %s2659
        %v2661 = vmul.f32 %v2660, %v2479
        %v2662 = vmul.f32 %v2660, %v2480
        %2665 = vrot.lane.b32.xlu0 %v2661, 119
        %v2666 = vpop.permute.xlu0 %2665
        %2667 = vrot.lane.b32.xlu0 %v2662, 119
        %v2668 = vpop.permute.xlu0 %2667
        %v2671 = vadd.f32 %v2615, %v2666
        %v2672 = vadd.f32 %v2616, %v2668
        %s2673 = sld [smem:[#allocation3 + $0x2e]]
        %v2674 = vstv %s2673
        %v2675 = vmul.f32 %v2674, %v2479
        %v2676 = vmul.f32 %v2674, %v2480
        %2679 = vrot.lane.b32.xlu0 %v2675, 116
        %v2680 = vpop.permute.xlu0 %2679
        %2681 = vrot.lane.b32.xlu0 %v2676, 116
        %v2682 = vpop.permute.xlu0 %2681
        %v2685 = vadd.f32 %v2629, %v2680
        %v2686 = vadd.f32 %v2630, %v2682
        %s2687 = sld [smem:[#allocation3 + $0x90]]
        %v2688 = vstv %s2687
        %v2689 = vmul.f32 %v2688, %v2479
        %v2690 = vmul.f32 %v2688, %v2480
        %2693 = vrot.lane.b32.xlu0 %v2689, 116
        %v2694 = vpop.permute.xlu0 %2693
        %2695 = vrot.lane.b32.xlu0 %v2690, 116
        %v2696 = vpop.permute.xlu0 %2695
        %v2699 = vadd.f32 %v2643, %v2694
        %v2700 = vadd.f32 %v2644, %v2696
        %s2701 = sld [smem:[#allocation3 + $0xf2]]
        %v2702 = vstv %s2701
        %v2703 = vmul.f32 %v2702, %v2479
        %v2704 = vmul.f32 %v2702, %v2480
        %2707 = vrot.lane.b32.xlu0 %v2703, 116
        %v2708 = vpop.permute.xlu0 %2707
        %2709 = vrot.lane.b32.xlu0 %v2704, 116
        %v2710 = vpop.permute.xlu0 %2709
        %v2713 = vadd.f32 %v2657, %v2708
        %v2714 = vadd.f32 %v2658, %v2710
        %s2715 = sld [smem:[#allocation3 + $0x154]]
        %v2716 = vstv %s2715
        %v2717 = vmul.f32 %v2716, %v2479
        %v2718 = vmul.f32 %v2716, %v2480
        %2721 = vrot.lane.b32.xlu0 %v2717, 116
        %v2722 = vpop.permute.xlu0 %2721
        %2723 = vrot.lane.b32.xlu0 %v2718, 116
        %v2724 = vpop.permute.xlu0 %2723
        %v2727 = vadd.f32 %v2671, %v2722
        %v2728 = vadd.f32 %v2672, %v2724
        %s2729 = sld [smem:[#allocation3 + $0x2f]]
        %v2730 = vstv %s2729
        %v2731 = vmul.f32 %v2730, %v2479
        %v2732 = vmul.f32 %v2730, %v2480
        %2735 = vrot.lane.b32.xlu0 %v2731, 113
        %v2736 = vpop.permute.xlu0 %2735
        %2737 = vrot.lane.b32.xlu0 %v2732, 113
        %v2738 = vpop.permute.xlu0 %2737
        %v2741 = vadd.f32 %v2685, %v2736
        %v2742 = vadd.f32 %v2686, %v2738
        %s2743 = sld [smem:[#allocation3 + $0x91]]
        %v2744 = vstv %s2743
        %v2745 = vmul.f32 %v2744, %v2479
        %v2746 = vmul.f32 %v2744, %v2480
        %2749 = vrot.lane.b32.xlu0 %v2745, 113
        %v2750 = vpop.permute.xlu0 %2749
        %2751 = vrot.lane.b32.xlu0 %v2746, 113
        %v2752 = vpop.permute.xlu0 %2751
        %v2755 = vadd.f32 %v2699, %v2750
        %v2756 = vadd.f32 %v2700, %v2752
        %s2757 = sld [smem:[#allocation3 + $0xf3]]
        %v2758 = vstv %s2757
        %v2759 = vmul.f32 %v2758, %v2479
        %v2760 = vmul.f32 %v2758, %v2480
        %2763 = vrot.lane.b32.xlu0 %v2759, 113
        %v2764 = vpop.permute.xlu0 %2763
        %2765 = vrot.lane.b32.xlu0 %v2760, 113
        %v2766 = vpop.permute.xlu0 %2765
        %v2769 = vadd.f32 %v2713, %v2764
        %v2770 = vadd.f32 %v2714, %v2766
        %s2771 = sld [smem:[#allocation3 + $0x155]]
        %v2772 = vstv %s2771
        %v2773 = vmul.f32 %v2772, %v2479
        %v2774 = vmul.f32 %v2772, %v2480
        %2777 = vrot.lane.b32.xlu0 %v2773, 113
        %v2778 = vpop.permute.xlu0 %2777
        %2779 = vrot.lane.b32.xlu0 %v2774, 113
        %v2780 = vpop.permute.xlu0 %2779
        %v2783 = vadd.f32 %v2727, %v2778
        %v2784 = vadd.f32 %v2728, %v2780
        %s2785 = sld [smem:[#allocation3 + $0x30]]
        %v2786 = vstv %s2785
        %v2787 = vmul.f32 %v2786, %v2479
        %v2788 = vmul.f32 %v2786, %v2480
        %2791 = vrot.lane.b32.xlu0 %v2787, 110
        %v2792 = vpop.permute.xlu0 %2791
        %2793 = vrot.lane.b32.xlu0 %v2788, 110
        %v2794 = vpop.permute.xlu0 %2793
        %v2797 = vadd.f32 %v2741, %v2792
        %v2798 = vadd.f32 %v2742, %v2794
        %s2799 = sld [smem:[#allocation3 + $0x92]]
        %v2800 = vstv %s2799
        %v2801 = vmul.f32 %v2800, %v2479
        %v2802 = vmul.f32 %v2800, %v2480
        %2805 = vrot.lane.b32.xlu0 %v2801, 110
        %v2806 = vpop.permute.xlu0 %2805
        %2807 = vrot.lane.b32.xlu0 %v2802, 110
        %v2808 = vpop.permute.xlu0 %2807
        %v2811 = vadd.f32 %v2755, %v2806
        %v2812 = vadd.f32 %v2756, %v2808
        %s2813 = sld [smem:[#allocation3 + $0xf4]]
        %v2814 = vstv %s2813
        %v2815 = vmul.f32 %v2814, %v2479
        %v2816 = vmul.f32 %v2814, %v2480
        %2819 = vrot.lane.b32.xlu0 %v2815, 110
        %v2820 = vpop.permute.xlu0 %2819
        %2821 = vrot.lane.b32.xlu0 %v2816, 110
        %v2822 = vpop.permute.xlu0 %2821
        %v2825 = vadd.f32 %v2769, %v2820
        %v2826 = vadd.f32 %v2770, %v2822
        %s2827 = sld [smem:[#allocation3 + $0x156]]
        %v2828 = vstv %s2827
        %v2829 = vmul.f32 %v2828, %v2479
        %v2830 = vmul.f32 %v2828, %v2480
        %2833 = vrot.lane.b32.xlu0 %v2829, 110
        %v2834 = vpop.permute.xlu0 %2833
        %2835 = vrot.lane.b32.xlu0 %v2830, 110
        %v2836 = vpop.permute.xlu0 %2835
        %v2839 = vadd.f32 %v2783, %v2834
        %v2840 = vadd.f32 %v2784, %v2836
        %v2841 = vld [vmem:[%s269] sm:$0xff]
        %v2842 = vld [vmem:[%s269 + $0x8] sm:$0xff]
        %s2843 = sld [smem:[#allocation3 + $0x31]]
        %v2844 = vstv %s2843
        %v2845 = vmul.f32 %v2844, %v2841
        %v2846 = vmul.f32 %v2844, %v2842
        %v2847 = vadd.f32 %v2797, %v2845
        %v2848 = vadd.f32 %v2798, %v2846
        %s2849 = sld [smem:[#allocation3 + $0x93]]
        %v2850 = vstv %s2849
        %v2851 = vmul.f32 %v2850, %v2841
        %v2852 = vmul.f32 %v2850, %v2842
        %v2853 = vadd.f32 %v2811, %v2851
        %v2854 = vadd.f32 %v2812, %v2852
        %s2855 = sld [smem:[#allocation3 + $0xf5]]
        %v2856 = vstv %s2855
        %v2857 = vmul.f32 %v2856, %v2841
        %v2858 = vmul.f32 %v2856, %v2842
        %v2859 = vadd.f32 %v2825, %v2857
        %v2860 = vadd.f32 %v2826, %v2858
        %s2861 = sld [smem:[#allocation3 + $0x157]]
        %v2862 = vstv %s2861
        %v2863 = vmul.f32 %v2862, %v2841
        %v2864 = vmul.f32 %v2862, %v2842
        %v2865 = vadd.f32 %v2839, %v2863
        %v2866 = vadd.f32 %v2840, %v2864
        %s2867 = sld [smem:[#allocation3 + $0x32]]
        %v2868 = vstv %s2867
        %v2869 = vmul.f32 %v2868, %v2841
        %v2870 = vmul.f32 %v2868, %v2842
        %2873 = vrot.lane.b32.xlu0 %v2869, 125
        %v2874 = vpop.permute.xlu0 %2873
        %2875 = vrot.lane.b32.xlu0 %v2870, 125
        %v2876 = vpop.permute.xlu0 %2875
        %v2879 = vadd.f32 %v2847, %v2874
        %v2880 = vadd.f32 %v2848, %v2876
        %s2881 = sld [smem:[#allocation3 + $0x94]]
        %v2882 = vstv %s2881
        %v2883 = vmul.f32 %v2882, %v2841
        %v2884 = vmul.f32 %v2882, %v2842
        %2887 = vrot.lane.b32.xlu0 %v2883, 125
        %v2888 = vpop.permute.xlu0 %2887
        %2889 = vrot.lane.b32.xlu0 %v2884, 125
        %v2890 = vpop.permute.xlu0 %2889
        %v2893 = vadd.f32 %v2853, %v2888
        %v2894 = vadd.f32 %v2854, %v2890
        %s2895 = sld [smem:[#allocation3 + $0xf6]]
        %v2896 = vstv %s2895
        %v2897 = vmul.f32 %v2896, %v2841
        %v2898 = vmul.f32 %v2896, %v2842
        %2901 = vrot.lane.b32.xlu0 %v2897, 125
        %v2902 = vpop.permute.xlu0 %2901
        %2903 = vrot.lane.b32.xlu0 %v2898, 125
        %v2904 = vpop.permute.xlu0 %2903
        %v2907 = vadd.f32 %v2859, %v2902
        %v2908 = vadd.f32 %v2860, %v2904
        %s2909 = sld [smem:[#allocation3 + $0x158]]
        %v2910 = vstv %s2909
        %v2911 = vmul.f32 %v2910, %v2841
        %v2912 = vmul.f32 %v2910, %v2842
        %2915 = vrot.lane.b32.xlu0 %v2911, 125
        %v2916 = vpop.permute.xlu0 %2915
        %2917 = vrot.lane.b32.xlu0 %v2912, 125
        %v2918 = vpop.permute.xlu0 %2917
        %v2921 = vadd.f32 %v2865, %v2916
        %v2922 = vadd.f32 %v2866, %v2918
        %s2923 = sld [smem:[#allocation3 + $0x33]]
        %v2924 = vstv %s2923
        %v2925 = vmul.f32 %v2924, %v2841
        %v2926 = vmul.f32 %v2924, %v2842
        %2929 = vrot.lane.b32.xlu0 %v2925, 122
        %v2930 = vpop.permute.xlu0 %2929
        %2931 = vrot.lane.b32.xlu0 %v2926, 122
        %v2932 = vpop.permute.xlu0 %2931
        %v2935 = vadd.f32 %v2879, %v2930
        %v2936 = vadd.f32 %v2880, %v2932
        %s2937 = sld [smem:[#allocation3 + $0x95]]
        %v2938 = vstv %s2937
        %v2939 = vmul.f32 %v2938, %v2841
        %v2940 = vmul.f32 %v2938, %v2842
        %2943 = vrot.lane.b32.xlu0 %v2939, 122
        %v2944 = vpop.permute.xlu0 %2943
        %2945 = vrot.lane.b32.xlu0 %v2940, 122
        %v2946 = vpop.permute.xlu0 %2945
        %v2949 = vadd.f32 %v2893, %v2944
        %v2950 = vadd.f32 %v2894, %v2946
        %s2951 = sld [smem:[#allocation3 + $0xf7]]
        %v2952 = vstv %s2951
        %v2953 = vmul.f32 %v2952, %v2841
        %v2954 = vmul.f32 %v2952, %v2842
        %2957 = vrot.lane.b32.xlu0 %v2953, 122
        %v2958 = vpop.permute.xlu0 %2957
        %2959 = vrot.lane.b32.xlu0 %v2954, 122
        %v2960 = vpop.permute.xlu0 %2959
        %v2963 = vadd.f32 %v2907, %v2958
        %v2964 = vadd.f32 %v2908, %v2960
        %s2965 = sld [smem:[#allocation3 + $0x159]]
        %v2966 = vstv %s2965
        %v2967 = vmul.f32 %v2966, %v2841
        %v2968 = vmul.f32 %v2966, %v2842
        %2971 = vrot.lane.b32.xlu0 %v2967, 122
        %v2972 = vpop.permute.xlu0 %2971
        %2973 = vrot.lane.b32.xlu0 %v2968, 122
        %v2974 = vpop.permute.xlu0 %2973
        %v2977 = vadd.f32 %v2921, %v2972
        %v2978 = vadd.f32 %v2922, %v2974
        %s2979 = sld [smem:[#allocation3 + $0x34]]
        %v2980 = vstv %s2979
        %v2981 = vmul.f32 %v2980, %v2841
        %v2982 = vmul.f32 %v2980, %v2842
        %2985 = vrot.lane.b32.xlu0 %v2981, 119
        %v2986 = vpop.permute.xlu0 %2985
        %2987 = vrot.lane.b32.xlu0 %v2982, 119
        %v2988 = vpop.permute.xlu0 %2987
        %v2991 = vadd.f32 %v2935, %v2986
        %v2992 = vadd.f32 %v2936, %v2988
        %s2993 = sld [smem:[#allocation3 + $0x96]]
        %v2994 = vstv %s2993
        %v2995 = vmul.f32 %v2994, %v2841
        %v2996 = vmul.f32 %v2994, %v2842
        %2999 = vrot.lane.b32.xlu0 %v2995, 119
        %v3000 = vpop.permute.xlu0 %2999
        %3001 = vrot.lane.b32.xlu0 %v2996, 119
        %v3002 = vpop.permute.xlu0 %3001
        %v3005 = vadd.f32 %v2949, %v3000
        %v3006 = vadd.f32 %v2950, %v3002
        %s3007 = sld [smem:[#allocation3 + $0xf8]]
        %v3008 = vstv %s3007
        %v3009 = vmul.f32 %v3008, %v2841
        %v3010 = vmul.f32 %v3008, %v2842
        %3013 = vrot.lane.b32.xlu0 %v3009, 119
        %v3014 = vpop.permute.xlu0 %3013
        %3015 = vrot.lane.b32.xlu0 %v3010, 119
        %v3016 = vpop.permute.xlu0 %3015
        %v3019 = vadd.f32 %v2963, %v3014
        %v3020 = vadd.f32 %v2964, %v3016
        %s3021 = sld [smem:[#allocation3 + $0x15a]]
        %v3022 = vstv %s3021
        %v3023 = vmul.f32 %v3022, %v2841
        %v3024 = vmul.f32 %v3022, %v2842
        %3027 = vrot.lane.b32.xlu0 %v3023, 119
        %v3028 = vpop.permute.xlu0 %3027
        %3029 = vrot.lane.b32.xlu0 %v3024, 119
        %v3030 = vpop.permute.xlu0 %3029
        %v3033 = vadd.f32 %v2977, %v3028
        %v3034 = vadd.f32 %v2978, %v3030
        %s3035 = sld [smem:[#allocation3 + $0x35]]
        %v3036 = vstv %s3035
        %v3037 = vmul.f32 %v3036, %v2841
        %v3038 = vmul.f32 %v3036, %v2842
        %3041 = vrot.lane.b32.xlu0 %v3037, 116
        %v3042 = vpop.permute.xlu0 %3041
        %3043 = vrot.lane.b32.xlu0 %v3038, 116
        %v3044 = vpop.permute.xlu0 %3043
        %v3047 = vadd.f32 %v2991, %v3042
        %v3048 = vadd.f32 %v2992, %v3044
        %s3049 = sld [smem:[#allocation3 + $0x97]]
        %v3050 = vstv %s3049
        %v3051 = vmul.f32 %v3050, %v2841
        %v3052 = vmul.f32 %v3050, %v2842
        %3055 = vrot.lane.b32.xlu0 %v3051, 116
        %v3056 = vpop.permute.xlu0 %3055
        %3057 = vrot.lane.b32.xlu0 %v3052, 116
        %v3058 = vpop.permute.xlu0 %3057
        %v3061 = vadd.f32 %v3005, %v3056
        %v3062 = vadd.f32 %v3006, %v3058
        %s3063 = sld [smem:[#allocation3 + $0xf9]]
        %v3064 = vstv %s3063
        %v3065 = vmul.f32 %v3064, %v2841
        %v3066 = vmul.f32 %v3064, %v2842
        %3069 = vrot.lane.b32.xlu0 %v3065, 116
        %v3070 = vpop.permute.xlu0 %3069
        %3071 = vrot.lane.b32.xlu0 %v3066, 116
        %v3072 = vpop.permute.xlu0 %3071
        %v3075 = vadd.f32 %v3019, %v3070
        %v3076 = vadd.f32 %v3020, %v3072
        %s3077 = sld [smem:[#allocation3 + $0x15b]]
        %v3078 = vstv %s3077
        %v3079 = vmul.f32 %v3078, %v2841
        %v3080 = vmul.f32 %v3078, %v2842
        %3083 = vrot.lane.b32.xlu0 %v3079, 116
        %v3084 = vpop.permute.xlu0 %3083
        %3085 = vrot.lane.b32.xlu0 %v3080, 116
        %v3086 = vpop.permute.xlu0 %3085
        %v3089 = vadd.f32 %v3033, %v3084
        %v3090 = vadd.f32 %v3034, %v3086
        %s3091 = sld [smem:[#allocation3 + $0x36]]
        %v3092 = vstv %s3091
        %v3093 = vmul.f32 %v3092, %v2841
        %v3094 = vmul.f32 %v3092, %v2842
        %3097 = vrot.lane.b32.xlu0 %v3093, 113
        %v3098 = vpop.permute.xlu0 %3097
        %3099 = vrot.lane.b32.xlu0 %v3094, 113
        %v3100 = vpop.permute.xlu0 %3099
        %v3103 = vadd.f32 %v3047, %v3098
        %v3104 = vadd.f32 %v3048, %v3100
        %s3105 = sld [smem:[#allocation3 + $0x98]]
        %v3106 = vstv %s3105
        %v3107 = vmul.f32 %v3106, %v2841
        %v3108 = vmul.f32 %v3106, %v2842
        %3111 = vrot.lane.b32.xlu0 %v3107, 113
        %v3112 = vpop.permute.xlu0 %3111
        %3113 = vrot.lane.b32.xlu0 %v3108, 113
        %v3114 = vpop.permute.xlu0 %3113
        %v3117 = vadd.f32 %v3061, %v3112
        %v3118 = vadd.f32 %v3062, %v3114
        %s3119 = sld [smem:[#allocation3 + $0xfa]]
        %v3120 = vstv %s3119
        %v3121 = vmul.f32 %v3120, %v2841
        %v3122 = vmul.f32 %v3120, %v2842
        %3125 = vrot.lane.b32.xlu0 %v3121, 113
        %v3126 = vpop.permute.xlu0 %3125
        %3127 = vrot.lane.b32.xlu0 %v3122, 113
        %v3128 = vpop.permute.xlu0 %3127
        %v3131 = vadd.f32 %v3075, %v3126
        %v3132 = vadd.f32 %v3076, %v3128
        %s3133 = sld [smem:[#allocation3 + $0x15c]]
        %v3134 = vstv %s3133
        %v3135 = vmul.f32 %v3134, %v2841
        %v3136 = vmul.f32 %v3134, %v2842
        %3139 = vrot.lane.b32.xlu0 %v3135, 113
        %v3140 = vpop.permute.xlu0 %3139
        %3141 = vrot.lane.b32.xlu0 %v3136, 113
        %v3142 = vpop.permute.xlu0 %3141
        %v3145 = vadd.f32 %v3089, %v3140
        %v3146 = vadd.f32 %v3090, %v3142
        %s3147 = sld [smem:[#allocation3 + $0x37]]
        %v3148 = vstv %s3147
        %v3149 = vmul.f32 %v3148, %v2841
        %v3150 = vmul.f32 %v3148, %v2842
        %3153 = vrot.lane.b32.xlu0 %v3149, 110
        %v3154 = vpop.permute.xlu0 %3153
        %3155 = vrot.lane.b32.xlu0 %v3150, 110
        %v3156 = vpop.permute.xlu0 %3155
        %v3159 = vadd.f32 %v3103, %v3154
        %v3160 = vadd.f32 %v3104, %v3156
        %s3161 = sld [smem:[#allocation3 + $0x99]]
        %v3162 = vstv %s3161
        %v3163 = vmul.f32 %v3162, %v2841
        %v3164 = vmul.f32 %v3162, %v2842
        %3167 = vrot.lane.b32.xlu0 %v3163, 110
        %v3168 = vpop.permute.xlu0 %3167
        %3169 = vrot.lane.b32.xlu0 %v3164, 110
        %v3170 = vpop.permute.xlu0 %3169
        %v3173 = vadd.f32 %v3117, %v3168
        %v3174 = vadd.f32 %v3118, %v3170
        %s3175 = sld [smem:[#allocation3 + $0xfb]]
        %v3176 = vstv %s3175
        %v3177 = vmul.f32 %v3176, %v2841
        %v3178 = vmul.f32 %v3176, %v2842
        %3181 = vrot.lane.b32.xlu0 %v3177, 110
        %v3182 = vpop.permute.xlu0 %3181
        %3183 = vrot.lane.b32.xlu0 %v3178, 110
        %v3184 = vpop.permute.xlu0 %3183
        %v3187 = vadd.f32 %v3131, %v3182
        %v3188 = vadd.f32 %v3132, %v3184
        %s3189 = sld [smem:[#allocation3 + $0x15d]]
        %v3190 = vstv %s3189
        %v3191 = vmul.f32 %v3190, %v2841
        %v3192 = vmul.f32 %v3190, %v2842
        %3195 = vrot.lane.b32.xlu0 %v3191, 110
        %v3196 = vpop.permute.xlu0 %3195
        %3197 = vrot.lane.b32.xlu0 %v3192, 110
        %v3198 = vpop.permute.xlu0 %3197
        %v3201 = vadd.f32 %v3145, %v3196
        %v3202 = vadd.f32 %v3146, %v3198
        %v3203 = vld [vmem:[%s269 + $0x3] sm:$0xff]
        %v3204 = vld [vmem:[%s269 + $0xb] sm:$0xff]
        %s3205 = sld [smem:[#allocation3 + $0x38]]
        %v3206 = vstv %s3205
        %v3207 = vmul.f32 %v3206, %v3203
        %v3208 = vmul.f32 %v3206, %v3204
        %v3209 = vadd.f32 %v3159, %v3207
        %v3210 = vadd.f32 %v3160, %v3208
        %s3211 = sld [smem:[#allocation3 + $0x9a]]
        %v3212 = vstv %s3211
        %v3213 = vmul.f32 %v3212, %v3203
        %v3214 = vmul.f32 %v3212, %v3204
        %v3215 = vadd.f32 %v3173, %v3213
        %v3216 = vadd.f32 %v3174, %v3214
        %s3217 = sld [smem:[#allocation3 + $0xfc]]
        %v3218 = vstv %s3217
        %v3219 = vmul.f32 %v3218, %v3203
        %v3220 = vmul.f32 %v3218, %v3204
        %v3221 = vadd.f32 %v3187, %v3219
        %v3222 = vadd.f32 %v3188, %v3220
        %s3223 = sld [smem:[#allocation3 + $0x15e]]
        %v3224 = vstv %s3223
        %v3225 = vmul.f32 %v3224, %v3203
        %v3226 = vmul.f32 %v3224, %v3204
        %v3227 = vadd.f32 %v3201, %v3225
        %v3228 = vadd.f32 %v3202, %v3226
        %s3229 = sld [smem:[#allocation3 + $0x39]]
        %v3230 = vstv %s3229
        %v3231 = vmul.f32 %v3230, %v3203
        %v3232 = vmul.f32 %v3230, %v3204
        %3235 = vrot.lane.b32.xlu0 %v3231, 125
        %v3236 = vpop.permute.xlu0 %3235
        %3237 = vrot.lane.b32.xlu0 %v3232, 125
        %v3238 = vpop.permute.xlu0 %3237
        %v3241 = vadd.f32 %v3209, %v3236
        %v3242 = vadd.f32 %v3210, %v3238
        %s3243 = sld [smem:[#allocation3 + $0x9b]]
        %v3244 = vstv %s3243
        %v3245 = vmul.f32 %v3244, %v3203
        %v3246 = vmul.f32 %v3244, %v3204
        %3249 = vrot.lane.b32.xlu0 %v3245, 125
        %v3250 = vpop.permute.xlu0 %3249
        %3251 = vrot.lane.b32.xlu0 %v3246, 125
        %v3252 = vpop.permute.xlu0 %3251
        %v3255 = vadd.f32 %v3215, %v3250
        %v3256 = vadd.f32 %v3216, %v3252
        %s3257 = sld [smem:[#allocation3 + $0xfd]]
        %v3258 = vstv %s3257
        %v3259 = vmul.f32 %v3258, %v3203
        %v3260 = vmul.f32 %v3258, %v3204
        %3263 = vrot.lane.b32.xlu0 %v3259, 125
        %v3264 = vpop.permute.xlu0 %3263
        %3265 = vrot.lane.b32.xlu0 %v3260, 125
        %v3266 = vpop.permute.xlu0 %3265
        %v3269 = vadd.f32 %v3221, %v3264
        %v3270 = vadd.f32 %v3222, %v3266
        %s3271 = sld [smem:[#allocation3 + $0x15f]]
        %v3272 = vstv %s3271
        %v3273 = vmul.f32 %v3272, %v3203
        %v3274 = vmul.f32 %v3272, %v3204
        %3277 = vrot.lane.b32.xlu0 %v3273, 125
        %v3278 = vpop.permute.xlu0 %3277
        %3279 = vrot.lane.b32.xlu0 %v3274, 125
        %v3280 = vpop.permute.xlu0 %3279
        %v3283 = vadd.f32 %v3227, %v3278
        %v3284 = vadd.f32 %v3228, %v3280
        %s3285 = sld [smem:[#allocation3 + $0x3a]]
        %v3286 = vstv %s3285
        %v3287 = vmul.f32 %v3286, %v3203
        %v3288 = vmul.f32 %v3286, %v3204
        %3291 = vrot.lane.b32.xlu0 %v3287, 122
        %v3292 = vpop.permute.xlu0 %3291
        %3293 = vrot.lane.b32.xlu0 %v3288, 122
        %v3294 = vpop.permute.xlu0 %3293
        %v3297 = vadd.f32 %v3241, %v3292
        %v3298 = vadd.f32 %v3242, %v3294
        %s3299 = sld [smem:[#allocation3 + $0x9c]]
        %v3300 = vstv %s3299
        %v3301 = vmul.f32 %v3300, %v3203
        %v3302 = vmul.f32 %v3300, %v3204
        %3305 = vrot.lane.b32.xlu0 %v3301, 122
        %v3306 = vpop.permute.xlu0 %3305
        %3307 = vrot.lane.b32.xlu0 %v3302, 122
        %v3308 = vpop.permute.xlu0 %3307
        %v3311 = vadd.f32 %v3255, %v3306
        %v3312 = vadd.f32 %v3256, %v3308
        %s3313 = sld [smem:[#allocation3 + $0xfe]]
        %v3314 = vstv %s3313
        %v3315 = vmul.f32 %v3314, %v3203
        %v3316 = vmul.f32 %v3314, %v3204
        %3319 = vrot.lane.b32.xlu0 %v3315, 122
        %v3320 = vpop.permute.xlu0 %3319
        %3321 = vrot.lane.b32.xlu0 %v3316, 122
        %v3322 = vpop.permute.xlu0 %3321
        %v3325 = vadd.f32 %v3269, %v3320
        %v3326 = vadd.f32 %v3270, %v3322
        %s3327 = sld [smem:[#allocation3 + $0x160]]
        %v3328 = vstv %s3327
        %v3329 = vmul.f32 %v3328, %v3203
        %v3330 = vmul.f32 %v3328, %v3204
        %3333 = vrot.lane.b32.xlu0 %v3329, 122
        %v3334 = vpop.permute.xlu0 %3333
        %3335 = vrot.lane.b32.xlu0 %v3330, 122
        %v3336 = vpop.permute.xlu0 %3335
        %v3339 = vadd.f32 %v3283, %v3334
        %v3340 = vadd.f32 %v3284, %v3336
        %s3341 = sld [smem:[#allocation3 + $0x3b]]
        %v3342 = vstv %s3341
        %v3343 = vmul.f32 %v3342, %v3203
        %v3344 = vmul.f32 %v3342, %v3204
        %3347 = vrot.lane.b32.xlu0 %v3343, 119
        %v3348 = vpop.permute.xlu0 %3347
        %3349 = vrot.lane.b32.xlu0 %v3344, 119
        %v3350 = vpop.permute.xlu0 %3349
        %v3353 = vadd.f32 %v3297, %v3348
        %v3354 = vadd.f32 %v3298, %v3350
        %s3355 = sld [smem:[#allocation3 + $0x9d]]
        %v3356 = vstv %s3355
        %v3357 = vmul.f32 %v3356, %v3203
        %v3358 = vmul.f32 %v3356, %v3204
        %3361 = vrot.lane.b32.xlu0 %v3357, 119
        %v3362 = vpop.permute.xlu0 %3361
        %3363 = vrot.lane.b32.xlu0 %v3358, 119
        %v3364 = vpop.permute.xlu0 %3363
        %v3367 = vadd.f32 %v3311, %v3362
        %v3368 = vadd.f32 %v3312, %v3364
        %s3369 = sld [smem:[#allocation3 + $0xff]]
        %v3370 = vstv %s3369
        %v3371 = vmul.f32 %v3370, %v3203
        %v3372 = vmul.f32 %v3370, %v3204
        %3375 = vrot.lane.b32.xlu0 %v3371, 119
        %v3376 = vpop.permute.xlu0 %3375
        %3377 = vrot.lane.b32.xlu0 %v3372, 119
        %v3378 = vpop.permute.xlu0 %3377
        %v3381 = vadd.f32 %v3325, %v3376
        %v3382 = vadd.f32 %v3326, %v3378
        %s3383 = sld [smem:[#allocation3 + $0x161]]
        %v3384 = vstv %s3383
        %v3385 = vmul.f32 %v3384, %v3203
        %v3386 = vmul.f32 %v3384, %v3204
        %3389 = vrot.lane.b32.xlu0 %v3385, 119
        %v3390 = vpop.permute.xlu0 %3389
        %3391 = vrot.lane.b32.xlu0 %v3386, 119
        %v3392 = vpop.permute.xlu0 %3391
        %v3395 = vadd.f32 %v3339, %v3390
        %v3396 = vadd.f32 %v3340, %v3392
        %s3397 = sld [smem:[#allocation3 + $0x3c]]
        %v3398 = vstv %s3397
        %v3399 = vmul.f32 %v3398, %v3203
        %v3400 = vmul.f32 %v3398, %v3204
        %3403 = vrot.lane.b32.xlu0 %v3399, 116
        %v3404 = vpop.permute.xlu0 %3403
        %3405 = vrot.lane.b32.xlu0 %v3400, 116
        %v3406 = vpop.permute.xlu0 %3405
        %v3409 = vadd.f32 %v3353, %v3404
        %v3410 = vadd.f32 %v3354, %v3406
        %s3411 = sld [smem:[#allocation3 + $0x9e]]
        %v3412 = vstv %s3411
        %v3413 = vmul.f32 %v3412, %v3203
        %v3414 = vmul.f32 %v3412, %v3204
        %3417 = vrot.lane.b32.xlu0 %v3413, 116
        %v3418 = vpop.permute.xlu0 %3417
        %3419 = vrot.lane.b32.xlu0 %v3414, 116
        %v3420 = vpop.permute.xlu0 %3419
        %v3423 = vadd.f32 %v3367, %v3418
        %v3424 = vadd.f32 %v3368, %v3420
        %s3425 = sld [smem:[#allocation3 + $0x100]]
        %v3426 = vstv %s3425
        %v3427 = vmul.f32 %v3426, %v3203
        %v3428 = vmul.f32 %v3426, %v3204
        %3431 = vrot.lane.b32.xlu0 %v3427, 116
        %v3432 = vpop.permute.xlu0 %3431
        %3433 = vrot.lane.b32.xlu0 %v3428, 116
        %v3434 = vpop.permute.xlu0 %3433
        %v3437 = vadd.f32 %v3381, %v3432
        %v3438 = vadd.f32 %v3382, %v3434
        %s3439 = sld [smem:[#allocation3 + $0x162]]
        %v3440 = vstv %s3439
        %v3441 = vmul.f32 %v3440, %v3203
        %v3442 = vmul.f32 %v3440, %v3204
        %3445 = vrot.lane.b32.xlu0 %v3441, 116
        %v3446 = vpop.permute.xlu0 %3445
        %3447 = vrot.lane.b32.xlu0 %v3442, 116
        %v3448 = vpop.permute.xlu0 %3447
        %v3451 = vadd.f32 %v3395, %v3446
        %v3452 = vadd.f32 %v3396, %v3448
        %s3453 = sld [smem:[#allocation3 + $0x3d]]
        %v3454 = vstv %s3453
        %v3455 = vmul.f32 %v3454, %v3203
        %v3456 = vmul.f32 %v3454, %v3204
        %3459 = vrot.lane.b32.xlu0 %v3455, 113
        %v3460 = vpop.permute.xlu0 %3459
        %3461 = vrot.lane.b32.xlu0 %v3456, 113
        %v3462 = vpop.permute.xlu0 %3461
        %v3465 = vadd.f32 %v3409, %v3460
        %v3466 = vadd.f32 %v3410, %v3462
        %s3467 = sld [smem:[#allocation3 + $0x9f]]
        %v3468 = vstv %s3467
        %v3469 = vmul.f32 %v3468, %v3203
        %v3470 = vmul.f32 %v3468, %v3204
        %3473 = vrot.lane.b32.xlu0 %v3469, 113
        %v3474 = vpop.permute.xlu0 %3473
        %3475 = vrot.lane.b32.xlu0 %v3470, 113
        %v3476 = vpop.permute.xlu0 %3475
        %v3479 = vadd.f32 %v3423, %v3474
        %v3480 = vadd.f32 %v3424, %v3476
        %s3481 = sld [smem:[#allocation3 + $0x101]]
        %v3482 = vstv %s3481
        %v3483 = vmul.f32 %v3482, %v3203
        %v3484 = vmul.f32 %v3482, %v3204
        %3487 = vrot.lane.b32.xlu0 %v3483, 113
        %v3488 = vpop.permute.xlu0 %3487
        %3489 = vrot.lane.b32.xlu0 %v3484, 113
        %v3490 = vpop.permute.xlu0 %3489
        %v3493 = vadd.f32 %v3437, %v3488
        %v3494 = vadd.f32 %v3438, %v3490
        %s3495 = sld [smem:[#allocation3 + $0x163]]
        %v3496 = vstv %s3495
        %v3497 = vmul.f32 %v3496, %v3203
        %v3498 = vmul.f32 %v3496, %v3204
        %3501 = vrot.lane.b32.xlu0 %v3497, 113
        %v3502 = vpop.permute.xlu0 %3501
        %3503 = vrot.lane.b32.xlu0 %v3498, 113
        %v3504 = vpop.permute.xlu0 %3503
        %v3507 = vadd.f32 %v3451, %v3502
        %v3508 = vadd.f32 %v3452, %v3504
        %s3509 = sld [smem:[#allocation3 + $0x3e]]
        %v3510 = vstv %s3509
        %v3511 = vmul.f32 %v3510, %v3203
        %v3512 = vmul.f32 %v3510, %v3204
        %3515 = vrot.lane.b32.xlu0 %v3511, 110
        %v3516 = vpop.permute.xlu0 %3515
        %3517 = vrot.lane.b32.xlu0 %v3512, 110
        %v3518 = vpop.permute.xlu0 %3517
        %v3521 = vadd.f32 %v3465, %v3516
        %v3522 = vadd.f32 %v3466, %v3518
        %s3523 = sld [smem:[#allocation3 + $0xa0]]
        %v3524 = vstv %s3523
        %v3525 = vmul.f32 %v3524, %v3203
        %v3526 = vmul.f32 %v3524, %v3204
        %3529 = vrot.lane.b32.xlu0 %v3525, 110
        %v3530 = vpop.permute.xlu0 %3529
        %3531 = vrot.lane.b32.xlu0 %v3526, 110
        %v3532 = vpop.permute.xlu0 %3531
        %v3535 = vadd.f32 %v3479, %v3530
        %v3536 = vadd.f32 %v3480, %v3532
        %s3537 = sld [smem:[#allocation3 + $0x102]]
        %v3538 = vstv %s3537
        %v3539 = vmul.f32 %v3538, %v3203
        %v3540 = vmul.f32 %v3538, %v3204
        %3543 = vrot.lane.b32.xlu0 %v3539, 110
        %v3544 = vpop.permute.xlu0 %3543
        %3545 = vrot.lane.b32.xlu0 %v3540, 110
        %v3546 = vpop.permute.xlu0 %3545
        %v3549 = vadd.f32 %v3493, %v3544
        %v3550 = vadd.f32 %v3494, %v3546
        %s3551 = sld [smem:[#allocation3 + $0x164]]
        %v3552 = vstv %s3551
        %v3553 = vmul.f32 %v3552, %v3203
        %v3554 = vmul.f32 %v3552, %v3204
        %3557 = vrot.lane.b32.xlu0 %v3553, 110
        %v3558 = vpop.permute.xlu0 %3557
        %3559 = vrot.lane.b32.xlu0 %v3554, 110
        %v3560 = vpop.permute.xlu0 %3559
        %v3563 = vadd.f32 %v3507, %v3558
        %v3564 = vadd.f32 %v3508, %v3560
        %v3565 = vld [vmem:[%s269 + $0x6] sm:$0xff]
        %v3566 = vld [vmem:[%s269 + $0xe] sm:$0xff]
        %s3567 = sld [smem:[#allocation3 + $0x3f]]
        %v3568 = vstv %s3567
        %v3569 = vmul.f32 %v3568, %v3565
        %v3570 = vmul.f32 %v3568, %v3566
        %v3571 = vadd.f32 %v3521, %v3569
        %v3572 = vadd.f32 %v3522, %v3570
        %s3573 = sld [smem:[#allocation3 + $0xa1]]
        %v3574 = vstv %s3573
        %v3575 = vmul.f32 %v3574, %v3565
        %v3576 = vmul.f32 %v3574, %v3566
        %v3577 = vadd.f32 %v3535, %v3575
        %v3578 = vadd.f32 %v3536, %v3576
        %s3579 = sld [smem:[#allocation3 + $0x103]]
        %v3580 = vstv %s3579
        %v3581 = vmul.f32 %v3580, %v3565
        %v3582 = vmul.f32 %v3580, %v3566
        %v3583 = vadd.f32 %v3549, %v3581
        %v3584 = vadd.f32 %v3550, %v3582
        %s3585 = sld [smem:[#allocation3 + $0x165]]
        %v3586 = vstv %s3585
        %v3587 = vmul.f32 %v3586, %v3565
        %v3588 = vmul.f32 %v3586, %v3566
        %v3589 = vadd.f32 %v3563, %v3587
        %v3590 = vadd.f32 %v3564, %v3588
        %s3591 = sld [smem:[#allocation3 + $0x40]]
        %v3592 = vstv %s3591
        %v3593 = vmul.f32 %v3592, %v3565
        %v3594 = vmul.f32 %v3592, %v3566
        %3597 = vrot.lane.b32.xlu0 %v3593, 125
        %v3598 = vpop.permute.xlu0 %3597
        %3599 = vrot.lane.b32.xlu0 %v3594, 125
        %v3600 = vpop.permute.xlu0 %3599
        %v3603 = vadd.f32 %v3571, %v3598
        %v3604 = vadd.f32 %v3572, %v3600
        %s3605 = sld [smem:[#allocation3 + $0xa2]]
        %v3606 = vstv %s3605
        %v3607 = vmul.f32 %v3606, %v3565
        %v3608 = vmul.f32 %v3606, %v3566
        %3611 = vrot.lane.b32.xlu0 %v3607, 125
        %v3612 = vpop.permute.xlu0 %3611
        %3613 = vrot.lane.b32.xlu0 %v3608, 125
        %v3614 = vpop.permute.xlu0 %3613
        %v3617 = vadd.f32 %v3577, %v3612
        %v3618 = vadd.f32 %v3578, %v3614
        %s3619 = sld [smem:[#allocation3 + $0x104]]
        %v3620 = vstv %s3619
        %v3621 = vmul.f32 %v3620, %v3565
        %v3622 = vmul.f32 %v3620, %v3566
        %3625 = vrot.lane.b32.xlu0 %v3621, 125
        %v3626 = vpop.permute.xlu0 %3625
        %3627 = vrot.lane.b32.xlu0 %v3622, 125
        %v3628 = vpop.permute.xlu0 %3627
        %v3631 = vadd.f32 %v3583, %v3626
        %v3632 = vadd.f32 %v3584, %v3628
        %s3633 = sld [smem:[#allocation3 + $0x166]]
        %v3634 = vstv %s3633
        %v3635 = vmul.f32 %v3634, %v3565
        %v3636 = vmul.f32 %v3634, %v3566
        %3639 = vrot.lane.b32.xlu0 %v3635, 125
        %v3640 = vpop.permute.xlu0 %3639
        %3641 = vrot.lane.b32.xlu0 %v3636, 125
        %v3642 = vpop.permute.xlu0 %3641
        %v3645 = vadd.f32 %v3589, %v3640
        %v3646 = vadd.f32 %v3590, %v3642
        %s3647 = sld [smem:[#allocation3 + $0x41]]
        %v3648 = vstv %s3647
        %v3649 = vmul.f32 %v3648, %v3565
        %v3650 = vmul.f32 %v3648, %v3566
        %3653 = vrot.lane.b32.xlu0 %v3649, 122
        %v3654 = vpop.permute.xlu0 %3653
        %3655 = vrot.lane.b32.xlu0 %v3650, 122
        %v3656 = vpop.permute.xlu0 %3655
        %v3659 = vadd.f32 %v3603, %v3654
        %v3660 = vadd.f32 %v3604, %v3656
        %s3661 = sld [smem:[#allocation3 + $0xa3]]
        %v3662 = vstv %s3661
        %v3663 = vmul.f32 %v3662, %v3565
        %v3664 = vmul.f32 %v3662, %v3566
        %3667 = vrot.lane.b32.xlu0 %v3663, 122
        %v3668 = vpop.permute.xlu0 %3667
        %3669 = vrot.lane.b32.xlu0 %v3664, 122
        %v3670 = vpop.permute.xlu0 %3669
        %v3673 = vadd.f32 %v3617, %v3668
        %v3674 = vadd.f32 %v3618, %v3670
        %s3675 = sld [smem:[#allocation3 + $0x105]]
        %v3676 = vstv %s3675
        %v3677 = vmul.f32 %v3676, %v3565
        %v3678 = vmul.f32 %v3676, %v3566
        %3681 = vrot.lane.b32.xlu0 %v3677, 122
        %v3682 = vpop.permute.xlu0 %3681
        %3683 = vrot.lane.b32.xlu0 %v3678, 122
        %v3684 = vpop.permute.xlu0 %3683
        %v3687 = vadd.f32 %v3631, %v3682
        %v3688 = vadd.f32 %v3632, %v3684
        %s3689 = sld [smem:[#allocation3 + $0x167]]
        %v3690 = vstv %s3689
        %v3691 = vmul.f32 %v3690, %v3565
        %v3692 = vmul.f32 %v3690, %v3566
        %3695 = vrot.lane.b32.xlu0 %v3691, 122
        %v3696 = vpop.permute.xlu0 %3695
        %3697 = vrot.lane.b32.xlu0 %v3692, 122
        %v3698 = vpop.permute.xlu0 %3697
        %v3701 = vadd.f32 %v3645, %v3696
        %v3702 = vadd.f32 %v3646, %v3698
        %s3703 = sld [smem:[#allocation3 + $0x42]]
        %v3704 = vstv %s3703
        %v3705 = vmul.f32 %v3704, %v3565
        %v3706 = vmul.f32 %v3704, %v3566
        %3709 = vrot.lane.b32.xlu0 %v3705, 119
        %v3710 = vpop.permute.xlu0 %3709
        %3711 = vrot.lane.b32.xlu0 %v3706, 119
        %v3712 = vpop.permute.xlu0 %3711
        %v3715 = vadd.f32 %v3659, %v3710
        %v3716 = vadd.f32 %v3660, %v3712
        %s3717 = sld [smem:[#allocation3 + $0xa4]]
        %v3718 = vstv %s3717
        %v3719 = vmul.f32 %v3718, %v3565
        %v3720 = vmul.f32 %v3718, %v3566
        %3723 = vrot.lane.b32.xlu0 %v3719, 119
        %v3724 = vpop.permute.xlu0 %3723
        %3725 = vrot.lane.b32.xlu0 %v3720, 119
        %v3726 = vpop.permute.xlu0 %3725
        %v3729 = vadd.f32 %v3673, %v3724
        %v3730 = vadd.f32 %v3674, %v3726
        %s3731 = sld [smem:[#allocation3 + $0x106]]
        %v3732 = vstv %s3731
        %v3733 = vmul.f32 %v3732, %v3565
        %v3734 = vmul.f32 %v3732, %v3566
        %3737 = vrot.lane.b32.xlu0 %v3733, 119
        %v3738 = vpop.permute.xlu0 %3737
        %3739 = vrot.lane.b32.xlu0 %v3734, 119
        %v3740 = vpop.permute.xlu0 %3739
        %v3743 = vadd.f32 %v3687, %v3738
        %v3744 = vadd.f32 %v3688, %v3740
        %s3745 = sld [smem:[#allocation3 + $0x168]]
        %v3746 = vstv %s3745
        %v3747 = vmul.f32 %v3746, %v3565
        %v3748 = vmul.f32 %v3746, %v3566
        %3751 = vrot.lane.b32.xlu0 %v3747, 119
        %v3752 = vpop.permute.xlu0 %3751
        %3753 = vrot.lane.b32.xlu0 %v3748, 119
        %v3754 = vpop.permute.xlu0 %3753
        %v3757 = vadd.f32 %v3701, %v3752
        %v3758 = vadd.f32 %v3702, %v3754
        %s3759 = sld [smem:[#allocation3 + $0x43]]
        %v3760 = vstv %s3759
        %v3761 = vmul.f32 %v3760, %v3565
        %v3762 = vmul.f32 %v3760, %v3566
        %3765 = vrot.lane.b32.xlu0 %v3761, 116
        %v3766 = vpop.permute.xlu0 %3765
        %3767 = vrot.lane.b32.xlu0 %v3762, 116
        %v3768 = vpop.permute.xlu0 %3767
        %v3771 = vadd.f32 %v3715, %v3766
        %v3772 = vadd.f32 %v3716, %v3768
        %s3773 = sld [smem:[#allocation3 + $0xa5]]
        %v3774 = vstv %s3773
        %v3775 = vmul.f32 %v3774, %v3565
        %v3776 = vmul.f32 %v3774, %v3566
        %3779 = vrot.lane.b32.xlu0 %v3775, 116
        %v3780 = vpop.permute.xlu0 %3779
        %3781 = vrot.lane.b32.xlu0 %v3776, 116
        %v3782 = vpop.permute.xlu0 %3781
        %v3785 = vadd.f32 %v3729, %v3780
        %v3786 = vadd.f32 %v3730, %v3782
        %s3787 = sld [smem:[#allocation3 + $0x107]]
        %v3788 = vstv %s3787
        %v3789 = vmul.f32 %v3788, %v3565
        %v3790 = vmul.f32 %v3788, %v3566
        %3793 = vrot.lane.b32.xlu0 %v3789, 116
        %v3794 = vpop.permute.xlu0 %3793
        %3795 = vrot.lane.b32.xlu0 %v3790, 116
        %v3796 = vpop.permute.xlu0 %3795
        %v3799 = vadd.f32 %v3743, %v3794
        %v3800 = vadd.f32 %v3744, %v3796
        %s3801 = sld [smem:[#allocation3 + $0x169]]
        %v3802 = vstv %s3801
        %v3803 = vmul.f32 %v3802, %v3565
        %v3804 = vmul.f32 %v3802, %v3566
        %3807 = vrot.lane.b32.xlu0 %v3803, 116
        %v3808 = vpop.permute.xlu0 %3807
        %3809 = vrot.lane.b32.xlu0 %v3804, 116
        %v3810 = vpop.permute.xlu0 %3809
        %v3813 = vadd.f32 %v3757, %v3808
        %v3814 = vadd.f32 %v3758, %v3810
        %s3815 = sld [smem:[#allocation3 + $0x44]]
        %v3816 = vstv %s3815
        %v3817 = vmul.f32 %v3816, %v3565
        %v3818 = vmul.f32 %v3816, %v3566
        %3821 = vrot.lane.b32.xlu0 %v3817, 113
        %v3822 = vpop.permute.xlu0 %3821
        %3823 = vrot.lane.b32.xlu0 %v3818, 113
        %v3824 = vpop.permute.xlu0 %3823
        %v3827 = vadd.f32 %v3771, %v3822
        %v3828 = vadd.f32 %v3772, %v3824
        %s3829 = sld [smem:[#allocation3 + $0xa6]]
        %v3830 = vstv %s3829
        %v3831 = vmul.f32 %v3830, %v3565
        %v3832 = vmul.f32 %v3830, %v3566
        %3835 = vrot.lane.b32.xlu0 %v3831, 113
        %v3836 = vpop.permute.xlu0 %3835
        %3837 = vrot.lane.b32.xlu0 %v3832, 113
        %v3838 = vpop.permute.xlu0 %3837
        %v3841 = vadd.f32 %v3785, %v3836
        %v3842 = vadd.f32 %v3786, %v3838
        %s3843 = sld [smem:[#allocation3 + $0x108]]
        %v3844 = vstv %s3843
        %v3845 = vmul.f32 %v3844, %v3565
        %v3846 = vmul.f32 %v3844, %v3566
        %3849 = vrot.lane.b32.xlu0 %v3845, 113
        %v3850 = vpop.permute.xlu0 %3849
        %3851 = vrot.lane.b32.xlu0 %v3846, 113
        %v3852 = vpop.permute.xlu0 %3851
        %v3855 = vadd.f32 %v3799, %v3850
        %v3856 = vadd.f32 %v3800, %v3852
        %s3857 = sld [smem:[#allocation3 + $0x16a]]
        %v3858 = vstv %s3857
        %v3859 = vmul.f32 %v3858, %v3565
        %v3860 = vmul.f32 %v3858, %v3566
        %3863 = vrot.lane.b32.xlu0 %v3859, 113
        %v3864 = vpop.permute.xlu0 %3863
        %3865 = vrot.lane.b32.xlu0 %v3860, 113
        %v3866 = vpop.permute.xlu0 %3865
        %v3869 = vadd.f32 %v3813, %v3864
        %v3870 = vadd.f32 %v3814, %v3866
        %s3871 = sld [smem:[#allocation3 + $0x45]]
        %v3872 = vstv %s3871
        %v3873 = vmul.f32 %v3872, %v3565
        %v3874 = vmul.f32 %v3872, %v3566
        %3877 = vrot.lane.b32.xlu0 %v3873, 110
        %v3878 = vpop.permute.xlu0 %3877
        %3879 = vrot.lane.b32.xlu0 %v3874, 110
        %v3880 = vpop.permute.xlu0 %3879
        %v3883 = vadd.f32 %v3827, %v3878
        %v3884 = vadd.f32 %v3828, %v3880
        %s3885 = sld [smem:[#allocation3 + $0xa7]]
        %v3886 = vstv %s3885
        %v3887 = vmul.f32 %v3886, %v3565
        %v3888 = vmul.f32 %v3886, %v3566
        %3891 = vrot.lane.b32.xlu0 %v3887, 110
        %v3892 = vpop.permute.xlu0 %3891
        %3893 = vrot.lane.b32.xlu0 %v3888, 110
        %v3894 = vpop.permute.xlu0 %3893
        %v3897 = vadd.f32 %v3841, %v3892
        %v3898 = vadd.f32 %v3842, %v3894
        %s3899 = sld [smem:[#allocation3 + $0x109]]
        %v3900 = vstv %s3899
        %v3901 = vmul.f32 %v3900, %v3565
        %v3902 = vmul.f32 %v3900, %v3566
        %3905 = vrot.lane.b32.xlu0 %v3901, 110
        %v3906 = vpop.permute.xlu0 %3905
        %3907 = vrot.lane.b32.xlu0 %v3902, 110
        %v3908 = vpop.permute.xlu0 %3907
        %v3911 = vadd.f32 %v3855, %v3906
        %v3912 = vadd.f32 %v3856, %v3908
        %s3913 = sld [smem:[#allocation3 + $0x16b]]
        %v3914 = vstv %s3913
        %v3915 = vmul.f32 %v3914, %v3565
        %v3916 = vmul.f32 %v3914, %v3566
        %3919 = vrot.lane.b32.xlu0 %v3915, 110
        %v3920 = vpop.permute.xlu0 %3919
        %3921 = vrot.lane.b32.xlu0 %v3916, 110
        %v3922 = vpop.permute.xlu0 %3921
        %v3925 = vadd.f32 %v3869, %v3920
        %v3926 = vadd.f32 %v3870, %v3922
        %v3927 = vld [vmem:[%s269 + $0x9] sm:$0xff]
        %v3928 = vld [vmem:[%s269 + $0x11] sm:$0xff]
        %s3929 = sld [smem:[#allocation3 + $0x46]]
        %v3930 = vstv %s3929
        %v3931 = vmul.f32 %v3930, %v3927
        %v3932 = vmul.f32 %v3930, %v3928
        %v3933 = vadd.f32 %v3883, %v3931
        %v3934 = vadd.f32 %v3884, %v3932
        %s3935 = sld [smem:[#allocation3 + $0xa8]]
        %v3936 = vstv %s3935
        %v3937 = vmul.f32 %v3936, %v3927
        %v3938 = vmul.f32 %v3936, %v3928
        %v3939 = vadd.f32 %v3897, %v3937
        %v3940 = vadd.f32 %v3898, %v3938
        %s3941 = sld [smem:[#allocation3 + $0x10a]]
        %v3942 = vstv %s3941
        %v3943 = vmul.f32 %v3942, %v3927
        %v3944 = vmul.f32 %v3942, %v3928
        %v3945 = vadd.f32 %v3911, %v3943
        %v3946 = vadd.f32 %v3912, %v3944
        %s3947 = sld [smem:[#allocation3 + $0x16c]]
        %v3948 = vstv %s3947
        %v3949 = vmul.f32 %v3948, %v3927
        %v3950 = vmul.f32 %v3948, %v3928
        %v3951 = vadd.f32 %v3925, %v3949
        %v3952 = vadd.f32 %v3926, %v3950
        %s3953 = sld [smem:[#allocation3 + $0x47]]
        %v3954 = vstv %s3953
        %v3955 = vmul.f32 %v3954, %v3927
        %v3956 = vmul.f32 %v3954, %v3928
        %3959 = vrot.lane.b32.xlu0 %v3955, 125
        %v3960 = vpop.permute.xlu0 %3959
        %3961 = vrot.lane.b32.xlu0 %v3956, 125
        %v3962 = vpop.permute.xlu0 %3961
        %v3965 = vadd.f32 %v3933, %v3960
        %v3966 = vadd.f32 %v3934, %v3962
        %s3967 = sld [smem:[#allocation3 + $0xa9]]
        %v3968 = vstv %s3967
        %v3969 = vmul.f32 %v3968, %v3927
        %v3970 = vmul.f32 %v3968, %v3928
        %3973 = vrot.lane.b32.xlu0 %v3969, 125
        %v3974 = vpop.permute.xlu0 %3973
        %3975 = vrot.lane.b32.xlu0 %v3970, 125
        %v3976 = vpop.permute.xlu0 %3975
        %v3979 = vadd.f32 %v3939, %v3974
        %v3980 = vadd.f32 %v3940, %v3976
        %s3981 = sld [smem:[#allocation3 + $0x10b]]
        %v3982 = vstv %s3981
        %v3983 = vmul.f32 %v3982, %v3927
        %v3984 = vmul.f32 %v3982, %v3928
        %3987 = vrot.lane.b32.xlu0 %v3983, 125
        %v3988 = vpop.permute.xlu0 %3987
        %3989 = vrot.lane.b32.xlu0 %v3984, 125
        %v3990 = vpop.permute.xlu0 %3989
        %v3993 = vadd.f32 %v3945, %v3988
        %v3994 = vadd.f32 %v3946, %v3990
        %s3995 = sld [smem:[#allocation3 + $0x16d]]
        %v3996 = vstv %s3995
        %v3997 = vmul.f32 %v3996, %v3927
        %v3998 = vmul.f32 %v3996, %v3928
        %4001 = vrot.lane.b32.xlu0 %v3997, 125
        %v4002 = vpop.permute.xlu0 %4001
        %4003 = vrot.lane.b32.xlu0 %v3998, 125
        %v4004 = vpop.permute.xlu0 %4003
        %v4007 = vadd.f32 %v3951, %v4002
        %v4008 = vadd.f32 %v3952, %v4004
        %s4009 = sld [smem:[#allocation3 + $0x48]]
        %v4010 = vstv %s4009
        %v4011 = vmul.f32 %v4010, %v3927
        %v4012 = vmul.f32 %v4010, %v3928
        %4015 = vrot.lane.b32.xlu0 %v4011, 122
        %v4016 = vpop.permute.xlu0 %4015
        %4017 = vrot.lane.b32.xlu0 %v4012, 122
        %v4018 = vpop.permute.xlu0 %4017
        %v4021 = vadd.f32 %v3965, %v4016
        %v4022 = vadd.f32 %v3966, %v4018
        %s4023 = sld [smem:[#allocation3 + $0xaa]]
        %v4024 = vstv %s4023
        %v4025 = vmul.f32 %v4024, %v3927
        %v4026 = vmul.f32 %v4024, %v3928
        %4029 = vrot.lane.b32.xlu0 %v4025, 122
        %v4030 = vpop.permute.xlu0 %4029
        %4031 = vrot.lane.b32.xlu0 %v4026, 122
        %v4032 = vpop.permute.xlu0 %4031
        %v4035 = vadd.f32 %v3979, %v4030
        %v4036 = vadd.f32 %v3980, %v4032
        %s4037 = sld [smem:[#allocation3 + $0x10c]]
        %v4038 = vstv %s4037
        %v4039 = vmul.f32 %v4038, %v3927
        %v4040 = vmul.f32 %v4038, %v3928
        %4043 = vrot.lane.b32.xlu0 %v4039, 122
        %v4044 = vpop.permute.xlu0 %4043
        %4045 = vrot.lane.b32.xlu0 %v4040, 122
        %v4046 = vpop.permute.xlu0 %4045
        %v4049 = vadd.f32 %v3993, %v4044
        %v4050 = vadd.f32 %v3994, %v4046
        %s4051 = sld [smem:[#allocation3 + $0x16e]]
        %v4052 = vstv %s4051
        %v4053 = vmul.f32 %v4052, %v3927
        %v4054 = vmul.f32 %v4052, %v3928
        %4057 = vrot.lane.b32.xlu0 %v4053, 122
        %v4058 = vpop.permute.xlu0 %4057
        %4059 = vrot.lane.b32.xlu0 %v4054, 122
        %v4060 = vpop.permute.xlu0 %4059
        %v4063 = vadd.f32 %v4007, %v4058
        %v4064 = vadd.f32 %v4008, %v4060
        %s4065 = sld [smem:[#allocation3 + $0x49]]
        %v4066 = vstv %s4065
        %v4067 = vmul.f32 %v4066, %v3927
        %v4068 = vmul.f32 %v4066, %v3928
        %4071 = vrot.lane.b32.xlu0 %v4067, 119
        %v4072 = vpop.permute.xlu0 %4071
        %4073 = vrot.lane.b32.xlu0 %v4068, 119
        %v4074 = vpop.permute.xlu0 %4073
        %v4077 = vadd.f32 %v4021, %v4072
        %v4078 = vadd.f32 %v4022, %v4074
        %s4079 = sld [smem:[#allocation3 + $0xab]]
        %v4080 = vstv %s4079
        %v4081 = vmul.f32 %v4080, %v3927
        %v4082 = vmul.f32 %v4080, %v3928
        %4085 = vrot.lane.b32.xlu0 %v4081, 119
        %v4086 = vpop.permute.xlu0 %4085
        %4087 = vrot.lane.b32.xlu0 %v4082, 119
        %v4088 = vpop.permute.xlu0 %4087
        %v4091 = vadd.f32 %v4035, %v4086
        %v4092 = vadd.f32 %v4036, %v4088
        %s4093 = sld [smem:[#allocation3 + $0x10d]]
        %v4094 = vstv %s4093
        %v4095 = vmul.f32 %v4094, %v3927
        %v4096 = vmul.f32 %v4094, %v3928
        %4099 = vrot.lane.b32.xlu0 %v4095, 119
        %v4100 = vpop.permute.xlu0 %4099
        %4101 = vrot.lane.b32.xlu0 %v4096, 119
        %v4102 = vpop.permute.xlu0 %4101
        %v4105 = vadd.f32 %v4049, %v4100
        %v4106 = vadd.f32 %v4050, %v4102
        %s4107 = sld [smem:[#allocation3 + $0x16f]]
        %v4108 = vstv %s4107
        %v4109 = vmul.f32 %v4108, %v3927
        %v4110 = vmul.f32 %v4108, %v3928
        %4113 = vrot.lane.b32.xlu0 %v4109, 119
        %v4114 = vpop.permute.xlu0 %4113
        %4115 = vrot.lane.b32.xlu0 %v4110, 119
        %v4116 = vpop.permute.xlu0 %4115
        %v4119 = vadd.f32 %v4063, %v4114
        %v4120 = vadd.f32 %v4064, %v4116
        %s4121 = sld [smem:[#allocation3 + $0x4a]]
        %v4122 = vstv %s4121
        %v4123 = vmul.f32 %v4122, %v3927
        %v4124 = vmul.f32 %v4122, %v3928
        %4127 = vrot.lane.b32.xlu0 %v4123, 116
        %v4128 = vpop.permute.xlu0 %4127
        %4129 = vrot.lane.b32.xlu0 %v4124, 116
        %v4130 = vpop.permute.xlu0 %4129
        %v4133 = vadd.f32 %v4077, %v4128
        %v4134 = vadd.f32 %v4078, %v4130
        %s4135 = sld [smem:[#allocation3 + $0xac]]
        %v4136 = vstv %s4135
        %v4137 = vmul.f32 %v4136, %v3927
        %v4138 = vmul.f32 %v4136, %v3928
        %4141 = vrot.lane.b32.xlu0 %v4137, 116
        %v4142 = vpop.permute.xlu0 %4141
        %4143 = vrot.lane.b32.xlu0 %v4138, 116
        %v4144 = vpop.permute.xlu0 %4143
        %v4147 = vadd.f32 %v4091, %v4142
        %v4148 = vadd.f32 %v4092, %v4144
        %s4149 = sld [smem:[#allocation3 + $0x10e]]
        %v4150 = vstv %s4149
        %v4151 = vmul.f32 %v4150, %v3927
        %v4152 = vmul.f32 %v4150, %v3928
        %4155 = vrot.lane.b32.xlu0 %v4151, 116
        %v4156 = vpop.permute.xlu0 %4155
        %4157 = vrot.lane.b32.xlu0 %v4152, 116
        %v4158 = vpop.permute.xlu0 %4157
        %v4161 = vadd.f32 %v4105, %v4156
        %v4162 = vadd.f32 %v4106, %v4158
        %s4163 = sld [smem:[#allocation3 + $0x170]]
        %v4164 = vstv %s4163
        %v4165 = vmul.f32 %v4164, %v3927
        %v4166 = vmul.f32 %v4164, %v3928
        %4169 = vrot.lane.b32.xlu0 %v4165, 116
        %v4170 = vpop.permute.xlu0 %4169
        %4171 = vrot.lane.b32.xlu0 %v4166, 116
        %v4172 = vpop.permute.xlu0 %4171
        %v4175 = vadd.f32 %v4119, %v4170
        %v4176 = vadd.f32 %v4120, %v4172
        %s4177 = sld [smem:[#allocation3 + $0x4b]]
        %v4178 = vstv %s4177
        %v4179 = vmul.f32 %v4178, %v3927
        %v4180 = vmul.f32 %v4178, %v3928
        %4183 = vrot.lane.b32.xlu0 %v4179, 113
        %v4184 = vpop.permute.xlu0 %4183
        %4185 = vrot.lane.b32.xlu0 %v4180, 113
        %v4186 = vpop.permute.xlu0 %4185
        %v4189 = vadd.f32 %v4133, %v4184
        %v4190 = vadd.f32 %v4134, %v4186
        %s4191 = sld [smem:[#allocation3 + $0xad]]
        %v4192 = vstv %s4191
        %v4193 = vmul.f32 %v4192, %v3927
        %v4194 = vmul.f32 %v4192, %v3928
        %4197 = vrot.lane.b32.xlu0 %v4193, 113
        %v4198 = vpop.permute.xlu0 %4197
        %4199 = vrot.lane.b32.xlu0 %v4194, 113
        %v4200 = vpop.permute.xlu0 %4199
        %v4203 = vadd.f32 %v4147, %v4198
        %v4204 = vadd.f32 %v4148, %v4200
        %s4205 = sld [smem:[#allocation3 + $0x10f]]
        %v4206 = vstv %s4205
        %v4207 = vmul.f32 %v4206, %v3927
        %v4208 = vmul.f32 %v4206, %v3928
        %4211 = vrot.lane.b32.xlu0 %v4207, 113
        %v4212 = vpop.permute.xlu0 %4211
        %4213 = vrot.lane.b32.xlu0 %v4208, 113
        %v4214 = vpop.permute.xlu0 %4213
        %v4217 = vadd.f32 %v4161, %v4212
        %v4218 = vadd.f32 %v4162, %v4214
        %s4219 = sld [smem:[#allocation3 + $0x171]]
        %v4220 = vstv %s4219
        %v4221 = vmul.f32 %v4220, %v3927
        %v4222 = vmul.f32 %v4220, %v3928
        %4225 = vrot.lane.b32.xlu0 %v4221, 113
        %v4226 = vpop.permute.xlu0 %4225
        %4227 = vrot.lane.b32.xlu0 %v4222, 113
        %v4228 = vpop.permute.xlu0 %4227
        %v4231 = vadd.f32 %v4175, %v4226
        %v4232 = vadd.f32 %v4176, %v4228
        %s4233 = sld [smem:[#allocation3 + $0x4c]]
        %v4234 = vstv %s4233
        %v4235 = vmul.f32 %v4234, %v3927
        %v4236 = vmul.f32 %v4234, %v3928
        %4239 = vrot.lane.b32.xlu0 %v4235, 110
        %v4240 = vpop.permute.xlu0 %4239
        %4241 = vrot.lane.b32.xlu0 %v4236, 110
        %v4242 = vpop.permute.xlu0 %4241
        %v4245 = vadd.f32 %v4189, %v4240
        %v4246 = vadd.f32 %v4190, %v4242
        %s4247 = sld [smem:[#allocation3 + $0xae]]
        %v4248 = vstv %s4247
        %v4249 = vmul.f32 %v4248, %v3927
        %v4250 = vmul.f32 %v4248, %v3928
        %4253 = vrot.lane.b32.xlu0 %v4249, 110
        %v4254 = vpop.permute.xlu0 %4253
        %4255 = vrot.lane.b32.xlu0 %v4250, 110
        %v4256 = vpop.permute.xlu0 %4255
        %v4259 = vadd.f32 %v4203, %v4254
        %v4260 = vadd.f32 %v4204, %v4256
        %s4261 = sld [smem:[#allocation3 + $0x110]]
        %v4262 = vstv %s4261
        %v4263 = vmul.f32 %v4262, %v3927
        %v4264 = vmul.f32 %v4262, %v3928
        %4267 = vrot.lane.b32.xlu0 %v4263, 110
        %v4268 = vpop.permute.xlu0 %4267
        %4269 = vrot.lane.b32.xlu0 %v4264, 110
        %v4270 = vpop.permute.xlu0 %4269
        %v4273 = vadd.f32 %v4217, %v4268
        %v4274 = vadd.f32 %v4218, %v4270
        %s4275 = sld [smem:[#allocation3 + $0x172]]
        %v4276 = vstv %s4275
        %v4277 = vmul.f32 %v4276, %v3927
        %v4278 = vmul.f32 %v4276, %v3928
        %4281 = vrot.lane.b32.xlu0 %v4277, 110
        %v4282 = vpop.permute.xlu0 %4281
        %4283 = vrot.lane.b32.xlu0 %v4278, 110
        %v4284 = vpop.permute.xlu0 %4283
        %v4287 = vadd.f32 %v4231, %v4282
        %v4288 = vadd.f32 %v4232, %v4284
        %v4289 = vld [vmem:[%s269 + $0xc] sm:$0xff]
        %v4290 = vld [vmem:[%s269 + $0x14] sm:$0xff]
        %s4291 = sld [smem:[#allocation3 + $0x4d]]
        %v4292 = vstv %s4291
        %v4293 = vmul.f32 %v4292, %v4289
        %v4294 = vmul.f32 %v4292, %v4290
        %v4295 = vadd.f32 %v4245, %v4293
        %v4296 = vadd.f32 %v4246, %v4294
        %s4297 = sld [smem:[#allocation3 + $0xaf]]
        %v4298 = vstv %s4297
        %v4299 = vmul.f32 %v4298, %v4289
        %v4300 = vmul.f32 %v4298, %v4290
        %v4301 = vadd.f32 %v4259, %v4299
        %v4302 = vadd.f32 %v4260, %v4300
        %s4303 = sld [smem:[#allocation3 + $0x111]]
        %v4304 = vstv %s4303
        %v4305 = vmul.f32 %v4304, %v4289
        %v4306 = vmul.f32 %v4304, %v4290
        %v4307 = vadd.f32 %v4273, %v4305
        %v4308 = vadd.f32 %v4274, %v4306
        %s4309 = sld [smem:[#allocation3 + $0x173]]
        %v4310 = vstv %s4309
        %v4311 = vmul.f32 %v4310, %v4289
        %v4312 = vmul.f32 %v4310, %v4290
        %v4313 = vadd.f32 %v4287, %v4311
        %v4314 = vadd.f32 %v4288, %v4312
        %s4315 = sld [smem:[#allocation3 + $0x4e]]
        %v4316 = vstv %s4315
        %v4317 = vmul.f32 %v4316, %v4289
        %v4318 = vmul.f32 %v4316, %v4290
        %4321 = vrot.lane.b32.xlu0 %v4317, 125
        %v4322 = vpop.permute.xlu0 %4321
        %4323 = vrot.lane.b32.xlu0 %v4318, 125
        %v4324 = vpop.permute.xlu0 %4323
        %v4327 = vadd.f32 %v4295, %v4322
        %v4328 = vadd.f32 %v4296, %v4324
        %s4329 = sld [smem:[#allocation3 + $0xb0]]
        %v4330 = vstv %s4329
        %v4331 = vmul.f32 %v4330, %v4289
        %v4332 = vmul.f32 %v4330, %v4290
        %4335 = vrot.lane.b32.xlu0 %v4331, 125
        %v4336 = vpop.permute.xlu0 %4335
        %4337 = vrot.lane.b32.xlu0 %v4332, 125
        %v4338 = vpop.permute.xlu0 %4337
        %v4341 = vadd.f32 %v4301, %v4336
        %v4342 = vadd.f32 %v4302, %v4338
        %s4343 = sld [smem:[#allocation3 + $0x112]]
        %v4344 = vstv %s4343
        %v4345 = vmul.f32 %v4344, %v4289
        %v4346 = vmul.f32 %v4344, %v4290
        %4349 = vrot.lane.b32.xlu0 %v4345, 125
        %v4350 = vpop.permute.xlu0 %4349
        %4351 = vrot.lane.b32.xlu0 %v4346, 125
        %v4352 = vpop.permute.xlu0 %4351
        %v4355 = vadd.f32 %v4307, %v4350
        %v4356 = vadd.f32 %v4308, %v4352
        %s4357 = sld [smem:[#allocation3 + $0x174]]
        %v4358 = vstv %s4357
        %v4359 = vmul.f32 %v4358, %v4289
        %v4360 = vmul.f32 %v4358, %v4290
        %4363 = vrot.lane.b32.xlu0 %v4359, 125
        %v4364 = vpop.permute.xlu0 %4363
        %4365 = vrot.lane.b32.xlu0 %v4360, 125
        %v4366 = vpop.permute.xlu0 %4365
        %v4369 = vadd.f32 %v4313, %v4364
        %v4370 = vadd.f32 %v4314, %v4366
        %s4371 = sld [smem:[#allocation3 + $0x4f]]
        %v4372 = vstv %s4371
        %v4373 = vmul.f32 %v4372, %v4289
        %v4374 = vmul.f32 %v4372, %v4290
        %4377 = vrot.lane.b32.xlu0 %v4373, 122
        %v4378 = vpop.permute.xlu0 %4377
        %4379 = vrot.lane.b32.xlu0 %v4374, 122
        %v4380 = vpop.permute.xlu0 %4379
        %v4383 = vadd.f32 %v4327, %v4378
        %v4384 = vadd.f32 %v4328, %v4380
        %s4385 = sld [smem:[#allocation3 + $0xb1]]
        %v4386 = vstv %s4385
        %v4387 = vmul.f32 %v4386, %v4289
        %v4388 = vmul.f32 %v4386, %v4290
        %4391 = vrot.lane.b32.xlu0 %v4387, 122
        %v4392 = vpop.permute.xlu0 %4391
        %4393 = vrot.lane.b32.xlu0 %v4388, 122
        %v4394 = vpop.permute.xlu0 %4393
        %v4397 = vadd.f32 %v4341, %v4392
        %v4398 = vadd.f32 %v4342, %v4394
        %s4399 = sld [smem:[#allocation3 + $0x113]]
        %v4400 = vstv %s4399
        %v4401 = vmul.f32 %v4400, %v4289
        %v4402 = vmul.f32 %v4400, %v4290
        %4405 = vrot.lane.b32.xlu0 %v4401, 122
        %v4406 = vpop.permute.xlu0 %4405
        %4407 = vrot.lane.b32.xlu0 %v4402, 122
        %v4408 = vpop.permute.xlu0 %4407
        %v4411 = vadd.f32 %v4355, %v4406
        %v4412 = vadd.f32 %v4356, %v4408
        %s4413 = sld [smem:[#allocation3 + $0x175]]
        %v4414 = vstv %s4413
        %v4415 = vmul.f32 %v4414, %v4289
        %v4416 = vmul.f32 %v4414, %v4290
        %4419 = vrot.lane.b32.xlu0 %v4415, 122
        %v4420 = vpop.permute.xlu0 %4419
        %4421 = vrot.lane.b32.xlu0 %v4416, 122
        %v4422 = vpop.permute.xlu0 %4421
        %v4425 = vadd.f32 %v4369, %v4420
        %v4426 = vadd.f32 %v4370, %v4422
        %s4427 = sld [smem:[#allocation3 + $0x50]]
        %v4428 = vstv %s4427
        %v4429 = vmul.f32 %v4428, %v4289
        %v4430 = vmul.f32 %v4428, %v4290
        %4433 = vrot.lane.b32.xlu0 %v4429, 119
        %v4434 = vpop.permute.xlu0 %4433
        %4435 = vrot.lane.b32.xlu0 %v4430, 119
        %v4436 = vpop.permute.xlu0 %4435
        %v4439 = vadd.f32 %v4383, %v4434
        %v4440 = vadd.f32 %v4384, %v4436
        %s4441 = sld [smem:[#allocation3 + $0xb2]]
        %v4442 = vstv %s4441
        %v4443 = vmul.f32 %v4442, %v4289
        %v4444 = vmul.f32 %v4442, %v4290
        %4447 = vrot.lane.b32.xlu0 %v4443, 119
        %v4448 = vpop.permute.xlu0 %4447
        %4449 = vrot.lane.b32.xlu0 %v4444, 119
        %v4450 = vpop.permute.xlu0 %4449
        %v4453 = vadd.f32 %v4397, %v4448
        %v4454 = vadd.f32 %v4398, %v4450
        %s4455 = sld [smem:[#allocation3 + $0x114]]
        %v4456 = vstv %s4455
        %v4457 = vmul.f32 %v4456, %v4289
        %v4458 = vmul.f32 %v4456, %v4290
        %4461 = vrot.lane.b32.xlu0 %v4457, 119
        %v4462 = vpop.permute.xlu0 %4461
        %4463 = vrot.lane.b32.xlu0 %v4458, 119
        %v4464 = vpop.permute.xlu0 %4463
        %v4467 = vadd.f32 %v4411, %v4462
        %v4468 = vadd.f32 %v4412, %v4464
        %s4469 = sld [smem:[#allocation3 + $0x176]]
        %v4470 = vstv %s4469
        %v4471 = vmul.f32 %v4470, %v4289
        %v4472 = vmul.f32 %v4470, %v4290
        %4475 = vrot.lane.b32.xlu0 %v4471, 119
        %v4476 = vpop.permute.xlu0 %4475
        %4477 = vrot.lane.b32.xlu0 %v4472, 119
        %v4478 = vpop.permute.xlu0 %4477
        %v4481 = vadd.f32 %v4425, %v4476
        %v4482 = vadd.f32 %v4426, %v4478
        %s4483 = sld [smem:[#allocation3 + $0x51]]
        %v4484 = vstv %s4483
        %v4485 = vmul.f32 %v4484, %v4289
        %v4486 = vmul.f32 %v4484, %v4290
        %4489 = vrot.lane.b32.xlu0 %v4485, 116
        %v4490 = vpop.permute.xlu0 %4489
        %4491 = vrot.lane.b32.xlu0 %v4486, 116
        %v4492 = vpop.permute.xlu0 %4491
        %v4495 = vadd.f32 %v4439, %v4490
        %v4496 = vadd.f32 %v4440, %v4492
        %s4497 = sld [smem:[#allocation3 + $0xb3]]
        %v4498 = vstv %s4497
        %v4499 = vmul.f32 %v4498, %v4289
        %v4500 = vmul.f32 %v4498, %v4290
        %4503 = vrot.lane.b32.xlu0 %v4499, 116
        %v4504 = vpop.permute.xlu0 %4503
        %4505 = vrot.lane.b32.xlu0 %v4500, 116
        %v4506 = vpop.permute.xlu0 %4505
        %v4509 = vadd.f32 %v4453, %v4504
        %v4510 = vadd.f32 %v4454, %v4506
        %s4511 = sld [smem:[#allocation3 + $0x115]]
        %v4512 = vstv %s4511
        %v4513 = vmul.f32 %v4512, %v4289
        %v4514 = vmul.f32 %v4512, %v4290
        %4517 = vrot.lane.b32.xlu0 %v4513, 116
        %v4518 = vpop.permute.xlu0 %4517
        %4519 = vrot.lane.b32.xlu0 %v4514, 116
        %v4520 = vpop.permute.xlu0 %4519
        %v4523 = vadd.f32 %v4467, %v4518
        %v4524 = vadd.f32 %v4468, %v4520
        %s4525 = sld [smem:[#allocation3 + $0x177]]
        %v4526 = vstv %s4525
        %v4527 = vmul.f32 %v4526, %v4289
        %v4528 = vmul.f32 %v4526, %v4290
        %4531 = vrot.lane.b32.xlu0 %v4527, 116
        %v4532 = vpop.permute.xlu0 %4531
        %4533 = vrot.lane.b32.xlu0 %v4528, 116
        %v4534 = vpop.permute.xlu0 %4533
        %v4537 = vadd.f32 %v4481, %v4532
        %v4538 = vadd.f32 %v4482, %v4534
        %s4539 = sld [smem:[#allocation3 + $0x52]]
        %v4540 = vstv %s4539
        %v4541 = vmul.f32 %v4540, %v4289
        %v4542 = vmul.f32 %v4540, %v4290
        %4545 = vrot.lane.b32.xlu0 %v4541, 113
        %v4546 = vpop.permute.xlu0 %4545
        %4547 = vrot.lane.b32.xlu0 %v4542, 113
        %v4548 = vpop.permute.xlu0 %4547
        %v4551 = vadd.f32 %v4495, %v4546
        %v4552 = vadd.f32 %v4496, %v4548
        %s4553 = sld [smem:[#allocation3 + $0xb4]]
        %v4554 = vstv %s4553
        %v4555 = vmul.f32 %v4554, %v4289
        %v4556 = vmul.f32 %v4554, %v4290
        %4559 = vrot.lane.b32.xlu0 %v4555, 113
        %v4560 = vpop.permute.xlu0 %4559
        %4561 = vrot.lane.b32.xlu0 %v4556, 113
        %v4562 = vpop.permute.xlu0 %4561
        %v4565 = vadd.f32 %v4509, %v4560
        %v4566 = vadd.f32 %v4510, %v4562
        %s4567 = sld [smem:[#allocation3 + $0x116]]
        %v4568 = vstv %s4567
        %v4569 = vmul.f32 %v4568, %v4289
        %v4570 = vmul.f32 %v4568, %v4290
        %4573 = vrot.lane.b32.xlu0 %v4569, 113
        %v4574 = vpop.permute.xlu0 %4573
        %4575 = vrot.lane.b32.xlu0 %v4570, 113
        %v4576 = vpop.permute.xlu0 %4575
        %v4579 = vadd.f32 %v4523, %v4574
        %v4580 = vadd.f32 %v4524, %v4576
        %s4581 = sld [smem:[#allocation3 + $0x178]]
        %v4582 = vstv %s4581
        %v4583 = vmul.f32 %v4582, %v4289
        %v4584 = vmul.f32 %v4582, %v4290
        %4587 = vrot.lane.b32.xlu0 %v4583, 113
        %v4588 = vpop.permute.xlu0 %4587
        %4589 = vrot.lane.b32.xlu0 %v4584, 113
        %v4590 = vpop.permute.xlu0 %4589
        %v4593 = vadd.f32 %v4537, %v4588
        %v4594 = vadd.f32 %v4538, %v4590
        %s4595 = sld [smem:[#allocation3 + $0x53]]
        %v4596 = vstv %s4595
        %v4597 = vmul.f32 %v4596, %v4289
        %v4598 = vmul.f32 %v4596, %v4290
        %4601 = vrot.lane.b32.xlu0 %v4597, 110
        %v4602 = vpop.permute.xlu0 %4601
        %4603 = vrot.lane.b32.xlu0 %v4598, 110
        %v4604 = vpop.permute.xlu0 %4603
        %v4607 = vadd.f32 %v4551, %v4602
        %v4608 = vadd.f32 %v4552, %v4604
        %s4609 = sld [smem:[#allocation3 + $0xb5]]
        %v4610 = vstv %s4609
        %v4611 = vmul.f32 %v4610, %v4289
        %v4612 = vmul.f32 %v4610, %v4290
        %4615 = vrot.lane.b32.xlu0 %v4611, 110
        %v4616 = vpop.permute.xlu0 %4615
        %4617 = vrot.lane.b32.xlu0 %v4612, 110
        %v4618 = vpop.permute.xlu0 %4617
        %v4621 = vadd.f32 %v4565, %v4616
        %v4622 = vadd.f32 %v4566, %v4618
        %s4623 = sld [smem:[#allocation3 + $0x117]]
        %v4624 = vstv %s4623
        %v4625 = vmul.f32 %v4624, %v4289
        %v4626 = vmul.f32 %v4624, %v4290
        %4629 = vrot.lane.b32.xlu0 %v4625, 110
        %v4630 = vpop.permute.xlu0 %4629
        %4631 = vrot.lane.b32.xlu0 %v4626, 110
        %v4632 = vpop.permute.xlu0 %4631
        %v4635 = vadd.f32 %v4579, %v4630
        %v4636 = vadd.f32 %v4580, %v4632
        %s4637 = sld [smem:[#allocation3 + $0x179]]
        %v4638 = vstv %s4637
        %v4639 = vmul.f32 %v4638, %v4289
        %v4640 = vmul.f32 %v4638, %v4290
        %4643 = vrot.lane.b32.xlu0 %v4639, 110
        %v4644 = vpop.permute.xlu0 %4643
        %4645 = vrot.lane.b32.xlu0 %v4640, 110
        %v4646 = vpop.permute.xlu0 %4645
        %v4649 = vadd.f32 %v4593, %v4644
        %v4650 = vadd.f32 %v4594, %v4646
        %v4651 = vld [vmem:[%s269 + $0xf] sm:$0xff]
        %v4652 = vld [vmem:[%s269 + $0x17] sm:$0xff]
        %s4653 = sld [smem:[#allocation3 + $0x54]]
        %v4654 = vstv %s4653
        %v4655 = vmul.f32 %v4654, %v4651
        %v4656 = vmul.f32 %v4654, %v4652
        %v4657 = vadd.f32 %v4607, %v4655
        %v4658 = vadd.f32 %v4608, %v4656
        %s4659 = sld [smem:[#allocation3 + $0xb6]]
        %v4660 = vstv %s4659
        %v4661 = vmul.f32 %v4660, %v4651
        %v4662 = vmul.f32 %v4660, %v4652
        %v4663 = vadd.f32 %v4621, %v4661
        %v4664 = vadd.f32 %v4622, %v4662
        %s4665 = sld [smem:[#allocation3 + $0x118]]
        %v4666 = vstv %s4665
        %v4667 = vmul.f32 %v4666, %v4651
        %v4668 = vmul.f32 %v4666, %v4652
        %v4669 = vadd.f32 %v4635, %v4667
        %v4670 = vadd.f32 %v4636, %v4668
        %s4671 = sld [smem:[#allocation3 + $0x17a]]
        %v4672 = vstv %s4671
        %v4673 = vmul.f32 %v4672, %v4651
        %v4674 = vmul.f32 %v4672, %v4652
        %v4675 = vadd.f32 %v4649, %v4673
        %v4676 = vadd.f32 %v4650, %v4674
        %s4677 = sld [smem:[#allocation3 + $0x55]]
        %v4678 = vstv %s4677
        %v4679 = vmul.f32 %v4678, %v4651
        %v4680 = vmul.f32 %v4678, %v4652
        %4683 = vrot.lane.b32.xlu0 %v4679, 125
        %v4684 = vpop.permute.xlu0 %4683
        %4685 = vrot.lane.b32.xlu0 %v4680, 125
        %v4686 = vpop.permute.xlu0 %4685
        %v4689 = vadd.f32 %v4657, %v4684
        %v4690 = vadd.f32 %v4658, %v4686
        %s4691 = sld [smem:[#allocation3 + $0xb7]]
        %v4692 = vstv %s4691
        %v4693 = vmul.f32 %v4692, %v4651
        %v4694 = vmul.f32 %v4692, %v4652
        %4697 = vrot.lane.b32.xlu0 %v4693, 125
        %v4698 = vpop.permute.xlu0 %4697
        %4699 = vrot.lane.b32.xlu0 %v4694, 125
        %v4700 = vpop.permute.xlu0 %4699
        %v4703 = vadd.f32 %v4663, %v4698
        %v4704 = vadd.f32 %v4664, %v4700
        %s4705 = sld [smem:[#allocation3 + $0x119]]
        %v4706 = vstv %s4705
        %v4707 = vmul.f32 %v4706, %v4651
        %v4708 = vmul.f32 %v4706, %v4652
        %4711 = vrot.lane.b32.xlu0 %v4707, 125
        %v4712 = vpop.permute.xlu0 %4711
        %4713 = vrot.lane.b32.xlu0 %v4708, 125
        %v4714 = vpop.permute.xlu0 %4713
        %v4717 = vadd.f32 %v4669, %v4712
        %v4718 = vadd.f32 %v4670, %v4714
        %s4719 = sld [smem:[#allocation3 + $0x17b]]
        %v4720 = vstv %s4719
        %v4721 = vmul.f32 %v4720, %v4651
        %v4722 = vmul.f32 %v4720, %v4652
        %4725 = vrot.lane.b32.xlu0 %v4721, 125
        %v4726 = vpop.permute.xlu0 %4725
        %4727 = vrot.lane.b32.xlu0 %v4722, 125
        %v4728 = vpop.permute.xlu0 %4727
        %v4731 = vadd.f32 %v4675, %v4726
        %v4732 = vadd.f32 %v4676, %v4728
        %s4733 = sld [smem:[#allocation3 + $0x56]]
        %v4734 = vstv %s4733
        %v4735 = vmul.f32 %v4734, %v4651
        %v4736 = vmul.f32 %v4734, %v4652
        %4739 = vrot.lane.b32.xlu0 %v4735, 122
        %v4740 = vpop.permute.xlu0 %4739
        %4741 = vrot.lane.b32.xlu0 %v4736, 122
        %v4742 = vpop.permute.xlu0 %4741
        %v4745 = vadd.f32 %v4689, %v4740
        %v4746 = vadd.f32 %v4690, %v4742
        %s4747 = sld [smem:[#allocation3 + $0xb8]]
        %v4748 = vstv %s4747
        %v4749 = vmul.f32 %v4748, %v4651
        %v4750 = vmul.f32 %v4748, %v4652
        %4753 = vrot.lane.b32.xlu0 %v4749, 122
        %v4754 = vpop.permute.xlu0 %4753
        %4755 = vrot.lane.b32.xlu0 %v4750, 122
        %v4756 = vpop.permute.xlu0 %4755
        %v4759 = vadd.f32 %v4703, %v4754
        %v4760 = vadd.f32 %v4704, %v4756
        %s4761 = sld [smem:[#allocation3 + $0x11a]]
        %v4762 = vstv %s4761
        %v4763 = vmul.f32 %v4762, %v4651
        %v4764 = vmul.f32 %v4762, %v4652
        %4767 = vrot.lane.b32.xlu0 %v4763, 122
        %v4768 = vpop.permute.xlu0 %4767
        %4769 = vrot.lane.b32.xlu0 %v4764, 122
        %v4770 = vpop.permute.xlu0 %4769
        %v4773 = vadd.f32 %v4717, %v4768
        %v4774 = vadd.f32 %v4718, %v4770
        %s4775 = sld [smem:[#allocation3 + $0x17c]]
        %v4776 = vstv %s4775
        %v4777 = vmul.f32 %v4776, %v4651
        %v4778 = vmul.f32 %v4776, %v4652
        %4781 = vrot.lane.b32.xlu0 %v4777, 122
        %v4782 = vpop.permute.xlu0 %4781
        %4783 = vrot.lane.b32.xlu0 %v4778, 122
        %v4784 = vpop.permute.xlu0 %4783
        %v4787 = vadd.f32 %v4731, %v4782
        %v4788 = vadd.f32 %v4732, %v4784
        %s4789 = sld [smem:[#allocation3 + $0x57]]
        %v4790 = vstv %s4789
        %v4791 = vmul.f32 %v4790, %v4651
        %v4792 = vmul.f32 %v4790, %v4652
        %4795 = vrot.lane.b32.xlu0 %v4791, 119
        %v4796 = vpop.permute.xlu0 %4795
        %4797 = vrot.lane.b32.xlu0 %v4792, 119
        %v4798 = vpop.permute.xlu0 %4797
        %v4801 = vadd.f32 %v4745, %v4796
        %v4802 = vadd.f32 %v4746, %v4798
        %s4803 = sld [smem:[#allocation3 + $0xb9]]
        %v4804 = vstv %s4803
        %v4805 = vmul.f32 %v4804, %v4651
        %v4806 = vmul.f32 %v4804, %v4652
        %4809 = vrot.lane.b32.xlu0 %v4805, 119
        %v4810 = vpop.permute.xlu0 %4809
        %4811 = vrot.lane.b32.xlu0 %v4806, 119
        %v4812 = vpop.permute.xlu0 %4811
        %v4815 = vadd.f32 %v4759, %v4810
        %v4816 = vadd.f32 %v4760, %v4812
        %s4817 = sld [smem:[#allocation3 + $0x11b]]
        %v4818 = vstv %s4817
        %v4819 = vmul.f32 %v4818, %v4651
        %v4820 = vmul.f32 %v4818, %v4652
        %4823 = vrot.lane.b32.xlu0 %v4819, 119
        %v4824 = vpop.permute.xlu0 %4823
        %4825 = vrot.lane.b32.xlu0 %v4820, 119
        %v4826 = vpop.permute.xlu0 %4825
        %v4829 = vadd.f32 %v4773, %v4824
        %v4830 = vadd.f32 %v4774, %v4826
        %s4831 = sld [smem:[#allocation3 + $0x17d]]
        %v4832 = vstv %s4831
        %v4833 = vmul.f32 %v4832, %v4651
        %v4834 = vmul.f32 %v4832, %v4652
        %4837 = vrot.lane.b32.xlu0 %v4833, 119
        %v4838 = vpop.permute.xlu0 %4837
        %4839 = vrot.lane.b32.xlu0 %v4834, 119
        %v4840 = vpop.permute.xlu0 %4839
        %v4843 = vadd.f32 %v4787, %v4838
        %v4844 = vadd.f32 %v4788, %v4840
        %s4845 = sld [smem:[#allocation3 + $0x58]]
        %v4846 = vstv %s4845
        %v4847 = vmul.f32 %v4846, %v4651
        %v4848 = vmul.f32 %v4846, %v4652
        %4851 = vrot.lane.b32.xlu0 %v4847, 116
        %v4852 = vpop.permute.xlu0 %4851
        %4853 = vrot.lane.b32.xlu0 %v4848, 116
        %v4854 = vpop.permute.xlu0 %4853
        %v4857 = vadd.f32 %v4801, %v4852
        %v4858 = vadd.f32 %v4802, %v4854
        %s4859 = sld [smem:[#allocation3 + $0xba]]
        %v4860 = vstv %s4859
        %v4861 = vmul.f32 %v4860, %v4651
        %v4862 = vmul.f32 %v4860, %v4652
        %4865 = vrot.lane.b32.xlu0 %v4861, 116
        %v4866 = vpop.permute.xlu0 %4865
        %4867 = vrot.lane.b32.xlu0 %v4862, 116
        %v4868 = vpop.permute.xlu0 %4867
        %v4871 = vadd.f32 %v4815, %v4866
        %v4872 = vadd.f32 %v4816, %v4868
        %s4873 = sld [smem:[#allocation3 + $0x11c]]
        %v4874 = vstv %s4873
        %v4875 = vmul.f32 %v4874, %v4651
        %v4876 = vmul.f32 %v4874, %v4652
        %4879 = vrot.lane.b32.xlu0 %v4875, 116
        %v4880 = vpop.permute.xlu0 %4879
        %4881 = vrot.lane.b32.xlu0 %v4876, 116
        %v4882 = vpop.permute.xlu0 %4881
        %v4885 = vadd.f32 %v4829, %v4880
        %v4886 = vadd.f32 %v4830, %v4882
        %s4887 = sld [smem:[#allocation3 + $0x17e]]
        %v4888 = vstv %s4887
        %v4889 = vmul.f32 %v4888, %v4651
        %v4890 = vmul.f32 %v4888, %v4652
        %4893 = vrot.lane.b32.xlu0 %v4889, 116
        %v4894 = vpop.permute.xlu0 %4893
        %4895 = vrot.lane.b32.xlu0 %v4890, 116
        %v4896 = vpop.permute.xlu0 %4895
        %v4899 = vadd.f32 %v4843, %v4894
        %v4900 = vadd.f32 %v4844, %v4896
        %s4901 = sld [smem:[#allocation3 + $0x59]]
        %v4902 = vstv %s4901
        %v4903 = vmul.f32 %v4902, %v4651
        %v4904 = vmul.f32 %v4902, %v4652
        %4907 = vrot.lane.b32.xlu0 %v4903, 113
        %v4908 = vpop.permute.xlu0 %4907
        %4909 = vrot.lane.b32.xlu0 %v4904, 113
        %v4910 = vpop.permute.xlu0 %4909
        %v4913 = vadd.f32 %v4857, %v4908
        %v4914 = vadd.f32 %v4858, %v4910
        %s4915 = sld [smem:[#allocation3 + $0xbb]]
        %v4916 = vstv %s4915
        %v4917 = vmul.f32 %v4916, %v4651
        %v4918 = vmul.f32 %v4916, %v4652
        %4921 = vrot.lane.b32.xlu0 %v4917, 113
        %v4922 = vpop.permute.xlu0 %4921
        %4923 = vrot.lane.b32.xlu0 %v4918, 113
        %v4924 = vpop.permute.xlu0 %4923
        %v4927 = vadd.f32 %v4871, %v4922
        %v4928 = vadd.f32 %v4872, %v4924
        %s4929 = sld [smem:[#allocation3 + $0x11d]]
        %v4930 = vstv %s4929
        %v4931 = vmul.f32 %v4930, %v4651
        %v4932 = vmul.f32 %v4930, %v4652
        %4935 = vrot.lane.b32.xlu0 %v4931, 113
        %v4936 = vpop.permute.xlu0 %4935
        %4937 = vrot.lane.b32.xlu0 %v4932, 113
        %v4938 = vpop.permute.xlu0 %4937
        %v4941 = vadd.f32 %v4885, %v4936
        %v4942 = vadd.f32 %v4886, %v4938
        %s4943 = sld [smem:[#allocation3 + $0x17f]]
        %v4944 = vstv %s4943
        %v4945 = vmul.f32 %v4944, %v4651
        %v4946 = vmul.f32 %v4944, %v4652
        %4949 = vrot.lane.b32.xlu0 %v4945, 113
        %v4950 = vpop.permute.xlu0 %4949
        %4951 = vrot.lane.b32.xlu0 %v4946, 113
        %v4952 = vpop.permute.xlu0 %4951
        %v4955 = vadd.f32 %v4899, %v4950
        %v4956 = vadd.f32 %v4900, %v4952
        %s4957 = sld [smem:[#allocation3 + $0x5a]]
        %v4958 = vstv %s4957
        %v4959 = vmul.f32 %v4958, %v4651
        %v4960 = vmul.f32 %v4958, %v4652
        %4963 = vrot.lane.b32.xlu0 %v4959, 110
        %v4964 = vpop.permute.xlu0 %4963
        %4965 = vrot.lane.b32.xlu0 %v4960, 110
        %v4966 = vpop.permute.xlu0 %4965
        %v4969 = vadd.f32 %v4913, %v4964
        %v4970 = vadd.f32 %v4914, %v4966
        %s4971 = sld [smem:[#allocation3 + $0xbc]]
        %v4972 = vstv %s4971
        %v4973 = vmul.f32 %v4972, %v4651
        %v4974 = vmul.f32 %v4972, %v4652
        %4977 = vrot.lane.b32.xlu0 %v4973, 110
        %v4978 = vpop.permute.xlu0 %4977
        %4979 = vrot.lane.b32.xlu0 %v4974, 110
        %v4980 = vpop.permute.xlu0 %4979
        %v4983 = vadd.f32 %v4927, %v4978
        %v4984 = vadd.f32 %v4928, %v4980
        %s4985 = sld [smem:[#allocation3 + $0x11e]]
        %v4986 = vstv %s4985
        %v4987 = vmul.f32 %v4986, %v4651
        %v4988 = vmul.f32 %v4986, %v4652
        %4991 = vrot.lane.b32.xlu0 %v4987, 110
        %v4992 = vpop.permute.xlu0 %4991
        %4993 = vrot.lane.b32.xlu0 %v4988, 110
        %v4994 = vpop.permute.xlu0 %4993
        %v4997 = vadd.f32 %v4941, %v4992
        %v4998 = vadd.f32 %v4942, %v4994
        %s4999 = sld [smem:[#allocation3 + $0x180]]
        %v5000 = vstv %s4999
        %v5001 = vmul.f32 %v5000, %v4651
        %v5002 = vmul.f32 %v5000, %v4652
        %5005 = vrot.lane.b32.xlu0 %v5001, 110
        %v5006 = vpop.permute.xlu0 %5005
        %5007 = vrot.lane.b32.xlu0 %v5002, 110
        %v5008 = vpop.permute.xlu0 %5007
        %v5011 = vadd.f32 %v4955, %v5006
        %v5012 = vadd.f32 %v4956, %v5008
        %v5013 = vld [vmem:[%s269 + $0x12] sm:$0xff]
        %v5014 = vld [vmem:[%s269 + $0x1a] sm:$0xff]
        %s5015 = sld [smem:[#allocation3 + $0x5b]]
        %v5016 = vstv %s5015
        %v5017 = vmul.f32 %v5016, %v5013
        %v5018 = vmul.f32 %v5016, %v5014
        %v5019 = vadd.f32 %v4969, %v5017
        %v5020 = vadd.f32 %v4970, %v5018
        %s5021 = sld [smem:[#allocation3 + $0xbd]]
        %v5022 = vstv %s5021
        %v5023 = vmul.f32 %v5022, %v5013
        %v5024 = vmul.f32 %v5022, %v5014
        %v5025 = vadd.f32 %v4983, %v5023
        %v5026 = vadd.f32 %v4984, %v5024
        %s5027 = sld [smem:[#allocation3 + $0x11f]]
        %v5028 = vstv %s5027
        %v5029 = vmul.f32 %v5028, %v5013
        %v5030 = vmul.f32 %v5028, %v5014
        %v5031 = vadd.f32 %v4997, %v5029
        %v5032 = vadd.f32 %v4998, %v5030
        %s5033 = sld [smem:[#allocation3 + $0x181]]
        %v5034 = vstv %s5033
        %v5035 = vmul.f32 %v5034, %v5013
        %v5036 = vmul.f32 %v5034, %v5014
        %v5037 = vadd.f32 %v5011, %v5035
        %v5038 = vadd.f32 %v5012, %v5036
        %s5039 = sld [smem:[#allocation3 + $0x5c]]
        %v5040 = vstv %s5039
        %v5041 = vmul.f32 %v5040, %v5013
        %v5042 = vmul.f32 %v5040, %v5014
        %5045 = vrot.lane.b32.xlu0 %v5041, 125
        %v5046 = vpop.permute.xlu0 %5045
        %5047 = vrot.lane.b32.xlu0 %v5042, 125
        %v5048 = vpop.permute.xlu0 %5047
        %v5051 = vadd.f32 %v5019, %v5046
        %v5052 = vadd.f32 %v5020, %v5048
        %s5053 = sld [smem:[#allocation3 + $0xbe]]
        %v5054 = vstv %s5053
        %v5055 = vmul.f32 %v5054, %v5013
        %v5056 = vmul.f32 %v5054, %v5014
        %5059 = vrot.lane.b32.xlu0 %v5055, 125
        %v5060 = vpop.permute.xlu0 %5059
        %5061 = vrot.lane.b32.xlu0 %v5056, 125
        %v5062 = vpop.permute.xlu0 %5061
        %v5065 = vadd.f32 %v5025, %v5060
        %v5066 = vadd.f32 %v5026, %v5062
        %s5067 = sld [smem:[#allocation3 + $0x120]]
        %v5068 = vstv %s5067
        %v5069 = vmul.f32 %v5068, %v5013
        %v5070 = vmul.f32 %v5068, %v5014
        %5073 = vrot.lane.b32.xlu0 %v5069, 125
        %v5074 = vpop.permute.xlu0 %5073
        %5075 = vrot.lane.b32.xlu0 %v5070, 125
        %v5076 = vpop.permute.xlu0 %5075
        %v5079 = vadd.f32 %v5031, %v5074
        %v5080 = vadd.f32 %v5032, %v5076
        %s5081 = sld [smem:[#allocation3 + $0x182]]
        %v5082 = vstv %s5081
        %v5083 = vmul.f32 %v5082, %v5013
        %v5084 = vmul.f32 %v5082, %v5014
        %5087 = vrot.lane.b32.xlu0 %v5083, 125
        %v5088 = vpop.permute.xlu0 %5087
        %5089 = vrot.lane.b32.xlu0 %v5084, 125
        %v5090 = vpop.permute.xlu0 %5089
        %v5093 = vadd.f32 %v5037, %v5088
        %v5094 = vadd.f32 %v5038, %v5090
        %s5095 = sld [smem:[#allocation3 + $0x5d]]
        %v5096 = vstv %s5095
        %v5097 = vmul.f32 %v5096, %v5013
        %v5098 = vmul.f32 %v5096, %v5014
        %5101 = vrot.lane.b32.xlu0 %v5097, 122
        %v5102 = vpop.permute.xlu0 %5101
        %5103 = vrot.lane.b32.xlu0 %v5098, 122
        %v5104 = vpop.permute.xlu0 %5103
        %v5107 = vadd.f32 %v5051, %v5102
        %v5108 = vadd.f32 %v5052, %v5104
        %s5109 = sld [smem:[#allocation3 + $0xbf]]
        %v5110 = vstv %s5109
        %v5111 = vmul.f32 %v5110, %v5013
        %v5112 = vmul.f32 %v5110, %v5014
        %5115 = vrot.lane.b32.xlu0 %v5111, 122
        %v5116 = vpop.permute.xlu0 %5115
        %5117 = vrot.lane.b32.xlu0 %v5112, 122
        %v5118 = vpop.permute.xlu0 %5117
        %v5121 = vadd.f32 %v5065, %v5116
        %v5122 = vadd.f32 %v5066, %v5118
        %s5123 = sld [smem:[#allocation3 + $0x121]]
        %v5124 = vstv %s5123
        %v5125 = vmul.f32 %v5124, %v5013
        %v5126 = vmul.f32 %v5124, %v5014
        %5129 = vrot.lane.b32.xlu0 %v5125, 122
        %v5130 = vpop.permute.xlu0 %5129
        %5131 = vrot.lane.b32.xlu0 %v5126, 122
        %v5132 = vpop.permute.xlu0 %5131
        %v5135 = vadd.f32 %v5079, %v5130
        %v5136 = vadd.f32 %v5080, %v5132
        %s5137 = sld [smem:[#allocation3 + $0x183]]
        %v5138 = vstv %s5137
        %v5139 = vmul.f32 %v5138, %v5013
        %v5140 = vmul.f32 %v5138, %v5014
        %5143 = vrot.lane.b32.xlu0 %v5139, 122
        %v5144 = vpop.permute.xlu0 %5143
        %5145 = vrot.lane.b32.xlu0 %v5140, 122
        %v5146 = vpop.permute.xlu0 %5145
        %v5149 = vadd.f32 %v5093, %v5144
        %v5150 = vadd.f32 %v5094, %v5146
        %s5151 = sld [smem:[#allocation3 + $0x5e]]
        %v5152 = vstv %s5151
        %v5153 = vmul.f32 %v5152, %v5013
        %v5154 = vmul.f32 %v5152, %v5014
        %5157 = vrot.lane.b32.xlu0 %v5153, 119
        %v5158 = vpop.permute.xlu0 %5157
        %5159 = vrot.lane.b32.xlu0 %v5154, 119
        %v5160 = vpop.permute.xlu0 %5159
        %v5163 = vadd.f32 %v5107, %v5158
        %v5164 = vadd.f32 %v5108, %v5160
        %s5165 = sld [smem:[#allocation3 + $0xc0]]
        %v5166 = vstv %s5165
        %v5167 = vmul.f32 %v5166, %v5013
        %v5168 = vmul.f32 %v5166, %v5014
        %5171 = vrot.lane.b32.xlu0 %v5167, 119
        %v5172 = vpop.permute.xlu0 %5171
        %5173 = vrot.lane.b32.xlu0 %v5168, 119
        %v5174 = vpop.permute.xlu0 %5173
        %v5177 = vadd.f32 %v5121, %v5172
        %v5178 = vadd.f32 %v5122, %v5174
        %s5179 = sld [smem:[#allocation3 + $0x122]]
        %v5180 = vstv %s5179
        %v5181 = vmul.f32 %v5180, %v5013
        %v5182 = vmul.f32 %v5180, %v5014
        %5185 = vrot.lane.b32.xlu0 %v5181, 119
        %v5186 = vpop.permute.xlu0 %5185
        %5187 = vrot.lane.b32.xlu0 %v5182, 119
        %v5188 = vpop.permute.xlu0 %5187
        %v5191 = vadd.f32 %v5135, %v5186
        %v5192 = vadd.f32 %v5136, %v5188
        %s5193 = sld [smem:[#allocation3 + $0x184]]
        %v5194 = vstv %s5193
        %v5195 = vmul.f32 %v5194, %v5013
        %v5196 = vmul.f32 %v5194, %v5014
        %5199 = vrot.lane.b32.xlu0 %v5195, 119
        %v5200 = vpop.permute.xlu0 %5199
        %5201 = vrot.lane.b32.xlu0 %v5196, 119
        %v5202 = vpop.permute.xlu0 %5201
        %v5205 = vadd.f32 %v5149, %v5200
        %v5206 = vadd.f32 %v5150, %v5202
        %s5207 = sld [smem:[#allocation3 + $0x5f]]
        %v5208 = vstv %s5207
        %v5209 = vmul.f32 %v5208, %v5013
        %v5210 = vmul.f32 %v5208, %v5014
        %5213 = vrot.lane.b32.xlu0 %v5209, 116
        %v5214 = vpop.permute.xlu0 %5213
        %5215 = vrot.lane.b32.xlu0 %v5210, 116
        %v5216 = vpop.permute.xlu0 %5215
        %v5219 = vadd.f32 %v5163, %v5214
        %v5220 = vadd.f32 %v5164, %v5216
        %s5221 = sld [smem:[#allocation3 + $0xc1]]
        %v5222 = vstv %s5221
        %v5223 = vmul.f32 %v5222, %v5013
        %v5224 = vmul.f32 %v5222, %v5014
        %5227 = vrot.lane.b32.xlu0 %v5223, 116
        %v5228 = vpop.permute.xlu0 %5227
        %5229 = vrot.lane.b32.xlu0 %v5224, 116
        %v5230 = vpop.permute.xlu0 %5229
        %v5233 = vadd.f32 %v5177, %v5228
        %v5234 = vadd.f32 %v5178, %v5230
        %s5235 = sld [smem:[#allocation3 + $0x123]]
        %v5236 = vstv %s5235
        %v5237 = vmul.f32 %v5236, %v5013
        %v5238 = vmul.f32 %v5236, %v5014
        %5241 = vrot.lane.b32.xlu0 %v5237, 116
        %v5242 = vpop.permute.xlu0 %5241
        %5243 = vrot.lane.b32.xlu0 %v5238, 116
        %v5244 = vpop.permute.xlu0 %5243
        %v5247 = vadd.f32 %v5191, %v5242
        %v5248 = vadd.f32 %v5192, %v5244
        %s5249 = sld [smem:[#allocation3 + $0x185]]
        %v5250 = vstv %s5249
        %v5251 = vmul.f32 %v5250, %v5013
        %v5252 = vmul.f32 %v5250, %v5014
        %5255 = vrot.lane.b32.xlu0 %v5251, 116
        %v5256 = vpop.permute.xlu0 %5255
        %5257 = vrot.lane.b32.xlu0 %v5252, 116
        %v5258 = vpop.permute.xlu0 %5257
        %v5261 = vadd.f32 %v5205, %v5256
        %v5262 = vadd.f32 %v5206, %v5258
        %s5263 = sld [smem:[#allocation3 + $0x60]]
        %v5264 = vstv %s5263
        %v5265 = vmul.f32 %v5264, %v5013
        %v5266 = vmul.f32 %v5264, %v5014
        %5269 = vrot.lane.b32.xlu0 %v5265, 113
        %v5270 = vpop.permute.xlu0 %5269
        %5271 = vrot.lane.b32.xlu0 %v5266, 113
        %v5272 = vpop.permute.xlu0 %5271
        %v5275 = vadd.f32 %v5219, %v5270
        %v5276 = vadd.f32 %v5220, %v5272
        %s5277 = sld [smem:[#allocation3 + $0xc2]]
        %v5278 = vstv %s5277
        %v5279 = vmul.f32 %v5278, %v5013
        %v5280 = vmul.f32 %v5278, %v5014
        %5283 = vrot.lane.b32.xlu0 %v5279, 113
        %v5284 = vpop.permute.xlu0 %5283
        %5285 = vrot.lane.b32.xlu0 %v5280, 113
        %v5286 = vpop.permute.xlu0 %5285
        %v5289 = vadd.f32 %v5233, %v5284
        %v5290 = vadd.f32 %v5234, %v5286
        %s5291 = sld [smem:[#allocation3 + $0x124]]
        %v5292 = vstv %s5291
        %v5293 = vmul.f32 %v5292, %v5013
        %v5294 = vmul.f32 %v5292, %v5014
        %5297 = vrot.lane.b32.xlu0 %v5293, 113
        %v5298 = vpop.permute.xlu0 %5297
        %5299 = vrot.lane.b32.xlu0 %v5294, 113
        %v5300 = vpop.permute.xlu0 %5299
        %v5303 = vadd.f32 %v5247, %v5298
        %v5304 = vadd.f32 %v5248, %v5300
        %s5305 = sld [smem:[#allocation3 + $0x186]]
        %v5306 = vstv %s5305
        %v5307 = vmul.f32 %v5306, %v5013
        %v5308 = vmul.f32 %v5306, %v5014
        %5311 = vrot.lane.b32.xlu0 %v5307, 113
        %v5312 = vpop.permute.xlu0 %5311
        %5313 = vrot.lane.b32.xlu0 %v5308, 113
        %v5314 = vpop.permute.xlu0 %5313
        %v5317 = vadd.f32 %v5261, %v5312
        %v5318 = vadd.f32 %v5262, %v5314
        %s5319 = sld [smem:[#allocation3 + $0x61]]
        %v5320 = vstv %s5319
        %v5321 = vmul.f32 %v5320, %v5013
        %v5322 = vmul.f32 %v5320, %v5014
        %5325 = vrot.lane.b32.xlu0 %v5321, 110
        %v5326 = vpop.permute.xlu0 %5325
        %5327 = vrot.lane.b32.xlu0 %v5322, 110
        %v5328 = vpop.permute.xlu0 %5327
        %v5331 = vadd.f32 %v5275, %v5326
        %v5332 = vadd.f32 %v5276, %v5328
        %s5333 = sld [smem:[#allocation3 + $0xc3]]
        %v5334 = vstv %s5333
        %v5335 = vmul.f32 %v5334, %v5013
        %v5336 = vmul.f32 %v5334, %v5014
        %5339 = vrot.lane.b32.xlu0 %v5335, 110
        %v5340 = vpop.permute.xlu0 %5339
        %5341 = vrot.lane.b32.xlu0 %v5336, 110
        %v5342 = vpop.permute.xlu0 %5341
        %v5345 = vadd.f32 %v5289, %v5340
        %v5346 = vadd.f32 %v5290, %v5342
        %s5347 = sld [smem:[#allocation3 + $0x125]]
        %v5348 = vstv %s5347
        %v5349 = vmul.f32 %v5348, %v5013
        %v5350 = vmul.f32 %v5348, %v5014
        %5353 = vrot.lane.b32.xlu0 %v5349, 110
        %v5354 = vpop.permute.xlu0 %5353
        %5355 = vrot.lane.b32.xlu0 %v5350, 110
        %v5356 = vpop.permute.xlu0 %5355
        %v5359 = vadd.f32 %v5303, %v5354
        %v5360 = vadd.f32 %v5304, %v5356
        %s5361 = sld [smem:[#allocation3 + $0x187]]
        %v5362 = vstv %s5361
        %v5363 = vmul.f32 %v5362, %v5013
        %v5364 = vmul.f32 %v5362, %v5014
        %5367 = vrot.lane.b32.xlu0 %v5363, 110
        %v5368 = vpop.permute.xlu0 %5367
        %5369 = vrot.lane.b32.xlu0 %v5364, 110
        %v5370 = vpop.permute.xlu0 %5369
        %v5373 = vadd.f32 %v5317, %v5368
        %v5374 = vadd.f32 %v5318, %v5370
        %v5375 = vxor.u32 %v5331, 2147483648
        %v5376 = vxor.u32 %v5332, 2147483648
        %v5377 = vmul.f32 %v5375, 1.442695
        %v5378 = vpow.pop %v5377
        %v5379 = vmul.f32 %v5376, 1.442695
        %v5380 = vpow.pop %v5379
        %v5381 = vadd.f32 %v5378, 1.0
        %v5382 = vadd.f32 %v5380, 1.0
        %v5383 = vrcp.pop %v5381
        %v5384 = vmul.f32 %v5381, %v5383
        %v5385 = vsub.f32 1.0, %v5384
        %v5386 = vmul.f32 %v5383, %v5385
        %v5387 = vadd.f32 %v5383, %v5386
        %vm5388 = vweird.f32 %v5381
        %vm5389 = vweird.f32 %v5383
        %vm5390 = vmor %vm5388, %vm5389
        %v5391 = vsel %vm5390, %v5383, %v5387
        %v5392 = vand.u32 2147483647, %v5381
        %vm5393 = vcmp.eq.f32.partialorder %v5392, 8.507059e+37
        %v5394 = vand.u32 %v5381, 2147483648
        %v5395 = vor.u32 1.1754944e-38, %v5394
        %v5396 = vsel %vm5393, %v5395, %v5391
        %v5397 = vmul.f32 1.0, %v5396
        %v5398 = vrcp.pop %v5382
        %v5399 = vmul.f32 %v5382, %v5398
        %v5400 = vsub.f32 1.0, %v5399
        %v5401 = vmul.f32 %v5398, %v5400
        %v5402 = vadd.f32 %v5398, %v5401
        %vm5403 = vweird.f32 %v5382
        %vm5404 = vweird.f32 %v5398
        %vm5405 = vmor %vm5403, %vm5404
        %v5406 = vsel %vm5405, %v5398, %v5402
        %v5407 = vand.u32 2147483647, %v5382
        %vm5408 = vcmp.eq.f32.partialorder %v5407, 8.507059e+37
        %v5409 = vand.u32 %v5382, 2147483648
        %v5410 = vor.u32 1.1754944e-38, %v5409
        %v5411 = vsel %vm5408, %v5410, %v5406
        %v5412 = vmul.f32 1.0, %v5411
        %5413 = vst.msk [vmem:[%s217] sm:$0xff] %vm226, %v5397
        %5414 = vst.msk [vmem:[%s217 + $0x8] sm:$0xff] %vm226, %v5412
        %v5415 = vxor.u32 %v5345, 2147483648
        %v5416 = vxor.u32 %v5346, 2147483648
        %v5417 = vmul.f32 %v5415, 1.442695
        %v5418 = vpow.pop %v5417
        %v5419 = vmul.f32 %v5416, 1.442695
        %v5420 = vpow.pop %v5419
        %v5421 = vadd.f32 %v5418, 1.0
        %v5422 = vadd.f32 %v5420, 1.0
        %v5423 = vrcp.pop %v5421
        %v5424 = vmul.f32 %v5421, %v5423
        %v5425 = vsub.f32 1.0, %v5424
        %v5426 = vmul.f32 %v5423, %v5425
        %v5427 = vadd.f32 %v5423, %v5426
        %vm5428 = vweird.f32 %v5421
        %vm5429 = vweird.f32 %v5423
        %vm5430 = vmor %vm5428, %vm5429
        %v5431 = vsel %vm5430, %v5423, %v5427
        %v5432 = vand.u32 2147483647, %v5421
        %vm5433 = vcmp.eq.f32.partialorder %v5432, 8.507059e+37
        %v5434 = vand.u32 %v5421, 2147483648
        %v5435 = vor.u32 1.1754944e-38, %v5434
        %v5436 = vsel %vm5433, %v5435, %v5431
        %v5437 = vmul.f32 1.0, %v5436
        %v5438 = vrcp.pop %v5422
        %v5439 = vmul.f32 %v5422, %v5438
        %v5440 = vsub.f32 1.0, %v5439
        %v5441 = vmul.f32 %v5438, %v5440
        %v5442 = vadd.f32 %v5438, %v5441
        %vm5443 = vweird.f32 %v5422
        %vm5444 = vweird.f32 %v5438
        %vm5445 = vmor %vm5443, %vm5444
        %v5446 = vsel %vm5445, %v5438, %v5442
        %v5447 = vand.u32 2147483647, %v5422
        %vm5448 = vcmp.eq.f32.partialorder %v5447, 8.507059e+37
        %v5449 = vand.u32 %v5422, 2147483648
        %v5450 = vor.u32 1.1754944e-38, %v5449
        %v5451 = vsel %vm5448, %v5450, %v5446
        %v5452 = vmul.f32 1.0, %v5451
        %s5453 = scalar_lea.vmem %s217, 16 [#allocation10]
        %5454 = vst.msk [vmem:[%s5453] sm:$0xff] %vm226, %v5437
        %5455 = vst.msk [vmem:[%s5453 + $0x8] sm:$0xff] %vm226, %v5452
        %v5456 = vxor.u32 %v5359, 2147483648
        %v5457 = vxor.u32 %v5360, 2147483648
        %v5458 = vmul.f32 %v5456, 1.442695
        %v5459 = vpow.pop %v5458
        %v5460 = vmul.f32 %v5457, 1.442695
        %v5461 = vpow.pop %v5460
        %v5462 = vadd.f32 %v5459, 1.0
        %v5463 = vadd.f32 %v5461, 1.0
        %v5464 = vrcp.pop %v5462
        %v5465 = vmul.f32 %v5462, %v5464
        %v5466 = vsub.f32 1.0, %v5465
        %v5467 = vmul.f32 %v5464, %v5466
        %v5468 = vadd.f32 %v5464, %v5467
        %vm5469 = vweird.f32 %v5462
        %vm5470 = vweird.f32 %v5464
        %vm5471 = vmor %vm5469, %vm5470
        %v5472 = vsel %vm5471, %v5464, %v5468
        %v5473 = vand.u32 2147483647, %v5462
        %vm5474 = vcmp.eq.f32.partialorder %v5473, 8.507059e+37
        %v5475 = vand.u32 %v5462, 2147483648
        %v5476 = vor.u32 1.1754944e-38, %v5475
        %v5477 = vsel %vm5474, %v5476, %v5472
        %v5478 = vmul.f32 1.0, %v5477
        %v5479 = vrcp.pop %v5463
        %v5480 = vmul.f32 %v5463, %v5479
        %v5481 = vsub.f32 1.0, %v5480
        %v5482 = vmul.f32 %v5479, %v5481
        %v5483 = vadd.f32 %v5479, %v5482
        %vm5484 = vweird.f32 %v5463
        %vm5485 = vweird.f32 %v5479
        %vm5486 = vmor %vm5484, %vm5485
        %v5487 = vsel %vm5486, %v5479, %v5483
        %v5488 = vand.u32 2147483647, %v5463
        %vm5489 = vcmp.eq.f32.partialorder %v5488, 8.507059e+37
        %v5490 = vand.u32 %v5463, 2147483648
        %v5491 = vor.u32 1.1754944e-38, %v5490
        %v5492 = vsel %vm5489, %v5491, %v5487
        %v5493 = vmul.f32 1.0, %v5492
        %s5494 = scalar_lea.vmem %s217, 32 [#allocation10]
        %5495 = vst.msk [vmem:[%s5494] sm:$0xff] %vm226, %v5478
        %5496 = vst.msk [vmem:[%s5494 + $0x8] sm:$0xff] %vm226, %v5493
        %v5497 = vxor.u32 %v5373, 2147483648
        %v5498 = vxor.u32 %v5374, 2147483648
        %v5499 = vmul.f32 %v5497, 1.442695
        %v5500 = vpow.pop %v5499
        %v5501 = vmul.f32 %v5498, 1.442695
        %v5502 = vpow.pop %v5501
        %v5503 = vadd.f32 %v5500, 1.0
        %v5504 = vadd.f32 %v5502, 1.0
        %v5505 = vrcp.pop %v5503
        %v5506 = vmul.f32 %v5503, %v5505
        %v5507 = vsub.f32 1.0, %v5506
        %v5508 = vmul.f32 %v5505, %v5507
        %v5509 = vadd.f32 %v5505, %v5508
        %vm5510 = vweird.f32 %v5503
        %vm5511 = vweird.f32 %v5505
        %vm5512 = vmor %vm5510, %vm5511
        %v5513 = vsel %vm5512, %v5505, %v5509
        %v5514 = vand.u32 2147483647, %v5503
        %vm5515 = vcmp.eq.f32.partialorder %v5514, 8.507059e+37
        %v5516 = vand.u32 %v5503, 2147483648
        %v5517 = vor.u32 1.1754944e-38, %v5516
        %v5518 = vsel %vm5515, %v5517, %v5513
        %v5519 = vmul.f32 1.0, %v5518
        %v5520 = vrcp.pop %v5504
        %v5521 = vmul.f32 %v5504, %v5520
        %v5522 = vsub.f32 1.0, %v5521
        %v5523 = vmul.f32 %v5520, %v5522
        %v5524 = vadd.f32 %v5520, %v5523
        %vm5525 = vweird.f32 %v5504
        %vm5526 = vweird.f32 %v5520
        %vm5527 = vmor %vm5525, %vm5526
        %v5528 = vsel %vm5527, %v5520, %v5524
        %v5529 = vand.u32 2147483647, %v5504
        %vm5530 = vcmp.eq.f32.partialorder %v5529, 8.507059e+37
        %v5531 = vand.u32 %v5504, 2147483648
        %v5532 = vor.u32 1.1754944e-38, %v5531
        %v5533 = vsel %vm5530, %v5532, %v5528
        %v5534 = vmul.f32 1.0, %v5533
        %s5535 = scalar_lea.vmem %s217, 48 [#allocation10]
        %5536 = vst.msk [vmem:[%s5535] sm:$0xff] %vm226, %v5519
        %5537 = vst.msk [vmem:[%s5535 + $0x8] sm:$0xff] %vm226, %v5534
        %s5538 = sand.u32 %s98, 1
        %s5539 = scalar_lea.sflag [#allocation5], %s5538
        %s5540 = sand.u32 %s98, 1
        %s5541 = smul.addr %s5540, 64
        %s5542 = scalar_lea.vmem [#allocation10], %s5541
        // Predicated region
        $region45: #{tpu_custom_call.1} parent=31 // pred_check
          %p5543 = pneg %p108
        $region46: #{tpu_custom_call.1} parent=31 // pred_check_branch
          %5545 = sbr.rel (%p5543) target = $region48
        $region47: #{tpu_custom_call.1} parent=31 // pred_region
          %5547 = vsyncadd %s5539, 0
          %s5548 = smul.addr %s22, 8
          %s5549 = smul.addr %s5548, 8
          %s5550 = scalar_lea.hbm %s3, %s5549
          %s5551 = sshll.u32 %s5542, 4
          %s5552 = int_to_ptr.vmem [resolvable:$true] %s5551
          %s5553 = sshll.u32 %s5550, 4
          %s5554 = int_to_ptr.hbm [resolvable:$true] %s5553
          %5559 = dma.vmem_to_hbm [thread:$0]  %s5552, 1024, %s5554, %s5539, 128, 128, 8
        $region48: #{tpu_custom_call.1} parent=31 // pred_fallthru
          _
      $region32: #{tpu_custom_call.1} parent=5 // pred_fallthru
        _
      %p5560 = scmp.le.s32.totalorder 2, %s17
      // Predicated region
      $region49: #{tpu_custom_call.1} parent=5 // pred_check
        %p5561 = pneg %p5560
      $region50: #{tpu_custom_call.1} parent=5 // pred_check_branch
        %5563 = sbr.rel (%p5561) target = $region52
      $region51: #{tpu_custom_call.1} parent=5 // pred_region
        %s5564 = ssub.s32 %s17, 2
        // Predicated region
        $region53: #{tpu_custom_call.1} parent=51 // pred_check
          %p5565 = pneg %p114
        $region54: #{tpu_custom_call.1} parent=51 // pred_check_branch
          %5567 = sbr.rel (%p5565) target = $region56
        $region55: #{tpu_custom_call.1} parent=51 // pred_region
          %s5568 = sand.u32 %s99, 1
          %s5569 = scalar_lea.sflag [#allocation5], %s5568
          %s5570 = sand.u32 %s99, 1
          %s5571 = smul.addr %s5570, 64
          %s5572 = scalar_lea.vmem [#allocation10], %s5571
          %5574 = dma.done %s5569, 1024
        $region56: #{tpu_custom_call.1} parent=51 // pred_fallthru
          _
      $region52: #{tpu_custom_call.1} parent=5 // pred_fallthru
        _
    $region6: #{tpu_custom_call.1} parent=1 // loop_footer
      %s21 = sadd.s32 1, %s17
    $region7: #{tpu_custom_call.1} parent=1 // loop_footer_branch
      %16 = sbr.rel target = $region3
    $region8: #{tpu_custom_call.1} parent=1 // loop_exit
      _
    %5575 = vsyncpa [#allocation4], 1
    %s5576 = scalar_lea.sflag [#allocation4], 1
    %5577 = vsyncpa %s5576, 1
    %5578 = vsyncpa [#allocation5], 1
    %s5579 = scalar_lea.sflag [#allocation5], 1
    %5580 = vsyncpa %s5579, 1
    %5581 = vsyncpa [#allocation6], 1
    %s5582 = scalar_lea.sflag [#allocation6], 1
    %5583 = vsyncpa %s5582, 1
    %5584 = vsyncpa [#allocation8], 1

</llo_original>
